<compile_context>
chip_gen: v7x
topology: tpu7x:2x2x1
jax: 0.10.0
libtpu: 0.0.40
codegen_flags: <defaults>
</compile_context>

<pallas_src>
import jax
import jax.numpy as jnp
from jax.experimental import pallas as pl
from jax.experimental.pallas import tpu as pltpu

L_IN = 16      # input sequence length
L_DS = 8       # length after stride-2 downsample: floor((16+2-3)/2)+1
P_POOL = 4     # AdaptiveMaxPool1d(4) output length
C1 = 32
C2 = 64
OUT_DIM = 10
OUT_PAD = 128  # lane-dense padded output width
BN_EPS = 1e-5

# Parameters consumed by the kernel (the initial conv wi/bi is applied in the
# wrapper so the kernel's first input block is already lane-dense).
KERNEL_PARAMS = ("w1al", "w1ac", "w1ar", "w1ab",
                 "w1bl", "w1bc", "w1br", "w1bb",
                 "wdl", "wdc", "wdr", "wdb",
                 "w2al", "w2ac", "w2ar", "w2ab",
                 "w2bl", "w2bc", "w2br", "w2bb",
                 "wf1", "bf1", "wf2", "bf2")


# --------------------------------- kernel ------------------------------------

def ode_kernel(y0_ref,
               w1al, w1ac, w1ar, b1a,
               w1bl, w1bc, w1br, b1b,
               wdl, wdc, wdr, bd,
               w2al, w2ac, w2ar, b2a,
               w2bl, w2bc, w2br, b2b,
               wf1, bf1, wf2, bf2,
               o_ref, ds_scr, pool_scr):
    tb = o_ref.shape[0]          # samples per grid step
    m1 = tb * L_IN               # rows of stage-1 slabs (16 positions/sample)
    m2 = tb * L_DS               # rows of stage-2 slabs (8 positions/sample)
    bf16 = jnp.bfloat16

    def boundary_masks(m, l):
        # Per-sample boundary masks for a batched (m, C) slab (row = b*l + pos).
        r = jax.lax.broadcasted_iota(jnp.int32, (m, 1), 0)
        lm = r & (l - 1)                              # l is a power of two
        nf = (lm != 0).astype(jnp.float32)            # 0 on first row of sample
        nl = (lm != (l - 1)).astype(jnp.float32)      # 0 on last row of sample
        return nf, nl

    nf1, nl1 = boundary_masks(m1, L_IN)
    nf2, nl2 = boundary_masks(m2, L_DS)

    def conv3(a, wl, wc, wr, b, nf, nl):
        # Conv1d(k=3, pad=1) + folded BN: three accumulating per-tap MXU dots
        # (bf16 operands, f32 accumulate).  Rolls/masks stay in f32.
        sd = jnp.roll(a, 1, axis=0) * nf              # a[l-1] (0 at sample start)
        su = jnp.roll(a, -1, axis=0) * nl             # a[l+1] (0 at sample end)
        acc = jnp.dot(a.astype(bf16), wc[...],
                      preferred_element_type=jnp.float32)
        acc = acc + jnp.dot(sd.astype(bf16), wl[...],
                            preferred_element_type=jnp.float32)
        acc = acc + jnp.dot(su.astype(bf16), wr[...],
                            preferred_element_type=jnp.float32)
        return acc + b[...]

    def odefunc(y, wl, wc, wr, ba, vl, vc, vr, bb, nf, nl):
        # ODEFunc eval: bn2(conv2(dropout(relu(bn1(conv1(y)))))), dropout = id.
        h = jnp.maximum(conv3(y, wl, wc, wr, ba, nf, nl), 0.0)
        return conv3(h, vl, vc, vr, bb, nf, nl)

    def rk4_step(f, y):
        # torchdiffeq fixed-grid 'rk4' (rk4_alt_step_func, 3/8 rule), dt = 1.
        k1 = f(y)
        t1 = k1 * (1.0 / 3.0)
        k2 = f(y + t1)
        k3 = f(y + (k2 - t1))
        k4 = f(y + (k1 - k2 + k3))
        return y + 0.125 * (k1 + 3.0 * (k2 + k3) + k4)

    # initial_conv + BN + ReLU was applied in the wrapper: load the dense y0.
    y = y0_ref[...]                                               # (m1, 32) f32

    # ode_block1: single RK4 step.
    y = rk4_step(lambda z: odefunc(z, w1al, w1ac, w1ar, b1a,
                                   w1bl, w1bc, w1br, b1b, nf1, nl1), y)

    # downsample1: Conv1d(32->64, k3, stride=2, p1) + BN + ReLU.
    # Strided VMEM reads build only the m2 surviving (even) positions.
    ds_scr[...] = y
    even = ds_scr[pl.ds(0, m2, 2), :]                             # y[b, 2p]
    odd = ds_scr[pl.ds(1, m2, 2), :]                              # y[b, 2p+1]
    sdm = jnp.roll(odd, 1, axis=0) * nf2                          # y[b, 2p-1]
    acc = jnp.dot(even.astype(bf16), wdc[...],
                  preferred_element_type=jnp.float32)
    acc = acc + jnp.dot(sdm.astype(bf16), wdl[...],
                        preferred_element_type=jnp.float32)
    acc = acc + jnp.dot(odd.astype(bf16), wdr[...],
                        preferred_element_type=jnp.float32)
    y = jnp.maximum(acc + bd[...], 0.0)                           # (m2, 64)

    # ode_block2: single RK4 step.
    y = rk4_step(lambda z: odefunc(z, w2al, w2ac, w2ar, b2a,
                                   w2bl, w2bc, w2br, b2b, nf2, nl2), y)

    # AdaptiveMaxPool1d(4): pool[p] = max(y[2p], y[2p+1]) -> one roll+max then
    # 4 strided reads (only even rows are read, so no boundary mask needed).
    pool_scr[...] = jnp.maximum(y, jnp.roll(y, -1, axis=0))
    feats = jnp.concatenate(
        [pool_scr[pl.ds(2 * p, tb, L_DS), :] for p in range(P_POOL)],
        axis=-1)                                                  # (tb, 256)

    # fc1 + ReLU (dropout = identity in eval), then fc2 into a lane-dense
    # (tb, 128) output block (columns 10..127 are zero-padded weights/bias).
    h = jnp.maximum(
        jnp.dot(feats.astype(bf16), wf1[...],
                preferred_element_type=jnp.float32) + bf1[...], 0.0)
    o_ref[...] = (jnp.dot(h.astype(bf16), wf2[...],
                          preferred_element_type=jnp.float32) + bf2[...])


# ----------------------------- wrapper / glue ---------------------------------

def _pick_tb(batch):
    # tb = 8 gives M1 = 128 MXU rows (fills v5e's MXU); cap at 16 so the RK4
    # live set stays well inside the 64 physical vregs (no spills), and keep
    # tb <= ceil(batch/2) (rounded to a multiple of 8) so the grid has >= 2
    # "parallel" steps for v7x's two TensorCores whenever batch > 8.
    if batch <= 8:
        return 8
    half = -(-batch // 2)                 # ceil(batch / 2)
    return min(16, ((half + 7) // 8) * 8)


def ode_forward(x, params, tb=None):
    batch, length = x.shape
    assert length == L_IN
    if tb is None:
        tb = _pick_tb(batch)
    b_pad = ((batch + tb - 1) // tb) * tb
    x = x.astype(jnp.float32)
    if b_pad != batch:
        x = jnp.pad(x, ((0, b_pad - batch), (0, 0)))

    # Trivial initial_conv (1->32, k3, p1) + folded BN + ReLU in plain JAX
    # (negligible FLOPs); keeps the kernel's input DMA a dense (tb*16, 32)
    # block instead of a 3-lane tap slab.
    xp = jnp.pad(x, ((0, 0), (1, 1)))
    taps = jnp.stack([xp[:, :L_IN], xp[:, 1:L_IN + 1], xp[:, 2:L_IN + 2]],
                     axis=-1).reshape(b_pad * L_IN, 3)
    y0 = jnp.maximum(taps @ params["wi"] + params["bi"], 0.0)    # (b_pad*16, 32)

    plist = [params[k] for k in KERNEL_PARAMS]
    in_specs = [pl.BlockSpec((tb * L_IN, C1), lambda b: (b, 0))] + [
        pl.BlockSpec(p.shape, lambda b: (0, 0)) for p in plist]

    out = pl.pallas_call(
        ode_kernel,
        out_shape=jax.ShapeDtypeStruct((b_pad, OUT_PAD), jnp.float32),
        grid=(b_pad // tb,),
        in_specs=in_specs,
        out_specs=pl.BlockSpec((tb, OUT_PAD), lambda b: (b, 0)),
        scratch_shapes=[pltpu.VMEM((tb * L_IN, C1), jnp.float32),
                        pltpu.VMEM((tb * L_DS, C2), jnp.float32)],
        compiler_params=pltpu.CompilerParams(
            dimension_semantics=("parallel",)),
    )(y0, *plist)
    return out[:batch, :OUT_DIM]


def init_params(key):
    ks = jax.random.split(key, 10)

    def conv_bn_taps(k, ci, co):
        # PyTorch Conv1d weight (Co, Ci, 3) + eval-mode BN folded, split into
        # per-tap (Ci, Co) matrices: left (x[l-1]), center (x[l]), right (x[l+1]).
        kw, kb = jax.random.split(k)
        w = jax.random.normal(kw, (co, ci, 3), jnp.float32) * 0.2
        b = jax.random.normal(kb, (co,), jnp.float32) * 0.1
        gamma = jnp.ones((co,), jnp.float32)
        beta = jnp.zeros((co,), jnp.float32)
        mean = jnp.zeros((co,), jnp.float32)
        var = jnp.ones((co,), jnp.float32)
        s = gamma / jnp.sqrt(var + BN_EPS)
        t = beta - mean * s
        w_eff = w * s[:, None, None]
        b_eff = (b * s + t).reshape(1, co)
        return w_eff[:, :, 0].T, w_eff[:, :, 1].T, w_eff[:, :, 2].T, b_eff

    p = {}

    # initial_conv + bn: fused-tap (3, 32) f32, applied in the wrapper.
    wl, wc, wr, bi = conv_bn_taps(ks[0], 1, C1)
    p["wi"] = jnp.concatenate([wl, wc, wr], axis=0)               # (3, C1) f32
    p["bi"] = bi                                                  # (1, C1) f32

    def add_conv(prefix, k, ci, co):
        wl, wc, wr, b = conv_bn_taps(k, ci, co)
        p[prefix + "l"] = wl.astype(jnp.bfloat16)
        p[prefix + "c"] = wc.astype(jnp.bfloat16)
        p[prefix + "r"] = wr.astype(jnp.bfloat16)
        p[prefix + "b"] = b                                       # f32 bias

    add_conv("w1a", ks[1], C1, C1)     # ode_block1 conv1+bn1
    add_conv("w1b", ks[2], C1, C1)     # ode_block1 conv2+bn2
    add_conv("wd", ks[3], C1, C2)      # downsample1 conv+bn
    add_conv("w2a", ks[4], C2, C2)     # ode_block2 conv1+bn1
    add_conv("w2b", ks[5], C2, C2)     # ode_block2 conv2+bn2

    # fc1: PyTorch Linear(256, 64) weight (64, 256) over flat index c*4 + p.
    # Kernel feature order is p*64 + c, so repack into one (256, 64) matrix.
    wfc1 = jax.random.normal(ks[6], (64, C2 * P_POOL), jnp.float32) * 0.05
    bfc1 = jax.random.normal(ks[7], (64,), jnp.float32) * 0.05
    w_r = wfc1.reshape(64, C2, P_POOL)                            # [j, c, p]
    p["wf1"] = jnp.transpose(w_r, (2, 1, 0)).reshape(
        P_POOL * C2, 64).astype(jnp.bfloat16)
    p["bf1"] = bfc1.reshape(1, 64)

    # fc2: Linear(64, 10), zero-padded to 128 output lanes for a dense store.
    wfc2 = jax.random.normal(ks[8], (OUT_DIM, 64), jnp.float32) * 0.05
    bfc2 = jax.random.normal(ks[9], (OUT_DIM,), jnp.float32) * 0.05
    wf2 = jnp.zeros((64, OUT_PAD), jnp.float32).at[:, :OUT_DIM].set(wfc2.T)
    bf2 = jnp.zeros((1, OUT_PAD), jnp.float32).at[:, :OUT_DIM].set(bfc2)
    p["wf2"] = wf2.astype(jnp.bfloat16)
    p["bf2"] = bf2
    return p


if __name__ == "__main__":
    key = jax.random.PRNGKey(0)
    kx, kp = jax.random.split(key)
    x = jax.random.normal(kx, (2, L_IN), jnp.float32)   # (batch, seq_len)
    params = init_params(kp)
    out = ode_forward(x, params)
    jax.block_until_ready(out)
    assert out.shape == (2, OUT_DIM)
    assert bool(jnp.all(jnp.isfinite(out)))
    print("KERNEL_OK")
</pallas_src>

<mosaic_0001>
module attributes {stable_mosaic.version = 11 : i64} {
  func.func @ode_kernel(%arg0: i32, %arg1: memref<128x32xf32, #tpu.memory_space<vmem>>, %arg2: memref<32x32xbf16, #tpu.memory_space<vmem>>, %arg3: memref<32x32xbf16, #tpu.memory_space<vmem>>, %arg4: memref<32x32xbf16, #tpu.memory_space<vmem>>, %arg5: memref<1x32xf32, #tpu.memory_space<vmem>>, %arg6: memref<32x32xbf16, #tpu.memory_space<vmem>>, %arg7: memref<32x32xbf16, #tpu.memory_space<vmem>>, %arg8: memref<32x32xbf16, #tpu.memory_space<vmem>>, %arg9: memref<1x32xf32, #tpu.memory_space<vmem>>, %arg10: memref<32x64xbf16, #tpu.memory_space<vmem>>, %arg11: memref<32x64xbf16, #tpu.memory_space<vmem>>, %arg12: memref<32x64xbf16, #tpu.memory_space<vmem>>, %arg13: memref<1x64xf32, #tpu.memory_space<vmem>>, %arg14: memref<64x64xbf16, #tpu.memory_space<vmem>>, %arg15: memref<64x64xbf16, #tpu.memory_space<vmem>>, %arg16: memref<64x64xbf16, #tpu.memory_space<vmem>>, %arg17: memref<1x64xf32, #tpu.memory_space<vmem>>, %arg18: memref<64x64xbf16, #tpu.memory_space<vmem>>, %arg19: memref<64x64xbf16, #tpu.memory_space<vmem>>, %arg20: memref<64x64xbf16, #tpu.memory_space<vmem>>, %arg21: memref<1x64xf32, #tpu.memory_space<vmem>>, %arg22: memref<256x64xbf16, #tpu.memory_space<vmem>>, %arg23: memref<1x64xf32, #tpu.memory_space<vmem>>, %arg24: memref<64x128xbf16, #tpu.memory_space<vmem>>, %arg25: memref<1x128xf32, #tpu.memory_space<vmem>>, %arg26: memref<8x128xf32, #tpu.memory_space<vmem>>, %arg27: memref<128x32xf32, #tpu.memory_space<vmem>>, %arg28: memref<64x64xf32, #tpu.memory_space<vmem>>) attributes {dimension_semantics = [#tpu.dimension_semantics<parallel>], iteration_bounds = array<i64: 1>, scalar_prefetch = 0 : i64, scratch_operands = 2 : i64, tpu.core_type = #tpu.core_type<tc>, window_params = [{transform_indices = @transform_0, window_bounds = array<i64: 128, 32>}, {pipeline_mode = #tpu.pipeline_mode<synchronous>, transform_indices = @transform_1, window_bounds = array<i64: 32, 32>}, {pipeline_mode = #tpu.pipeline_mode<synchronous>, transform_indices = @transform_2, window_bounds = array<i64: 32, 32>}, {pipeline_mode = #tpu.pipeline_mode<synchronous>, transform_indices = @transform_3, window_bounds = array<i64: 32, 32>}, {pipeline_mode = #tpu.pipeline_mode<synchronous>, transform_indices = @transform_4, window_bounds = array<i64: 1, 32>}, {pipeline_mode = #tpu.pipeline_mode<synchronous>, transform_indices = @transform_5, window_bounds = array<i64: 32, 32>}, {pipeline_mode = #tpu.pipeline_mode<synchronous>, transform_indices = @transform_6, window_bounds = array<i64: 32, 32>}, {pipeline_mode = #tpu.pipeline_mode<synchronous>, transform_indices = @transform_7, window_bounds = array<i64: 32, 32>}, {pipeline_mode = #tpu.pipeline_mode<synchronous>, transform_indices = @transform_8, window_bounds = array<i64: 1, 32>}, {pipeline_mode = #tpu.pipeline_mode<synchronous>, transform_indices = @transform_9, window_bounds = array<i64: 32, 64>}, {pipeline_mode = #tpu.pipeline_mode<synchronous>, transform_indices = @transform_10, window_bounds = array<i64: 32, 64>}, {pipeline_mode = #tpu.pipeline_mode<synchronous>, transform_indices = @transform_11, window_bounds = array<i64: 32, 64>}, {pipeline_mode = #tpu.pipeline_mode<synchronous>, transform_indices = @transform_12, window_bounds = array<i64: 1, 64>}, {pipeline_mode = #tpu.pipeline_mode<synchronous>, transform_indices = @transform_13, window_bounds = array<i64: 64, 64>}, {pipeline_mode = #tpu.pipeline_mode<synchronous>, transform_indices = @transform_14, window_bounds = array<i64: 64, 64>}, {pipeline_mode = #tpu.pipeline_mode<synchronous>, transform_indices = @transform_15, window_bounds = array<i64: 64, 64>}, {pipeline_mode = #tpu.pipeline_mode<synchronous>, transform_indices = @transform_16, window_bounds = array<i64: 1, 64>}, {pipeline_mode = #tpu.pipeline_mode<synchronous>, transform_indices = @transform_17, window_bounds = array<i64: 64, 64>}, {pipeline_mode = #tpu.pipeline_mode<synchronous>, transform_indices = @transform_18, window_bounds = array<i64: 64, 64>}, {pipeline_mode = #tpu.pipeline_mode<synchronous>, transform_indices = @transform_19, window_bounds = array<i64: 64, 64>}, {pipeline_mode = #tpu.pipeline_mode<synchronous>, transform_indices = @transform_20, window_bounds = array<i64: 1, 64>}, {pipeline_mode = #tpu.pipeline_mode<synchronous>, transform_indices = @transform_21, window_bounds = array<i64: 256, 64>}, {pipeline_mode = #tpu.pipeline_mode<synchronous>, transform_indices = @transform_22, window_bounds = array<i64: 1, 64>}, {pipeline_mode = #tpu.pipeline_mode<synchronous>, transform_indices = @transform_23, window_bounds = array<i64: 64, 128>}, {pipeline_mode = #tpu.pipeline_mode<synchronous>, transform_indices = @transform_24, window_bounds = array<i64: 1, 128>}, {transform_indices = @transform_25, window_bounds = array<i64: 8, 128>}]} {
    %0 = tpu.iota {dimensions = array<i32: 0>} : vector<128x1xi32>
    %c15_i32 = arith.constant 15 : i32
    %1 = vector.broadcast %c15_i32 : i32 to vector<128x1xi32>
    %2 = arith.andi %0, %1 : vector<128x1xi32>
    %c0_i32 = arith.constant 0 : i32
    %3 = vector.broadcast %c0_i32 : i32 to vector<128x1xi32>
    %4 = arith.cmpi ne, %2, %3 : vector<128x1xi32>
    %5 = arith.extui %4 : vector<128x1xi1> to vector<128x1xi32>
    %6 = arith.sitofp %5 : vector<128x1xi32> to vector<128x1xf32>
    %c15_i32_0 = arith.constant 15 : i32
    %7 = vector.broadcast %c15_i32_0 : i32 to vector<128x1xi32>
    %8 = arith.cmpi ne, %2, %7 : vector<128x1xi32>
    %9 = arith.extui %8 : vector<128x1xi1> to vector<128x1xi32>
    %10 = arith.sitofp %9 : vector<128x1xi32> to vector<128x1xf32>
    %11 = tpu.iota {dimensions = array<i32: 0>} : vector<64x1xi32>
    %c7_i32 = arith.constant 7 : i32
    %12 = vector.broadcast %c7_i32 : i32 to vector<64x1xi32>
    %13 = arith.andi %11, %12 : vector<64x1xi32>
    %c0_i32_1 = arith.constant 0 : i32
    %14 = vector.broadcast %c0_i32_1 : i32 to vector<64x1xi32>
    %15 = arith.cmpi ne, %13, %14 : vector<64x1xi32>
    %16 = arith.extui %15 : vector<64x1xi1> to vector<64x1xi32>
    %17 = arith.sitofp %16 : vector<64x1xi32> to vector<64x1xf32>
    %c7_i32_2 = arith.constant 7 : i32
    %18 = vector.broadcast %c7_i32_2 : i32 to vector<64x1xi32>
    %19 = arith.cmpi ne, %13, %18 : vector<64x1xi32>
    %20 = arith.extui %19 : vector<64x1xi1> to vector<64x1xi32>
    %21 = arith.sitofp %20 : vector<64x1xi32> to vector<64x1xf32>
    %c0 = arith.constant 0 : index
    %c0_3 = arith.constant 0 : index
    %22 = vector.load %arg1[%c0, %c0_3] : memref<128x32xf32, #tpu.memory_space<vmem>>, vector<128x32xf32>
    %23 = vector.extract_strided_slice %22 {offsets = [127, 0], sizes = [1, 32], strides = [1, 1]} : vector<128x32xf32> to vector<1x32xf32>
    %24 = vector.extract_strided_slice %22 {offsets = [0, 0], sizes = [127, 32], strides = [1, 1]} : vector<128x32xf32> to vector<127x32xf32>
    %25 = tpu.concatenate %23, %24 in 0 : vector<1x32xf32>, vector<127x32xf32> -> vector<128x32xf32>
    %26 = vector.broadcast %6 : vector<128x1xf32> to vector<128x32xf32>
    %27 = arith.mulf %25, %26 : vector<128x32xf32>
    %28 = vector.extract_strided_slice %22 {offsets = [1, 0], sizes = [127, 32], strides = [1, 1]} : vector<128x32xf32> to vector<127x32xf32>
    %29 = vector.extract_strided_slice %22 {offsets = [0, 0], sizes = [1, 32], strides = [1, 1]} : vector<128x32xf32> to vector<1x32xf32>
    %30 = tpu.concatenate %28, %29 in 0 : vector<127x32xf32>, vector<1x32xf32> -> vector<128x32xf32>
    %31 = vector.broadcast %10 : vector<128x1xf32> to vector<128x32xf32>
    %32 = arith.mulf %30, %31 : vector<128x32xf32>
    %33 = arith.truncf %22 : vector<128x32xf32> to vector<128x32xbf16>
    %c0_4 = arith.constant 0 : index
    %c0_5 = arith.constant 0 : index
    %34 = vector.load %arg3[%c0_4, %c0_5] : memref<32x32xbf16, #tpu.memory_space<vmem>>, vector<32x32xbf16>
    %cst = arith.constant dense<0.000000e+00> : vector<128x32xf32>
    %35 = tpu.matmul %33, %34, %cst {dimension_numbers = #tpu.dot_dimension_numbers<[1], [0], [0], [1], [0, 0, 1, 1], [], []>} : vector<128x32xbf16>, vector<32x32xbf16>, vector<128x32xf32> -> vector<128x32xf32>
    %36 = arith.truncf %27 : vector<128x32xf32> to vector<128x32xbf16>
    %c0_6 = arith.constant 0 : index
    %c0_7 = arith.constant 0 : index
    %37 = vector.load %arg2[%c0_6, %c0_7] : memref<32x32xbf16, #tpu.memory_space<vmem>>, vector<32x32xbf16>
    %cst_8 = arith.constant dense<0.000000e+00> : vector<128x32xf32>
    %38 = tpu.matmul %36, %37, %cst_8 {dimension_numbers = #tpu.dot_dimension_numbers<[1], [0], [0], [1], [0, 0, 1, 1], [], []>} : vector<128x32xbf16>, vector<32x32xbf16>, vector<128x32xf32> -> vector<128x32xf32>
    %39 = arith.addf %35, %38 : vector<128x32xf32>
    %40 = arith.truncf %32 : vector<128x32xf32> to vector<128x32xbf16>
    %c0_9 = arith.constant 0 : index
    %c0_10 = arith.constant 0 : index
    %41 = vector.load %arg4[%c0_9, %c0_10] : memref<32x32xbf16, #tpu.memory_space<vmem>>, vector<32x32xbf16>
    %cst_11 = arith.constant dense<0.000000e+00> : vector<128x32xf32>
    %42 = tpu.matmul %40, %41, %cst_11 {dimension_numbers = #tpu.dot_dimension_numbers<[1], [0], [0], [1], [0, 0, 1, 1], [], []>} : vector<128x32xbf16>, vector<32x32xbf16>, vector<128x32xf32> -> vector<128x32xf32>
    %43 = arith.addf %39, %42 : vector<128x32xf32>
    %c0_12 = arith.constant 0 : index
    %c0_13 = arith.constant 0 : index
    %44 = vector.load %arg5[%c0_12, %c0_13] : memref<1x32xf32, #tpu.memory_space<vmem>>, vector<1x32xf32>
    %45 = vector.broadcast %44 : vector<1x32xf32> to vector<128x32xf32>
    %46 = arith.addf %43, %45 : vector<128x32xf32>
    %cst_14 = arith.constant 0.000000e+00 : f32
    %47 = vector.broadcast %cst_14 : f32 to vector<128x32xf32>
    %48 = arith.maximumf %46, %47 : vector<128x32xf32>
    %49 = vector.extract_strided_slice %48 {offsets = [127, 0], sizes = [1, 32], strides = [1, 1]} : vector<128x32xf32> to vector<1x32xf32>
    %50 = vector.extract_strided_slice %48 {offsets = [0, 0], sizes = [127, 32], strides = [1, 1]} : vector<128x32xf32> to vector<127x32xf32>
    %51 = tpu.concatenate %49, %50 in 0 : vector<1x32xf32>, vector<127x32xf32> -> vector<128x32xf32>
    %52 = vector.broadcast %6 : vector<128x1xf32> to vector<128x32xf32>
    %53 = arith.mulf %51, %52 : vector<128x32xf32>
    %54 = vector.extract_strided_slice %48 {offsets = [1, 0], sizes = [127, 32], strides = [1, 1]} : vector<128x32xf32> to vector<127x32xf32>
    %55 = vector.extract_strided_slice %48 {offsets = [0, 0], sizes = [1, 32], strides = [1, 1]} : vector<128x32xf32> to vector<1x32xf32>
    %56 = tpu.concatenate %54, %55 in 0 : vector<127x32xf32>, vector<1x32xf32> -> vector<128x32xf32>
    %57 = vector.broadcast %10 : vector<128x1xf32> to vector<128x32xf32>
    %58 = arith.mulf %56, %57 : vector<128x32xf32>
    %59 = arith.truncf %48 : vector<128x32xf32> to vector<128x32xbf16>
    %c0_15 = arith.constant 0 : index
    %c0_16 = arith.constant 0 : index
    %60 = vector.load %arg7[%c0_15, %c0_16] : memref<32x32xbf16, #tpu.memory_space<vmem>>, vector<32x32xbf16>
    %cst_17 = arith.constant dense<0.000000e+00> : vector<128x32xf32>
    %61 = tpu.matmul %59, %60, %cst_17 {dimension_numbers = #tpu.dot_dimension_numbers<[1], [0], [0], [1], [0, 0, 1, 1], [], []>} : vector<128x32xbf16>, vector<32x32xbf16>, vector<128x32xf32> -> vector<128x32xf32>
    %62 = arith.truncf %53 : vector<128x32xf32> to vector<128x32xbf16>
    %c0_18 = arith.constant 0 : index
    %c0_19 = arith.constant 0 : index
    %63 = vector.load %arg6[%c0_18, %c0_19] : memref<32x32xbf16, #tpu.memory_space<vmem>>, vector<32x32xbf16>
    %cst_20 = arith.constant dense<0.000000e+00> : vector<128x32xf32>
    %64 = tpu.matmul %62, %63, %cst_20 {dimension_numbers = #tpu.dot_dimension_numbers<[1], [0], [0], [1], [0, 0, 1, 1], [], []>} : vector<128x32xbf16>, vector<32x32xbf16>, vector<128x32xf32> -> vector<128x32xf32>
    %65 = arith.addf %61, %64 : vector<128x32xf32>
    %66 = arith.truncf %58 : vector<128x32xf32> to vector<128x32xbf16>
    %c0_21 = arith.constant 0 : index
    %c0_22 = arith.constant 0 : index
    %67 = vector.load %arg8[%c0_21, %c0_22] : memref<32x32xbf16, #tpu.memory_space<vmem>>, vector<32x32xbf16>
    %cst_23 = arith.constant dense<0.000000e+00> : vector<128x32xf32>
    %68 = tpu.matmul %66, %67, %cst_23 {dimension_numbers = #tpu.dot_dimension_numbers<[1], [0], [0], [1], [0, 0, 1, 1], [], []>} : vector<128x32xbf16>, vector<32x32xbf16>, vector<128x32xf32> -> vector<128x32xf32>
    %69 = arith.addf %65, %68 : vector<128x32xf32>
    %c0_24 = arith.constant 0 : index
    %c0_25 = arith.constant 0 : index
    %70 = vector.load %arg9[%c0_24, %c0_25] : memref<1x32xf32, #tpu.memory_space<vmem>>, vector<1x32xf32>
    %71 = vector.broadcast %70 : vector<1x32xf32> to vector<128x32xf32>
    %72 = arith.addf %69, %71 : vector<128x32xf32>
    %cst_26 = arith.constant 0.333333343 : f32
    %73 = vector.broadcast %cst_26 : f32 to vector<128x32xf32>
    %74 = arith.mulf %72, %73 : vector<128x32xf32>
    %75 = arith.addf %22, %74 : vector<128x32xf32>
    %76 = vector.extract_strided_slice %75 {offsets = [127, 0], sizes = [1, 32], strides = [1, 1]} : vector<128x32xf32> to vector<1x32xf32>
    %77 = vector.extract_strided_slice %75 {offsets = [0, 0], sizes = [127, 32], strides = [1, 1]} : vector<128x32xf32> to vector<127x32xf32>
    %78 = tpu.concatenate %76, %77 in 0 : vector<1x32xf32>, vector<127x32xf32> -> vector<128x32xf32>
    %79 = vector.broadcast %6 : vector<128x1xf32> to vector<128x32xf32>
    %80 = arith.mulf %78, %79 : vector<128x32xf32>
    %81 = vector.extract_strided_slice %75 {offsets = [1, 0], sizes = [127, 32], strides = [1, 1]} : vector<128x32xf32> to vector<127x32xf32>
    %82 = vector.extract_strided_slice %75 {offsets = [0, 0], sizes = [1, 32], strides = [1, 1]} : vector<128x32xf32> to vector<1x32xf32>
    %83 = tpu.concatenate %81, %82 in 0 : vector<127x32xf32>, vector<1x32xf32> -> vector<128x32xf32>
    %84 = vector.broadcast %10 : vector<128x1xf32> to vector<128x32xf32>
    %85 = arith.mulf %83, %84 : vector<128x32xf32>
    %86 = arith.truncf %75 : vector<128x32xf32> to vector<128x32xbf16>
    %c0_27 = arith.constant 0 : index
    %c0_28 = arith.constant 0 : index
    %87 = vector.load %arg3[%c0_27, %c0_28] : memref<32x32xbf16, #tpu.memory_space<vmem>>, vector<32x32xbf16>
    %cst_29 = arith.constant dense<0.000000e+00> : vector<128x32xf32>
    %88 = tpu.matmul %86, %87, %cst_29 {dimension_numbers = #tpu.dot_dimension_numbers<[1], [0], [0], [1], [0, 0, 1, 1], [], []>} : vector<128x32xbf16>, vector<32x32xbf16>, vector<128x32xf32> -> vector<128x32xf32>
    %89 = arith.truncf %80 : vector<128x32xf32> to vector<128x32xbf16>
    %c0_30 = arith.constant 0 : index
    %c0_31 = arith.constant 0 : index
    %90 = vector.load %arg2[%c0_30, %c0_31] : memref<32x32xbf16, #tpu.memory_space<vmem>>, vector<32x32xbf16>
    %cst_32 = arith.constant dense<0.000000e+00> : vector<128x32xf32>
    %91 = tpu.matmul %89, %90, %cst_32 {dimension_numbers = #tpu.dot_dimension_numbers<[1], [0], [0], [1], [0, 0, 1, 1], [], []>} : vector<128x32xbf16>, vector<32x32xbf16>, vector<128x32xf32> -> vector<128x32xf32>
    %92 = arith.addf %88, %91 : vector<128x32xf32>
    %93 = arith.truncf %85 : vector<128x32xf32> to vector<128x32xbf16>
    %c0_33 = arith.constant 0 : index
    %c0_34 = arith.constant 0 : index
    %94 = vector.load %arg4[%c0_33, %c0_34] : memref<32x32xbf16, #tpu.memory_space<vmem>>, vector<32x32xbf16>
    %cst_35 = arith.constant dense<0.000000e+00> : vector<128x32xf32>
    %95 = tpu.matmul %93, %94, %cst_35 {dimension_numbers = #tpu.dot_dimension_numbers<[1], [0], [0], [1], [0, 0, 1, 1], [], []>} : vector<128x32xbf16>, vector<32x32xbf16>, vector<128x32xf32> -> vector<128x32xf32>
    %96 = arith.addf %92, %95 : vector<128x32xf32>
    %c0_36 = arith.constant 0 : index
    %c0_37 = arith.constant 0 : index
    %97 = vector.load %arg5[%c0_36, %c0_37] : memref<1x32xf32, #tpu.memory_space<vmem>>, vector<1x32xf32>
    %98 = vector.broadcast %97 : vector<1x32xf32> to vector<128x32xf32>
    %99 = arith.addf %96, %98 : vector<128x32xf32>
    %cst_38 = arith.constant 0.000000e+00 : f32
    %100 = vector.broadcast %cst_38 : f32 to vector<128x32xf32>
    %101 = arith.maximumf %99, %100 : vector<128x32xf32>
    %102 = vector.extract_strided_slice %101 {offsets = [127, 0], sizes = [1, 32], strides = [1, 1]} : vector<128x32xf32> to vector<1x32xf32>
    %103 = vector.extract_strided_slice %101 {offsets = [0, 0], sizes = [127, 32], strides = [1, 1]} : vector<128x32xf32> to vector<127x32xf32>
    %104 = tpu.concatenate %102, %103 in 0 : vector<1x32xf32>, vector<127x32xf32> -> vector<128x32xf32>
    %105 = vector.broadcast %6 : vector<128x1xf32> to vector<128x32xf32>
    %106 = arith.mulf %104, %105 : vector<128x32xf32>
    %107 = vector.extract_strided_slice %101 {offsets = [1, 0], sizes = [127, 32], strides = [1, 1]} : vector<128x32xf32> to vector<127x32xf32>
    %108 = vector.extract_strided_slice %101 {offsets = [0, 0], sizes = [1, 32], strides = [1, 1]} : vector<128x32xf32> to vector<1x32xf32>
    %109 = tpu.concatenate %107, %108 in 0 : vector<127x32xf32>, vector<1x32xf32> -> vector<128x32xf32>
    %110 = vector.broadcast %10 : vector<128x1xf32> to vector<128x32xf32>
    %111 = arith.mulf %109, %110 : vector<128x32xf32>
    %112 = arith.truncf %101 : vector<128x32xf32> to vector<128x32xbf16>
    %c0_39 = arith.constant 0 : index
    %c0_40 = arith.constant 0 : index
    %113 = vector.load %arg7[%c0_39, %c0_40] : memref<32x32xbf16, #tpu.memory_space<vmem>>, vector<32x32xbf16>
    %cst_41 = arith.constant dense<0.000000e+00> : vector<128x32xf32>
    %114 = tpu.matmul %112, %113, %cst_41 {dimension_numbers = #tpu.dot_dimension_numbers<[1], [0], [0], [1], [0, 0, 1, 1], [], []>} : vector<128x32xbf16>, vector<32x32xbf16>, vector<128x32xf32> -> vector<128x32xf32>
    %115 = arith.truncf %106 : vector<128x32xf32> to vector<128x32xbf16>
    %c0_42 = arith.constant 0 : index
    %c0_43 = arith.constant 0 : index
    %116 = vector.load %arg6[%c0_42, %c0_43] : memref<32x32xbf16, #tpu.memory_space<vmem>>, vector<32x32xbf16>
    %cst_44 = arith.constant dense<0.000000e+00> : vector<128x32xf32>
    %117 = tpu.matmul %115, %116, %cst_44 {dimension_numbers = #tpu.dot_dimension_numbers<[1], [0], [0], [1], [0, 0, 1, 1], [], []>} : vector<128x32xbf16>, vector<32x32xbf16>, vector<128x32xf32> -> vector<128x32xf32>
    %118 = arith.addf %114, %117 : vector<128x32xf32>
    %119 = arith.truncf %111 : vector<128x32xf32> to vector<128x32xbf16>
    %c0_45 = arith.constant 0 : index
    %c0_46 = arith.constant 0 : index
    %120 = vector.load %arg8[%c0_45, %c0_46] : memref<32x32xbf16, #tpu.memory_space<vmem>>, vector<32x32xbf16>
    %cst_47 = arith.constant dense<0.000000e+00> : vector<128x32xf32>
    %121 = tpu.matmul %119, %120, %cst_47 {dimension_numbers = #tpu.dot_dimension_numbers<[1], [0], [0], [1], [0, 0, 1, 1], [], []>} : vector<128x32xbf16>, vector<32x32xbf16>, vector<128x32xf32> -> vector<128x32xf32>
    %122 = arith.addf %118, %121 : vector<128x32xf32>
    %c0_48 = arith.constant 0 : index
    %c0_49 = arith.constant 0 : index
    %123 = vector.load %arg9[%c0_48, %c0_49] : memref<1x32xf32, #tpu.memory_space<vmem>>, vector<1x32xf32>
    %124 = vector.broadcast %123 : vector<1x32xf32> to vector<128x32xf32>
    %125 = arith.addf %122, %124 : vector<128x32xf32>
    %126 = arith.subf %125, %74 : vector<128x32xf32>
    %127 = arith.addf %22, %126 : vector<128x32xf32>
    %128 = vector.extract_strided_slice %127 {offsets = [127, 0], sizes = [1, 32], strides = [1, 1]} : vector<128x32xf32> to vector<1x32xf32>
    %129 = vector.extract_strided_slice %127 {offsets = [0, 0], sizes = [127, 32], strides = [1, 1]} : vector<128x32xf32> to vector<127x32xf32>
    %130 = tpu.concatenate %128, %129 in 0 : vector<1x32xf32>, vector<127x32xf32> -> vector<128x32xf32>
    %131 = vector.broadcast %6 : vector<128x1xf32> to vector<128x32xf32>
    %132 = arith.mulf %130, %131 : vector<128x32xf32>
    %133 = vector.extract_strided_slice %127 {offsets = [1, 0], sizes = [127, 32], strides = [1, 1]} : vector<128x32xf32> to vector<127x32xf32>
    %134 = vector.extract_strided_slice %127 {offsets = [0, 0], sizes = [1, 32], strides = [1, 1]} : vector<128x32xf32> to vector<1x32xf32>
    %135 = tpu.concatenate %133, %134 in 0 : vector<127x32xf32>, vector<1x32xf32> -> vector<128x32xf32>
    %136 = vector.broadcast %10 : vector<128x1xf32> to vector<128x32xf32>
    %137 = arith.mulf %135, %136 : vector<128x32xf32>
    %138 = arith.truncf %127 : vector<128x32xf32> to vector<128x32xbf16>
    %c0_50 = arith.constant 0 : index
    %c0_51 = arith.constant 0 : index
    %139 = vector.load %arg3[%c0_50, %c0_51] : memref<32x32xbf16, #tpu.memory_space<vmem>>, vector<32x32xbf16>
    %cst_52 = arith.constant dense<0.000000e+00> : vector<128x32xf32>
    %140 = tpu.matmul %138, %139, %cst_52 {dimension_numbers = #tpu.dot_dimension_numbers<[1], [0], [0], [1], [0, 0, 1, 1], [], []>} : vector<128x32xbf16>, vector<32x32xbf16>, vector<128x32xf32> -> vector<128x32xf32>
    %141 = arith.truncf %132 : vector<128x32xf32> to vector<128x32xbf16>
    %c0_53 = arith.constant 0 : index
    %c0_54 = arith.constant 0 : index
    %142 = vector.load %arg2[%c0_53, %c0_54] : memref<32x32xbf16, #tpu.memory_space<vmem>>, vector<32x32xbf16>
    %cst_55 = arith.constant dense<0.000000e+00> : vector<128x32xf32>
    %143 = tpu.matmul %141, %142, %cst_55 {dimension_numbers = #tpu.dot_dimension_numbers<[1], [0], [0], [1], [0, 0, 1, 1], [], []>} : vector<128x32xbf16>, vector<32x32xbf16>, vector<128x32xf32> -> vector<128x32xf32>
    %144 = arith.addf %140, %143 : vector<128x32xf32>
    %145 = arith.truncf %137 : vector<128x32xf32> to vector<128x32xbf16>
    %c0_56 = arith.constant 0 : index
    %c0_57 = arith.constant 0 : index
    %146 = vector.load %arg4[%c0_56, %c0_57] : memref<32x32xbf16, #tpu.memory_space<vmem>>, vector<32x32xbf16>
    %cst_58 = arith.constant dense<0.000000e+00> : vector<128x32xf32>
    %147 = tpu.matmul %145, %146, %cst_58 {dimension_numbers = #tpu.dot_dimension_numbers<[1], [0], [0], [1], [0, 0, 1, 1], [], []>} : vector<128x32xbf16>, vector<32x32xbf16>, vector<128x32xf32> -> vector<128x32xf32>
    %148 = arith.addf %144, %147 : vector<128x32xf32>
    %c0_59 = arith.constant 0 : index
    %c0_60 = arith.constant 0 : index
    %149 = vector.load %arg5[%c0_59, %c0_60] : memref<1x32xf32, #tpu.memory_space<vmem>>, vector<1x32xf32>
    %150 = vector.broadcast %149 : vector<1x32xf32> to vector<128x32xf32>
    %151 = arith.addf %148, %150 : vector<128x32xf32>
    %cst_61 = arith.constant 0.000000e+00 : f32
    %152 = vector.broadcast %cst_61 : f32 to vector<128x32xf32>
    %153 = arith.maximumf %151, %152 : vector<128x32xf32>
    %154 = vector.extract_strided_slice %153 {offsets = [127, 0], sizes = [1, 32], strides = [1, 1]} : vector<128x32xf32> to vector<1x32xf32>
    %155 = vector.extract_strided_slice %153 {offsets = [0, 0], sizes = [127, 32], strides = [1, 1]} : vector<128x32xf32> to vector<127x32xf32>
    %156 = tpu.concatenate %154, %155 in 0 : vector<1x32xf32>, vector<127x32xf32> -> vector<128x32xf32>
    %157 = vector.broadcast %6 : vector<128x1xf32> to vector<128x32xf32>
    %158 = arith.mulf %156, %157 : vector<128x32xf32>
    %159 = vector.extract_strided_slice %153 {offsets = [1, 0], sizes = [127, 32], strides = [1, 1]} : vector<128x32xf32> to vector<127x32xf32>
    %160 = vector.extract_strided_slice %153 {offsets = [0, 0], sizes = [1, 32], strides = [1, 1]} : vector<128x32xf32> to vector<1x32xf32>
    %161 = tpu.concatenate %159, %160 in 0 : vector<127x32xf32>, vector<1x32xf32> -> vector<128x32xf32>
    %162 = vector.broadcast %10 : vector<128x1xf32> to vector<128x32xf32>
    %163 = arith.mulf %161, %162 : vector<128x32xf32>
    %164 = arith.truncf %153 : vector<128x32xf32> to vector<128x32xbf16>
    %c0_62 = arith.constant 0 : index
    %c0_63 = arith.constant 0 : index
    %165 = vector.load %arg7[%c0_62, %c0_63] : memref<32x32xbf16, #tpu.memory_space<vmem>>, vector<32x32xbf16>
    %cst_64 = arith.constant dense<0.000000e+00> : vector<128x32xf32>
    %166 = tpu.matmul %164, %165, %cst_64 {dimension_numbers = #tpu.dot_dimension_numbers<[1], [0], [0], [1], [0, 0, 1, 1], [], []>} : vector<128x32xbf16>, vector<32x32xbf16>, vector<128x32xf32> -> vector<128x32xf32>
    %167 = arith.truncf %158 : vector<128x32xf32> to vector<128x32xbf16>
    %c0_65 = arith.constant 0 : index
    %c0_66 = arith.constant 0 : index
    %168 = vector.load %arg6[%c0_65, %c0_66] : memref<32x32xbf16, #tpu.memory_space<vmem>>, vector<32x32xbf16>
    %cst_67 = arith.constant dense<0.000000e+00> : vector<128x32xf32>
    %169 = tpu.matmul %167, %168, %cst_67 {dimension_numbers = #tpu.dot_dimension_numbers<[1], [0], [0], [1], [0, 0, 1, 1], [], []>} : vector<128x32xbf16>, vector<32x32xbf16>, vector<128x32xf32> -> vector<128x32xf32>
    %170 = arith.addf %166, %169 : vector<128x32xf32>
    %171 = arith.truncf %163 : vector<128x32xf32> to vector<128x32xbf16>
    %c0_68 = arith.constant 0 : index
    %c0_69 = arith.constant 0 : index
    %172 = vector.load %arg8[%c0_68, %c0_69] : memref<32x32xbf16, #tpu.memory_space<vmem>>, vector<32x32xbf16>
    %cst_70 = arith.constant dense<0.000000e+00> : vector<128x32xf32>
    %173 = tpu.matmul %171, %172, %cst_70 {dimension_numbers = #tpu.dot_dimension_numbers<[1], [0], [0], [1], [0, 0, 1, 1], [], []>} : vector<128x32xbf16>, vector<32x32xbf16>, vector<128x32xf32> -> vector<128x32xf32>
    %174 = arith.addf %170, %173 : vector<128x32xf32>
    %c0_71 = arith.constant 0 : index
    %c0_72 = arith.constant 0 : index
    %175 = vector.load %arg9[%c0_71, %c0_72] : memref<1x32xf32, #tpu.memory_space<vmem>>, vector<1x32xf32>
    %176 = vector.broadcast %175 : vector<1x32xf32> to vector<128x32xf32>
    %177 = arith.addf %174, %176 : vector<128x32xf32>
    %178 = arith.subf %72, %125 : vector<128x32xf32>
    %179 = arith.addf %178, %177 : vector<128x32xf32>
    %180 = arith.addf %22, %179 : vector<128x32xf32>
    %181 = vector.extract_strided_slice %180 {offsets = [127, 0], sizes = [1, 32], strides = [1, 1]} : vector<128x32xf32> to vector<1x32xf32>
    %182 = vector.extract_strided_slice %180 {offsets = [0, 0], sizes = [127, 32], strides = [1, 1]} : vector<128x32xf32> to vector<127x32xf32>
    %183 = tpu.concatenate %181, %182 in 0 : vector<1x32xf32>, vector<127x32xf32> -> vector<128x32xf32>
    %184 = vector.broadcast %6 : vector<128x1xf32> to vector<128x32xf32>
    %185 = arith.mulf %183, %184 : vector<128x32xf32>
    %186 = vector.extract_strided_slice %180 {offsets = [1, 0], sizes = [127, 32], strides = [1, 1]} : vector<128x32xf32> to vector<127x32xf32>
    %187 = vector.extract_strided_slice %180 {offsets = [0, 0], sizes = [1, 32], strides = [1, 1]} : vector<128x32xf32> to vector<1x32xf32>
    %188 = tpu.concatenate %186, %187 in 0 : vector<127x32xf32>, vector<1x32xf32> -> vector<128x32xf32>
    %189 = vector.broadcast %10 : vector<128x1xf32> to vector<128x32xf32>
    %190 = arith.mulf %188, %189 : vector<128x32xf32>
    %191 = arith.truncf %180 : vector<128x32xf32> to vector<128x32xbf16>
    %c0_73 = arith.constant 0 : index
    %c0_74 = arith.constant 0 : index
    %192 = vector.load %arg3[%c0_73, %c0_74] : memref<32x32xbf16, #tpu.memory_space<vmem>>, vector<32x32xbf16>
    %cst_75 = arith.constant dense<0.000000e+00> : vector<128x32xf32>
    %193 = tpu.matmul %191, %192, %cst_75 {dimension_numbers = #tpu.dot_dimension_numbers<[1], [0], [0], [1], [0, 0, 1, 1], [], []>} : vector<128x32xbf16>, vector<32x32xbf16>, vector<128x32xf32> -> vector<128x32xf32>
    %194 = arith.truncf %185 : vector<128x32xf32> to vector<128x32xbf16>
    %c0_76 = arith.constant 0 : index
    %c0_77 = arith.constant 0 : index
    %195 = vector.load %arg2[%c0_76, %c0_77] : memref<32x32xbf16, #tpu.memory_space<vmem>>, vector<32x32xbf16>
    %cst_78 = arith.constant dense<0.000000e+00> : vector<128x32xf32>
    %196 = tpu.matmul %194, %195, %cst_78 {dimension_numbers = #tpu.dot_dimension_numbers<[1], [0], [0], [1], [0, 0, 1, 1], [], []>} : vector<128x32xbf16>, vector<32x32xbf16>, vector<128x32xf32> -> vector<128x32xf32>
    %197 = arith.addf %193, %196 : vector<128x32xf32>
    %198 = arith.truncf %190 : vector<128x32xf32> to vector<128x32xbf16>
    %c0_79 = arith.constant 0 : index
    %c0_80 = arith.constant 0 : index
    %199 = vector.load %arg4[%c0_79, %c0_80] : memref<32x32xbf16, #tpu.memory_space<vmem>>, vector<32x32xbf16>
    %cst_81 = arith.constant dense<0.000000e+00> : vector<128x32xf32>
    %200 = tpu.matmul %198, %199, %cst_81 {dimension_numbers = #tpu.dot_dimension_numbers<[1], [0], [0], [1], [0, 0, 1, 1], [], []>} : vector<128x32xbf16>, vector<32x32xbf16>, vector<128x32xf32> -> vector<128x32xf32>
    %201 = arith.addf %197, %200 : vector<128x32xf32>
    %c0_82 = arith.constant 0 : index
    %c0_83 = arith.constant 0 : index
    %202 = vector.load %arg5[%c0_82, %c0_83] : memref<1x32xf32, #tpu.memory_space<vmem>>, vector<1x32xf32>
    %203 = vector.broadcast %202 : vector<1x32xf32> to vector<128x32xf32>
    %204 = arith.addf %201, %203 : vector<128x32xf32>
    %cst_84 = arith.constant 0.000000e+00 : f32
    %205 = vector.broadcast %cst_84 : f32 to vector<128x32xf32>
    %206 = arith.maximumf %204, %205 : vector<128x32xf32>
    %207 = vector.extract_strided_slice %206 {offsets = [127, 0], sizes = [1, 32], strides = [1, 1]} : vector<128x32xf32> to vector<1x32xf32>
    %208 = vector.extract_strided_slice %206 {offsets = [0, 0], sizes = [127, 32], strides = [1, 1]} : vector<128x32xf32> to vector<127x32xf32>
    %209 = tpu.concatenate %207, %208 in 0 : vector<1x32xf32>, vector<127x32xf32> -> vector<128x32xf32>
    %210 = vector.broadcast %6 : vector<128x1xf32> to vector<128x32xf32>
    %211 = arith.mulf %209, %210 : vector<128x32xf32>
    %212 = vector.extract_strided_slice %206 {offsets = [1, 0], sizes = [127, 32], strides = [1, 1]} : vector<128x32xf32> to vector<127x32xf32>
    %213 = vector.extract_strided_slice %206 {offsets = [0, 0], sizes = [1, 32], strides = [1, 1]} : vector<128x32xf32> to vector<1x32xf32>
    %214 = tpu.concatenate %212, %213 in 0 : vector<127x32xf32>, vector<1x32xf32> -> vector<128x32xf32>
    %215 = vector.broadcast %10 : vector<128x1xf32> to vector<128x32xf32>
    %216 = arith.mulf %214, %215 : vector<128x32xf32>
    %217 = arith.truncf %206 : vector<128x32xf32> to vector<128x32xbf16>
    %c0_85 = arith.constant 0 : index
    %c0_86 = arith.constant 0 : index
    %218 = vector.load %arg7[%c0_85, %c0_86] : memref<32x32xbf16, #tpu.memory_space<vmem>>, vector<32x32xbf16>
    %cst_87 = arith.constant dense<0.000000e+00> : vector<128x32xf32>
    %219 = tpu.matmul %217, %218, %cst_87 {dimension_numbers = #tpu.dot_dimension_numbers<[1], [0], [0], [1], [0, 0, 1, 1], [], []>} : vector<128x32xbf16>, vector<32x32xbf16>, vector<128x32xf32> -> vector<128x32xf32>
    %220 = arith.truncf %211 : vector<128x32xf32> to vector<128x32xbf16>
    %c0_88 = arith.constant 0 : index
    %c0_89 = arith.constant 0 : index
    %221 = vector.load %arg6[%c0_88, %c0_89] : memref<32x32xbf16, #tpu.memory_space<vmem>>, vector<32x32xbf16>
    %cst_90 = arith.constant dense<0.000000e+00> : vector<128x32xf32>
    %222 = tpu.matmul %220, %221, %cst_90 {dimension_numbers = #tpu.dot_dimension_numbers<[1], [0], [0], [1], [0, 0, 1, 1], [], []>} : vector<128x32xbf16>, vector<32x32xbf16>, vector<128x32xf32> -> vector<128x32xf32>
    %223 = arith.addf %219, %222 : vector<128x32xf32>
    %224 = arith.truncf %216 : vector<128x32xf32> to vector<128x32xbf16>
    %c0_91 = arith.constant 0 : index
    %c0_92 = arith.constant 0 : index
    %225 = vector.load %arg8[%c0_91, %c0_92] : memref<32x32xbf16, #tpu.memory_space<vmem>>, vector<32x32xbf16>
    %cst_93 = arith.constant dense<0.000000e+00> : vector<128x32xf32>
    %226 = tpu.matmul %224, %225, %cst_93 {dimension_numbers = #tpu.dot_dimension_numbers<[1], [0], [0], [1], [0, 0, 1, 1], [], []>} : vector<128x32xbf16>, vector<32x32xbf16>, vector<128x32xf32> -> vector<128x32xf32>
    %227 = arith.addf %223, %226 : vector<128x32xf32>
    %c0_94 = arith.constant 0 : index
    %c0_95 = arith.constant 0 : index
    %228 = vector.load %arg9[%c0_94, %c0_95] : memref<1x32xf32, #tpu.memory_space<vmem>>, vector<1x32xf32>
    %229 = vector.broadcast %228 : vector<1x32xf32> to vector<128x32xf32>
    %230 = arith.addf %227, %229 : vector<128x32xf32>
    %231 = arith.addf %125, %177 : vector<128x32xf32>
    %cst_96 = arith.constant 3.000000e+00 : f32
    %232 = vector.broadcast %cst_96 : f32 to vector<128x32xf32>
    %233 = arith.mulf %232, %231 : vector<128x32xf32>
    %234 = arith.addf %72, %233 : vector<128x32xf32>
    %235 = arith.addf %234, %230 : vector<128x32xf32>
    %cst_97 = arith.constant 1.250000e-01 : f32
    %236 = vector.broadcast %cst_97 : f32 to vector<128x32xf32>
    %237 = arith.mulf %236, %235 : vector<128x32xf32>
    %238 = arith.addf %22, %237 : vector<128x32xf32>
    %c0_98 = arith.constant 0 : index
    %c0_99 = arith.constant 0 : index
    %239 = vector.load %arg27[%c0_98, %c0_99] : memref<128x32xf32, #tpu.memory_space<vmem>>, vector<128x32xf32>
    tpu.vector_store %arg27[%c0_98, %c0_99], %238 {strides = array<i32>} : memref<128x32xf32, #tpu.memory_space<vmem>>, vector<128x32xf32>,
    %c0_100 = arith.constant 0 : index
    %c0_101 = arith.constant 0 : index
    %240 = tpu.strided_load %arg27[%c0_100, %c0_101] {strides = array<i32: 2, 1>} : memref<128x32xf32, #tpu.memory_space<vmem>>, vector<64x32xf32>
    %c1 = arith.constant 1 : index
    %c0_102 = arith.constant 0 : index
    %241 = tpu.strided_load %arg27[%c1, %c0_102] {strides = array<i32: 2, 1>} : memref<128x32xf32, #tpu.memory_space<vmem>>, vector<64x32xf32>
    %242 = vector.extract_strided_slice %241 {offsets = [63, 0], sizes = [1, 32], strides = [1, 1]} : vector<64x32xf32> to vector<1x32xf32>
    %243 = vector.extract_strided_slice %241 {offsets = [0, 0], sizes = [63, 32], strides = [1, 1]} : vector<64x32xf32> to vector<63x32xf32>
    %244 = tpu.concatenate %242, %243 in 0 : vector<1x32xf32>, vector<63x32xf32> -> vector<64x32xf32>
    %245 = vector.broadcast %17 : vector<64x1xf32> to vector<64x32xf32>
    %246 = arith.mulf %244, %245 : vector<64x32xf32>
    %247 = arith.truncf %240 : vector<64x32xf32> to vector<64x32xbf16>
    %c0_103 = arith.constant 0 : index
    %c0_104 = arith.constant 0 : index
    %248 = vector.load %arg11[%c0_103, %c0_104] : memref<32x64xbf16, #tpu.memory_space<vmem>>, vector<32x64xbf16>
    %cst_105 = arith.constant dense<0.000000e+00> : vector<64x64xf32>
    %249 = tpu.matmul %247, %248, %cst_105 {dimension_numbers = #tpu.dot_dimension_numbers<[1], [0], [0], [1], [0, 0, 1, 1], [], []>} : vector<64x32xbf16>, vector<32x64xbf16>, vector<64x64xf32> -> vector<64x64xf32>
    %250 = arith.truncf %246 : vector<64x32xf32> to vector<64x32xbf16>
    %c0_106 = arith.constant 0 : index
    %c0_107 = arith.constant 0 : index
    %251 = vector.load %arg10[%c0_106, %c0_107] : memref<32x64xbf16, #tpu.memory_space<vmem>>, vector<32x64xbf16>
    %cst_108 = arith.constant dense<0.000000e+00> : vector<64x64xf32>
    %252 = tpu.matmul %250, %251, %cst_108 {dimension_numbers = #tpu.dot_dimension_numbers<[1], [0], [0], [1], [0, 0, 1, 1], [], []>} : vector<64x32xbf16>, vector<32x64xbf16>, vector<64x64xf32> -> vector<64x64xf32>
    %253 = arith.addf %249, %252 : vector<64x64xf32>
    %254 = arith.truncf %241 : vector<64x32xf32> to vector<64x32xbf16>
    %c0_109 = arith.constant 0 : index
    %c0_110 = arith.constant 0 : index
    %255 = vector.load %arg12[%c0_109, %c0_110] : memref<32x64xbf16, #tpu.memory_space<vmem>>, vector<32x64xbf16>
    %cst_111 = arith.constant dense<0.000000e+00> : vector<64x64xf32>
    %256 = tpu.matmul %254, %255, %cst_111 {dimension_numbers = #tpu.dot_dimension_numbers<[1], [0], [0], [1], [0, 0, 1, 1], [], []>} : vector<64x32xbf16>, vector<32x64xbf16>, vector<64x64xf32> -> vector<64x64xf32>
    %257 = arith.addf %253, %256 : vector<64x64xf32>
    %c0_112 = arith.constant 0 : index
    %c0_113 = arith.constant 0 : index
    %258 = vector.load %arg13[%c0_112, %c0_113] : memref<1x64xf32, #tpu.memory_space<vmem>>, vector<1x64xf32>
    %259 = vector.broadcast %258 : vector<1x64xf32> to vector<64x64xf32>
    %260 = arith.addf %257, %259 : vector<64x64xf32>
    %cst_114 = arith.constant 0.000000e+00 : f32
    %261 = vector.broadcast %cst_114 : f32 to vector<64x64xf32>
    %262 = arith.maximumf %260, %261 : vector<64x64xf32>
    %263 = vector.extract_strided_slice %262 {offsets = [63, 0], sizes = [1, 64], strides = [1, 1]} : vector<64x64xf32> to vector<1x64xf32>
    %264 = vector.extract_strided_slice %262 {offsets = [0, 0], sizes = [63, 64], strides = [1, 1]} : vector<64x64xf32> to vector<63x64xf32>
    %265 = tpu.concatenate %263, %264 in 0 : vector<1x64xf32>, vector<63x64xf32> -> vector<64x64xf32>
    %266 = vector.broadcast %17 : vector<64x1xf32> to vector<64x64xf32>
    %267 = arith.mulf %265, %266 : vector<64x64xf32>
    %268 = vector.extract_strided_slice %262 {offsets = [1, 0], sizes = [63, 64], strides = [1, 1]} : vector<64x64xf32> to vector<63x64xf32>
    %269 = vector.extract_strided_slice %262 {offsets = [0, 0], sizes = [1, 64], strides = [1, 1]} : vector<64x64xf32> to vector<1x64xf32>
    %270 = tpu.concatenate %268, %269 in 0 : vector<63x64xf32>, vector<1x64xf32> -> vector<64x64xf32>
    %271 = vector.broadcast %21 : vector<64x1xf32> to vector<64x64xf32>
    %272 = arith.mulf %270, %271 : vector<64x64xf32>
    %273 = arith.truncf %262 : vector<64x64xf32> to vector<64x64xbf16>
    %c0_115 = arith.constant 0 : index
    %c0_116 = arith.constant 0 : index
    %274 = vector.load %arg15[%c0_115, %c0_116] : memref<64x64xbf16, #tpu.memory_space<vmem>>, vector<64x64xbf16>
    %cst_117 = arith.constant dense<0.000000e+00> : vector<64x64xf32>
    %275 = tpu.matmul %273, %274, %cst_117 {dimension_numbers = #tpu.dot_dimension_numbers<[1], [0], [0], [1], [0, 0, 1, 1], [], []>} : vector<64x64xbf16>, vector<64x64xbf16>, vector<64x64xf32> -> vector<64x64xf32>
    %276 = arith.truncf %267 : vector<64x64xf32> to vector<64x64xbf16>
    %c0_118 = arith.constant 0 : index
    %c0_119 = arith.constant 0 : index
    %277 = vector.load %arg14[%c0_118, %c0_119] : memref<64x64xbf16, #tpu.memory_space<vmem>>, vector<64x64xbf16>
    %cst_120 = arith.constant dense<0.000000e+00> : vector<64x64xf32>
    %278 = tpu.matmul %276, %277, %cst_120 {dimension_numbers = #tpu.dot_dimension_numbers<[1], [0], [0], [1], [0, 0, 1, 1], [], []>} : vector<64x64xbf16>, vector<64x64xbf16>, vector<64x64xf32> -> vector<64x64xf32>
    %279 = arith.addf %275, %278 : vector<64x64xf32>
    %280 = arith.truncf %272 : vector<64x64xf32> to vector<64x64xbf16>
    %c0_121 = arith.constant 0 : index
    %c0_122 = arith.constant 0 : index
    %281 = vector.load %arg16[%c0_121, %c0_122] : memref<64x64xbf16, #tpu.memory_space<vmem>>, vector<64x64xbf16>
    %cst_123 = arith.constant dense<0.000000e+00> : vector<64x64xf32>
    %282 = tpu.matmul %280, %281, %cst_123 {dimension_numbers = #tpu.dot_dimension_numbers<[1], [0], [0], [1], [0, 0, 1, 1], [], []>} : vector<64x64xbf16>, vector<64x64xbf16>, vector<64x64xf32> -> vector<64x64xf32>
    %283 = arith.addf %279, %282 : vector<64x64xf32>
    %c0_124 = arith.constant 0 : index
    %c0_125 = arith.constant 0 : index
    %284 = vector.load %arg17[%c0_124, %c0_125] : memref<1x64xf32, #tpu.memory_space<vmem>>, vector<1x64xf32>
    %285 = vector.broadcast %284 : vector<1x64xf32> to vector<64x64xf32>
    %286 = arith.addf %283, %285 : vector<64x64xf32>
    %cst_126 = arith.constant 0.000000e+00 : f32
    %287 = vector.broadcast %cst_126 : f32 to vector<64x64xf32>
    %288 = arith.maximumf %286, %287 : vector<64x64xf32>
    %289 = vector.extract_strided_slice %288 {offsets = [63, 0], sizes = [1, 64], strides = [1, 1]} : vector<64x64xf32> to vector<1x64xf32>
    %290 = vector.extract_strided_slice %288 {offsets = [0, 0], sizes = [63, 64], strides = [1, 1]} : vector<64x64xf32> to vector<63x64xf32>
    %291 = tpu.concatenate %289, %290 in 0 : vector<1x64xf32>, vector<63x64xf32> -> vector<64x64xf32>
    %292 = vector.broadcast %17 : vector<64x1xf32> to vector<64x64xf32>
    %293 = arith.mulf %291, %292 : vector<64x64xf32>
    %294 = vector.extract_strided_slice %288 {offsets = [1, 0], sizes = [63, 64], strides = [1, 1]} : vector<64x64xf32> to vector<63x64xf32>
    %295 = vector.extract_strided_slice %288 {offsets = [0, 0], sizes = [1, 64], strides = [1, 1]} : vector<64x64xf32> to vector<1x64xf32>
    %296 = tpu.concatenate %294, %295 in 0 : vector<63x64xf32>, vector<1x64xf32> -> vector<64x64xf32>
    %297 = vector.broadcast %21 : vector<64x1xf32> to vector<64x64xf32>
    %298 = arith.mulf %296, %297 : vector<64x64xf32>
    %299 = arith.truncf %288 : vector<64x64xf32> to vector<64x64xbf16>
    %c0_127 = arith.constant 0 : index
    %c0_128 = arith.constant 0 : index
    %300 = vector.load %arg19[%c0_127, %c0_128] : memref<64x64xbf16, #tpu.memory_space<vmem>>, vector<64x64xbf16>
    %cst_129 = arith.constant dense<0.000000e+00> : vector<64x64xf32>
    %301 = tpu.matmul %299, %300, %cst_129 {dimension_numbers = #tpu.dot_dimension_numbers<[1], [0], [0], [1], [0, 0, 1, 1], [], []>} : vector<64x64xbf16>, vector<64x64xbf16>, vector<64x64xf32> -> vector<64x64xf32>
    %302 = arith.truncf %293 : vector<64x64xf32> to vector<64x64xbf16>
    %c0_130 = arith.constant 0 : index
    %c0_131 = arith.constant 0 : index
    %303 = vector.load %arg18[%c0_130, %c0_131] : memref<64x64xbf16, #tpu.memory_space<vmem>>, vector<64x64xbf16>
    %cst_132 = arith.constant dense<0.000000e+00> : vector<64x64xf32>
    %304 = tpu.matmul %302, %303, %cst_132 {dimension_numbers = #tpu.dot_dimension_numbers<[1], [0], [0], [1], [0, 0, 1, 1], [], []>} : vector<64x64xbf16>, vector<64x64xbf16>, vector<64x64xf32> -> vector<64x64xf32>
    %305 = arith.addf %301, %304 : vector<64x64xf32>
    %306 = arith.truncf %298 : vector<64x64xf32> to vector<64x64xbf16>
    %c0_133 = arith.constant 0 : index
    %c0_134 = arith.constant 0 : index
    %307 = vector.load %arg20[%c0_133, %c0_134] : memref<64x64xbf16, #tpu.memory_space<vmem>>, vector<64x64xbf16>
    %cst_135 = arith.constant dense<0.000000e+00> : vector<64x64xf32>
    %308 = tpu.matmul %306, %307, %cst_135 {dimension_numbers = #tpu.dot_dimension_numbers<[1], [0], [0], [1], [0, 0, 1, 1], [], []>} : vector<64x64xbf16>, vector<64x64xbf16>, vector<64x64xf32> -> vector<64x64xf32>
    %309 = arith.addf %305, %308 : vector<64x64xf32>
    %c0_136 = arith.constant 0 : index
    %c0_137 = arith.constant 0 : index
    %310 = vector.load %arg21[%c0_136, %c0_137] : memref<1x64xf32, #tpu.memory_space<vmem>>, vector<1x64xf32>
    %311 = vector.broadcast %310 : vector<1x64xf32> to vector<64x64xf32>
    %312 = arith.addf %309, %311 : vector<64x64xf32>
    %cst_138 = arith.constant 0.333333343 : f32
    %313 = vector.broadcast %cst_138 : f32 to vector<64x64xf32>
    %314 = arith.mulf %312, %313 : vector<64x64xf32>
    %315 = arith.addf %262, %314 : vector<64x64xf32>
    %316 = vector.extract_strided_slice %315 {offsets = [63, 0], sizes = [1, 64], strides = [1, 1]} : vector<64x64xf32> to vector<1x64xf32>
    %317 = vector.extract_strided_slice %315 {offsets = [0, 0], sizes = [63, 64], strides = [1, 1]} : vector<64x64xf32> to vector<63x64xf32>
    %318 = tpu.concatenate %316, %317 in 0 : vector<1x64xf32>, vector<63x64xf32> -> vector<64x64xf32>
    %319 = vector.broadcast %17 : vector<64x1xf32> to vector<64x64xf32>
    %320 = arith.mulf %318, %319 : vector<64x64xf32>
    %321 = vector.extract_strided_slice %315 {offsets = [1, 0], sizes = [63, 64], strides = [1, 1]} : vector<64x64xf32> to vector<63x64xf32>
    %322 = vector.extract_strided_slice %315 {offsets = [0, 0], sizes = [1, 64], strides = [1, 1]} : vector<64x64xf32> to vector<1x64xf32>
    %323 = tpu.concatenate %321, %322 in 0 : vector<63x64xf32>, vector<1x64xf32> -> vector<64x64xf32>
    %324 = vector.broadcast %21 : vector<64x1xf32> to vector<64x64xf32>
    %325 = arith.mulf %323, %324 : vector<64x64xf32>
    %326 = arith.truncf %315 : vector<64x64xf32> to vector<64x64xbf16>
    %c0_139 = arith.constant 0 : index
    %c0_140 = arith.constant 0 : index
    %327 = vector.load %arg15[%c0_139, %c0_140] : memref<64x64xbf16, #tpu.memory_space<vmem>>, vector<64x64xbf16>
    %cst_141 = arith.constant dense<0.000000e+00> : vector<64x64xf32>
    %328 = tpu.matmul %326, %327, %cst_141 {dimension_numbers = #tpu.dot_dimension_numbers<[1], [0], [0], [1], [0, 0, 1, 1], [], []>} : vector<64x64xbf16>, vector<64x64xbf16>, vector<64x64xf32> -> vector<64x64xf32>
    %329 = arith.truncf %320 : vector<64x64xf32> to vector<64x64xbf16>
    %c0_142 = arith.constant 0 : index
    %c0_143 = arith.constant 0 : index
    %330 = vector.load %arg14[%c0_142, %c0_143] : memref<64x64xbf16, #tpu.memory_space<vmem>>, vector<64x64xbf16>
    %cst_144 = arith.constant dense<0.000000e+00> : vector<64x64xf32>
    %331 = tpu.matmul %329, %330, %cst_144 {dimension_numbers = #tpu.dot_dimension_numbers<[1], [0], [0], [1], [0, 0, 1, 1], [], []>} : vector<64x64xbf16>, vector<64x64xbf16>, vector<64x64xf32> -> vector<64x64xf32>
    %332 = arith.addf %328, %331 : vector<64x64xf32>
    %333 = arith.truncf %325 : vector<64x64xf32> to vector<64x64xbf16>
    %c0_145 = arith.constant 0 : index
    %c0_146 = arith.constant 0 : index
    %334 = vector.load %arg16[%c0_145, %c0_146] : memref<64x64xbf16, #tpu.memory_space<vmem>>, vector<64x64xbf16>
    %cst_147 = arith.constant dense<0.000000e+00> : vector<64x64xf32>
    %335 = tpu.matmul %333, %334, %cst_147 {dimension_numbers = #tpu.dot_dimension_numbers<[1], [0], [0], [1], [0, 0, 1, 1], [], []>} : vector<64x64xbf16>, vector<64x64xbf16>, vector<64x64xf32> -> vector<64x64xf32>
    %336 = arith.addf %332, %335 : vector<64x64xf32>
    %c0_148 = arith.constant 0 : index
    %c0_149 = arith.constant 0 : index
    %337 = vector.load %arg17[%c0_148, %c0_149] : memref<1x64xf32, #tpu.memory_space<vmem>>, vector<1x64xf32>
    %338 = vector.broadcast %337 : vector<1x64xf32> to vector<64x64xf32>
    %339 = arith.addf %336, %338 : vector<64x64xf32>
    %cst_150 = arith.constant 0.000000e+00 : f32
    %340 = vector.broadcast %cst_150 : f32 to vector<64x64xf32>
    %341 = arith.maximumf %339, %340 : vector<64x64xf32>
    %342 = vector.extract_strided_slice %341 {offsets = [63, 0], sizes = [1, 64], strides = [1, 1]} : vector<64x64xf32> to vector<1x64xf32>
    %343 = vector.extract_strided_slice %341 {offsets = [0, 0], sizes = [63, 64], strides = [1, 1]} : vector<64x64xf32> to vector<63x64xf32>
    %344 = tpu.concatenate %342, %343 in 0 : vector<1x64xf32>, vector<63x64xf32> -> vector<64x64xf32>
    %345 = vector.broadcast %17 : vector<64x1xf32> to vector<64x64xf32>
    %346 = arith.mulf %344, %345 : vector<64x64xf32>
    %347 = vector.extract_strided_slice %341 {offsets = [1, 0], sizes = [63, 64], strides = [1, 1]} : vector<64x64xf32> to vector<63x64xf32>
    %348 = vector.extract_strided_slice %341 {offsets = [0, 0], sizes = [1, 64], strides = [1, 1]} : vector<64x64xf32> to vector<1x64xf32>
    %349 = tpu.concatenate %347, %348 in 0 : vector<63x64xf32>, vector<1x64xf32> -> vector<64x64xf32>
    %350 = vector.broadcast %21 : vector<64x1xf32> to vector<64x64xf32>
    %351 = arith.mulf %349, %350 : vector<64x64xf32>
    %352 = arith.truncf %341 : vector<64x64xf32> to vector<64x64xbf16>
    %c0_151 = arith.constant 0 : index
    %c0_152 = arith.constant 0 : index
    %353 = vector.load %arg19[%c0_151, %c0_152] : memref<64x64xbf16, #tpu.memory_space<vmem>>, vector<64x64xbf16>
    %cst_153 = arith.constant dense<0.000000e+00> : vector<64x64xf32>
    %354 = tpu.matmul %352, %353, %cst_153 {dimension_numbers = #tpu.dot_dimension_numbers<[1], [0], [0], [1], [0, 0, 1, 1], [], []>} : vector<64x64xbf16>, vector<64x64xbf16>, vector<64x64xf32> -> vector<64x64xf32>
    %355 = arith.truncf %346 : vector<64x64xf32> to vector<64x64xbf16>
    %c0_154 = arith.constant 0 : index
    %c0_155 = arith.constant 0 : index
    %356 = vector.load %arg18[%c0_154, %c0_155] : memref<64x64xbf16, #tpu.memory_space<vmem>>, vector<64x64xbf16>
    %cst_156 = arith.constant dense<0.000000e+00> : vector<64x64xf32>
    %357 = tpu.matmul %355, %356, %cst_156 {dimension_numbers = #tpu.dot_dimension_numbers<[1], [0], [0], [1], [0, 0, 1, 1], [], []>} : vector<64x64xbf16>, vector<64x64xbf16>, vector<64x64xf32> -> vector<64x64xf32>
    %358 = arith.addf %354, %357 : vector<64x64xf32>
    %359 = arith.truncf %351 : vector<64x64xf32> to vector<64x64xbf16>
    %c0_157 = arith.constant 0 : index
    %c0_158 = arith.constant 0 : index
    %360 = vector.load %arg20[%c0_157, %c0_158] : memref<64x64xbf16, #tpu.memory_space<vmem>>, vector<64x64xbf16>
    %cst_159 = arith.constant dense<0.000000e+00> : vector<64x64xf32>
    %361 = tpu.matmul %359, %360, %cst_159 {dimension_numbers = #tpu.dot_dimension_numbers<[1], [0], [0], [1], [0, 0, 1, 1], [], []>} : vector<64x64xbf16>, vector<64x64xbf16>, vector<64x64xf32> -> vector<64x64xf32>
    %362 = arith.addf %358, %361 : vector<64x64xf32>
    %c0_160 = arith.constant 0 : index
    %c0_161 = arith.constant 0 : index
    %363 = vector.load %arg21[%c0_160, %c0_161] : memref<1x64xf32, #tpu.memory_space<vmem>>, vector<1x64xf32>
    %364 = vector.broadcast %363 : vector<1x64xf32> to vector<64x64xf32>
    %365 = arith.addf %362, %364 : vector<64x64xf32>
    %366 = arith.subf %365, %314 : vector<64x64xf32>
    %367 = arith.addf %262, %366 : vector<64x64xf32>
    %368 = vector.extract_strided_slice %367 {offsets = [63, 0], sizes = [1, 64], strides = [1, 1]} : vector<64x64xf32> to vector<1x64xf32>
    %369 = vector.extract_strided_slice %367 {offsets = [0, 0], sizes = [63, 64], strides = [1, 1]} : vector<64x64xf32> to vector<63x64xf32>
    %370 = tpu.concatenate %368, %369 in 0 : vector<1x64xf32>, vector<63x64xf32> -> vector<64x64xf32>
    %371 = vector.broadcast %17 : vector<64x1xf32> to vector<64x64xf32>
    %372 = arith.mulf %370, %371 : vector<64x64xf32>
    %373 = vector.extract_strided_slice %367 {offsets = [1, 0], sizes = [63, 64], strides = [1, 1]} : vector<64x64xf32> to vector<63x64xf32>
    %374 = vector.extract_strided_slice %367 {offsets = [0, 0], sizes = [1, 64], strides = [1, 1]} : vector<64x64xf32> to vector<1x64xf32>
    %375 = tpu.concatenate %373, %374 in 0 : vector<63x64xf32>, vector<1x64xf32> -> vector<64x64xf32>
    %376 = vector.broadcast %21 : vector<64x1xf32> to vector<64x64xf32>
    %377 = arith.mulf %375, %376 : vector<64x64xf32>
    %378 = arith.truncf %367 : vector<64x64xf32> to vector<64x64xbf16>
    %c0_162 = arith.constant 0 : index
    %c0_163 = arith.constant 0 : index
    %379 = vector.load %arg15[%c0_162, %c0_163] : memref<64x64xbf16, #tpu.memory_space<vmem>>, vector<64x64xbf16>
    %cst_164 = arith.constant dense<0.000000e+00> : vector<64x64xf32>
    %380 = tpu.matmul %378, %379, %cst_164 {dimension_numbers = #tpu.dot_dimension_numbers<[1], [0], [0], [1], [0, 0, 1, 1], [], []>} : vector<64x64xbf16>, vector<64x64xbf16>, vector<64x64xf32> -> vector<64x64xf32>
    %381 = arith.truncf %372 : vector<64x64xf32> to vector<64x64xbf16>
    %c0_165 = arith.constant 0 : index
    %c0_166 = arith.constant 0 : index
    %382 = vector.load %arg14[%c0_165, %c0_166] : memref<64x64xbf16, #tpu.memory_space<vmem>>, vector<64x64xbf16>
    %cst_167 = arith.constant dense<0.000000e+00> : vector<64x64xf32>
    %383 = tpu.matmul %381, %382, %cst_167 {dimension_numbers = #tpu.dot_dimension_numbers<[1], [0], [0], [1], [0, 0, 1, 1], [], []>} : vector<64x64xbf16>, vector<64x64xbf16>, vector<64x64xf32> -> vector<64x64xf32>
    %384 = arith.addf %380, %383 : vector<64x64xf32>
    %385 = arith.truncf %377 : vector<64x64xf32> to vector<64x64xbf16>
    %c0_168 = arith.constant 0 : index
    %c0_169 = arith.constant 0 : index
    %386 = vector.load %arg16[%c0_168, %c0_169] : memref<64x64xbf16, #tpu.memory_space<vmem>>, vector<64x64xbf16>
    %cst_170 = arith.constant dense<0.000000e+00> : vector<64x64xf32>
    %387 = tpu.matmul %385, %386, %cst_170 {dimension_numbers = #tpu.dot_dimension_numbers<[1], [0], [0], [1], [0, 0, 1, 1], [], []>} : vector<64x64xbf16>, vector<64x64xbf16>, vector<64x64xf32> -> vector<64x64xf32>
    %388 = arith.addf %384, %387 : vector<64x64xf32>
    %c0_171 = arith.constant 0 : index
    %c0_172 = arith.constant 0 : index
    %389 = vector.load %arg17[%c0_171, %c0_172] : memref<1x64xf32, #tpu.memory_space<vmem>>, vector<1x64xf32>
    %390 = vector.broadcast %389 : vector<1x64xf32> to vector<64x64xf32>
    %391 = arith.addf %388, %390 : vector<64x64xf32>
    %cst_173 = arith.constant 0.000000e+00 : f32
    %392 = vector.broadcast %cst_173 : f32 to vector<64x64xf32>
    %393 = arith.maximumf %391, %392 : vector<64x64xf32>
    %394 = vector.extract_strided_slice %393 {offsets = [63, 0], sizes = [1, 64], strides = [1, 1]} : vector<64x64xf32> to vector<1x64xf32>
    %395 = vector.extract_strided_slice %393 {offsets = [0, 0], sizes = [63, 64], strides = [1, 1]} : vector<64x64xf32> to vector<63x64xf32>
    %396 = tpu.concatenate %394, %395 in 0 : vector<1x64xf32>, vector<63x64xf32> -> vector<64x64xf32>
    %397 = vector.broadcast %17 : vector<64x1xf32> to vector<64x64xf32>
    %398 = arith.mulf %396, %397 : vector<64x64xf32>
    %399 = vector.extract_strided_slice %393 {offsets = [1, 0], sizes = [63, 64], strides = [1, 1]} : vector<64x64xf32> to vector<63x64xf32>
    %400 = vector.extract_strided_slice %393 {offsets = [0, 0], sizes = [1, 64], strides = [1, 1]} : vector<64x64xf32> to vector<1x64xf32>
    %401 = tpu.concatenate %399, %400 in 0 : vector<63x64xf32>, vector<1x64xf32> -> vector<64x64xf32>
    %402 = vector.broadcast %21 : vector<64x1xf32> to vector<64x64xf32>
    %403 = arith.mulf %401, %402 : vector<64x64xf32>
    %404 = arith.truncf %393 : vector<64x64xf32> to vector<64x64xbf16>
    %c0_174 = arith.constant 0 : index
    %c0_175 = arith.constant 0 : index
    %405 = vector.load %arg19[%c0_174, %c0_175] : memref<64x64xbf16, #tpu.memory_space<vmem>>, vector<64x64xbf16>
    %cst_176 = arith.constant dense<0.000000e+00> : vector<64x64xf32>
    %406 = tpu.matmul %404, %405, %cst_176 {dimension_numbers = #tpu.dot_dimension_numbers<[1], [0], [0], [1], [0, 0, 1, 1], [], []>} : vector<64x64xbf16>, vector<64x64xbf16>, vector<64x64xf32> -> vector<64x64xf32>
    %407 = arith.truncf %398 : vector<64x64xf32> to vector<64x64xbf16>
    %c0_177 = arith.constant 0 : index
    %c0_178 = arith.constant 0 : index
    %408 = vector.load %arg18[%c0_177, %c0_178] : memref<64x64xbf16, #tpu.memory_space<vmem>>, vector<64x64xbf16>
    %cst_179 = arith.constant dense<0.000000e+00> : vector<64x64xf32>
    %409 = tpu.matmul %407, %408, %cst_179 {dimension_numbers = #tpu.dot_dimension_numbers<[1], [0], [0], [1], [0, 0, 1, 1], [], []>} : vector<64x64xbf16>, vector<64x64xbf16>, vector<64x64xf32> -> vector<64x64xf32>
    %410 = arith.addf %406, %409 : vector<64x64xf32>
    %411 = arith.truncf %403 : vector<64x64xf32> to vector<64x64xbf16>
    %c0_180 = arith.constant 0 : index
    %c0_181 = arith.constant 0 : index
    %412 = vector.load %arg20[%c0_180, %c0_181] : memref<64x64xbf16, #tpu.memory_space<vmem>>, vector<64x64xbf16>
    %cst_182 = arith.constant dense<0.000000e+00> : vector<64x64xf32>
    %413 = tpu.matmul %411, %412, %cst_182 {dimension_numbers = #tpu.dot_dimension_numbers<[1], [0], [0], [1], [0, 0, 1, 1], [], []>} : vector<64x64xbf16>, vector<64x64xbf16>, vector<64x64xf32> -> vector<64x64xf32>
    %414 = arith.addf %410, %413 : vector<64x64xf32>
    %c0_183 = arith.constant 0 : index
    %c0_184 = arith.constant 0 : index
    %415 = vector.load %arg21[%c0_183, %c0_184] : memref<1x64xf32, #tpu.memory_space<vmem>>, vector<1x64xf32>
    %416 = vector.broadcast %415 : vector<1x64xf32> to vector<64x64xf32>
    %417 = arith.addf %414, %416 : vector<64x64xf32>
    %418 = arith.subf %312, %365 : vector<64x64xf32>
    %419 = arith.addf %418, %417 : vector<64x64xf32>
    %420 = arith.addf %262, %419 : vector<64x64xf32>
    %421 = vector.extract_strided_slice %420 {offsets = [63, 0], sizes = [1, 64], strides = [1, 1]} : vector<64x64xf32> to vector<1x64xf32>
    %422 = vector.extract_strided_slice %420 {offsets = [0, 0], sizes = [63, 64], strides = [1, 1]} : vector<64x64xf32> to vector<63x64xf32>
    %423 = tpu.concatenate %421, %422 in 0 : vector<1x64xf32>, vector<63x64xf32> -> vector<64x64xf32>
    %424 = vector.broadcast %17 : vector<64x1xf32> to vector<64x64xf32>
    %425 = arith.mulf %423, %424 : vector<64x64xf32>
    %426 = vector.extract_strided_slice %420 {offsets = [1, 0], sizes = [63, 64], strides = [1, 1]} : vector<64x64xf32> to vector<63x64xf32>
    %427 = vector.extract_strided_slice %420 {offsets = [0, 0], sizes = [1, 64], strides = [1, 1]} : vector<64x64xf32> to vector<1x64xf32>
    %428 = tpu.concatenate %426, %427 in 0 : vector<63x64xf32>, vector<1x64xf32> -> vector<64x64xf32>
    %429 = vector.broadcast %21 : vector<64x1xf32> to vector<64x64xf32>
    %430 = arith.mulf %428, %429 : vector<64x64xf32>
    %431 = arith.truncf %420 : vector<64x64xf32> to vector<64x64xbf16>
    %c0_185 = arith.constant 0 : index
    %c0_186 = arith.constant 0 : index
    %432 = vector.load %arg15[%c0_185, %c0_186] : memref<64x64xbf16, #tpu.memory_space<vmem>>, vector<64x64xbf16>
    %cst_187 = arith.constant dense<0.000000e+00> : vector<64x64xf32>
    %433 = tpu.matmul %431, %432, %cst_187 {dimension_numbers = #tpu.dot_dimension_numbers<[1], [0], [0], [1], [0, 0, 1, 1], [], []>} : vector<64x64xbf16>, vector<64x64xbf16>, vector<64x64xf32> -> vector<64x64xf32>
    %434 = arith.truncf %425 : vector<64x64xf32> to vector<64x64xbf16>
    %c0_188 = arith.constant 0 : index
    %c0_189 = arith.constant 0 : index
    %435 = vector.load %arg14[%c0_188, %c0_189] : memref<64x64xbf16, #tpu.memory_space<vmem>>, vector<64x64xbf16>
    %cst_190 = arith.constant dense<0.000000e+00> : vector<64x64xf32>
    %436 = tpu.matmul %434, %435, %cst_190 {dimension_numbers = #tpu.dot_dimension_numbers<[1], [0], [0], [1], [0, 0, 1, 1], [], []>} : vector<64x64xbf16>, vector<64x64xbf16>, vector<64x64xf32> -> vector<64x64xf32>
    %437 = arith.addf %433, %436 : vector<64x64xf32>
    %438 = arith.truncf %430 : vector<64x64xf32> to vector<64x64xbf16>
    %c0_191 = arith.constant 0 : index
    %c0_192 = arith.constant 0 : index
    %439 = vector.load %arg16[%c0_191, %c0_192] : memref<64x64xbf16, #tpu.memory_space<vmem>>, vector<64x64xbf16>
    %cst_193 = arith.constant dense<0.000000e+00> : vector<64x64xf32>
    %440 = tpu.matmul %438, %439, %cst_193 {dimension_numbers = #tpu.dot_dimension_numbers<[1], [0], [0], [1], [0, 0, 1, 1], [], []>} : vector<64x64xbf16>, vector<64x64xbf16>, vector<64x64xf32> -> vector<64x64xf32>
    %441 = arith.addf %437, %440 : vector<64x64xf32>
    %c0_194 = arith.constant 0 : index
    %c0_195 = arith.constant 0 : index
    %442 = vector.load %arg17[%c0_194, %c0_195] : memref<1x64xf32, #tpu.memory_space<vmem>>, vector<1x64xf32>
    %443 = vector.broadcast %442 : vector<1x64xf32> to vector<64x64xf32>
    %444 = arith.addf %441, %443 : vector<64x64xf32>
    %cst_196 = arith.constant 0.000000e+00 : f32
    %445 = vector.broadcast %cst_196 : f32 to vector<64x64xf32>
    %446 = arith.maximumf %444, %445 : vector<64x64xf32>
    %447 = vector.extract_strided_slice %446 {offsets = [63, 0], sizes = [1, 64], strides = [1, 1]} : vector<64x64xf32> to vector<1x64xf32>
    %448 = vector.extract_strided_slice %446 {offsets = [0, 0], sizes = [63, 64], strides = [1, 1]} : vector<64x64xf32> to vector<63x64xf32>
    %449 = tpu.concatenate %447, %448 in 0 : vector<1x64xf32>, vector<63x64xf32> -> vector<64x64xf32>
    %450 = vector.broadcast %17 : vector<64x1xf32> to vector<64x64xf32>
    %451 = arith.mulf %449, %450 : vector<64x64xf32>
    %452 = vector.extract_strided_slice %446 {offsets = [1, 0], sizes = [63, 64], strides = [1, 1]} : vector<64x64xf32> to vector<63x64xf32>
    %453 = vector.extract_strided_slice %446 {offsets = [0, 0], sizes = [1, 64], strides = [1, 1]} : vector<64x64xf32> to vector<1x64xf32>
    %454 = tpu.concatenate %452, %453 in 0 : vector<63x64xf32>, vector<1x64xf32> -> vector<64x64xf32>
    %455 = vector.broadcast %21 : vector<64x1xf32> to vector<64x64xf32>
    %456 = arith.mulf %454, %455 : vector<64x64xf32>
    %457 = arith.truncf %446 : vector<64x64xf32> to vector<64x64xbf16>
    %c0_197 = arith.constant 0 : index
    %c0_198 = arith.constant 0 : index
    %458 = vector.load %arg19[%c0_197, %c0_198] : memref<64x64xbf16, #tpu.memory_space<vmem>>, vector<64x64xbf16>
    %cst_199 = arith.constant dense<0.000000e+00> : vector<64x64xf32>
    %459 = tpu.matmul %457, %458, %cst_199 {dimension_numbers = #tpu.dot_dimension_numbers<[1], [0], [0], [1], [0, 0, 1, 1], [], []>} : vector<64x64xbf16>, vector<64x64xbf16>, vector<64x64xf32> -> vector<64x64xf32>
    %460 = arith.truncf %451 : vector<64x64xf32> to vector<64x64xbf16>
    %c0_200 = arith.constant 0 : index
    %c0_201 = arith.constant 0 : index
    %461 = vector.load %arg18[%c0_200, %c0_201] : memref<64x64xbf16, #tpu.memory_space<vmem>>, vector<64x64xbf16>
    %cst_202 = arith.constant dense<0.000000e+00> : vector<64x64xf32>
    %462 = tpu.matmul %460, %461, %cst_202 {dimension_numbers = #tpu.dot_dimension_numbers<[1], [0], [0], [1], [0, 0, 1, 1], [], []>} : vector<64x64xbf16>, vector<64x64xbf16>, vector<64x64xf32> -> vector<64x64xf32>
    %463 = arith.addf %459, %462 : vector<64x64xf32>
    %464 = arith.truncf %456 : vector<64x64xf32> to vector<64x64xbf16>
    %c0_203 = arith.constant 0 : index
    %c0_204 = arith.constant 0 : index
    %465 = vector.load %arg20[%c0_203, %c0_204] : memref<64x64xbf16, #tpu.memory_space<vmem>>, vector<64x64xbf16>
    %cst_205 = arith.constant dense<0.000000e+00> : vector<64x64xf32>
    %466 = tpu.matmul %464, %465, %cst_205 {dimension_numbers = #tpu.dot_dimension_numbers<[1], [0], [0], [1], [0, 0, 1, 1], [], []>} : vector<64x64xbf16>, vector<64x64xbf16>, vector<64x64xf32> -> vector<64x64xf32>
    %467 = arith.addf %463, %466 : vector<64x64xf32>
    %c0_206 = arith.constant 0 : index
    %c0_207 = arith.constant 0 : index
    %468 = vector.load %arg21[%c0_206, %c0_207] : memref<1x64xf32, #tpu.memory_space<vmem>>, vector<1x64xf32>
    %469 = vector.broadcast %468 : vector<1x64xf32> to vector<64x64xf32>
    %470 = arith.addf %467, %469 : vector<64x64xf32>
    %471 = arith.addf %365, %417 : vector<64x64xf32>
    %cst_208 = arith.constant 3.000000e+00 : f32
    %472 = vector.broadcast %cst_208 : f32 to vector<64x64xf32>
    %473 = arith.mulf %472, %471 : vector<64x64xf32>
    %474 = arith.addf %312, %473 : vector<64x64xf32>
    %475 = arith.addf %474, %470 : vector<64x64xf32>
    %cst_209 = arith.constant 1.250000e-01 : f32
    %476 = vector.broadcast %cst_209 : f32 to vector<64x64xf32>
    %477 = arith.mulf %476, %475 : vector<64x64xf32>
    %478 = arith.addf %262, %477 : vector<64x64xf32>
    %479 = vector.extract_strided_slice %478 {offsets = [1, 0], sizes = [63, 64], strides = [1, 1]} : vector<64x64xf32> to vector<63x64xf32>
    %480 = vector.extract_strided_slice %478 {offsets = [0, 0], sizes = [1, 64], strides = [1, 1]} : vector<64x64xf32> to vector<1x64xf32>
    %481 = tpu.concatenate %479, %480 in 0 : vector<63x64xf32>, vector<1x64xf32> -> vector<64x64xf32>
    %482 = arith.maximumf %478, %481 : vector<64x64xf32>
    %c0_210 = arith.constant 0 : index
    %c0_211 = arith.constant 0 : index
    %483 = vector.load %arg28[%c0_210, %c0_211] : memref<64x64xf32, #tpu.memory_space<vmem>>, vector<64x64xf32>
    tpu.vector_store %arg28[%c0_210, %c0_211], %482 {strides = array<i32>} : memref<64x64xf32, #tpu.memory_space<vmem>>, vector<64x64xf32>,
    %c0_212 = arith.constant 0 : index
    %c0_213 = arith.constant 0 : index
    %484 = tpu.strided_load %arg28[%c0_212, %c0_213] {strides = array<i32: 8, 1>} : memref<64x64xf32, #tpu.memory_space<vmem>>, vector<8x64xf32>
    %c2 = arith.constant 2 : index
    %c0_214 = arith.constant 0 : index
    %485 = tpu.strided_load %arg28[%c2, %c0_214] {strides = array<i32: 8, 1>} : memref<64x64xf32, #tpu.memory_space<vmem>>, vector<8x64xf32>
    %c4 = arith.constant 4 : index
    %c0_215 = arith.constant 0 : index
    %486 = tpu.strided_load %arg28[%c4, %c0_215] {strides = array<i32: 8, 1>} : memref<64x64xf32, #tpu.memory_space<vmem>>, vector<8x64xf32>
    %c6 = arith.constant 6 : index
    %c0_216 = arith.constant 0 : index
    %487 = tpu.strided_load %arg28[%c6, %c0_216] {strides = array<i32: 8, 1>} : memref<64x64xf32, #tpu.memory_space<vmem>>, vector<8x64xf32>
    %488 = tpu.concatenate %484, %485, %486, %487 in 1 : vector<8x64xf32>, vector<8x64xf32>, vector<8x64xf32>, vector<8x64xf32> -> vector<8x256xf32>
    %489 = arith.truncf %488 : vector<8x256xf32> to vector<8x256xbf16>
    %c0_217 = arith.constant 0 : index
    %c0_218 = arith.constant 0 : index
    %490 = vector.load %arg22[%c0_217, %c0_218] : memref<256x64xbf16, #tpu.memory_space<vmem>>, vector<256x64xbf16>
    %cst_219 = arith.constant dense<0.000000e+00> : vector<8x64xf32>
    %491 = tpu.matmul %489, %490, %cst_219 {dimension_numbers = #tpu.dot_dimension_numbers<[1], [0], [0], [1], [0, 0, 1, 1], [], []>} : vector<8x256xbf16>, vector<256x64xbf16>, vector<8x64xf32> -> vector<8x64xf32>
    %c0_220 = arith.constant 0 : index
    %c0_221 = arith.constant 0 : index
    %492 = vector.load %arg23[%c0_220, %c0_221] : memref<1x64xf32, #tpu.memory_space<vmem>>, vector<1x64xf32>
    %493 = vector.broadcast %492 : vector<1x64xf32> to vector<8x64xf32>
    %494 = arith.addf %491, %493 : vector<8x64xf32>
    %cst_222 = arith.constant 0.000000e+00 : f32
    %495 = vector.broadcast %cst_222 : f32 to vector<8x64xf32>
    %496 = arith.maximumf %494, %495 : vector<8x64xf32>
    %497 = arith.truncf %496 : vector<8x64xf32> to vector<8x64xbf16>
    %c0_223 = arith.constant 0 : index
    %c0_224 = arith.constant 0 : index
    %498 = vector.load %arg24[%c0_223, %c0_224] : memref<64x128xbf16, #tpu.memory_space<vmem>>, vector<64x128xbf16>
    %cst_225 = arith.constant dense<0.000000e+00> : vector<8x128xf32>
    %499 = tpu.matmul %497, %498, %cst_225 {dimension_numbers = #tpu.dot_dimension_numbers<[1], [0], [0], [1], [0, 0, 1, 1], [], []>} : vector<8x64xbf16>, vector<64x128xbf16>, vector<8x128xf32> -> vector<8x128xf32>
    %c0_226 = arith.constant 0 : index
    %c0_227 = arith.constant 0 : index
    %500 = vector.load %arg25[%c0_226, %c0_227] : memref<1x128xf32, #tpu.memory_space<vmem>>, vector<1x128xf32>
    %501 = vector.broadcast %500 : vector<1x128xf32> to vector<8x128xf32>
    %502 = arith.addf %499, %501 : vector<8x128xf32>
    %c0_228 = arith.constant 0 : index
    %c0_229 = arith.constant 0 : index
    %503 = vector.load %arg26[%c0_228, %c0_229] : memref<8x128xf32, #tpu.memory_space<vmem>>, vector<8x128xf32>
    tpu.vector_store %arg26[%c0_228, %c0_229], %502 {strides = array<i32>} : memref<8x128xf32, #tpu.memory_space<vmem>>, vector<8x128xf32>,
    return
  }
  func.func @transform_0(%arg0: i32) -> (i32, i32) {
    %c0_i32 = arith.constant 0 : i32
    %c0_i32_0 = arith.constant 0 : i32
    return %arg0, %c0_i32 : i32, i32
  }
  func.func @transform_1(%arg0: i32) -> (i32, i32) {
    %c0_i32 = arith.constant 0 : i32
    %c0_i32_0 = arith.constant 0 : i32
    %c0_i32_1 = arith.constant 0 : i32
    return %c0_i32, %c0_i32_0 : i32, i32
  }
  func.func @transform_2(%arg0: i32) -> (i32, i32) {
    %c0_i32 = arith.constant 0 : i32
    %c0_i32_0 = arith.constant 0 : i32
    %c0_i32_1 = arith.constant 0 : i32
    return %c0_i32, %c0_i32_0 : i32, i32
  }
  func.func @transform_3(%arg0: i32) -> (i32, i32) {
    %c0_i32 = arith.constant 0 : i32
    %c0_i32_0 = arith.constant 0 : i32
    %c0_i32_1 = arith.constant 0 : i32
    return %c0_i32, %c0_i32_0 : i32, i32
  }
  func.func @transform_4(%arg0: i32) -> (i32, i32) {
    %c0_i32 = arith.constant 0 : i32
    %c0_i32_0 = arith.constant 0 : i32
    %c0_i32_1 = arith.constant 0 : i32
    return %c0_i32, %c0_i32_0 : i32, i32
  }
  func.func @transform_5(%arg0: i32) -> (i32, i32) {
    %c0_i32 = arith.constant 0 : i32
    %c0_i32_0 = arith.constant 0 : i32
    %c0_i32_1 = arith.constant 0 : i32
    return %c0_i32, %c0_i32_0 : i32, i32
  }
  func.func @transform_6(%arg0: i32) -> (i32, i32) {
    %c0_i32 = arith.constant 0 : i32
    %c0_i32_0 = arith.constant 0 : i32
    %c0_i32_1 = arith.constant 0 : i32
    return %c0_i32, %c0_i32_0 : i32, i32
  }
  func.func @transform_7(%arg0: i32) -> (i32, i32) {
    %c0_i32 = arith.constant 0 : i32
    %c0_i32_0 = arith.constant 0 : i32
    %c0_i32_1 = arith.constant 0 : i32
    return %c0_i32, %c0_i32_0 : i32, i32
  }
  func.func @transform_8(%arg0: i32) -> (i32, i32) {
    %c0_i32 = arith.constant 0 : i32
    %c0_i32_0 = arith.constant 0 : i32
    %c0_i32_1 = arith.constant 0 : i32
    return %c0_i32, %c0_i32_0 : i32, i32
  }
  func.func @transform_9(%arg0: i32) -> (i32, i32) {
    %c0_i32 = arith.constant 0 : i32
    %c0_i32_0 = arith.constant 0 : i32
    %c0_i32_1 = arith.constant 0 : i32
    return %c0_i32, %c0_i32_0 : i32, i32
  }
  func.func @transform_10(%arg0: i32) -> (i32, i32) {
    %c0_i32 = arith.constant 0 : i32
    %c0_i32_0 = arith.constant 0 : i32
    %c0_i32_1 = arith.constant 0 : i32
    return %c0_i32, %c0_i32_0 : i32, i32
  }
  func.func @transform_11(%arg0: i32) -> (i32, i32) {
    %c0_i32 = arith.constant 0 : i32
    %c0_i32_0 = arith.constant 0 : i32
    %c0_i32_1 = arith.constant 0 : i32
    return %c0_i32, %c0_i32_0 : i32, i32
  }
  func.func @transform_12(%arg0: i32) -> (i32, i32) {
    %c0_i32 = arith.constant 0 : i32
    %c0_i32_0 = arith.constant 0 : i32
    %c0_i32_1 = arith.constant 0 : i32
    return %c0_i32, %c0_i32_0 : i32, i32
  }
  func.func @transform_13(%arg0: i32) -> (i32, i32) {
    %c0_i32 = arith.constant 0 : i32
    %c0_i32_0 = arith.constant 0 : i32
    %c0_i32_1 = arith.constant 0 : i32
    return %c0_i32, %c0_i32_0 : i32, i32
  }
  func.func @transform_14(%arg0: i32) -> (i32, i32) {
    %c0_i32 = arith.constant 0 : i32
    %c0_i32_0 = arith.constant 0 : i32
    %c0_i32_1 = arith.constant 0 : i32
    return %c0_i32, %c0_i32_0 : i32, i32
  }
  func.func @transform_15(%arg0: i32) -> (i32, i32) {
    %c0_i32 = arith.constant 0 : i32
    %c0_i32_0 = arith.constant 0 : i32
    %c0_i32_1 = arith.constant 0 : i32
    return %c0_i32, %c0_i32_0 : i32, i32
  }
  func.func @transform_16(%arg0: i32) -> (i32, i32) {
    %c0_i32 = arith.constant 0 : i32
    %c0_i32_0 = arith.constant 0 : i32
    %c0_i32_1 = arith.constant 0 : i32
    return %c0_i32, %c0_i32_0 : i32, i32
  }
  func.func @transform_17(%arg0: i32) -> (i32, i32) {
    %c0_i32 = arith.constant 0 : i32
    %c0_i32_0 = arith.constant 0 : i32
    %c0_i32_1 = arith.constant 0 : i32
    return %c0_i32, %c0_i32_0 : i32, i32
  }
  func.func @transform_18(%arg0: i32) -> (i32, i32) {
    %c0_i32 = arith.constant 0 : i32
    %c0_i32_0 = arith.constant 0 : i32
    %c0_i32_1 = arith.constant 0 : i32
    return %c0_i32, %c0_i32_0 : i32, i32
  }
  func.func @transform_19(%arg0: i32) -> (i32, i32) {
    %c0_i32 = arith.constant 0 : i32
    %c0_i32_0 = arith.constant 0 : i32
    %c0_i32_1 = arith.constant 0 : i32
    return %c0_i32, %c0_i32_0 : i32, i32
  }
  func.func @transform_20(%arg0: i32) -> (i32, i32) {
    %c0_i32 = arith.constant 0 : i32
    %c0_i32_0 = arith.constant 0 : i32
    %c0_i32_1 = arith.constant 0 : i32
    return %c0_i32, %c0_i32_0 : i32, i32
  }
  func.func @transform_21(%arg0: i32) -> (i32, i32) {
    %c0_i32 = arith.constant 0 : i32
    %c0_i32_0 = arith.constant 0 : i32
    %c0_i32_1 = arith.constant 0 : i32
    return %c0_i32, %c0_i32_0 : i32, i32
  }
  func.func @transform_22(%arg0: i32) -> (i32, i32) {
    %c0_i32 = arith.constant 0 : i32
    %c0_i32_0 = arith.constant 0 : i32
    %c0_i32_1 = arith.constant 0 : i32
    return %c0_i32, %c0_i32_0 : i32, i32
  }
  func.func @transform_23(%arg0: i32) -> (i32, i32) {
    %c0_i32 = arith.constant 0 : i32
    %c0_i32_0 = arith.constant 0 : i32
    %c0_i32_1 = arith.constant 0 : i32
    return %c0_i32, %c0_i32_0 : i32, i32
  }
  func.func @transform_24(%arg0: i32) -> (i32, i32) {
    %c0_i32 = arith.constant 0 : i32
    %c0_i32_0 = arith.constant 0 : i32
    %c0_i32_1 = arith.constant 0 : i32
    return %c0_i32, %c0_i32_0 : i32, i32
  }
  func.func @transform_25(%arg0: i32) -> (i32, i32) {
    %c0_i32 = arith.constant 0 : i32
    %c0_i32_0 = arith.constant 0 : i32
    return %arg0, %c0_i32 : i32, i32
  }
}

</mosaic_0001>

<llo_original>
// kernel: tpu_custom_call.1
$region0: #{tpu_custom_call.1}
  #allocation0 [shape = 'u32[]', space=smem, size = 0x4, offset = 0x4, fixed_abs, tag = 'smem constant byte address 0x4 - core index']
  #allocation1 [shape = 'u32[144,128]{1,0:T(1,128)}', space=vmem, size = 0x12000, scoped, tag = 'internal scratch']
  #allocation2 [shape = 'f32[128,32]{1,0:T(8,128)}', space=vmem, size = 0x10000, scoped, tag = 'scratch operand']
  #allocation3 [shape = 'f32[64,64]{1,0:T(8,128)}', space=vmem, size = 0x8000, scoped, tag = 'scratch operand']
  %s0 = inlined_call_operand.vmem [shape: f32[128,32], index: 0, kind: input, shape index: {}]
  %s1 = inlined_call_operand.vmem [shape: bf16[32,32], index: 1, kind: input, shape index: {}]
  %s2 = inlined_call_operand.vmem [shape: bf16[32,32], index: 2, kind: input, shape index: {}]
  %s3 = inlined_call_operand.vmem [shape: bf16[32,32], index: 3, kind: input, shape index: {}]
  %s4 = inlined_call_operand.vmem [shape: f32[1,32], index: 4, kind: input, shape index: {}]
  %s5 = inlined_call_operand.vmem [shape: bf16[32,32], index: 5, kind: input, shape index: {}]
  %s6 = inlined_call_operand.vmem [shape: bf16[32,32], index: 6, kind: input, shape index: {}]
  %s7 = inlined_call_operand.hbm [shape: bf16[32,32], index: 7, kind: input, shape index: {}]
  %s8 = inlined_call_operand.vmem [shape: f32[1,32], index: 8, kind: input, shape index: {}]
  %s9 = inlined_call_operand.hbm [shape: bf16[32,64], index: 9, kind: input, shape index: {}]
  %s10 = inlined_call_operand.vmem [shape: bf16[32,64], index: 10, kind: input, shape index: {}]
  %s11 = inlined_call_operand.hbm [shape: bf16[32,64], index: 11, kind: input, shape index: {}]
  %s12 = inlined_call_operand.vmem [shape: f32[1,64], index: 12, kind: input, shape index: {}]
  %s13 = inlined_call_operand.vmem [shape: bf16[64,64], index: 13, kind: input, shape index: {}]
  %s14 = inlined_call_operand.vmem [shape: bf16[64,64], index: 14, kind: input, shape index: {}]
  %s15 = inlined_call_operand.vmem [shape: bf16[64,64], index: 15, kind: input, shape index: {}]
  %s16 = inlined_call_operand.vmem [shape: f32[1,64], index: 16, kind: input, shape index: {}]
  %s17 = inlined_call_operand.vmem [shape: bf16[64,64], index: 17, kind: input, shape index: {}]
  %s18 = inlined_call_operand.vmem [shape: bf16[64,64], index: 18, kind: input, shape index: {}]
  %s19 = inlined_call_operand.vmem [shape: bf16[64,64], index: 19, kind: input, shape index: {}]
  %s20 = inlined_call_operand.vmem [shape: f32[1,64], index: 20, kind: input, shape index: {}]
  %s21 = inlined_call_operand.vmem [shape: bf16[256,64], index: 21, kind: input, shape index: {}]
  %s22 = inlined_call_operand.vmem [shape: f32[1,64], index: 22, kind: input, shape index: {}]
  %s23 = inlined_call_operand.vmem [shape: bf16[64,128], index: 23, kind: input, shape index: {}]
  %s24 = inlined_call_operand.vmem [shape: f32[1,128], index: 24, kind: input, shape index: {}]
  %s25 = inlined_call_operand.hbm [shape: f32[8,128], index: 25, kind: output, shape index: {}]
  %s26 = sld [smem:[#allocation0]]
  $region122: #{tpu_custom_call.1} parent=0
    _
  %s28 = ssub.s32 1, %s26
  %s29 = scalar_select 0, %s28, %s26
  $region1: #{tpu_custom_call.1} parent=0
    #allocation4 [shape = 'u8[8192]{0}', space=vmem, size = 0x2000, scoped, tag = 'input window, operand 7, single buffered']
    #allocation5 [shape = 's32[1]{0}', space=sflag, size = 0x4, scoped, tag = 'scoped memory for tpu_custom_call.1']
    #allocation6 [shape = 's32[1]{0}', space=sflag, size = 0x4, scoped, tag = 'scoped memory for tpu_custom_call.1']
    #allocation7 [shape = 'u8[8192]{0}', space=vmem, size = 0x2000, scoped, tag = 'input window, operand 9, single buffered']
    #allocation8 [shape = 's32[1]{0}', space=sflag, size = 0x4, scoped, tag = 'scoped memory for tpu_custom_call.1']
    #allocation9 [shape = 'u8[8192]{0}', space=vmem, size = 0x2000, scoped, tag = 'input window, operand 11, single buffered']
    #allocation10 [shape = 'u8[4096]{0}', space=vmem, size = 0x1000, scoped, tag = 'output window, operand 0, single buffered']
    %30 = vsyncpa [#allocation5], 0
    %31 = vsyncpa [#allocation8], 0
    %32 = vsyncpa [#allocation6], 0
    // Predicated region
    $region2: #{tpu_custom_call.1} parent=1 // pred_check
      _
    $region3: #{tpu_custom_call.1} parent=1 // pred_check_branch
      %34 = sbr.rel (0) target = $region5
    $region4: #{tpu_custom_call.1} parent=1 // pred_region
      _
    $region5: #{tpu_custom_call.1} parent=1 // pred_fallthru
      _
    // Predicated region
    $region6: #{tpu_custom_call.1} parent=1 // pred_check
      _
    $region7: #{tpu_custom_call.1} parent=1 // pred_check_branch
      %36 = sbr.rel (0) target = $region9
    $region8: #{tpu_custom_call.1} parent=1 // pred_region
      _
    $region9: #{tpu_custom_call.1} parent=1 // pred_fallthru
      _
    // Predicated region
    $region10: #{tpu_custom_call.1} parent=1 // pred_check
      _
    $region11: #{tpu_custom_call.1} parent=1 // pred_check_branch
      %38 = sbr.rel (0) target = $region13
    $region12: #{tpu_custom_call.1} parent=1 // pred_region
      _
    $region13: #{tpu_custom_call.1} parent=1 // pred_fallthru
      _
    // Predicated region
    $region14: #{tpu_custom_call.1} parent=1 // pred_check
      _
    $region15: #{tpu_custom_call.1} parent=1 // pred_check_branch
      %40 = sbr.rel (0) target = $region17
    $region16: #{tpu_custom_call.1} parent=1 // pred_region
      _
    $region17: #{tpu_custom_call.1} parent=1 // pred_fallthru
      _
    // Predicated region
    $region18: #{tpu_custom_call.1} parent=1 // pred_check
      _
    $region19: #{tpu_custom_call.1} parent=1 // pred_check_branch
      %42 = sbr.rel (0) target = $region21
    $region20: #{tpu_custom_call.1} parent=1 // pred_region
      _
    $region21: #{tpu_custom_call.1} parent=1 // pred_fallthru
      _
    // Predicated region
    $region22: #{tpu_custom_call.1} parent=1 // pred_check
      _
    $region23: #{tpu_custom_call.1} parent=1 // pred_check_branch
      %44 = sbr.rel (0) target = $region25
    $region24: #{tpu_custom_call.1} parent=1 // pred_region
      _
    $region25: #{tpu_custom_call.1} parent=1 // pred_fallthru
      _
    // Predicated region
    $region26: #{tpu_custom_call.1} parent=1 // pred_check
      _
    $region27: #{tpu_custom_call.1} parent=1 // pred_check_branch
      %46 = sbr.rel (0) target = $region29
    $region28: #{tpu_custom_call.1} parent=1 // pred_region
      _
    $region29: #{tpu_custom_call.1} parent=1 // pred_fallthru
      _
    // Predicated region
    $region30: #{tpu_custom_call.1} parent=1 // pred_check
      _
    $region31: #{tpu_custom_call.1} parent=1 // pred_check_branch
      %48 = sbr.rel (0) target = $region33
    $region32: #{tpu_custom_call.1} parent=1 // pred_region
      %s50 = ssub.s32 256, 256
      %51 = vsyncadd [#allocation5], %s50
      %s52 = sshll.u32 [#allocation4], 4
      %s53 = int_to_ptr.vmem [resolvable:$true] %s52
      %58 = dma.hbm_to_vmem [thread:$0]  %s7, 256, %s53, [#allocation5], 64, 64, 4
    $region33: #{tpu_custom_call.1} parent=1 // pred_fallthru
      _
    // Predicated region
    $region34: #{tpu_custom_call.1} parent=1 // pred_check
      _
    $region35: #{tpu_custom_call.1} parent=1 // pred_check_branch
      %60 = sbr.rel (0) target = $region37
    $region36: #{tpu_custom_call.1} parent=1 // pred_region
      _
    $region37: #{tpu_custom_call.1} parent=1 // pred_fallthru
      _
    // Predicated region
    $region38: #{tpu_custom_call.1} parent=1 // pred_check
      _
    $region39: #{tpu_custom_call.1} parent=1 // pred_check_branch
      %62 = sbr.rel (0) target = $region41
    $region40: #{tpu_custom_call.1} parent=1 // pred_region
      %s64 = ssub.s32 256, 256
      %65 = vsyncadd [#allocation8], %s64
      %s66 = sshll.u32 [#allocation7], 4
      %s67 = int_to_ptr.vmem [resolvable:$true] %s66
      %72 = dma.hbm_to_vmem [thread:$0]  %s9, 256, %s67, [#allocation8], 64, 64, 4
    $region41: #{tpu_custom_call.1} parent=1 // pred_fallthru
      _
    // Predicated region
    $region42: #{tpu_custom_call.1} parent=1 // pred_check
      _
    $region43: #{tpu_custom_call.1} parent=1 // pred_check_branch
      %74 = sbr.rel (0) target = $region45
    $region44: #{tpu_custom_call.1} parent=1 // pred_region
      _
    $region45: #{tpu_custom_call.1} parent=1 // pred_fallthru
      _
    // Predicated region
    $region46: #{tpu_custom_call.1} parent=1 // pred_check
      _
    $region47: #{tpu_custom_call.1} parent=1 // pred_check_branch
      %76 = sbr.rel (0) target = $region49
    $region48: #{tpu_custom_call.1} parent=1 // pred_region
      %s78 = ssub.s32 256, 256
      %79 = vsyncadd [#allocation8], %s78
      %s80 = sshll.u32 [#allocation9], 4
      %s81 = int_to_ptr.vmem [resolvable:$true] %s80
      %86 = dma.hbm_to_vmem [thread:$0]  %s11, 256, %s81, [#allocation8], 64, 64, 4
    $region49: #{tpu_custom_call.1} parent=1 // pred_fallthru
      _
    // Predicated region
    $region50: #{tpu_custom_call.1} parent=1 // pred_check
      _
    $region51: #{tpu_custom_call.1} parent=1 // pred_check_branch
      %88 = sbr.rel (0) target = $region53
    $region52: #{tpu_custom_call.1} parent=1 // pred_region
      _
    $region53: #{tpu_custom_call.1} parent=1 // pred_fallthru
      _
    // Predicated region
    $region54: #{tpu_custom_call.1} parent=1 // pred_check
      _
    $region55: #{tpu_custom_call.1} parent=1 // pred_check_branch
      %90 = sbr.rel (0) target = $region57
    $region56: #{tpu_custom_call.1} parent=1 // pred_region
      _
    $region57: #{tpu_custom_call.1} parent=1 // pred_fallthru
      _
    // Predicated region
    $region58: #{tpu_custom_call.1} parent=1 // pred_check
      _
    $region59: #{tpu_custom_call.1} parent=1 // pred_check_branch
      %92 = sbr.rel (0) target = $region61
    $region60: #{tpu_custom_call.1} parent=1 // pred_region
      _
    $region61: #{tpu_custom_call.1} parent=1 // pred_fallthru
      _
    // Predicated region
    $region62: #{tpu_custom_call.1} parent=1 // pred_check
      _
    $region63: #{tpu_custom_call.1} parent=1 // pred_check_branch
      %94 = sbr.rel (0) target = $region65
    $region64: #{tpu_custom_call.1} parent=1 // pred_region
      _
    $region65: #{tpu_custom_call.1} parent=1 // pred_fallthru
      _
    // Predicated region
    $region66: #{tpu_custom_call.1} parent=1 // pred_check
      _
    $region67: #{tpu_custom_call.1} parent=1 // pred_check_branch
      %96 = sbr.rel (0) target = $region69
    $region68: #{tpu_custom_call.1} parent=1 // pred_region
      _
    $region69: #{tpu_custom_call.1} parent=1 // pred_fallthru
      _
    // Predicated region
    $region70: #{tpu_custom_call.1} parent=1 // pred_check
      _
    $region71: #{tpu_custom_call.1} parent=1 // pred_check_branch
      %98 = sbr.rel (0) target = $region73
    $region72: #{tpu_custom_call.1} parent=1 // pred_region
      _
    $region73: #{tpu_custom_call.1} parent=1 // pred_fallthru
      _
    // Predicated region
    $region74: #{tpu_custom_call.1} parent=1 // pred_check
      _
    $region75: #{tpu_custom_call.1} parent=1 // pred_check_branch
      %100 = sbr.rel (0) target = $region77
    $region76: #{tpu_custom_call.1} parent=1 // pred_region
      _
    $region77: #{tpu_custom_call.1} parent=1 // pred_fallthru
      _
    // Predicated region
    $region78: #{tpu_custom_call.1} parent=1 // pred_check
      _
    $region79: #{tpu_custom_call.1} parent=1 // pred_check_branch
      %102 = sbr.rel (0) target = $region81
    $region80: #{tpu_custom_call.1} parent=1 // pred_region
      _
    $region81: #{tpu_custom_call.1} parent=1 // pred_fallthru
      _
    // Predicated region
    $region82: #{tpu_custom_call.1} parent=1 // pred_check
      _
    $region83: #{tpu_custom_call.1} parent=1 // pred_check_branch
      %104 = sbr.rel (0) target = $region85
    $region84: #{tpu_custom_call.1} parent=1 // pred_region
      _
    $region85: #{tpu_custom_call.1} parent=1 // pred_fallthru
      _
    // Predicated region
    $region86: #{tpu_custom_call.1} parent=1 // pred_check
      _
    $region87: #{tpu_custom_call.1} parent=1 // pred_check_branch
      %106 = sbr.rel (0) target = $region89
    $region88: #{tpu_custom_call.1} parent=1 // pred_region
      _
    $region89: #{tpu_custom_call.1} parent=1 // pred_fallthru
      _
    // Predicated region
    $region90: #{tpu_custom_call.1} parent=1 // pred_check
      _
    $region91: #{tpu_custom_call.1} parent=1 // pred_check_branch
      %108 = sbr.rel (0) target = $region93
    $region92: #{tpu_custom_call.1} parent=1 // pred_region
      _
    $region93: #{tpu_custom_call.1} parent=1 // pred_fallthru
      _
    // Predicated region
    $region94: #{tpu_custom_call.1} parent=1 // pred_check
      _
    $region95: #{tpu_custom_call.1} parent=1 // pred_check_branch
      %110 = sbr.rel (0) target = $region97
    $region96: #{tpu_custom_call.1} parent=1 // pred_region
      _
    $region97: #{tpu_custom_call.1} parent=1 // pred_fallthru
      _
    // Predicated region
    $region98: #{tpu_custom_call.1} parent=1 // pred_check
      _
    $region99: #{tpu_custom_call.1} parent=1 // pred_check_branch
      %112 = sbr.rel (0) target = $region101
    $region100: #{tpu_custom_call.1} parent=1 // pred_region
      _
    $region101: #{tpu_custom_call.1} parent=1 // pred_fallthru
      _
    // Predicated region
    $region102: #{tpu_custom_call.1} parent=1 // pred_check
      _
    $region103: #{tpu_custom_call.1} parent=1 // pred_check_branch
      %114 = sbr.rel (0) target = $region105
    $region104: #{tpu_custom_call.1} parent=1 // pred_region
      %115 = dma.done [#allocation5], 256
    $region105: #{tpu_custom_call.1} parent=1 // pred_fallthru
      _
    // Predicated region
    $region106: #{tpu_custom_call.1} parent=1 // pred_check
      _
    $region107: #{tpu_custom_call.1} parent=1 // pred_check_branch
      %117 = sbr.rel (0) target = $region109
    $region108: #{tpu_custom_call.1} parent=1 // pred_region
      %118 = dma.done [#allocation8], 256
    $region109: #{tpu_custom_call.1} parent=1 // pred_fallthru
      _
    // Predicated region
    $region110: #{tpu_custom_call.1} parent=1 // pred_check
      _
    $region111: #{tpu_custom_call.1} parent=1 // pred_check_branch
      %120 = sbr.rel (0) target = $region113
    $region112: #{tpu_custom_call.1} parent=1 // pred_region
      %121 = dma.done [#allocation8], 256
    $region113: #{tpu_custom_call.1} parent=1 // pred_fallthru
      _
    %v123 = vlaneseq
    %v124 = vshrl.u32 %v123, 7
    %v125 = vadd.s32 %v124, 8
    %v126 = vadd.s32 %v124, 16
    %v127 = vadd.s32 %v124, 24
    %v128 = vadd.s32 %v124, 32
    %v129 = vadd.s32 %v124, 40
    %v130 = vadd.s32 %v124, 48
    %v131 = vadd.s32 %v124, 56
    %v132 = vadd.s32 %v124, 64
    %v133 = vadd.s32 %v124, 72
    %v134 = vadd.s32 %v124, 80
    %v135 = vadd.s32 %v124, 88
    %v136 = vadd.s32 %v124, 96
    %v137 = vadd.s32 %v124, 104
    %v138 = vadd.s32 %v124, 112
    %v139 = vadd.s32 %v124, 120
    %v140 = vand.u32 %v124, 15
    %v141 = vand.u32 %v125, 15
    %v142 = vand.u32 %v126, 15
    %v143 = vand.u32 %v127, 15
    %v144 = vand.u32 %v128, 15
    %v145 = vand.u32 %v129, 15
    %v146 = vand.u32 %v130, 15
    %v147 = vand.u32 %v131, 15
    %v148 = vand.u32 %v132, 15
    %v149 = vand.u32 %v133, 15
    %v150 = vand.u32 %v134, 15
    %v151 = vand.u32 %v135, 15
    %v152 = vand.u32 %v136, 15
    %v153 = vand.u32 %v137, 15
    %v154 = vand.u32 %v138, 15
    %v155 = vand.u32 %v139, 15
    %vm156 = vcmp.ne.s32.totalorder %v140, 0
    %vm157 = vcmp.ne.s32.totalorder %v141, 0
    %vm158 = vcmp.ne.s32.totalorder %v142, 0
    %vm159 = vcmp.ne.s32.totalorder %v143, 0
    %vm160 = vcmp.ne.s32.totalorder %v144, 0
    %vm161 = vcmp.ne.s32.totalorder %v145, 0
    %vm162 = vcmp.ne.s32.totalorder %v146, 0
    %vm163 = vcmp.ne.s32.totalorder %v147, 0
    %vm164 = vcmp.ne.s32.totalorder %v148, 0
    %vm165 = vcmp.ne.s32.totalorder %v149, 0
    %vm166 = vcmp.ne.s32.totalorder %v150, 0
    %vm167 = vcmp.ne.s32.totalorder %v151, 0
    %vm168 = vcmp.ne.s32.totalorder %v152, 0
    %vm169 = vcmp.ne.s32.totalorder %v153, 0
    %vm170 = vcmp.ne.s32.totalorder %v154, 0
    %vm171 = vcmp.ne.s32.totalorder %v155, 0
    %v172 = vsel %vm156, 1, 0
    %v173 = vsel %vm157, 1, 0
    %v174 = vsel %vm158, 1, 0
    %v175 = vsel %vm159, 1, 0
    %v176 = vsel %vm160, 1, 0
    %v177 = vsel %vm161, 1, 0
    %v178 = vsel %vm162, 1, 0
    %v179 = vsel %vm163, 1, 0
    %v180 = vsel %vm164, 1, 0
    %v181 = vsel %vm165, 1, 0
    %v182 = vsel %vm166, 1, 0
    %v183 = vsel %vm167, 1, 0
    %v184 = vsel %vm168, 1, 0
    %v185 = vsel %vm169, 1, 0
    %v186 = vsel %vm170, 1, 0
    %v187 = vsel %vm171, 1, 0
    %v188 = vcvt.s32.f32 %v172
    %v189 = vcvt.s32.f32 %v173
    %v190 = vcvt.s32.f32 %v174
    %v191 = vcvt.s32.f32 %v175
    %v192 = vcvt.s32.f32 %v176
    %v193 = vcvt.s32.f32 %v177
    %v194 = vcvt.s32.f32 %v178
    %v195 = vcvt.s32.f32 %v179
    %v196 = vcvt.s32.f32 %v180
    %v197 = vcvt.s32.f32 %v181
    %v198 = vcvt.s32.f32 %v182
    %v199 = vcvt.s32.f32 %v183
    %v200 = vcvt.s32.f32 %v184
    %v201 = vcvt.s32.f32 %v185
    %v202 = vcvt.s32.f32 %v186
    %v203 = vcvt.s32.f32 %v187
    %vm204 = vcmp.ne.s32.totalorder %v140, 15
    %vm205 = vcmp.ne.s32.totalorder %v141, 15
    %vm206 = vcmp.ne.s32.totalorder %v142, 15
    %vm207 = vcmp.ne.s32.totalorder %v143, 15
    %vm208 = vcmp.ne.s32.totalorder %v144, 15
    %vm209 = vcmp.ne.s32.totalorder %v145, 15
    %vm210 = vcmp.ne.s32.totalorder %v146, 15
    %vm211 = vcmp.ne.s32.totalorder %v147, 15
    %vm212 = vcmp.ne.s32.totalorder %v148, 15
    %vm213 = vcmp.ne.s32.totalorder %v149, 15
    %vm214 = vcmp.ne.s32.totalorder %v150, 15
    %vm215 = vcmp.ne.s32.totalorder %v151, 15
    %vm216 = vcmp.ne.s32.totalorder %v152, 15
    %vm217 = vcmp.ne.s32.totalorder %v153, 15
    %vm218 = vcmp.ne.s32.totalorder %v154, 15
    %vm219 = vcmp.ne.s32.totalorder %v155, 15
    %v220 = vsel %vm204, 1, 0
    %v221 = vsel %vm205, 1, 0
    %v222 = vsel %vm206, 1, 0
    %v223 = vsel %vm207, 1, 0
    %v224 = vsel %vm208, 1, 0
    %v225 = vsel %vm209, 1, 0
    %v226 = vsel %vm210, 1, 0
    %v227 = vsel %vm211, 1, 0
    %v228 = vsel %vm212, 1, 0
    %v229 = vsel %vm213, 1, 0
    %v230 = vsel %vm214, 1, 0
    %v231 = vsel %vm215, 1, 0
    %v232 = vsel %vm216, 1, 0
    %v233 = vsel %vm217, 1, 0
    %v234 = vsel %vm218, 1, 0
    %v235 = vsel %vm219, 1, 0
    %v236 = vcvt.s32.f32 %v220
    %v237 = vcvt.s32.f32 %v221
    %v238 = vcvt.s32.f32 %v222
    %v239 = vcvt.s32.f32 %v223
    %v240 = vcvt.s32.f32 %v224
    %v241 = vcvt.s32.f32 %v225
    %v242 = vcvt.s32.f32 %v226
    %v243 = vcvt.s32.f32 %v227
    %v244 = vcvt.s32.f32 %v228
    %v245 = vcvt.s32.f32 %v229
    %v246 = vcvt.s32.f32 %v230
    %v247 = vcvt.s32.f32 %v231
    %v248 = vcvt.s32.f32 %v232
    %v249 = vcvt.s32.f32 %v233
    %v250 = vcvt.s32.f32 %v234
    %v251 = vcvt.s32.f32 %v235
    %v252 = vand.u32 %v124, 7
    %v253 = vand.u32 %v125, 7
    %v254 = vand.u32 %v126, 7
    %v255 = vand.u32 %v127, 7
    %v256 = vand.u32 %v128, 7
    %v257 = vand.u32 %v129, 7
    %v258 = vand.u32 %v130, 7
    %v259 = vand.u32 %v131, 7
    %vm260 = vcmp.ne.s32.totalorder %v252, 0
    %vm261 = vcmp.ne.s32.totalorder %v253, 0
    %vm262 = vcmp.ne.s32.totalorder %v254, 0
    %vm263 = vcmp.ne.s32.totalorder %v255, 0
    %vm264 = vcmp.ne.s32.totalorder %v256, 0
    %vm265 = vcmp.ne.s32.totalorder %v257, 0
    %vm266 = vcmp.ne.s32.totalorder %v258, 0
    %vm267 = vcmp.ne.s32.totalorder %v259, 0
    %v268 = vsel %vm260, 1, 0
    %v269 = vsel %vm261, 1, 0
    %v270 = vsel %vm262, 1, 0
    %v271 = vsel %vm263, 1, 0
    %v272 = vsel %vm264, 1, 0
    %v273 = vsel %vm265, 1, 0
    %v274 = vsel %vm266, 1, 0
    %v275 = vsel %vm267, 1, 0
    %v276 = vcvt.s32.f32 %v268
    %v277 = vcvt.s32.f32 %v269
    %v278 = vcvt.s32.f32 %v270
    %v279 = vcvt.s32.f32 %v271
    %v280 = vcvt.s32.f32 %v272
    %v281 = vcvt.s32.f32 %v273
    %v282 = vcvt.s32.f32 %v274
    %v283 = vcvt.s32.f32 %v275
    %vm284 = vcmp.ne.s32.totalorder %v252, 7
    %vm285 = vcmp.ne.s32.totalorder %v253, 7
    %vm286 = vcmp.ne.s32.totalorder %v254, 7
    %vm287 = vcmp.ne.s32.totalorder %v255, 7
    %vm288 = vcmp.ne.s32.totalorder %v256, 7
    %vm289 = vcmp.ne.s32.totalorder %v257, 7
    %vm290 = vcmp.ne.s32.totalorder %v258, 7
    %vm291 = vcmp.ne.s32.totalorder %v259, 7
    %v292 = vsel %vm284, 1, 0
    %v293 = vsel %vm285, 1, 0
    %v294 = vsel %vm286, 1, 0
    %v295 = vsel %vm287, 1, 0
    %v296 = vsel %vm288, 1, 0
    %v297 = vsel %vm289, 1, 0
    %v298 = vsel %vm290, 1, 0
    %v299 = vsel %vm291, 1, 0
    %v300 = vcvt.s32.f32 %v292
    %v301 = vcvt.s32.f32 %v293
    %v302 = vcvt.s32.f32 %v294
    %v303 = vcvt.s32.f32 %v295
    %v304 = vcvt.s32.f32 %v296
    %v305 = vcvt.s32.f32 %v297
    %v306 = vcvt.s32.f32 %v298
    %v307 = vcvt.s32.f32 %v299
    %v308 = vld [vmem:[%s0] sm:$0xff]
    %v309 = vld [vmem:[%s0 + $0x8] sm:$0xff]
    %v310 = vld [vmem:[%s0 + $0x10] sm:$0xff]
    %v311 = vld [vmem:[%s0 + $0x18] sm:$0xff]
    %v312 = vld [vmem:[%s0 + $0x20] sm:$0xff]
    %v313 = vld [vmem:[%s0 + $0x28] sm:$0xff]
    %v314 = vld [vmem:[%s0 + $0x30] sm:$0xff]
    %v315 = vld [vmem:[%s0 + $0x38] sm:$0xff]
    %v316 = vld [vmem:[%s0 + $0x40] sm:$0xff]
    %v317 = vld [vmem:[%s0 + $0x48] sm:$0xff]
    %v318 = vld [vmem:[%s0 + $0x50] sm:$0xff]
    %v319 = vld [vmem:[%s0 + $0x58] sm:$0xff]
    %v320 = vld [vmem:[%s0 + $0x60] sm:$0xff]
    %v321 = vld [vmem:[%s0 + $0x68] sm:$0xff]
    %v322 = vld [vmem:[%s0 + $0x70] sm:$0xff]
    %v323 = vld [vmem:[%s0 + $0x78] sm:$0xff]
    %v325 = vrot.slane %v323, 7
    %vm342 = vcmask 1040384
    %v343 = vrot.slane %v308, 7
    %v344 = vrot.slane %v309, 7
    %v345 = vsel %vm342, %v343, %v344
    %v346 = vrot.slane %v310, 7
    %v347 = vsel %vm342, %v344, %v346
    %v348 = vrot.slane %v311, 7
    %v349 = vsel %vm342, %v346, %v348
    %v350 = vrot.slane %v312, 7
    %v351 = vsel %vm342, %v348, %v350
    %v352 = vrot.slane %v313, 7
    %v353 = vsel %vm342, %v350, %v352
    %v354 = vrot.slane %v314, 7
    %v355 = vsel %vm342, %v352, %v354
    %v356 = vrot.slane %v315, 7
    %v357 = vsel %vm342, %v354, %v356
    %v358 = vrot.slane %v316, 7
    %v359 = vsel %vm342, %v356, %v358
    %v360 = vrot.slane %v317, 7
    %v361 = vsel %vm342, %v358, %v360
    %v362 = vrot.slane %v318, 7
    %v363 = vsel %vm342, %v360, %v362
    %v364 = vrot.slane %v319, 7
    %v365 = vsel %vm342, %v362, %v364
    %v366 = vrot.slane %v320, 7
    %v367 = vsel %vm342, %v364, %v366
    %v368 = vrot.slane %v321, 7
    %v369 = vsel %vm342, %v366, %v368
    %v370 = vrot.slane %v322, 7
    %v371 = vsel %vm342, %v368, %v370
    %v372 = vsel %vm342, %v370, %v325
    %v389 = vsel %vm342, %v325, %v343
    %v390 = vmul.f32 %v389, %v188
    %v391 = vmul.f32 %v345, %v189
    %v392 = vmul.f32 %v347, %v190
    %v393 = vmul.f32 %v349, %v191
    %v394 = vmul.f32 %v351, %v192
    %v395 = vmul.f32 %v353, %v193
    %v396 = vmul.f32 %v355, %v194
    %v397 = vmul.f32 %v357, %v195
    %v398 = vmul.f32 %v359, %v196
    %v399 = vmul.f32 %v361, %v197
    %v400 = vmul.f32 %v363, %v198
    %v401 = vmul.f32 %v365, %v199
    %v402 = vmul.f32 %v367, %v200
    %v403 = vmul.f32 %v369, %v201
    %v404 = vmul.f32 %v371, %v202
    %v405 = vmul.f32 %v372, %v203
    %vm406 = vcmask 1046528
    %v407 = vrot.slane %v308, 1
    %v408 = vrot.slane %v309, 1
    %v409 = vsel %vm406, %v407, %v408
    %v410 = vrot.slane %v310, 1
    %v411 = vsel %vm406, %v408, %v410
    %v412 = vrot.slane %v311, 1
    %v413 = vsel %vm406, %v410, %v412
    %v414 = vrot.slane %v312, 1
    %v415 = vsel %vm406, %v412, %v414
    %v416 = vrot.slane %v313, 1
    %v417 = vsel %vm406, %v414, %v416
    %v418 = vrot.slane %v314, 1
    %v419 = vsel %vm406, %v416, %v418
    %v420 = vrot.slane %v315, 1
    %v421 = vsel %vm406, %v418, %v420
    %v422 = vrot.slane %v316, 1
    %v423 = vsel %vm406, %v420, %v422
    %v424 = vrot.slane %v317, 1
    %v425 = vsel %vm406, %v422, %v424
    %v426 = vrot.slane %v318, 1
    %v427 = vsel %vm406, %v424, %v426
    %v428 = vrot.slane %v319, 1
    %v429 = vsel %vm406, %v426, %v428
    %v430 = vrot.slane %v320, 1
    %v431 = vsel %vm406, %v428, %v430
    %v432 = vrot.slane %v321, 1
    %v433 = vsel %vm406, %v430, %v432
    %v434 = vrot.slane %v322, 1
    %v435 = vsel %vm406, %v432, %v434
    %v436 = vrot.slane %v323, 1
    %v437 = vsel %vm406, %v434, %v436
    %v455 = vsel %vm406, %v436, %v407
    %v456 = vmul.f32 %v409, %v236
    %v457 = vmul.f32 %v411, %v237
    %v458 = vmul.f32 %v413, %v238
    %v459 = vmul.f32 %v415, %v239
    %v460 = vmul.f32 %v417, %v240
    %v461 = vmul.f32 %v419, %v241
    %v462 = vmul.f32 %v421, %v242
    %v463 = vmul.f32 %v423, %v243
    %v464 = vmul.f32 %v425, %v244
    %v465 = vmul.f32 %v427, %v245
    %v466 = vmul.f32 %v429, %v246
    %v467 = vmul.f32 %v431, %v247
    %v468 = vmul.f32 %v433, %v248
    %v469 = vmul.f32 %v435, %v249
    %v470 = vmul.f32 %v437, %v250
    %v471 = vmul.f32 %v455, %v251
    %v472 = vpack.c.bf16 %v309, %v308
    %v473 = vpack.c.bf16 %v311, %v310
    %v474 = vpack.c.bf16 %v313, %v312
    %v475 = vpack.c.bf16 %v315, %v314
    %v476 = vpack.c.bf16 %v317, %v316
    %v477 = vpack.c.bf16 %v319, %v318
    %v478 = vpack.c.bf16 %v321, %v320
    %v479 = vpack.c.bf16 %v323, %v322
    %v480 = vld [vmem:[%s2] sm:$0xf]
    %v481 = vld [vmem:[%s2 + $0x4] sm:$0xf]
    %v482 = vld [vmem:[%s2 + $0x8] sm:$0xf]
    %v483 = vld [vmem:[%s2 + $0xc] sm:$0xf]
    %v484 = vpack.c.bf16 %v391, %v390
    %v485 = vpack.c.bf16 %v393, %v392
    %v486 = vpack.c.bf16 %v395, %v394
    %v487 = vpack.c.bf16 %v397, %v396
    %v488 = vpack.c.bf16 %v399, %v398
    %v489 = vpack.c.bf16 %v401, %v400
    %v490 = vpack.c.bf16 %v403, %v402
    %v491 = vpack.c.bf16 %v405, %v404
    %v492 = vld [vmem:[%s1] sm:$0xf]
    %v493 = vld [vmem:[%s1 + $0x4] sm:$0xf]
    %v494 = vld [vmem:[%s1 + $0x8] sm:$0xf]
    %v495 = vld [vmem:[%s1 + $0xc] sm:$0xf]
    %v500 = vunpack.c.l.b16 %v492
    %v501 = vunpack.c.l.b16 %v493
    %v502 = vunpack.c.l.b16 %v494
    %v503 = vunpack.c.l.b16 %v495
    %v504 = vpack.c.b16 %v501, %v500
    %v505 = vpack.c.b16 %v503, %v502
    %vm508 = vcmask 261120
    %v510 = vsel %vm508, %v484, 0
    %v513 = vsel %vm508, %v485, 0
    %v516 = vsel %vm508, %v486, 0
    %v519 = vsel %vm508, %v487, 0
    %v522 = vsel %vm508, %v488, 0
    %v525 = vsel %vm508, %v489, 0
    %v528 = vsel %vm508, %v490, 0
    %v531 = vsel %vm508, %v491, 0
    %533 = vmatprep.subr.bf16.mxu0 0
    %534 = vmatpush1.bf16.msra.mxu0 %v504
    %535 = vmatprep.subr.bf16.mxu0 0
    %536 = vmatpush1.bf16.msra.mxu0 %v505
    %537 = vmatprep.subr.bf16.mxu0 0
    %538 = vmatpush1.bf16.msra.mxu0 0
    %539 = vmatprep.subr.bf16.mxu0 0
    %540 = vmatpush1.bf16.msra.mxu0 0
    %541 = vmatprep.subr.bf16.mxu0 0
    %542 = vmatpush1.bf16.msra.mxu0 0
    %543 = vmatprep.subr.bf16.mxu0 0
    %544 = vmatpush1.bf16.msra.mxu0 0
    %545 = vmatprep.subr.bf16.mxu0 0
    %546 = vmatpush1.bf16.msra.mxu0 0
    %547 = vmatprep.subr.bf16.mxu0 0
    %548 = vmatpush1.bf16.msra.mxu0 0
    %549 = vmatprep.subr.bf16.mxu0 0
    %550 = vmatpush1.bf16.msra.mxu0 0
    %551 = vmatprep.subr.bf16.mxu0 0
    %552 = vmatpush1.bf16.msra.mxu0 0
    %553 = vmatprep.subr.bf16.mxu0 0
    %554 = vmatpush1.bf16.msra.mxu0 0
    %555 = vmatprep.subr.bf16.mxu0 0
    %556 = vmatpush1.bf16.msra.mxu0 0
    %557 = vmatprep.subr.bf16.mxu0 0
    %558 = vmatpush1.bf16.msra.mxu0 0
    %559 = vmatprep.subr.bf16.mxu0 0
    %560 = vmatpush1.bf16.msra.mxu0 0
    %561 = vmatprep.subr.bf16.mxu0 0
    %562 = vmatpush1.bf16.msra.mxu0 0
    %563 = vmatprep.subr.bf16.mxu0 0
    %564 = vmatpush1.bf16.msra.mxu0 0
    %565 = vmatprep.mubr.bf16.mxu0 0
    %566 = vmatmul.mubr.bf16.gmra.mrb[0].mxu0 %v510
    %v567 = vpop.f32.mrb[0].mxu0
    %v568 = vadd.f32 0.0, %v567
    %v569 = vpop.f32.mrb[0].mxu0
    %v570 = vpop.f32.mrb[0].mxu0
    %v571 = vadd.f32 0.0, %v570
    %v572 = vpop.f32.mrb[0].mxu0
    %573 = vmatprep.mubr.bf16.mxu0 0
    %574 = vmatmul.mubr.bf16.gmra.mrb[0].mxu0 %v513
    %v575 = vpop.f32.mrb[0].mxu0
    %v576 = vadd.f32 0.0, %v575
    %v577 = vpop.f32.mrb[0].mxu0
    %v578 = vpop.f32.mrb[0].mxu0
    %v579 = vadd.f32 0.0, %v578
    %v580 = vpop.f32.mrb[0].mxu0
    %581 = vmatprep.mubr.bf16.mxu0 0
    %582 = vmatmul.mubr.bf16.gmra.mrb[0].mxu0 %v516
    %v583 = vpop.f32.mrb[0].mxu0
    %v584 = vadd.f32 0.0, %v583
    %v585 = vpop.f32.mrb[0].mxu0
    %v586 = vpop.f32.mrb[0].mxu0
    %v587 = vadd.f32 0.0, %v586
    %v588 = vpop.f32.mrb[0].mxu0
    %589 = vmatprep.mubr.bf16.mxu0 0
    %590 = vmatmul.mubr.bf16.gmra.mrb[0].mxu0 %v519
    %v591 = vpop.f32.mrb[0].mxu0
    %v592 = vadd.f32 0.0, %v591
    %v593 = vpop.f32.mrb[0].mxu0
    %v594 = vpop.f32.mrb[0].mxu0
    %v595 = vadd.f32 0.0, %v594
    %v596 = vpop.f32.mrb[0].mxu0
    %597 = vmatprep.mubr.bf16.mxu0 0
    %598 = vmatmul.mubr.bf16.gmra.mrb[0].mxu0 %v522
    %v599 = vpop.f32.mrb[0].mxu0
    %v600 = vadd.f32 0.0, %v599
    %v601 = vpop.f32.mrb[0].mxu0
    %v602 = vpop.f32.mrb[0].mxu0
    %v603 = vadd.f32 0.0, %v602
    %v604 = vpop.f32.mrb[0].mxu0
    %605 = vmatprep.mubr.bf16.mxu0 0
    %606 = vmatmul.mubr.bf16.gmra.mrb[0].mxu0 %v525
    %v607 = vpop.f32.mrb[0].mxu0
    %v608 = vadd.f32 0.0, %v607
    %v609 = vpop.f32.mrb[0].mxu0
    %v610 = vpop.f32.mrb[0].mxu0
    %v611 = vadd.f32 0.0, %v610
    %v612 = vpop.f32.mrb[0].mxu0
    %613 = vmatprep.mubr.bf16.mxu0 0
    %614 = vmatmul.mubr.bf16.gmra.mrb[0].mxu0 %v528
    %v615 = vpop.f32.mrb[0].mxu0
    %v616 = vadd.f32 0.0, %v615
    %v617 = vpop.f32.mrb[0].mxu0
    %v618 = vpop.f32.mrb[0].mxu0
    %v619 = vadd.f32 0.0, %v618
    %v620 = vpop.f32.mrb[0].mxu0
    %621 = vmatprep.mubr.bf16.mxu0 0
    %622 = vmatmul.mubr.bf16.gmra.mrb[0].mxu0 %v531
    %v623 = vpop.f32.mrb[0].mxu0
    %v624 = vadd.f32 0.0, %v623
    %v625 = vpop.f32.mrb[0].mxu0
    %v626 = vpop.f32.mrb[0].mxu0
    %v627 = vadd.f32 0.0, %v626
    %v628 = vpop.f32.mrb[0].mxu0
    %629 = vdwg.mxu0
    %v634 = vunpack.c.l.b16 %v480
    %v635 = vunpack.c.l.b16 %v481
    %v636 = vunpack.c.l.b16 %v482
    %v637 = vunpack.c.l.b16 %v483
    %v638 = vpack.c.b16 %v635, %v634
    %v639 = vpack.c.b16 %v637, %v636
    %v643 = vsel %vm508, %v472, 0
    %v646 = vsel %vm508, %v473, 0
    %v649 = vsel %vm508, %v474, 0
    %v652 = vsel %vm508, %v475, 0
    %v655 = vsel %vm508, %v476, 0
    %v658 = vsel %vm508, %v477, 0
    %v661 = vsel %vm508, %v478, 0
    %v664 = vsel %vm508, %v479, 0
    %666 = vmatprep.subr.bf16.mxu0 0
    %667 = vmatpush1.bf16.msra.mxu0 %v638
    %668 = vmatprep.subr.bf16.mxu0 0
    %669 = vmatpush1.bf16.msra.mxu0 %v639
    %670 = vmatprep.subr.bf16.mxu0 0
    %671 = vmatpush1.bf16.msra.mxu0 0
    %672 = vmatprep.subr.bf16.mxu0 0
    %673 = vmatpush1.bf16.msra.mxu0 0
    %674 = vmatprep.subr.bf16.mxu0 0
    %675 = vmatpush1.bf16.msra.mxu0 0
    %676 = vmatprep.subr.bf16.mxu0 0
    %677 = vmatpush1.bf16.msra.mxu0 0
    %678 = vmatprep.subr.bf16.mxu0 0
    %679 = vmatpush1.bf16.msra.mxu0 0
    %680 = vmatprep.subr.bf16.mxu0 0
    %681 = vmatpush1.bf16.msra.mxu0 0
    %682 = vmatprep.subr.bf16.mxu0 0
    %683 = vmatpush1.bf16.msra.mxu0 0
    %684 = vmatprep.subr.bf16.mxu0 0
    %685 = vmatpush1.bf16.msra.mxu0 0
    %686 = vmatprep.subr.bf16.mxu0 0
    %687 = vmatpush1.bf16.msra.mxu0 0
    %688 = vmatprep.subr.bf16.mxu0 0
    %689 = vmatpush1.bf16.msra.mxu0 0
    %690 = vmatprep.subr.bf16.mxu0 0
    %691 = vmatpush1.bf16.msra.mxu0 0
    %692 = vmatprep.subr.bf16.mxu0 0
    %693 = vmatpush1.bf16.msra.mxu0 0
    %694 = vmatprep.subr.bf16.mxu0 0
    %695 = vmatpush1.bf16.msra.mxu0 0
    %696 = vmatprep.subr.bf16.mxu0 0
    %697 = vmatpush1.bf16.msra.mxu0 0
    %698 = vmatprep.mubr.bf16.mxu0 0
    %699 = vmatmul.mubr.bf16.gmra.mrb[0].mxu0 %v643
    %v700 = vpop.f32.mrb[0].mxu0
    %v701 = vadd.f32 %v568, %v700
    %v702 = vpop.f32.mrb[0].mxu0
    %v703 = vpop.f32.mrb[0].mxu0
    %v704 = vadd.f32 %v571, %v703
    %v705 = vpop.f32.mrb[0].mxu0
    %706 = vmatprep.mubr.bf16.mxu0 0
    %707 = vmatmul.mubr.bf16.gmra.mrb[0].mxu0 %v646
    %v708 = vpop.f32.mrb[0].mxu0
    %v709 = vadd.f32 %v576, %v708
    %v710 = vpop.f32.mrb[0].mxu0
    %v711 = vpop.f32.mrb[0].mxu0
    %v712 = vadd.f32 %v579, %v711
    %v713 = vpop.f32.mrb[0].mxu0
    %714 = vmatprep.mubr.bf16.mxu0 0
    %715 = vmatmul.mubr.bf16.gmra.mrb[0].mxu0 %v649
    %v716 = vpop.f32.mrb[0].mxu0
    %v717 = vadd.f32 %v584, %v716
    %v718 = vpop.f32.mrb[0].mxu0
    %v719 = vpop.f32.mrb[0].mxu0
    %v720 = vadd.f32 %v587, %v719
    %v721 = vpop.f32.mrb[0].mxu0
    %722 = vmatprep.mubr.bf16.mxu0 0
    %723 = vmatmul.mubr.bf16.gmra.mrb[0].mxu0 %v652
    %v724 = vpop.f32.mrb[0].mxu0
    %v725 = vadd.f32 %v592, %v724
    %v726 = vpop.f32.mrb[0].mxu0
    %v727 = vpop.f32.mrb[0].mxu0
    %v728 = vadd.f32 %v595, %v727
    %v729 = vpop.f32.mrb[0].mxu0
    %730 = vmatprep.mubr.bf16.mxu0 0
    %731 = vmatmul.mubr.bf16.gmra.mrb[0].mxu0 %v655
    %v732 = vpop.f32.mrb[0].mxu0
    %v733 = vadd.f32 %v600, %v732
    %v734 = vpop.f32.mrb[0].mxu0
    %v735 = vpop.f32.mrb[0].mxu0
    %v736 = vadd.f32 %v603, %v735
    %v737 = vpop.f32.mrb[0].mxu0
    %738 = vmatprep.mubr.bf16.mxu0 0
    %739 = vmatmul.mubr.bf16.gmra.mrb[0].mxu0 %v658
    %v740 = vpop.f32.mrb[0].mxu0
    %v741 = vadd.f32 %v608, %v740
    %v742 = vpop.f32.mrb[0].mxu0
    %v743 = vpop.f32.mrb[0].mxu0
    %v744 = vadd.f32 %v611, %v743
    %v745 = vpop.f32.mrb[0].mxu0
    %746 = vmatprep.mubr.bf16.mxu0 0
    %747 = vmatmul.mubr.bf16.gmra.mrb[0].mxu0 %v661
    %v748 = vpop.f32.mrb[0].mxu0
    %v749 = vadd.f32 %v616, %v748
    %v750 = vpop.f32.mrb[0].mxu0
    %v751 = vpop.f32.mrb[0].mxu0
    %v752 = vadd.f32 %v619, %v751
    %v753 = vpop.f32.mrb[0].mxu0
    %754 = vmatprep.mubr.bf16.mxu0 0
    %755 = vmatmul.mubr.bf16.gmra.mrb[0].mxu0 %v664
    %v756 = vpop.f32.mrb[0].mxu0
    %v757 = vadd.f32 %v624, %v756
    %v758 = vpop.f32.mrb[0].mxu0
    %v759 = vpop.f32.mrb[0].mxu0
    %v760 = vadd.f32 %v627, %v759
    %v761 = vpop.f32.mrb[0].mxu0
    %762 = vdwg.mxu0
    %v763 = vpack.c.bf16 %v457, %v456
    %v764 = vpack.c.bf16 %v459, %v458
    %v765 = vpack.c.bf16 %v461, %v460
    %v766 = vpack.c.bf16 %v463, %v462
    %v767 = vpack.c.bf16 %v465, %v464
    %v768 = vpack.c.bf16 %v467, %v466
    %v769 = vpack.c.bf16 %v469, %v468
    %v770 = vpack.c.bf16 %v471, %v470
    %v771 = vld [vmem:[%s3] sm:$0xf]
    %v772 = vld [vmem:[%s3 + $0x4] sm:$0xf]
    %v773 = vld [vmem:[%s3 + $0x8] sm:$0xf]
    %v774 = vld [vmem:[%s3 + $0xc] sm:$0xf]
    %v779 = vunpack.c.l.b16 %v771
    %v780 = vunpack.c.l.b16 %v772
    %v781 = vunpack.c.l.b16 %v773
    %v782 = vunpack.c.l.b16 %v774
    %v783 = vpack.c.b16 %v780, %v779
    %v784 = vpack.c.b16 %v782, %v781
    %v788 = vsel %vm508, %v763, 0
    %v791 = vsel %vm508, %v764, 0
    %v794 = vsel %vm508, %v765, 0
    %v797 = vsel %vm508, %v766, 0
    %v800 = vsel %vm508, %v767, 0
    %v803 = vsel %vm508, %v768, 0
    %v806 = vsel %vm508, %v769, 0
    %v809 = vsel %vm508, %v770, 0
    %811 = vmatprep.subr.bf16.mxu0 0
    %812 = vmatpush1.bf16.msra.mxu0 %v783
    %813 = vmatprep.subr.bf16.mxu0 0
    %814 = vmatpush1.bf16.msra.mxu0 %v784
    %815 = vmatprep.subr.bf16.mxu0 0
    %816 = vmatpush1.bf16.msra.mxu0 0
    %817 = vmatprep.subr.bf16.mxu0 0
    %818 = vmatpush1.bf16.msra.mxu0 0
    %819 = vmatprep.subr.bf16.mxu0 0
    %820 = vmatpush1.bf16.msra.mxu0 0
    %821 = vmatprep.subr.bf16.mxu0 0
    %822 = vmatpush1.bf16.msra.mxu0 0
    %823 = vmatprep.subr.bf16.mxu0 0
    %824 = vmatpush1.bf16.msra.mxu0 0
    %825 = vmatprep.subr.bf16.mxu0 0
    %826 = vmatpush1.bf16.msra.mxu0 0
    %827 = vmatprep.subr.bf16.mxu0 0
    %828 = vmatpush1.bf16.msra.mxu0 0
    %829 = vmatprep.subr.bf16.mxu0 0
    %830 = vmatpush1.bf16.msra.mxu0 0
    %831 = vmatprep.subr.bf16.mxu0 0
    %832 = vmatpush1.bf16.msra.mxu0 0
    %833 = vmatprep.subr.bf16.mxu0 0
    %834 = vmatpush1.bf16.msra.mxu0 0
    %835 = vmatprep.subr.bf16.mxu0 0
    %836 = vmatpush1.bf16.msra.mxu0 0
    %837 = vmatprep.subr.bf16.mxu0 0
    %838 = vmatpush1.bf16.msra.mxu0 0
    %839 = vmatprep.subr.bf16.mxu0 0
    %840 = vmatpush1.bf16.msra.mxu0 0
    %841 = vmatprep.subr.bf16.mxu0 0
    %842 = vmatpush1.bf16.msra.mxu0 0
    %843 = vmatprep.mubr.bf16.mxu0 0
    %844 = vmatmul.mubr.bf16.gmra.mrb[0].mxu0 %v788
    %v845 = vpop.f32.mrb[0].mxu0
    %v846 = vadd.f32 0.0, %v845
    %v847 = vpop.f32.mrb[0].mxu0
    %v848 = vpop.f32.mrb[0].mxu0
    %v849 = vadd.f32 0.0, %v848
    %v850 = vpop.f32.mrb[0].mxu0
    %851 = vmatprep.mubr.bf16.mxu0 0
    %852 = vmatmul.mubr.bf16.gmra.mrb[0].mxu0 %v791
    %v853 = vpop.f32.mrb[0].mxu0
    %v854 = vadd.f32 0.0, %v853
    %v855 = vpop.f32.mrb[0].mxu0
    %v856 = vpop.f32.mrb[0].mxu0
    %v857 = vadd.f32 0.0, %v856
    %v858 = vpop.f32.mrb[0].mxu0
    %859 = vmatprep.mubr.bf16.mxu0 0
    %860 = vmatmul.mubr.bf16.gmra.mrb[0].mxu0 %v794
    %v861 = vpop.f32.mrb[0].mxu0
    %v862 = vadd.f32 0.0, %v861
    %v863 = vpop.f32.mrb[0].mxu0
    %v864 = vpop.f32.mrb[0].mxu0
    %v865 = vadd.f32 0.0, %v864
    %v866 = vpop.f32.mrb[0].mxu0
    %867 = vmatprep.mubr.bf16.mxu0 0
    %868 = vmatmul.mubr.bf16.gmra.mrb[0].mxu0 %v797
    %v869 = vpop.f32.mrb[0].mxu0
    %v870 = vadd.f32 0.0, %v869
    %v871 = vpop.f32.mrb[0].mxu0
    %v872 = vpop.f32.mrb[0].mxu0
    %v873 = vadd.f32 0.0, %v872
    %v874 = vpop.f32.mrb[0].mxu0
    %875 = vmatprep.mubr.bf16.mxu0 0
    %876 = vmatmul.mubr.bf16.gmra.mrb[0].mxu0 %v800
    %v877 = vpop.f32.mrb[0].mxu0
    %v878 = vadd.f32 0.0, %v877
    %v879 = vpop.f32.mrb[0].mxu0
    %v880 = vpop.f32.mrb[0].mxu0
    %v881 = vadd.f32 0.0, %v880
    %v882 = vpop.f32.mrb[0].mxu0
    %883 = vmatprep.mubr.bf16.mxu0 0
    %884 = vmatmul.mubr.bf16.gmra.mrb[0].mxu0 %v803
    %v885 = vpop.f32.mrb[0].mxu0
    %v886 = vadd.f32 0.0, %v885
    %v887 = vpop.f32.mrb[0].mxu0
    %v888 = vpop.f32.mrb[0].mxu0
    %v889 = vadd.f32 0.0, %v888
    %v890 = vpop.f32.mrb[0].mxu0
    %891 = vmatprep.mubr.bf16.mxu0 0
    %892 = vmatmul.mubr.bf16.gmra.mrb[0].mxu0 %v806
    %v893 = vpop.f32.mrb[0].mxu0
    %v894 = vadd.f32 0.0, %v893
    %v895 = vpop.f32.mrb[0].mxu0
    %v896 = vpop.f32.mrb[0].mxu0
    %v897 = vadd.f32 0.0, %v896
    %v898 = vpop.f32.mrb[0].mxu0
    %899 = vmatprep.mubr.bf16.mxu0 0
    %900 = vmatmul.mubr.bf16.gmra.mrb[0].mxu0 %v809
    %v901 = vpop.f32.mrb[0].mxu0
    %v902 = vadd.f32 0.0, %v901
    %v903 = vpop.f32.mrb[0].mxu0
    %v904 = vpop.f32.mrb[0].mxu0
    %v905 = vadd.f32 0.0, %v904
    %v906 = vpop.f32.mrb[0].mxu0
    %907 = vdwg.mxu0
    %v908 = vadd.f32 %v701, %v846
    %v909 = vadd.f32 %v704, %v849
    %v910 = vadd.f32 %v709, %v854
    %v911 = vadd.f32 %v712, %v857
    %v912 = vadd.f32 %v717, %v862
    %v913 = vadd.f32 %v720, %v865
    %v914 = vadd.f32 %v725, %v870
    %v915 = vadd.f32 %v728, %v873
    %v916 = vadd.f32 %v733, %v878
    %v917 = vadd.f32 %v736, %v881
    %v918 = vadd.f32 %v741, %v886
    %v919 = vadd.f32 %v744, %v889
    %v920 = vadd.f32 %v749, %v894
    %v921 = vadd.f32 %v752, %v897
    %v922 = vadd.f32 %v757, %v902
    %v923 = vadd.f32 %v760, %v905
    %v924 = vld [vmem:[%s4] sm:$0x1]
    %v926 = vlaneseq
    %v927 = vshrl.u32 %v926, 7
    %v928 = vsub.s32 0, %v927
    %v929 = vrot.slane %v924, %v928
    %v931 = vadd.f32 %v908, %v929
    %v932 = vadd.f32 %v909, %v929
    %v933 = vadd.f32 %v910, %v929
    %v934 = vadd.f32 %v911, %v929
    %v935 = vadd.f32 %v912, %v929
    %v936 = vadd.f32 %v913, %v929
    %v937 = vadd.f32 %v914, %v929
    %v938 = vadd.f32 %v915, %v929
    %v939 = vadd.f32 %v916, %v929
    %v940 = vadd.f32 %v917, %v929
    %v941 = vadd.f32 %v918, %v929
    %v942 = vadd.f32 %v919, %v929
    %v943 = vadd.f32 %v920, %v929
    %v944 = vadd.f32 %v921, %v929
    %v945 = vadd.f32 %v922, %v929
    %v946 = vadd.f32 %v923, %v929
    %v947 = vmax.f32 %v931, 0.0
    %v948 = vmax.f32 %v932, 0.0
    %v949 = vmax.f32 %v933, 0.0
    %v950 = vmax.f32 %v934, 0.0
    %v951 = vmax.f32 %v935, 0.0
    %v952 = vmax.f32 %v936, 0.0
    %v953 = vmax.f32 %v937, 0.0
    %v954 = vmax.f32 %v938, 0.0
    %v955 = vmax.f32 %v939, 0.0
    %v956 = vmax.f32 %v940, 0.0
    %v957 = vmax.f32 %v941, 0.0
    %v958 = vmax.f32 %v942, 0.0
    %v959 = vmax.f32 %v943, 0.0
    %v960 = vmax.f32 %v944, 0.0
    %v961 = vmax.f32 %v945, 0.0
    %v962 = vmax.f32 %v946, 0.0
    %v964 = vrot.slane %v962, 7
    %v981 = vrot.slane %v947, 7
    %v982 = vrot.slane %v948, 7
    %v983 = vsel %vm342, %v981, %v982
    %v984 = vrot.slane %v949, 7
    %v985 = vsel %vm342, %v982, %v984
    %v986 = vrot.slane %v950, 7
    %v987 = vsel %vm342, %v984, %v986
    %v988 = vrot.slane %v951, 7
    %v989 = vsel %vm342, %v986, %v988
    %v990 = vrot.slane %v952, 7
    %v991 = vsel %vm342, %v988, %v990
    %v992 = vrot.slane %v953, 7
    %v993 = vsel %vm342, %v990, %v992
    %v994 = vrot.slane %v954, 7
    %v995 = vsel %vm342, %v992, %v994
    %v996 = vrot.slane %v955, 7
    %v997 = vsel %vm342, %v994, %v996
    %v998 = vrot.slane %v956, 7
    %v999 = vsel %vm342, %v996, %v998
    %v1000 = vrot.slane %v957, 7
    %v1001 = vsel %vm342, %v998, %v1000
    %v1002 = vrot.slane %v958, 7
    %v1003 = vsel %vm342, %v1000, %v1002
    %v1004 = vrot.slane %v959, 7
    %v1005 = vsel %vm342, %v1002, %v1004
    %v1006 = vrot.slane %v960, 7
    %v1007 = vsel %vm342, %v1004, %v1006
    %v1008 = vrot.slane %v961, 7
    %v1009 = vsel %vm342, %v1006, %v1008
    %v1010 = vsel %vm342, %v1008, %v964
    %v1027 = vsel %vm342, %v964, %v981
    %v1028 = vmul.f32 %v1027, %v188
    %v1029 = vmul.f32 %v983, %v189
    %v1030 = vmul.f32 %v985, %v190
    %v1031 = vmul.f32 %v987, %v191
    %v1032 = vmul.f32 %v989, %v192
    %v1033 = vmul.f32 %v991, %v193
    %v1034 = vmul.f32 %v993, %v194
    %v1035 = vmul.f32 %v995, %v195
    %v1036 = vmul.f32 %v997, %v196
    %v1037 = vmul.f32 %v999, %v197
    %v1038 = vmul.f32 %v1001, %v198
    %v1039 = vmul.f32 %v1003, %v199
    %v1040 = vmul.f32 %v1005, %v200
    %v1041 = vmul.f32 %v1007, %v201
    %v1042 = vmul.f32 %v1009, %v202
    %v1043 = vmul.f32 %v1010, %v203
    %v1044 = vrot.slane %v947, 1
    %v1045 = vrot.slane %v948, 1
    %v1046 = vsel %vm406, %v1044, %v1045
    %v1047 = vrot.slane %v949, 1
    %v1048 = vsel %vm406, %v1045, %v1047
    %v1049 = vrot.slane %v950, 1
    %v1050 = vsel %vm406, %v1047, %v1049
    %v1051 = vrot.slane %v951, 1
    %v1052 = vsel %vm406, %v1049, %v1051
    %v1053 = vrot.slane %v952, 1
    %v1054 = vsel %vm406, %v1051, %v1053
    %v1055 = vrot.slane %v953, 1
    %v1056 = vsel %vm406, %v1053, %v1055
    %v1057 = vrot.slane %v954, 1
    %v1058 = vsel %vm406, %v1055, %v1057
    %v1059 = vrot.slane %v955, 1
    %v1060 = vsel %vm406, %v1057, %v1059
    %v1061 = vrot.slane %v956, 1
    %v1062 = vsel %vm406, %v1059, %v1061
    %v1063 = vrot.slane %v957, 1
    %v1064 = vsel %vm406, %v1061, %v1063
    %v1065 = vrot.slane %v958, 1
    %v1066 = vsel %vm406, %v1063, %v1065
    %v1067 = vrot.slane %v959, 1
    %v1068 = vsel %vm406, %v1065, %v1067
    %v1069 = vrot.slane %v960, 1
    %v1070 = vsel %vm406, %v1067, %v1069
    %v1071 = vrot.slane %v961, 1
    %v1072 = vsel %vm406, %v1069, %v1071
    %v1073 = vrot.slane %v962, 1
    %v1074 = vsel %vm406, %v1071, %v1073
    %v1092 = vsel %vm406, %v1073, %v1044
    %v1093 = vmul.f32 %v1046, %v236
    %v1094 = vmul.f32 %v1048, %v237
    %v1095 = vmul.f32 %v1050, %v238
    %v1096 = vmul.f32 %v1052, %v239
    %v1097 = vmul.f32 %v1054, %v240
    %v1098 = vmul.f32 %v1056, %v241
    %v1099 = vmul.f32 %v1058, %v242
    %v1100 = vmul.f32 %v1060, %v243
    %v1101 = vmul.f32 %v1062, %v244
    %v1102 = vmul.f32 %v1064, %v245
    %v1103 = vmul.f32 %v1066, %v246
    %v1104 = vmul.f32 %v1068, %v247
    %v1105 = vmul.f32 %v1070, %v248
    %v1106 = vmul.f32 %v1072, %v249
    %v1107 = vmul.f32 %v1074, %v250
    %v1108 = vmul.f32 %v1092, %v251
    %v1109 = vpack.c.bf16 %v948, %v947
    %v1110 = vpack.c.bf16 %v950, %v949
    %v1111 = vpack.c.bf16 %v952, %v951
    %v1112 = vpack.c.bf16 %v954, %v953
    %v1113 = vpack.c.bf16 %v956, %v955
    %v1114 = vpack.c.bf16 %v958, %v957
    %v1115 = vpack.c.bf16 %v960, %v959
    %v1116 = vpack.c.bf16 %v962, %v961
    %v1117 = vld [vmem:[%s6] sm:$0xf]
    %v1118 = vld [vmem:[%s6 + $0x4] sm:$0xf]
    %v1119 = vld [vmem:[%s6 + $0x8] sm:$0xf]
    %v1120 = vld [vmem:[%s6 + $0xc] sm:$0xf]
    %v1121 = vpack.c.bf16 %v1029, %v1028
    %v1122 = vpack.c.bf16 %v1031, %v1030
    %v1123 = vpack.c.bf16 %v1033, %v1032
    %v1124 = vpack.c.bf16 %v1035, %v1034
    %v1125 = vpack.c.bf16 %v1037, %v1036
    %v1126 = vpack.c.bf16 %v1039, %v1038
    %v1127 = vpack.c.bf16 %v1041, %v1040
    %v1128 = vpack.c.bf16 %v1043, %v1042
    %v1129 = vld [vmem:[%s5] sm:$0xf]
    %v1130 = vld [vmem:[%s5 + $0x4] sm:$0xf]
    %v1131 = vld [vmem:[%s5 + $0x8] sm:$0xf]
    %v1132 = vld [vmem:[%s5 + $0xc] sm:$0xf]
    %v1137 = vunpack.c.l.b16 %v1129
    %v1138 = vunpack.c.l.b16 %v1130
    %v1139 = vunpack.c.l.b16 %v1131
    %v1140 = vunpack.c.l.b16 %v1132
    %v1141 = vpack.c.b16 %v1138, %v1137
    %v1142 = vpack.c.b16 %v1140, %v1139
    %v1146 = vsel %vm508, %v1121, 0
    %v1149 = vsel %vm508, %v1122, 0
    %v1152 = vsel %vm508, %v1123, 0
    %v1155 = vsel %vm508, %v1124, 0
    %v1158 = vsel %vm508, %v1125, 0
    %v1161 = vsel %vm508, %v1126, 0
    %v1164 = vsel %vm508, %v1127, 0
    %v1167 = vsel %vm508, %v1128, 0
    %1169 = vmatprep.subr.bf16.mxu0 0
    %1170 = vmatpush1.bf16.msra.mxu0 %v1141
    %1171 = vmatprep.subr.bf16.mxu0 0
    %1172 = vmatpush1.bf16.msra.mxu0 %v1142
    %1173 = vmatprep.subr.bf16.mxu0 0
    %1174 = vmatpush1.bf16.msra.mxu0 0
    %1175 = vmatprep.subr.bf16.mxu0 0
    %1176 = vmatpush1.bf16.msra.mxu0 0
    %1177 = vmatprep.subr.bf16.mxu0 0
    %1178 = vmatpush1.bf16.msra.mxu0 0
    %1179 = vmatprep.subr.bf16.mxu0 0
    %1180 = vmatpush1.bf16.msra.mxu0 0
    %1181 = vmatprep.subr.bf16.mxu0 0
    %1182 = vmatpush1.bf16.msra.mxu0 0
    %1183 = vmatprep.subr.bf16.mxu0 0
    %1184 = vmatpush1.bf16.msra.mxu0 0
    %1185 = vmatprep.subr.bf16.mxu0 0
    %1186 = vmatpush1.bf16.msra.mxu0 0
    %1187 = vmatprep.subr.bf16.mxu0 0
    %1188 = vmatpush1.bf16.msra.mxu0 0
    %1189 = vmatprep.subr.bf16.mxu0 0
    %1190 = vmatpush1.bf16.msra.mxu0 0
    %1191 = vmatprep.subr.bf16.mxu0 0
    %1192 = vmatpush1.bf16.msra.mxu0 0
    %1193 = vmatprep.subr.bf16.mxu0 0
    %1194 = vmatpush1.bf16.msra.mxu0 0
    %1195 = vmatprep.subr.bf16.mxu0 0
    %1196 = vmatpush1.bf16.msra.mxu0 0
    %1197 = vmatprep.subr.bf16.mxu0 0
    %1198 = vmatpush1.bf16.msra.mxu0 0
    %1199 = vmatprep.subr.bf16.mxu0 0
    %1200 = vmatpush1.bf16.msra.mxu0 0
    %1201 = vmatprep.mubr.bf16.mxu0 0
    %1202 = vmatmul.mubr.bf16.gmra.mrb[0].mxu0 %v1146
    %v1203 = vpop.f32.mrb[0].mxu0
    %v1204 = vadd.f32 0.0, %v1203
    %v1205 = vpop.f32.mrb[0].mxu0
    %v1206 = vpop.f32.mrb[0].mxu0
    %v1207 = vadd.f32 0.0, %v1206
    %v1208 = vpop.f32.mrb[0].mxu0
    %1209 = vmatprep.mubr.bf16.mxu0 0
    %1210 = vmatmul.mubr.bf16.gmra.mrb[0].mxu0 %v1149
    %v1211 = vpop.f32.mrb[0].mxu0
    %v1212 = vadd.f32 0.0, %v1211
    %v1213 = vpop.f32.mrb[0].mxu0
    %v1214 = vpop.f32.mrb[0].mxu0
    %v1215 = vadd.f32 0.0, %v1214
    %v1216 = vpop.f32.mrb[0].mxu0
    %1217 = vmatprep.mubr.bf16.mxu0 0
    %1218 = vmatmul.mubr.bf16.gmra.mrb[0].mxu0 %v1152
    %v1219 = vpop.f32.mrb[0].mxu0
    %v1220 = vadd.f32 0.0, %v1219
    %v1221 = vpop.f32.mrb[0].mxu0
    %v1222 = vpop.f32.mrb[0].mxu0
    %v1223 = vadd.f32 0.0, %v1222
    %v1224 = vpop.f32.mrb[0].mxu0
    %1225 = vmatprep.mubr.bf16.mxu0 0
    %1226 = vmatmul.mubr.bf16.gmra.mrb[0].mxu0 %v1155
    %v1227 = vpop.f32.mrb[0].mxu0
    %v1228 = vadd.f32 0.0, %v1227
    %v1229 = vpop.f32.mrb[0].mxu0
    %v1230 = vpop.f32.mrb[0].mxu0
    %v1231 = vadd.f32 0.0, %v1230
    %v1232 = vpop.f32.mrb[0].mxu0
    %1233 = vmatprep.mubr.bf16.mxu0 0
    %1234 = vmatmul.mubr.bf16.gmra.mrb[0].mxu0 %v1158
    %v1235 = vpop.f32.mrb[0].mxu0
    %v1236 = vadd.f32 0.0, %v1235
    %v1237 = vpop.f32.mrb[0].mxu0
    %v1238 = vpop.f32.mrb[0].mxu0
    %v1239 = vadd.f32 0.0, %v1238
    %v1240 = vpop.f32.mrb[0].mxu0
    %1241 = vmatprep.mubr.bf16.mxu0 0
    %1242 = vmatmul.mubr.bf16.gmra.mrb[0].mxu0 %v1161
    %v1243 = vpop.f32.mrb[0].mxu0
    %v1244 = vadd.f32 0.0, %v1243
    %v1245 = vpop.f32.mrb[0].mxu0
    %v1246 = vpop.f32.mrb[0].mxu0
    %v1247 = vadd.f32 0.0, %v1246
    %v1248 = vpop.f32.mrb[0].mxu0
    %1249 = vmatprep.mubr.bf16.mxu0 0
    %1250 = vmatmul.mubr.bf16.gmra.mrb[0].mxu0 %v1164
    %v1251 = vpop.f32.mrb[0].mxu0
    %v1252 = vadd.f32 0.0, %v1251
    %v1253 = vpop.f32.mrb[0].mxu0
    %v1254 = vpop.f32.mrb[0].mxu0
    %v1255 = vadd.f32 0.0, %v1254
    %v1256 = vpop.f32.mrb[0].mxu0
    %1257 = vmatprep.mubr.bf16.mxu0 0
    %1258 = vmatmul.mubr.bf16.gmra.mrb[0].mxu0 %v1167
    %v1259 = vpop.f32.mrb[0].mxu0
    %v1260 = vadd.f32 0.0, %v1259
    %v1261 = vpop.f32.mrb[0].mxu0
    %v1262 = vpop.f32.mrb[0].mxu0
    %v1263 = vadd.f32 0.0, %v1262
    %v1264 = vpop.f32.mrb[0].mxu0
    %1265 = vdwg.mxu0
    %v1270 = vunpack.c.l.b16 %v1117
    %v1271 = vunpack.c.l.b16 %v1118
    %v1272 = vunpack.c.l.b16 %v1119
    %v1273 = vunpack.c.l.b16 %v1120
    %v1274 = vpack.c.b16 %v1271, %v1270
    %v1275 = vpack.c.b16 %v1273, %v1272
    %v1279 = vsel %vm508, %v1109, 0
    %v1282 = vsel %vm508, %v1110, 0
    %v1285 = vsel %vm508, %v1111, 0
    %v1288 = vsel %vm508, %v1112, 0
    %v1291 = vsel %vm508, %v1113, 0
    %v1294 = vsel %vm508, %v1114, 0
    %v1297 = vsel %vm508, %v1115, 0
    %v1300 = vsel %vm508, %v1116, 0
    %1302 = vmatprep.subr.bf16.mxu0 0
    %1303 = vmatpush1.bf16.msra.mxu0 %v1274
    %1304 = vmatprep.subr.bf16.mxu0 0
    %1305 = vmatpush1.bf16.msra.mxu0 %v1275
    %1306 = vmatprep.subr.bf16.mxu0 0
    %1307 = vmatpush1.bf16.msra.mxu0 0
    %1308 = vmatprep.subr.bf16.mxu0 0
    %1309 = vmatpush1.bf16.msra.mxu0 0
    %1310 = vmatprep.subr.bf16.mxu0 0
    %1311 = vmatpush1.bf16.msra.mxu0 0
    %1312 = vmatprep.subr.bf16.mxu0 0
    %1313 = vmatpush1.bf16.msra.mxu0 0
    %1314 = vmatprep.subr.bf16.mxu0 0
    %1315 = vmatpush1.bf16.msra.mxu0 0
    %1316 = vmatprep.subr.bf16.mxu0 0
    %1317 = vmatpush1.bf16.msra.mxu0 0
    %1318 = vmatprep.subr.bf16.mxu0 0
    %1319 = vmatpush1.bf16.msra.mxu0 0
    %1320 = vmatprep.subr.bf16.mxu0 0
    %1321 = vmatpush1.bf16.msra.mxu0 0
    %1322 = vmatprep.subr.bf16.mxu0 0
    %1323 = vmatpush1.bf16.msra.mxu0 0
    %1324 = vmatprep.subr.bf16.mxu0 0
    %1325 = vmatpush1.bf16.msra.mxu0 0
    %1326 = vmatprep.subr.bf16.mxu0 0
    %1327 = vmatpush1.bf16.msra.mxu0 0
    %1328 = vmatprep.subr.bf16.mxu0 0
    %1329 = vmatpush1.bf16.msra.mxu0 0
    %1330 = vmatprep.subr.bf16.mxu0 0
    %1331 = vmatpush1.bf16.msra.mxu0 0
    %1332 = vmatprep.subr.bf16.mxu0 0
    %1333 = vmatpush1.bf16.msra.mxu0 0
    %1334 = vmatprep.mubr.bf16.mxu0 0
    %1335 = vmatmul.mubr.bf16.gmra.mrb[0].mxu0 %v1279
    %v1336 = vpop.f32.mrb[0].mxu0
    %v1337 = vadd.f32 %v1204, %v1336
    %v1338 = vpop.f32.mrb[0].mxu0
    %v1339 = vpop.f32.mrb[0].mxu0
    %v1340 = vadd.f32 %v1207, %v1339
    %v1341 = vpop.f32.mrb[0].mxu0
    %1342 = vmatprep.mubr.bf16.mxu0 0
    %1343 = vmatmul.mubr.bf16.gmra.mrb[0].mxu0 %v1282
    %v1344 = vpop.f32.mrb[0].mxu0
    %v1345 = vadd.f32 %v1212, %v1344
    %v1346 = vpop.f32.mrb[0].mxu0
    %v1347 = vpop.f32.mrb[0].mxu0
    %v1348 = vadd.f32 %v1215, %v1347
    %v1349 = vpop.f32.mrb[0].mxu0
    %1350 = vmatprep.mubr.bf16.mxu0 0
    %1351 = vmatmul.mubr.bf16.gmra.mrb[0].mxu0 %v1285
    %v1352 = vpop.f32.mrb[0].mxu0
    %v1353 = vadd.f32 %v1220, %v1352
    %v1354 = vpop.f32.mrb[0].mxu0
    %v1355 = vpop.f32.mrb[0].mxu0
    %v1356 = vadd.f32 %v1223, %v1355
    %v1357 = vpop.f32.mrb[0].mxu0
    %1358 = vmatprep.mubr.bf16.mxu0 0
    %1359 = vmatmul.mubr.bf16.gmra.mrb[0].mxu0 %v1288
    %v1360 = vpop.f32.mrb[0].mxu0
    %v1361 = vadd.f32 %v1228, %v1360
    %v1362 = vpop.f32.mrb[0].mxu0
    %v1363 = vpop.f32.mrb[0].mxu0
    %v1364 = vadd.f32 %v1231, %v1363
    %v1365 = vpop.f32.mrb[0].mxu0
    %1366 = vmatprep.mubr.bf16.mxu0 0
    %1367 = vmatmul.mubr.bf16.gmra.mrb[0].mxu0 %v1291
    %v1368 = vpop.f32.mrb[0].mxu0
    %v1369 = vadd.f32 %v1236, %v1368
    %v1370 = vpop.f32.mrb[0].mxu0
    %v1371 = vpop.f32.mrb[0].mxu0
    %v1372 = vadd.f32 %v1239, %v1371
    %v1373 = vpop.f32.mrb[0].mxu0
    %1374 = vmatprep.mubr.bf16.mxu0 0
    %1375 = vmatmul.mubr.bf16.gmra.mrb[0].mxu0 %v1294
    %v1376 = vpop.f32.mrb[0].mxu0
    %v1377 = vadd.f32 %v1244, %v1376
    %v1378 = vpop.f32.mrb[0].mxu0
    %v1379 = vpop.f32.mrb[0].mxu0
    %v1380 = vadd.f32 %v1247, %v1379
    %v1381 = vpop.f32.mrb[0].mxu0
    %1382 = vmatprep.mubr.bf16.mxu0 0
    %1383 = vmatmul.mubr.bf16.gmra.mrb[0].mxu0 %v1297
    %v1384 = vpop.f32.mrb[0].mxu0
    %v1385 = vadd.f32 %v1252, %v1384
    %v1386 = vpop.f32.mrb[0].mxu0
    %v1387 = vpop.f32.mrb[0].mxu0
    %v1388 = vadd.f32 %v1255, %v1387
    %v1389 = vpop.f32.mrb[0].mxu0
    %1390 = vmatprep.mubr.bf16.mxu0 0
    %1391 = vmatmul.mubr.bf16.gmra.mrb[0].mxu0 %v1300
    %v1392 = vpop.f32.mrb[0].mxu0
    %v1393 = vadd.f32 %v1260, %v1392
    %v1394 = vpop.f32.mrb[0].mxu0
    %v1395 = vpop.f32.mrb[0].mxu0
    %v1396 = vadd.f32 %v1263, %v1395
    %v1397 = vpop.f32.mrb[0].mxu0
    %1398 = vdwg.mxu0
    %v1399 = vpack.c.bf16 %v1094, %v1093
    %v1400 = vpack.c.bf16 %v1096, %v1095
    %v1401 = vpack.c.bf16 %v1098, %v1097
    %v1402 = vpack.c.bf16 %v1100, %v1099
    %v1403 = vpack.c.bf16 %v1102, %v1101
    %v1404 = vpack.c.bf16 %v1104, %v1103
    %v1405 = vpack.c.bf16 %v1106, %v1105
    %v1406 = vpack.c.bf16 %v1108, %v1107
    %v1407 = vld [vmem:[#allocation4] sm:$0xf]
    %v1408 = vld [vmem:[#allocation4 + $0x4] sm:$0xf]
    %v1409 = vld [vmem:[#allocation4 + $0x8] sm:$0xf]
    %v1410 = vld [vmem:[#allocation4 + $0xc] sm:$0xf]
    %v1415 = vunpack.c.l.b16 %v1407
    %v1416 = vunpack.c.l.b16 %v1408
    %v1417 = vunpack.c.l.b16 %v1409
    %v1418 = vunpack.c.l.b16 %v1410
    %v1419 = vpack.c.b16 %v1416, %v1415
    %v1420 = vpack.c.b16 %v1418, %v1417
    %v1424 = vsel %vm508, %v1399, 0
    %v1427 = vsel %vm508, %v1400, 0
    %v1430 = vsel %vm508, %v1401, 0
    %v1433 = vsel %vm508, %v1402, 0
    %v1436 = vsel %vm508, %v1403, 0
    %v1439 = vsel %vm508, %v1404, 0
    %v1442 = vsel %vm508, %v1405, 0
    %v1445 = vsel %vm508, %v1406, 0
    %1447 = vmatprep.subr.bf16.mxu0 0
    %1448 = vmatpush1.bf16.msra.mxu0 %v1419
    %1449 = vmatprep.subr.bf16.mxu0 0
    %1450 = vmatpush1.bf16.msra.mxu0 %v1420
    %1451 = vmatprep.subr.bf16.mxu0 0
    %1452 = vmatpush1.bf16.msra.mxu0 0
    %1453 = vmatprep.subr.bf16.mxu0 0
    %1454 = vmatpush1.bf16.msra.mxu0 0
    %1455 = vmatprep.subr.bf16.mxu0 0
    %1456 = vmatpush1.bf16.msra.mxu0 0
    %1457 = vmatprep.subr.bf16.mxu0 0
    %1458 = vmatpush1.bf16.msra.mxu0 0
    %1459 = vmatprep.subr.bf16.mxu0 0
    %1460 = vmatpush1.bf16.msra.mxu0 0
    %1461 = vmatprep.subr.bf16.mxu0 0
    %1462 = vmatpush1.bf16.msra.mxu0 0
    %1463 = vmatprep.subr.bf16.mxu0 0
    %1464 = vmatpush1.bf16.msra.mxu0 0
    %1465 = vmatprep.subr.bf16.mxu0 0
    %1466 = vmatpush1.bf16.msra.mxu0 0
    %1467 = vmatprep.subr.bf16.mxu0 0
    %1468 = vmatpush1.bf16.msra.mxu0 0
    %1469 = vmatprep.subr.bf16.mxu0 0
    %1470 = vmatpush1.bf16.msra.mxu0 0
    %1471 = vmatprep.subr.bf16.mxu0 0
    %1472 = vmatpush1.bf16.msra.mxu0 0
    %1473 = vmatprep.subr.bf16.mxu0 0
    %1474 = vmatpush1.bf16.msra.mxu0 0
    %1475 = vmatprep.subr.bf16.mxu0 0
    %1476 = vmatpush1.bf16.msra.mxu0 0
    %1477 = vmatprep.subr.bf16.mxu0 0
    %1478 = vmatpush1.bf16.msra.mxu0 0
    %1479 = vmatprep.mubr.bf16.mxu0 0
    %1480 = vmatmul.mubr.bf16.gmra.mrb[0].mxu0 %v1424
    %v1481 = vpop.f32.mrb[0].mxu0
    %v1482 = vadd.f32 0.0, %v1481
    %v1483 = vpop.f32.mrb[0].mxu0
    %v1484 = vpop.f32.mrb[0].mxu0
    %v1485 = vadd.f32 0.0, %v1484
    %v1486 = vpop.f32.mrb[0].mxu0
    %1487 = vmatprep.mubr.bf16.mxu0 0
    %1488 = vmatmul.mubr.bf16.gmra.mrb[0].mxu0 %v1427
    %v1489 = vpop.f32.mrb[0].mxu0
    %v1490 = vadd.f32 0.0, %v1489
    %v1491 = vpop.f32.mrb[0].mxu0
    %v1492 = vpop.f32.mrb[0].mxu0
    %v1493 = vadd.f32 0.0, %v1492
    %v1494 = vpop.f32.mrb[0].mxu0
    %1495 = vmatprep.mubr.bf16.mxu0 0
    %1496 = vmatmul.mubr.bf16.gmra.mrb[0].mxu0 %v1430
    %v1497 = vpop.f32.mrb[0].mxu0
    %v1498 = vadd.f32 0.0, %v1497
    %v1499 = vpop.f32.mrb[0].mxu0
    %v1500 = vpop.f32.mrb[0].mxu0
    %v1501 = vadd.f32 0.0, %v1500
    %v1502 = vpop.f32.mrb[0].mxu0
    %1503 = vmatprep.mubr.bf16.mxu0 0
    %1504 = vmatmul.mubr.bf16.gmra.mrb[0].mxu0 %v1433
    %v1505 = vpop.f32.mrb[0].mxu0
    %v1506 = vadd.f32 0.0, %v1505
    %v1507 = vpop.f32.mrb[0].mxu0
    %v1508 = vpop.f32.mrb[0].mxu0
    %v1509 = vadd.f32 0.0, %v1508
    %v1510 = vpop.f32.mrb[0].mxu0
    %1511 = vmatprep.mubr.bf16.mxu0 0
    %1512 = vmatmul.mubr.bf16.gmra.mrb[0].mxu0 %v1436
    %v1513 = vpop.f32.mrb[0].mxu0
    %v1514 = vadd.f32 0.0, %v1513
    %v1515 = vpop.f32.mrb[0].mxu0
    %v1516 = vpop.f32.mrb[0].mxu0
    %v1517 = vadd.f32 0.0, %v1516
    %v1518 = vpop.f32.mrb[0].mxu0
    %1519 = vmatprep.mubr.bf16.mxu0 0
    %1520 = vmatmul.mubr.bf16.gmra.mrb[0].mxu0 %v1439
    %v1521 = vpop.f32.mrb[0].mxu0
    %v1522 = vadd.f32 0.0, %v1521
    %v1523 = vpop.f32.mrb[0].mxu0
    %v1524 = vpop.f32.mrb[0].mxu0
    %v1525 = vadd.f32 0.0, %v1524
    %v1526 = vpop.f32.mrb[0].mxu0
    %1527 = vmatprep.mubr.bf16.mxu0 0
    %1528 = vmatmul.mubr.bf16.gmra.mrb[0].mxu0 %v1442
    %v1529 = vpop.f32.mrb[0].mxu0
    %v1530 = vadd.f32 0.0, %v1529
    %v1531 = vpop.f32.mrb[0].mxu0
    %v1532 = vpop.f32.mrb[0].mxu0
    %v1533 = vadd.f32 0.0, %v1532
    %v1534 = vpop.f32.mrb[0].mxu0
    %1535 = vmatprep.mubr.bf16.mxu0 0
    %1536 = vmatmul.mubr.bf16.gmra.mrb[0].mxu0 %v1445
    %v1537 = vpop.f32.mrb[0].mxu0
    %v1538 = vadd.f32 0.0, %v1537
    %v1539 = vpop.f32.mrb[0].mxu0
    %v1540 = vpop.f32.mrb[0].mxu0
    %v1541 = vadd.f32 0.0, %v1540
    %v1542 = vpop.f32.mrb[0].mxu0
    %1543 = vdwg.mxu0
    %v1544 = vadd.f32 %v1337, %v1482
    %v1545 = vadd.f32 %v1340, %v1485
    %v1546 = vadd.f32 %v1345, %v1490
    %v1547 = vadd.f32 %v1348, %v1493
    %v1548 = vadd.f32 %v1353, %v1498
    %v1549 = vadd.f32 %v1356, %v1501
    %v1550 = vadd.f32 %v1361, %v1506
    %v1551 = vadd.f32 %v1364, %v1509
    %v1552 = vadd.f32 %v1369, %v1514
    %v1553 = vadd.f32 %v1372, %v1517
    %v1554 = vadd.f32 %v1377, %v1522
    %v1555 = vadd.f32 %v1380, %v1525
    %v1556 = vadd.f32 %v1385, %v1530
    %v1557 = vadd.f32 %v1388, %v1533
    %v1558 = vadd.f32 %v1393, %v1538
    %v1559 = vadd.f32 %v1396, %v1541
    %v1560 = vld [vmem:[%s8] sm:$0x1]
    %v1562 = vlaneseq
    %v1563 = vshrl.u32 %v1562, 7
    %v1564 = vsub.s32 0, %v1563
    %v1565 = vrot.slane %v1560, %v1564
    %v1567 = vadd.f32 %v1544, %v1565
    %v1568 = vadd.f32 %v1545, %v1565
    %v1569 = vadd.f32 %v1546, %v1565
    %v1570 = vadd.f32 %v1547, %v1565
    %v1571 = vadd.f32 %v1548, %v1565
    %v1572 = vadd.f32 %v1549, %v1565
    %v1573 = vadd.f32 %v1550, %v1565
    %v1574 = vadd.f32 %v1551, %v1565
    %v1575 = vadd.f32 %v1552, %v1565
    %v1576 = vadd.f32 %v1553, %v1565
    %v1577 = vadd.f32 %v1554, %v1565
    %v1578 = vadd.f32 %v1555, %v1565
    %v1579 = vadd.f32 %v1556, %v1565
    %v1580 = vadd.f32 %v1557, %v1565
    %v1581 = vadd.f32 %v1558, %v1565
    %v1582 = vadd.f32 %v1559, %v1565
    %v1583 = vmul.f32 %v1567, 0.33333334
    %v1584 = vmul.f32 %v1568, 0.33333334
    %v1585 = vmul.f32 %v1569, 0.33333334
    %v1586 = vmul.f32 %v1570, 0.33333334
    %v1587 = vmul.f32 %v1571, 0.33333334
    %v1588 = vmul.f32 %v1572, 0.33333334
    %v1589 = vmul.f32 %v1573, 0.33333334
    %v1590 = vmul.f32 %v1574, 0.33333334
    %v1591 = vmul.f32 %v1575, 0.33333334
    %v1592 = vmul.f32 %v1576, 0.33333334
    %v1593 = vmul.f32 %v1577, 0.33333334
    %v1594 = vmul.f32 %v1578, 0.33333334
    %v1595 = vmul.f32 %v1579, 0.33333334
    %v1596 = vmul.f32 %v1580, 0.33333334
    %v1597 = vmul.f32 %v1581, 0.33333334
    %v1598 = vmul.f32 %v1582, 0.33333334
    %v1599 = vadd.f32 %v308, %v1583
    %v1600 = vadd.f32 %v309, %v1584
    %v1601 = vadd.f32 %v310, %v1585
    %v1602 = vadd.f32 %v311, %v1586
    %v1603 = vadd.f32 %v312, %v1587
    %v1604 = vadd.f32 %v313, %v1588
    %v1605 = vadd.f32 %v314, %v1589
    %v1606 = vadd.f32 %v315, %v1590
    %v1607 = vadd.f32 %v316, %v1591
    %v1608 = vadd.f32 %v317, %v1592
    %v1609 = vadd.f32 %v318, %v1593
    %v1610 = vadd.f32 %v319, %v1594
    %v1611 = vadd.f32 %v320, %v1595
    %v1612 = vadd.f32 %v321, %v1596
    %v1613 = vadd.f32 %v322, %v1597
    %v1614 = vadd.f32 %v323, %v1598
    %v1616 = vrot.slane %v1614, 7
    %v1633 = vrot.slane %v1599, 7
    %v1634 = vrot.slane %v1600, 7
    %v1635 = vsel %vm342, %v1633, %v1634
    %v1636 = vrot.slane %v1601, 7
    %v1637 = vsel %vm342, %v1634, %v1636
    %v1638 = vrot.slane %v1602, 7
    %v1639 = vsel %vm342, %v1636, %v1638
    %v1640 = vrot.slane %v1603, 7
    %v1641 = vsel %vm342, %v1638, %v1640
    %v1642 = vrot.slane %v1604, 7
    %v1643 = vsel %vm342, %v1640, %v1642
    %v1644 = vrot.slane %v1605, 7
    %v1645 = vsel %vm342, %v1642, %v1644
    %v1646 = vrot.slane %v1606, 7
    %v1647 = vsel %vm342, %v1644, %v1646
    %v1648 = vrot.slane %v1607, 7
    %v1649 = vsel %vm342, %v1646, %v1648
    %v1650 = vrot.slane %v1608, 7
    %v1651 = vsel %vm342, %v1648, %v1650
    %v1652 = vrot.slane %v1609, 7
    %v1653 = vsel %vm342, %v1650, %v1652
    %v1654 = vrot.slane %v1610, 7
    %v1655 = vsel %vm342, %v1652, %v1654
    %v1656 = vrot.slane %v1611, 7
    %v1657 = vsel %vm342, %v1654, %v1656
    %v1658 = vrot.slane %v1612, 7
    %v1659 = vsel %vm342, %v1656, %v1658
    %v1660 = vrot.slane %v1613, 7
    %v1661 = vsel %vm342, %v1658, %v1660
    %v1662 = vsel %vm342, %v1660, %v1616
    %v1679 = vsel %vm342, %v1616, %v1633
    %v1680 = vmul.f32 %v1679, %v188
    %v1681 = vmul.f32 %v1635, %v189
    %v1682 = vmul.f32 %v1637, %v190
    %v1683 = vmul.f32 %v1639, %v191
    %v1684 = vmul.f32 %v1641, %v192
    %v1685 = vmul.f32 %v1643, %v193
    %v1686 = vmul.f32 %v1645, %v194
    %v1687 = vmul.f32 %v1647, %v195
    %v1688 = vmul.f32 %v1649, %v196
    %v1689 = vmul.f32 %v1651, %v197
    %v1690 = vmul.f32 %v1653, %v198
    %v1691 = vmul.f32 %v1655, %v199
    %v1692 = vmul.f32 %v1657, %v200
    %v1693 = vmul.f32 %v1659, %v201
    %v1694 = vmul.f32 %v1661, %v202
    %v1695 = vmul.f32 %v1662, %v203
    %v1696 = vrot.slane %v1599, 1
    %v1697 = vrot.slane %v1600, 1
    %v1698 = vsel %vm406, %v1696, %v1697
    %v1699 = vrot.slane %v1601, 1
    %v1700 = vsel %vm406, %v1697, %v1699
    %v1701 = vrot.slane %v1602, 1
    %v1702 = vsel %vm406, %v1699, %v1701
    %v1703 = vrot.slane %v1603, 1
    %v1704 = vsel %vm406, %v1701, %v1703
    %v1705 = vrot.slane %v1604, 1
    %v1706 = vsel %vm406, %v1703, %v1705
    %v1707 = vrot.slane %v1605, 1
    %v1708 = vsel %vm406, %v1705, %v1707
    %v1709 = vrot.slane %v1606, 1
    %v1710 = vsel %vm406, %v1707, %v1709
    %v1711 = vrot.slane %v1607, 1
    %v1712 = vsel %vm406, %v1709, %v1711
    %v1713 = vrot.slane %v1608, 1
    %v1714 = vsel %vm406, %v1711, %v1713
    %v1715 = vrot.slane %v1609, 1
    %v1716 = vsel %vm406, %v1713, %v1715
    %v1717 = vrot.slane %v1610, 1
    %v1718 = vsel %vm406, %v1715, %v1717
    %v1719 = vrot.slane %v1611, 1
    %v1720 = vsel %vm406, %v1717, %v1719
    %v1721 = vrot.slane %v1612, 1
    %v1722 = vsel %vm406, %v1719, %v1721
    %v1723 = vrot.slane %v1613, 1
    %v1724 = vsel %vm406, %v1721, %v1723
    %v1725 = vrot.slane %v1614, 1
    %v1726 = vsel %vm406, %v1723, %v1725
    %v1744 = vsel %vm406, %v1725, %v1696
    %v1745 = vmul.f32 %v1698, %v236
    %v1746 = vmul.f32 %v1700, %v237
    %v1747 = vmul.f32 %v1702, %v238
    %v1748 = vmul.f32 %v1704, %v239
    %v1749 = vmul.f32 %v1706, %v240
    %v1750 = vmul.f32 %v1708, %v241
    %v1751 = vmul.f32 %v1710, %v242
    %v1752 = vmul.f32 %v1712, %v243
    %v1753 = vmul.f32 %v1714, %v244
    %v1754 = vmul.f32 %v1716, %v245
    %v1755 = vmul.f32 %v1718, %v246
    %v1756 = vmul.f32 %v1720, %v247
    %v1757 = vmul.f32 %v1722, %v248
    %v1758 = vmul.f32 %v1724, %v249
    %v1759 = vmul.f32 %v1726, %v250
    %v1760 = vmul.f32 %v1744, %v251
    %v1761 = vpack.c.bf16 %v1600, %v1599
    %v1762 = vpack.c.bf16 %v1602, %v1601
    %v1763 = vpack.c.bf16 %v1604, %v1603
    %v1764 = vpack.c.bf16 %v1606, %v1605
    %v1765 = vpack.c.bf16 %v1608, %v1607
    %v1766 = vpack.c.bf16 %v1610, %v1609
    %v1767 = vpack.c.bf16 %v1612, %v1611
    %v1768 = vpack.c.bf16 %v1614, %v1613
    %v1769 = vpack.c.bf16 %v1681, %v1680
    %v1770 = vpack.c.bf16 %v1683, %v1682
    %v1771 = vpack.c.bf16 %v1685, %v1684
    %v1772 = vpack.c.bf16 %v1687, %v1686
    %v1773 = vpack.c.bf16 %v1689, %v1688
    %v1774 = vpack.c.bf16 %v1691, %v1690
    %v1775 = vpack.c.bf16 %v1693, %v1692
    %v1776 = vpack.c.bf16 %v1695, %v1694
    %v1778 = vsel %vm508, %v1769, 0
    %v1781 = vsel %vm508, %v1770, 0
    %v1784 = vsel %vm508, %v1771, 0
    %v1787 = vsel %vm508, %v1772, 0
    %v1790 = vsel %vm508, %v1773, 0
    %v1793 = vsel %vm508, %v1774, 0
    %v1796 = vsel %vm508, %v1775, 0
    %v1799 = vsel %vm508, %v1776, 0
    %1801 = vmatprep.subr.bf16.mxu0 0
    %1802 = vmatpush1.bf16.msra.mxu0 %v504
    %1803 = vmatprep.subr.bf16.mxu0 0
    %1804 = vmatpush1.bf16.msra.mxu0 %v505
    %1805 = vmatprep.subr.bf16.mxu0 0
    %1806 = vmatpush1.bf16.msra.mxu0 0
    %1807 = vmatprep.subr.bf16.mxu0 0
    %1808 = vmatpush1.bf16.msra.mxu0 0
    %1809 = vmatprep.subr.bf16.mxu0 0
    %1810 = vmatpush1.bf16.msra.mxu0 0
    %1811 = vmatprep.subr.bf16.mxu0 0
    %1812 = vmatpush1.bf16.msra.mxu0 0
    %1813 = vmatprep.subr.bf16.mxu0 0
    %1814 = vmatpush1.bf16.msra.mxu0 0
    %1815 = vmatprep.subr.bf16.mxu0 0
    %1816 = vmatpush1.bf16.msra.mxu0 0
    %1817 = vmatprep.subr.bf16.mxu0 0
    %1818 = vmatpush1.bf16.msra.mxu0 0
    %1819 = vmatprep.subr.bf16.mxu0 0
    %1820 = vmatpush1.bf16.msra.mxu0 0
    %1821 = vmatprep.subr.bf16.mxu0 0
    %1822 = vmatpush1.bf16.msra.mxu0 0
    %1823 = vmatprep.subr.bf16.mxu0 0
    %1824 = vmatpush1.bf16.msra.mxu0 0
    %1825 = vmatprep.subr.bf16.mxu0 0
    %1826 = vmatpush1.bf16.msra.mxu0 0
    %1827 = vmatprep.subr.bf16.mxu0 0
    %1828 = vmatpush1.bf16.msra.mxu0 0
    %1829 = vmatprep.subr.bf16.mxu0 0
    %1830 = vmatpush1.bf16.msra.mxu0 0
    %1831 = vmatprep.subr.bf16.mxu0 0
    %1832 = vmatpush1.bf16.msra.mxu0 0
    %1833 = vmatprep.mubr.bf16.mxu0 0
    %1834 = vmatmul.mubr.bf16.gmra.mrb[0].mxu0 %v1778
    %v1835 = vpop.f32.mrb[0].mxu0
    %v1836 = vadd.f32 0.0, %v1835
    %v1837 = vpop.f32.mrb[0].mxu0
    %v1838 = vpop.f32.mrb[0].mxu0
    %v1839 = vadd.f32 0.0, %v1838
    %v1840 = vpop.f32.mrb[0].mxu0
    %1841 = vmatprep.mubr.bf16.mxu0 0
    %1842 = vmatmul.mubr.bf16.gmra.mrb[0].mxu0 %v1781
    %v1843 = vpop.f32.mrb[0].mxu0
    %v1844 = vadd.f32 0.0, %v1843
    %v1845 = vpop.f32.mrb[0].mxu0
    %v1846 = vpop.f32.mrb[0].mxu0
    %v1847 = vadd.f32 0.0, %v1846
    %v1848 = vpop.f32.mrb[0].mxu0
    %1849 = vmatprep.mubr.bf16.mxu0 0
    %1850 = vmatmul.mubr.bf16.gmra.mrb[0].mxu0 %v1784
    %v1851 = vpop.f32.mrb[0].mxu0
    %v1852 = vadd.f32 0.0, %v1851
    %v1853 = vpop.f32.mrb[0].mxu0
    %v1854 = vpop.f32.mrb[0].mxu0
    %v1855 = vadd.f32 0.0, %v1854
    %v1856 = vpop.f32.mrb[0].mxu0
    %1857 = vmatprep.mubr.bf16.mxu0 0
    %1858 = vmatmul.mubr.bf16.gmra.mrb[0].mxu0 %v1787
    %v1859 = vpop.f32.mrb[0].mxu0
    %v1860 = vadd.f32 0.0, %v1859
    %v1861 = vpop.f32.mrb[0].mxu0
    %v1862 = vpop.f32.mrb[0].mxu0
    %v1863 = vadd.f32 0.0, %v1862
    %v1864 = vpop.f32.mrb[0].mxu0
    %1865 = vmatprep.mubr.bf16.mxu0 0
    %1866 = vmatmul.mubr.bf16.gmra.mrb[0].mxu0 %v1790
    %v1867 = vpop.f32.mrb[0].mxu0
    %v1868 = vadd.f32 0.0, %v1867
    %v1869 = vpop.f32.mrb[0].mxu0
    %v1870 = vpop.f32.mrb[0].mxu0
    %v1871 = vadd.f32 0.0, %v1870
    %v1872 = vpop.f32.mrb[0].mxu0
    %1873 = vmatprep.mubr.bf16.mxu0 0
    %1874 = vmatmul.mubr.bf16.gmra.mrb[0].mxu0 %v1793
    %v1875 = vpop.f32.mrb[0].mxu0
    %v1876 = vadd.f32 0.0, %v1875
    %v1877 = vpop.f32.mrb[0].mxu0
    %v1878 = vpop.f32.mrb[0].mxu0
    %v1879 = vadd.f32 0.0, %v1878
    %v1880 = vpop.f32.mrb[0].mxu0
    %1881 = vmatprep.mubr.bf16.mxu0 0
    %1882 = vmatmul.mubr.bf16.gmra.mrb[0].mxu0 %v1796
    %v1883 = vpop.f32.mrb[0].mxu0
    %v1884 = vadd.f32 0.0, %v1883
    %v1885 = vpop.f32.mrb[0].mxu0
    %v1886 = vpop.f32.mrb[0].mxu0
    %v1887 = vadd.f32 0.0, %v1886
    %v1888 = vpop.f32.mrb[0].mxu0
    %1889 = vmatprep.mubr.bf16.mxu0 0
    %1890 = vmatmul.mubr.bf16.gmra.mrb[0].mxu0 %v1799
    %v1891 = vpop.f32.mrb[0].mxu0
    %v1892 = vadd.f32 0.0, %v1891
    %v1893 = vpop.f32.mrb[0].mxu0
    %v1894 = vpop.f32.mrb[0].mxu0
    %v1895 = vadd.f32 0.0, %v1894
    %v1896 = vpop.f32.mrb[0].mxu0
    %1897 = vdwg.mxu0
    %v1899 = vsel %vm508, %v1761, 0
    %v1902 = vsel %vm508, %v1762, 0
    %v1905 = vsel %vm508, %v1763, 0
    %v1908 = vsel %vm508, %v1764, 0
    %v1911 = vsel %vm508, %v1765, 0
    %v1914 = vsel %vm508, %v1766, 0
    %v1917 = vsel %vm508, %v1767, 0
    %v1920 = vsel %vm508, %v1768, 0
    %1922 = vmatprep.subr.bf16.mxu0 0
    %1923 = vmatpush1.bf16.msra.mxu0 %v638
    %1924 = vmatprep.subr.bf16.mxu0 0
    %1925 = vmatpush1.bf16.msra.mxu0 %v639
    %1926 = vmatprep.subr.bf16.mxu0 0
    %1927 = vmatpush1.bf16.msra.mxu0 0
    %1928 = vmatprep.subr.bf16.mxu0 0
    %1929 = vmatpush1.bf16.msra.mxu0 0
    %1930 = vmatprep.subr.bf16.mxu0 0
    %1931 = vmatpush1.bf16.msra.mxu0 0
    %1932 = vmatprep.subr.bf16.mxu0 0
    %1933 = vmatpush1.bf16.msra.mxu0 0
    %1934 = vmatprep.subr.bf16.mxu0 0
    %1935 = vmatpush1.bf16.msra.mxu0 0
    %1936 = vmatprep.subr.bf16.mxu0 0
    %1937 = vmatpush1.bf16.msra.mxu0 0
    %1938 = vmatprep.subr.bf16.mxu0 0
    %1939 = vmatpush1.bf16.msra.mxu0 0
    %1940 = vmatprep.subr.bf16.mxu0 0
    %1941 = vmatpush1.bf16.msra.mxu0 0
    %1942 = vmatprep.subr.bf16.mxu0 0
    %1943 = vmatpush1.bf16.msra.mxu0 0
    %1944 = vmatprep.subr.bf16.mxu0 0
    %1945 = vmatpush1.bf16.msra.mxu0 0
    %1946 = vmatprep.subr.bf16.mxu0 0
    %1947 = vmatpush1.bf16.msra.mxu0 0
    %1948 = vmatprep.subr.bf16.mxu0 0
    %1949 = vmatpush1.bf16.msra.mxu0 0
    %1950 = vmatprep.subr.bf16.mxu0 0
    %1951 = vmatpush1.bf16.msra.mxu0 0
    %1952 = vmatprep.subr.bf16.mxu0 0
    %1953 = vmatpush1.bf16.msra.mxu0 0
    %1954 = vmatprep.mubr.bf16.mxu0 0
    %1955 = vmatmul.mubr.bf16.gmra.mrb[0].mxu0 %v1899
    %v1956 = vpop.f32.mrb[0].mxu0
    %v1957 = vadd.f32 %v1836, %v1956
    %v1958 = vpop.f32.mrb[0].mxu0
    %v1959 = vpop.f32.mrb[0].mxu0
    %v1960 = vadd.f32 %v1839, %v1959
    %v1961 = vpop.f32.mrb[0].mxu0
    %1962 = vmatprep.mubr.bf16.mxu0 0
    %1963 = vmatmul.mubr.bf16.gmra.mrb[0].mxu0 %v1902
    %v1964 = vpop.f32.mrb[0].mxu0
    %v1965 = vadd.f32 %v1844, %v1964
    %v1966 = vpop.f32.mrb[0].mxu0
    %v1967 = vpop.f32.mrb[0].mxu0
    %v1968 = vadd.f32 %v1847, %v1967
    %v1969 = vpop.f32.mrb[0].mxu0
    %1970 = vmatprep.mubr.bf16.mxu0 0
    %1971 = vmatmul.mubr.bf16.gmra.mrb[0].mxu0 %v1905
    %v1972 = vpop.f32.mrb[0].mxu0
    %v1973 = vadd.f32 %v1852, %v1972
    %v1974 = vpop.f32.mrb[0].mxu0
    %v1975 = vpop.f32.mrb[0].mxu0
    %v1976 = vadd.f32 %v1855, %v1975
    %v1977 = vpop.f32.mrb[0].mxu0
    %1978 = vmatprep.mubr.bf16.mxu0 0
    %1979 = vmatmul.mubr.bf16.gmra.mrb[0].mxu0 %v1908
    %v1980 = vpop.f32.mrb[0].mxu0
    %v1981 = vadd.f32 %v1860, %v1980
    %v1982 = vpop.f32.mrb[0].mxu0
    %v1983 = vpop.f32.mrb[0].mxu0
    %v1984 = vadd.f32 %v1863, %v1983
    %v1985 = vpop.f32.mrb[0].mxu0
    %1986 = vmatprep.mubr.bf16.mxu0 0
    %1987 = vmatmul.mubr.bf16.gmra.mrb[0].mxu0 %v1911
    %v1988 = vpop.f32.mrb[0].mxu0
    %v1989 = vadd.f32 %v1868, %v1988
    %v1990 = vpop.f32.mrb[0].mxu0
    %v1991 = vpop.f32.mrb[0].mxu0
    %v1992 = vadd.f32 %v1871, %v1991
    %v1993 = vpop.f32.mrb[0].mxu0
    %1994 = vmatprep.mubr.bf16.mxu0 0
    %1995 = vmatmul.mubr.bf16.gmra.mrb[0].mxu0 %v1914
    %v1996 = vpop.f32.mrb[0].mxu0
    %v1997 = vadd.f32 %v1876, %v1996
    %v1998 = vpop.f32.mrb[0].mxu0
    %v1999 = vpop.f32.mrb[0].mxu0
    %v2000 = vadd.f32 %v1879, %v1999
    %v2001 = vpop.f32.mrb[0].mxu0
    %2002 = vmatprep.mubr.bf16.mxu0 0
    %2003 = vmatmul.mubr.bf16.gmra.mrb[0].mxu0 %v1917
    %v2004 = vpop.f32.mrb[0].mxu0
    %v2005 = vadd.f32 %v1884, %v2004
    %v2006 = vpop.f32.mrb[0].mxu0
    %v2007 = vpop.f32.mrb[0].mxu0
    %v2008 = vadd.f32 %v1887, %v2007
    %v2009 = vpop.f32.mrb[0].mxu0
    %2010 = vmatprep.mubr.bf16.mxu0 0
    %2011 = vmatmul.mubr.bf16.gmra.mrb[0].mxu0 %v1920
    %v2012 = vpop.f32.mrb[0].mxu0
    %v2013 = vadd.f32 %v1892, %v2012
    %v2014 = vpop.f32.mrb[0].mxu0
    %v2015 = vpop.f32.mrb[0].mxu0
    %v2016 = vadd.f32 %v1895, %v2015
    %v2017 = vpop.f32.mrb[0].mxu0
    %2018 = vdwg.mxu0
    %v2019 = vpack.c.bf16 %v1746, %v1745
    %v2020 = vpack.c.bf16 %v1748, %v1747
    %v2021 = vpack.c.bf16 %v1750, %v1749
    %v2022 = vpack.c.bf16 %v1752, %v1751
    %v2023 = vpack.c.bf16 %v1754, %v1753
    %v2024 = vpack.c.bf16 %v1756, %v1755
    %v2025 = vpack.c.bf16 %v1758, %v1757
    %v2026 = vpack.c.bf16 %v1760, %v1759
    %v2028 = vsel %vm508, %v2019, 0
    %v2031 = vsel %vm508, %v2020, 0
    %v2034 = vsel %vm508, %v2021, 0
    %v2037 = vsel %vm508, %v2022, 0
    %v2040 = vsel %vm508, %v2023, 0
    %v2043 = vsel %vm508, %v2024, 0
    %v2046 = vsel %vm508, %v2025, 0
    %v2049 = vsel %vm508, %v2026, 0
    %2051 = vmatprep.subr.bf16.mxu0 0
    %2052 = vmatpush1.bf16.msra.mxu0 %v783
    %2053 = vmatprep.subr.bf16.mxu0 0
    %2054 = vmatpush1.bf16.msra.mxu0 %v784
    %2055 = vmatprep.subr.bf16.mxu0 0
    %2056 = vmatpush1.bf16.msra.mxu0 0
    %2057 = vmatprep.subr.bf16.mxu0 0
    %2058 = vmatpush1.bf16.msra.mxu0 0
    %2059 = vmatprep.subr.bf16.mxu0 0
    %2060 = vmatpush1.bf16.msra.mxu0 0
    %2061 = vmatprep.subr.bf16.mxu0 0
    %2062 = vmatpush1.bf16.msra.mxu0 0
    %2063 = vmatprep.subr.bf16.mxu0 0
    %2064 = vmatpush1.bf16.msra.mxu0 0
    %2065 = vmatprep.subr.bf16.mxu0 0
    %2066 = vmatpush1.bf16.msra.mxu0 0
    %2067 = vmatprep.subr.bf16.mxu0 0
    %2068 = vmatpush1.bf16.msra.mxu0 0
    %2069 = vmatprep.subr.bf16.mxu0 0
    %2070 = vmatpush1.bf16.msra.mxu0 0
    %2071 = vmatprep.subr.bf16.mxu0 0
    %2072 = vmatpush1.bf16.msra.mxu0 0
    %2073 = vmatprep.subr.bf16.mxu0 0
    %2074 = vmatpush1.bf16.msra.mxu0 0
    %2075 = vmatprep.subr.bf16.mxu0 0
    %2076 = vmatpush1.bf16.msra.mxu0 0
    %2077 = vmatprep.subr.bf16.mxu0 0
    %2078 = vmatpush1.bf16.msra.mxu0 0
    %2079 = vmatprep.subr.bf16.mxu0 0
    %2080 = vmatpush1.bf16.msra.mxu0 0
    %2081 = vmatprep.subr.bf16.mxu0 0
    %2082 = vmatpush1.bf16.msra.mxu0 0
    %2083 = vmatprep.mubr.bf16.mxu0 0
    %2084 = vmatmul.mubr.bf16.gmra.mrb[0].mxu0 %v2028
    %v2085 = vpop.f32.mrb[0].mxu0
    %v2086 = vadd.f32 0.0, %v2085
    %v2087 = vpop.f32.mrb[0].mxu0
    %v2088 = vpop.f32.mrb[0].mxu0
    %v2089 = vadd.f32 0.0, %v2088
    %v2090 = vpop.f32.mrb[0].mxu0
    %2091 = vmatprep.mubr.bf16.mxu0 0
    %2092 = vmatmul.mubr.bf16.gmra.mrb[0].mxu0 %v2031
    %v2093 = vpop.f32.mrb[0].mxu0
    %v2094 = vadd.f32 0.0, %v2093
    %v2095 = vpop.f32.mrb[0].mxu0
    %v2096 = vpop.f32.mrb[0].mxu0
    %v2097 = vadd.f32 0.0, %v2096
    %v2098 = vpop.f32.mrb[0].mxu0
    %2099 = vmatprep.mubr.bf16.mxu0 0
    %2100 = vmatmul.mubr.bf16.gmra.mrb[0].mxu0 %v2034
    %v2101 = vpop.f32.mrb[0].mxu0
    %v2102 = vadd.f32 0.0, %v2101
    %v2103 = vpop.f32.mrb[0].mxu0
    %v2104 = vpop.f32.mrb[0].mxu0
    %v2105 = vadd.f32 0.0, %v2104
    %v2106 = vpop.f32.mrb[0].mxu0
    %2107 = vmatprep.mubr.bf16.mxu0 0
    %2108 = vmatmul.mubr.bf16.gmra.mrb[0].mxu0 %v2037
    %v2109 = vpop.f32.mrb[0].mxu0
    %v2110 = vadd.f32 0.0, %v2109
    %v2111 = vpop.f32.mrb[0].mxu0
    %v2112 = vpop.f32.mrb[0].mxu0
    %v2113 = vadd.f32 0.0, %v2112
    %v2114 = vpop.f32.mrb[0].mxu0
    %2115 = vmatprep.mubr.bf16.mxu0 0
    %2116 = vmatmul.mubr.bf16.gmra.mrb[0].mxu0 %v2040
    %v2117 = vpop.f32.mrb[0].mxu0
    %v2118 = vadd.f32 0.0, %v2117
    %v2119 = vpop.f32.mrb[0].mxu0
    %v2120 = vpop.f32.mrb[0].mxu0
    %v2121 = vadd.f32 0.0, %v2120
    %v2122 = vpop.f32.mrb[0].mxu0
    %2123 = vmatprep.mubr.bf16.mxu0 0
    %2124 = vmatmul.mubr.bf16.gmra.mrb[0].mxu0 %v2043
    %v2125 = vpop.f32.mrb[0].mxu0
    %v2126 = vadd.f32 0.0, %v2125
    %v2127 = vpop.f32.mrb[0].mxu0
    %v2128 = vpop.f32.mrb[0].mxu0
    %v2129 = vadd.f32 0.0, %v2128
    %v2130 = vpop.f32.mrb[0].mxu0
    %2131 = vmatprep.mubr.bf16.mxu0 0
    %2132 = vmatmul.mubr.bf16.gmra.mrb[0].mxu0 %v2046
    %v2133 = vpop.f32.mrb[0].mxu0
    %v2134 = vadd.f32 0.0, %v2133
    %v2135 = vpop.f32.mrb[0].mxu0
    %v2136 = vpop.f32.mrb[0].mxu0
    %v2137 = vadd.f32 0.0, %v2136
    %v2138 = vpop.f32.mrb[0].mxu0
    %2139 = vmatprep.mubr.bf16.mxu0 0
    %2140 = vmatmul.mubr.bf16.gmra.mrb[0].mxu0 %v2049
    %v2141 = vpop.f32.mrb[0].mxu0
    %v2142 = vadd.f32 0.0, %v2141
    %v2143 = vpop.f32.mrb[0].mxu0
    %v2144 = vpop.f32.mrb[0].mxu0
    %v2145 = vadd.f32 0.0, %v2144
    %v2146 = vpop.f32.mrb[0].mxu0
    %2147 = vdwg.mxu0
    %v2148 = vadd.f32 %v1957, %v2086
    %v2149 = vadd.f32 %v1960, %v2089
    %v2150 = vadd.f32 %v1965, %v2094
    %v2151 = vadd.f32 %v1968, %v2097
    %v2152 = vadd.f32 %v1973, %v2102
    %v2153 = vadd.f32 %v1976, %v2105
    %v2154 = vadd.f32 %v1981, %v2110
    %v2155 = vadd.f32 %v1984, %v2113
    %v2156 = vadd.f32 %v1989, %v2118
    %v2157 = vadd.f32 %v1992, %v2121
    %v2158 = vadd.f32 %v1997, %v2126
    %v2159 = vadd.f32 %v2000, %v2129
    %v2160 = vadd.f32 %v2005, %v2134
    %v2161 = vadd.f32 %v2008, %v2137
    %v2162 = vadd.f32 %v2013, %v2142
    %v2163 = vadd.f32 %v2016, %v2145
    %v2164 = vadd.f32 %v2148, %v929
    %v2165 = vadd.f32 %v2149, %v929
    %v2166 = vadd.f32 %v2150, %v929
    %v2167 = vadd.f32 %v2151, %v929
    %v2168 = vadd.f32 %v2152, %v929
    %v2169 = vadd.f32 %v2153, %v929
    %v2170 = vadd.f32 %v2154, %v929
    %v2171 = vadd.f32 %v2155, %v929
    %v2172 = vadd.f32 %v2156, %v929
    %v2173 = vadd.f32 %v2157, %v929
    %v2174 = vadd.f32 %v2158, %v929
    %v2175 = vadd.f32 %v2159, %v929
    %v2176 = vadd.f32 %v2160, %v929
    %v2177 = vadd.f32 %v2161, %v929
    %v2178 = vadd.f32 %v2162, %v929
    %v2179 = vadd.f32 %v2163, %v929
    %v2180 = vmax.f32 %v2164, 0.0
    %v2181 = vmax.f32 %v2165, 0.0
    %v2182 = vmax.f32 %v2166, 0.0
    %v2183 = vmax.f32 %v2167, 0.0
    %v2184 = vmax.f32 %v2168, 0.0
    %v2185 = vmax.f32 %v2169, 0.0
    %v2186 = vmax.f32 %v2170, 0.0
    %v2187 = vmax.f32 %v2171, 0.0
    %v2188 = vmax.f32 %v2172, 0.0
    %v2189 = vmax.f32 %v2173, 0.0
    %v2190 = vmax.f32 %v2174, 0.0
    %v2191 = vmax.f32 %v2175, 0.0
    %v2192 = vmax.f32 %v2176, 0.0
    %v2193 = vmax.f32 %v2177, 0.0
    %v2194 = vmax.f32 %v2178, 0.0
    %v2195 = vmax.f32 %v2179, 0.0
    %v2197 = vrot.slane %v2195, 7
    %v2214 = vrot.slane %v2180, 7
    %v2215 = vrot.slane %v2181, 7
    %v2216 = vsel %vm342, %v2214, %v2215
    %v2217 = vrot.slane %v2182, 7
    %v2218 = vsel %vm342, %v2215, %v2217
    %v2219 = vrot.slane %v2183, 7
    %v2220 = vsel %vm342, %v2217, %v2219
    %v2221 = vrot.slane %v2184, 7
    %v2222 = vsel %vm342, %v2219, %v2221
    %v2223 = vrot.slane %v2185, 7
    %v2224 = vsel %vm342, %v2221, %v2223
    %v2225 = vrot.slane %v2186, 7
    %v2226 = vsel %vm342, %v2223, %v2225
    %v2227 = vrot.slane %v2187, 7
    %v2228 = vsel %vm342, %v2225, %v2227
    %v2229 = vrot.slane %v2188, 7
    %v2230 = vsel %vm342, %v2227, %v2229
    %v2231 = vrot.slane %v2189, 7
    %v2232 = vsel %vm342, %v2229, %v2231
    %v2233 = vrot.slane %v2190, 7
    %v2234 = vsel %vm342, %v2231, %v2233
    %v2235 = vrot.slane %v2191, 7
    %v2236 = vsel %vm342, %v2233, %v2235
    %v2237 = vrot.slane %v2192, 7
    %v2238 = vsel %vm342, %v2235, %v2237
    %v2239 = vrot.slane %v2193, 7
    %v2240 = vsel %vm342, %v2237, %v2239
    %v2241 = vrot.slane %v2194, 7
    %v2242 = vsel %vm342, %v2239, %v2241
    %v2243 = vsel %vm342, %v2241, %v2197
    %v2260 = vsel %vm342, %v2197, %v2214
    %v2261 = vmul.f32 %v2260, %v188
    %v2262 = vmul.f32 %v2216, %v189
    %v2263 = vmul.f32 %v2218, %v190
    %v2264 = vmul.f32 %v2220, %v191
    %v2265 = vmul.f32 %v2222, %v192
    %v2266 = vmul.f32 %v2224, %v193
    %v2267 = vmul.f32 %v2226, %v194
    %v2268 = vmul.f32 %v2228, %v195
    %v2269 = vmul.f32 %v2230, %v196
    %v2270 = vmul.f32 %v2232, %v197
    %v2271 = vmul.f32 %v2234, %v198
    %v2272 = vmul.f32 %v2236, %v199
    %v2273 = vmul.f32 %v2238, %v200
    %v2274 = vmul.f32 %v2240, %v201
    %v2275 = vmul.f32 %v2242, %v202
    %v2276 = vmul.f32 %v2243, %v203
    %v2277 = vrot.slane %v2180, 1
    %v2278 = vrot.slane %v2181, 1
    %v2279 = vsel %vm406, %v2277, %v2278
    %v2280 = vrot.slane %v2182, 1
    %v2281 = vsel %vm406, %v2278, %v2280
    %v2282 = vrot.slane %v2183, 1
    %v2283 = vsel %vm406, %v2280, %v2282
    %v2284 = vrot.slane %v2184, 1
    %v2285 = vsel %vm406, %v2282, %v2284
    %v2286 = vrot.slane %v2185, 1
    %v2287 = vsel %vm406, %v2284, %v2286
    %v2288 = vrot.slane %v2186, 1
    %v2289 = vsel %vm406, %v2286, %v2288
    %v2290 = vrot.slane %v2187, 1
    %v2291 = vsel %vm406, %v2288, %v2290
    %v2292 = vrot.slane %v2188, 1
    %v2293 = vsel %vm406, %v2290, %v2292
    %v2294 = vrot.slane %v2189, 1
    %v2295 = vsel %vm406, %v2292, %v2294
    %v2296 = vrot.slane %v2190, 1
    %v2297 = vsel %vm406, %v2294, %v2296
    %v2298 = vrot.slane %v2191, 1
    %v2299 = vsel %vm406, %v2296, %v2298
    %v2300 = vrot.slane %v2192, 1
    %v2301 = vsel %vm406, %v2298, %v2300
    %v2302 = vrot.slane %v2193, 1
    %v2303 = vsel %vm406, %v2300, %v2302
    %v2304 = vrot.slane %v2194, 1
    %v2305 = vsel %vm406, %v2302, %v2304
    %v2306 = vrot.slane %v2195, 1
    %v2307 = vsel %vm406, %v2304, %v2306
    %v2325 = vsel %vm406, %v2306, %v2277
    %v2326 = vmul.f32 %v2279, %v236
    %v2327 = vmul.f32 %v2281, %v237
    %v2328 = vmul.f32 %v2283, %v238
    %v2329 = vmul.f32 %v2285, %v239
    %v2330 = vmul.f32 %v2287, %v240
    %v2331 = vmul.f32 %v2289, %v241
    %v2332 = vmul.f32 %v2291, %v242
    %v2333 = vmul.f32 %v2293, %v243
    %v2334 = vmul.f32 %v2295, %v244
    %v2335 = vmul.f32 %v2297, %v245
    %v2336 = vmul.f32 %v2299, %v246
    %v2337 = vmul.f32 %v2301, %v247
    %v2338 = vmul.f32 %v2303, %v248
    %v2339 = vmul.f32 %v2305, %v249
    %v2340 = vmul.f32 %v2307, %v250
    %v2341 = vmul.f32 %v2325, %v251
    %v2342 = vpack.c.bf16 %v2181, %v2180
    %v2343 = vpack.c.bf16 %v2183, %v2182
    %v2344 = vpack.c.bf16 %v2185, %v2184
    %v2345 = vpack.c.bf16 %v2187, %v2186
    %v2346 = vpack.c.bf16 %v2189, %v2188
    %v2347 = vpack.c.bf16 %v2191, %v2190
    %v2348 = vpack.c.bf16 %v2193, %v2192
    %v2349 = vpack.c.bf16 %v2195, %v2194
    %v2350 = vpack.c.bf16 %v2262, %v2261
    %v2351 = vpack.c.bf16 %v2264, %v2263
    %v2352 = vpack.c.bf16 %v2266, %v2265
    %v2353 = vpack.c.bf16 %v2268, %v2267
    %v2354 = vpack.c.bf16 %v2270, %v2269
    %v2355 = vpack.c.bf16 %v2272, %v2271
    %v2356 = vpack.c.bf16 %v2274, %v2273
    %v2357 = vpack.c.bf16 %v2276, %v2275
    %v2359 = vsel %vm508, %v2350, 0
    %v2362 = vsel %vm508, %v2351, 0
    %v2365 = vsel %vm508, %v2352, 0
    %v2368 = vsel %vm508, %v2353, 0
    %v2371 = vsel %vm508, %v2354, 0
    %v2374 = vsel %vm508, %v2355, 0
    %v2377 = vsel %vm508, %v2356, 0
    %v2380 = vsel %vm508, %v2357, 0
    %2382 = vmatprep.subr.bf16.mxu0 0
    %2383 = vmatpush1.bf16.msra.mxu0 %v1141
    %2384 = vmatprep.subr.bf16.mxu0 0
    %2385 = vmatpush1.bf16.msra.mxu0 %v1142
    %2386 = vmatprep.subr.bf16.mxu0 0
    %2387 = vmatpush1.bf16.msra.mxu0 0
    %2388 = vmatprep.subr.bf16.mxu0 0
    %2389 = vmatpush1.bf16.msra.mxu0 0
    %2390 = vmatprep.subr.bf16.mxu0 0
    %2391 = vmatpush1.bf16.msra.mxu0 0
    %2392 = vmatprep.subr.bf16.mxu0 0
    %2393 = vmatpush1.bf16.msra.mxu0 0
    %2394 = vmatprep.subr.bf16.mxu0 0
    %2395 = vmatpush1.bf16.msra.mxu0 0
    %2396 = vmatprep.subr.bf16.mxu0 0
    %2397 = vmatpush1.bf16.msra.mxu0 0
    %2398 = vmatprep.subr.bf16.mxu0 0
    %2399 = vmatpush1.bf16.msra.mxu0 0
    %2400 = vmatprep.subr.bf16.mxu0 0
    %2401 = vmatpush1.bf16.msra.mxu0 0
    %2402 = vmatprep.subr.bf16.mxu0 0
    %2403 = vmatpush1.bf16.msra.mxu0 0
    %2404 = vmatprep.subr.bf16.mxu0 0
    %2405 = vmatpush1.bf16.msra.mxu0 0
    %2406 = vmatprep.subr.bf16.mxu0 0
    %2407 = vmatpush1.bf16.msra.mxu0 0
    %2408 = vmatprep.subr.bf16.mxu0 0
    %2409 = vmatpush1.bf16.msra.mxu0 0
    %2410 = vmatprep.subr.bf16.mxu0 0
    %2411 = vmatpush1.bf16.msra.mxu0 0
    %2412 = vmatprep.subr.bf16.mxu0 0
    %2413 = vmatpush1.bf16.msra.mxu0 0
    %2414 = vmatprep.mubr.bf16.mxu0 0
    %2415 = vmatmul.mubr.bf16.gmra.mrb[0].mxu0 %v2359
    %v2416 = vpop.f32.mrb[0].mxu0
    %v2417 = vadd.f32 0.0, %v2416
    %v2418 = vpop.f32.mrb[0].mxu0
    %v2419 = vpop.f32.mrb[0].mxu0
    %v2420 = vadd.f32 0.0, %v2419
    %v2421 = vpop.f32.mrb[0].mxu0
    %2422 = vmatprep.mubr.bf16.mxu0 0
    %2423 = vmatmul.mubr.bf16.gmra.mrb[0].mxu0 %v2362
    %v2424 = vpop.f32.mrb[0].mxu0
    %v2425 = vadd.f32 0.0, %v2424
    %v2426 = vpop.f32.mrb[0].mxu0
    %v2427 = vpop.f32.mrb[0].mxu0
    %v2428 = vadd.f32 0.0, %v2427
    %v2429 = vpop.f32.mrb[0].mxu0
    %2430 = vmatprep.mubr.bf16.mxu0 0
    %2431 = vmatmul.mubr.bf16.gmra.mrb[0].mxu0 %v2365
    %v2432 = vpop.f32.mrb[0].mxu0
    %v2433 = vadd.f32 0.0, %v2432
    %v2434 = vpop.f32.mrb[0].mxu0
    %v2435 = vpop.f32.mrb[0].mxu0
    %v2436 = vadd.f32 0.0, %v2435
    %v2437 = vpop.f32.mrb[0].mxu0
    %2438 = vmatprep.mubr.bf16.mxu0 0
    %2439 = vmatmul.mubr.bf16.gmra.mrb[0].mxu0 %v2368
    %v2440 = vpop.f32.mrb[0].mxu0
    %v2441 = vadd.f32 0.0, %v2440
    %v2442 = vpop.f32.mrb[0].mxu0
    %v2443 = vpop.f32.mrb[0].mxu0
    %v2444 = vadd.f32 0.0, %v2443
    %v2445 = vpop.f32.mrb[0].mxu0
    %2446 = vmatprep.mubr.bf16.mxu0 0
    %2447 = vmatmul.mubr.bf16.gmra.mrb[0].mxu0 %v2371
    %v2448 = vpop.f32.mrb[0].mxu0
    %v2449 = vadd.f32 0.0, %v2448
    %v2450 = vpop.f32.mrb[0].mxu0
    %v2451 = vpop.f32.mrb[0].mxu0
    %v2452 = vadd.f32 0.0, %v2451
    %v2453 = vpop.f32.mrb[0].mxu0
    %2454 = vmatprep.mubr.bf16.mxu0 0
    %2455 = vmatmul.mubr.bf16.gmra.mrb[0].mxu0 %v2374
    %v2456 = vpop.f32.mrb[0].mxu0
    %v2457 = vadd.f32 0.0, %v2456
    %v2458 = vpop.f32.mrb[0].mxu0
    %v2459 = vpop.f32.mrb[0].mxu0
    %v2460 = vadd.f32 0.0, %v2459
    %v2461 = vpop.f32.mrb[0].mxu0
    %2462 = vmatprep.mubr.bf16.mxu0 0
    %2463 = vmatmul.mubr.bf16.gmra.mrb[0].mxu0 %v2377
    %v2464 = vpop.f32.mrb[0].mxu0
    %v2465 = vadd.f32 0.0, %v2464
    %v2466 = vpop.f32.mrb[0].mxu0
    %v2467 = vpop.f32.mrb[0].mxu0
    %v2468 = vadd.f32 0.0, %v2467
    %v2469 = vpop.f32.mrb[0].mxu0
    %2470 = vmatprep.mubr.bf16.mxu0 0
    %2471 = vmatmul.mubr.bf16.gmra.mrb[0].mxu0 %v2380
    %v2472 = vpop.f32.mrb[0].mxu0
    %v2473 = vadd.f32 0.0, %v2472
    %v2474 = vpop.f32.mrb[0].mxu0
    %v2475 = vpop.f32.mrb[0].mxu0
    %v2476 = vadd.f32 0.0, %v2475
    %v2477 = vpop.f32.mrb[0].mxu0
    %2478 = vdwg.mxu0
    %v2480 = vsel %vm508, %v2342, 0
    %v2483 = vsel %vm508, %v2343, 0
    %v2486 = vsel %vm508, %v2344, 0
    %v2489 = vsel %vm508, %v2345, 0
    %v2492 = vsel %vm508, %v2346, 0
    %v2495 = vsel %vm508, %v2347, 0
    %v2498 = vsel %vm508, %v2348, 0
    %v2501 = vsel %vm508, %v2349, 0
    %2503 = vmatprep.subr.bf16.mxu0 0
    %2504 = vmatpush1.bf16.msra.mxu0 %v1274
    %2505 = vmatprep.subr.bf16.mxu0 0
    %2506 = vmatpush1.bf16.msra.mxu0 %v1275
    %2507 = vmatprep.subr.bf16.mxu0 0
    %2508 = vmatpush1.bf16.msra.mxu0 0
    %2509 = vmatprep.subr.bf16.mxu0 0
    %2510 = vmatpush1.bf16.msra.mxu0 0
    %2511 = vmatprep.subr.bf16.mxu0 0
    %2512 = vmatpush1.bf16.msra.mxu0 0
    %2513 = vmatprep.subr.bf16.mxu0 0
    %2514 = vmatpush1.bf16.msra.mxu0 0
    %2515 = vmatprep.subr.bf16.mxu0 0
    %2516 = vmatpush1.bf16.msra.mxu0 0
    %2517 = vmatprep.subr.bf16.mxu0 0
    %2518 = vmatpush1.bf16.msra.mxu0 0
    %2519 = vmatprep.subr.bf16.mxu0 0
    %2520 = vmatpush1.bf16.msra.mxu0 0
    %2521 = vmatprep.subr.bf16.mxu0 0
    %2522 = vmatpush1.bf16.msra.mxu0 0
    %2523 = vmatprep.subr.bf16.mxu0 0
    %2524 = vmatpush1.bf16.msra.mxu0 0
    %2525 = vmatprep.subr.bf16.mxu0 0
    %2526 = vmatpush1.bf16.msra.mxu0 0
    %2527 = vmatprep.subr.bf16.mxu0 0
    %2528 = vmatpush1.bf16.msra.mxu0 0
    %2529 = vmatprep.subr.bf16.mxu0 0
    %2530 = vmatpush1.bf16.msra.mxu0 0
    %2531 = vmatprep.subr.bf16.mxu0 0
    %2532 = vmatpush1.bf16.msra.mxu0 0
    %2533 = vmatprep.subr.bf16.mxu0 0
    %2534 = vmatpush1.bf16.msra.mxu0 0
    %2535 = vmatprep.mubr.bf16.mxu0 0
    %2536 = vmatmul.mubr.bf16.gmra.mrb[0].mxu0 %v2480
    %v2537 = vpop.f32.mrb[0].mxu0
    %v2538 = vadd.f32 %v2417, %v2537
    %v2539 = vpop.f32.mrb[0].mxu0
    %v2540 = vpop.f32.mrb[0].mxu0
    %v2541 = vadd.f32 %v2420, %v2540
    %v2542 = vpop.f32.mrb[0].mxu0
    %2543 = vmatprep.mubr.bf16.mxu0 0
    %2544 = vmatmul.mubr.bf16.gmra.mrb[0].mxu0 %v2483
    %v2545 = vpop.f32.mrb[0].mxu0
    %v2546 = vadd.f32 %v2425, %v2545
    %v2547 = vpop.f32.mrb[0].mxu0
    %v2548 = vpop.f32.mrb[0].mxu0
    %v2549 = vadd.f32 %v2428, %v2548
    %v2550 = vpop.f32.mrb[0].mxu0
    %2551 = vmatprep.mubr.bf16.mxu0 0
    %2552 = vmatmul.mubr.bf16.gmra.mrb[0].mxu0 %v2486
    %v2553 = vpop.f32.mrb[0].mxu0
    %v2554 = vadd.f32 %v2433, %v2553
    %v2555 = vpop.f32.mrb[0].mxu0
    %v2556 = vpop.f32.mrb[0].mxu0
    %v2557 = vadd.f32 %v2436, %v2556
    %v2558 = vpop.f32.mrb[0].mxu0
    %2559 = vmatprep.mubr.bf16.mxu0 0
    %2560 = vmatmul.mubr.bf16.gmra.mrb[0].mxu0 %v2489
    %v2561 = vpop.f32.mrb[0].mxu0
    %v2562 = vadd.f32 %v2441, %v2561
    %v2563 = vpop.f32.mrb[0].mxu0
    %v2564 = vpop.f32.mrb[0].mxu0
    %v2565 = vadd.f32 %v2444, %v2564
    %v2566 = vpop.f32.mrb[0].mxu0
    %2567 = vmatprep.mubr.bf16.mxu0 0
    %2568 = vmatmul.mubr.bf16.gmra.mrb[0].mxu0 %v2492
    %v2569 = vpop.f32.mrb[0].mxu0
    %v2570 = vadd.f32 %v2449, %v2569
    %v2571 = vpop.f32.mrb[0].mxu0
    %v2572 = vpop.f32.mrb[0].mxu0
    %v2573 = vadd.f32 %v2452, %v2572
    %v2574 = vpop.f32.mrb[0].mxu0
    %2575 = vmatprep.mubr.bf16.mxu0 0
    %2576 = vmatmul.mubr.bf16.gmra.mrb[0].mxu0 %v2495
    %v2577 = vpop.f32.mrb[0].mxu0
    %v2578 = vadd.f32 %v2457, %v2577
    %v2579 = vpop.f32.mrb[0].mxu0
    %v2580 = vpop.f32.mrb[0].mxu0
    %v2581 = vadd.f32 %v2460, %v2580
    %v2582 = vpop.f32.mrb[0].mxu0
    %2583 = vmatprep.mubr.bf16.mxu0 0
    %2584 = vmatmul.mubr.bf16.gmra.mrb[0].mxu0 %v2498
    %v2585 = vpop.f32.mrb[0].mxu0
    %v2586 = vadd.f32 %v2465, %v2585
    %v2587 = vpop.f32.mrb[0].mxu0
    %v2588 = vpop.f32.mrb[0].mxu0
    %v2589 = vadd.f32 %v2468, %v2588
    %v2590 = vpop.f32.mrb[0].mxu0
    %2591 = vmatprep.mubr.bf16.mxu0 0
    %2592 = vmatmul.mubr.bf16.gmra.mrb[0].mxu0 %v2501
    %v2593 = vpop.f32.mrb[0].mxu0
    %v2594 = vadd.f32 %v2473, %v2593
    %v2595 = vpop.f32.mrb[0].mxu0
    %v2596 = vpop.f32.mrb[0].mxu0
    %v2597 = vadd.f32 %v2476, %v2596
    %v2598 = vpop.f32.mrb[0].mxu0
    %2599 = vdwg.mxu0
    %v2600 = vpack.c.bf16 %v2327, %v2326
    %v2601 = vpack.c.bf16 %v2329, %v2328
    %v2602 = vpack.c.bf16 %v2331, %v2330
    %v2603 = vpack.c.bf16 %v2333, %v2332
    %v2604 = vpack.c.bf16 %v2335, %v2334
    %v2605 = vpack.c.bf16 %v2337, %v2336
    %v2606 = vpack.c.bf16 %v2339, %v2338
    %v2607 = vpack.c.bf16 %v2341, %v2340
    %v2609 = vsel %vm508, %v2600, 0
    %v2612 = vsel %vm508, %v2601, 0
    %v2615 = vsel %vm508, %v2602, 0
    %v2618 = vsel %vm508, %v2603, 0
    %v2621 = vsel %vm508, %v2604, 0
    %v2624 = vsel %vm508, %v2605, 0
    %v2627 = vsel %vm508, %v2606, 0
    %v2630 = vsel %vm508, %v2607, 0
    %2632 = vmatprep.subr.bf16.mxu0 0
    %2633 = vmatpush1.bf16.msra.mxu0 %v1419
    %2634 = vmatprep.subr.bf16.mxu0 0
    %2635 = vmatpush1.bf16.msra.mxu0 %v1420
    %2636 = vmatprep.subr.bf16.mxu0 0
    %2637 = vmatpush1.bf16.msra.mxu0 0
    %2638 = vmatprep.subr.bf16.mxu0 0
    %2639 = vmatpush1.bf16.msra.mxu0 0
    %2640 = vmatprep.subr.bf16.mxu0 0
    %2641 = vmatpush1.bf16.msra.mxu0 0
    %2642 = vmatprep.subr.bf16.mxu0 0
    %2643 = vmatpush1.bf16.msra.mxu0 0
    %2644 = vmatprep.subr.bf16.mxu0 0
    %2645 = vmatpush1.bf16.msra.mxu0 0
    %2646 = vmatprep.subr.bf16.mxu0 0
    %2647 = vmatpush1.bf16.msra.mxu0 0
    %2648 = vmatprep.subr.bf16.mxu0 0
    %2649 = vmatpush1.bf16.msra.mxu0 0
    %2650 = vmatprep.subr.bf16.mxu0 0
    %2651 = vmatpush1.bf16.msra.mxu0 0
    %2652 = vmatprep.subr.bf16.mxu0 0
    %2653 = vmatpush1.bf16.msra.mxu0 0
    %2654 = vmatprep.subr.bf16.mxu0 0
    %2655 = vmatpush1.bf16.msra.mxu0 0
    %2656 = vmatprep.subr.bf16.mxu0 0
    %2657 = vmatpush1.bf16.msra.mxu0 0
    %2658 = vmatprep.subr.bf16.mxu0 0
    %2659 = vmatpush1.bf16.msra.mxu0 0
    %2660 = vmatprep.subr.bf16.mxu0 0
    %2661 = vmatpush1.bf16.msra.mxu0 0
    %2662 = vmatprep.subr.bf16.mxu0 0
    %2663 = vmatpush1.bf16.msra.mxu0 0
    %2664 = vmatprep.mubr.bf16.mxu0 0
    %2665 = vmatmul.mubr.bf16.gmra.mrb[0].mxu0 %v2609
    %v2666 = vpop.f32.mrb[0].mxu0
    %v2667 = vadd.f32 0.0, %v2666
    %v2668 = vpop.f32.mrb[0].mxu0
    %v2669 = vpop.f32.mrb[0].mxu0
    %v2670 = vadd.f32 0.0, %v2669
    %v2671 = vpop.f32.mrb[0].mxu0
    %2672 = vmatprep.mubr.bf16.mxu0 0
    %2673 = vmatmul.mubr.bf16.gmra.mrb[0].mxu0 %v2612
    %v2674 = vpop.f32.mrb[0].mxu0
    %v2675 = vadd.f32 0.0, %v2674
    %v2676 = vpop.f32.mrb[0].mxu0
    %v2677 = vpop.f32.mrb[0].mxu0
    %v2678 = vadd.f32 0.0, %v2677
    %v2679 = vpop.f32.mrb[0].mxu0
    %2680 = vmatprep.mubr.bf16.mxu0 0
    %2681 = vmatmul.mubr.bf16.gmra.mrb[0].mxu0 %v2615
    %v2682 = vpop.f32.mrb[0].mxu0
    %v2683 = vadd.f32 0.0, %v2682
    %v2684 = vpop.f32.mrb[0].mxu0
    %v2685 = vpop.f32.mrb[0].mxu0
    %v2686 = vadd.f32 0.0, %v2685
    %v2687 = vpop.f32.mrb[0].mxu0
    %2688 = vmatprep.mubr.bf16.mxu0 0
    %2689 = vmatmul.mubr.bf16.gmra.mrb[0].mxu0 %v2618
    %v2690 = vpop.f32.mrb[0].mxu0
    %v2691 = vadd.f32 0.0, %v2690
    %v2692 = vpop.f32.mrb[0].mxu0
    %v2693 = vpop.f32.mrb[0].mxu0
    %v2694 = vadd.f32 0.0, %v2693
    %v2695 = vpop.f32.mrb[0].mxu0
    %2696 = vmatprep.mubr.bf16.mxu0 0
    %2697 = vmatmul.mubr.bf16.gmra.mrb[0].mxu0 %v2621
    %v2698 = vpop.f32.mrb[0].mxu0
    %v2699 = vadd.f32 0.0, %v2698
    %v2700 = vpop.f32.mrb[0].mxu0
    %v2701 = vpop.f32.mrb[0].mxu0
    %v2702 = vadd.f32 0.0, %v2701
    %v2703 = vpop.f32.mrb[0].mxu0
    %2704 = vmatprep.mubr.bf16.mxu0 0
    %2705 = vmatmul.mubr.bf16.gmra.mrb[0].mxu0 %v2624
    %v2706 = vpop.f32.mrb[0].mxu0
    %v2707 = vadd.f32 0.0, %v2706
    %v2708 = vpop.f32.mrb[0].mxu0
    %v2709 = vpop.f32.mrb[0].mxu0
    %v2710 = vadd.f32 0.0, %v2709
    %v2711 = vpop.f32.mrb[0].mxu0
    %2712 = vmatprep.mubr.bf16.mxu0 0
    %2713 = vmatmul.mubr.bf16.gmra.mrb[0].mxu0 %v2627
    %v2714 = vpop.f32.mrb[0].mxu0
    %v2715 = vadd.f32 0.0, %v2714
    %v2716 = vpop.f32.mrb[0].mxu0
    %v2717 = vpop.f32.mrb[0].mxu0
    %v2718 = vadd.f32 0.0, %v2717
    %v2719 = vpop.f32.mrb[0].mxu0
    %2720 = vmatprep.mubr.bf16.mxu0 0
    %2721 = vmatmul.mubr.bf16.gmra.mrb[0].mxu0 %v2630
    %v2722 = vpop.f32.mrb[0].mxu0
    %v2723 = vadd.f32 0.0, %v2722
    %v2724 = vpop.f32.mrb[0].mxu0
    %v2725 = vpop.f32.mrb[0].mxu0
    %v2726 = vadd.f32 0.0, %v2725
    %v2727 = vpop.f32.mrb[0].mxu0
    %2728 = vdwg.mxu0
    %v2729 = vadd.f32 %v2538, %v2667
    %v2730 = vadd.f32 %v2541, %v2670
    %v2731 = vadd.f32 %v2546, %v2675
    %v2732 = vadd.f32 %v2549, %v2678
    %v2733 = vadd.f32 %v2554, %v2683
    %v2734 = vadd.f32 %v2557, %v2686
    %v2735 = vadd.f32 %v2562, %v2691
    %v2736 = vadd.f32 %v2565, %v2694
    %v2737 = vadd.f32 %v2570, %v2699
    %v2738 = vadd.f32 %v2573, %v2702
    %v2739 = vadd.f32 %v2578, %v2707
    %v2740 = vadd.f32 %v2581, %v2710
    %v2741 = vadd.f32 %v2586, %v2715
    %v2742 = vadd.f32 %v2589, %v2718
    %v2743 = vadd.f32 %v2594, %v2723
    %v2744 = vadd.f32 %v2597, %v2726
    %v2745 = vadd.f32 %v2729, %v1565
    %v2746 = vadd.f32 %v2730, %v1565
    %v2747 = vadd.f32 %v2731, %v1565
    %v2748 = vadd.f32 %v2732, %v1565
    %v2749 = vadd.f32 %v2733, %v1565
    %v2750 = vadd.f32 %v2734, %v1565
    %v2751 = vadd.f32 %v2735, %v1565
    %v2752 = vadd.f32 %v2736, %v1565
    %v2753 = vadd.f32 %v2737, %v1565
    %v2754 = vadd.f32 %v2738, %v1565
    %v2755 = vadd.f32 %v2739, %v1565
    %v2756 = vadd.f32 %v2740, %v1565
    %v2757 = vadd.f32 %v2741, %v1565
    %v2758 = vadd.f32 %v2742, %v1565
    %v2759 = vadd.f32 %v2743, %v1565
    %v2760 = vadd.f32 %v2744, %v1565
    %v2761 = vsub.f32 %v2745, %v1583
    %v2762 = vsub.f32 %v2746, %v1584
    %v2763 = vsub.f32 %v2747, %v1585
    %v2764 = vsub.f32 %v2748, %v1586
    %v2765 = vsub.f32 %v2749, %v1587
    %v2766 = vsub.f32 %v2750, %v1588
    %v2767 = vsub.f32 %v2751, %v1589
    %v2768 = vsub.f32 %v2752, %v1590
    %v2769 = vsub.f32 %v2753, %v1591
    %v2770 = vsub.f32 %v2754, %v1592
    %v2771 = vsub.f32 %v2755, %v1593
    %v2772 = vsub.f32 %v2756, %v1594
    %v2773 = vsub.f32 %v2757, %v1595
    %v2774 = vsub.f32 %v2758, %v1596
    %v2775 = vsub.f32 %v2759, %v1597
    %v2776 = vsub.f32 %v2760, %v1598
    %v2777 = vadd.f32 %v308, %v2761
    %v2778 = vadd.f32 %v309, %v2762
    %v2779 = vadd.f32 %v310, %v2763
    %v2780 = vadd.f32 %v311, %v2764
    %v2781 = vadd.f32 %v312, %v2765
    %v2782 = vadd.f32 %v313, %v2766
    %v2783 = vadd.f32 %v314, %v2767
    %v2784 = vadd.f32 %v315, %v2768
    %v2785 = vadd.f32 %v316, %v2769
    %v2786 = vadd.f32 %v317, %v2770
    %v2787 = vadd.f32 %v318, %v2771
    %v2788 = vadd.f32 %v319, %v2772
    %v2789 = vadd.f32 %v320, %v2773
    %v2790 = vadd.f32 %v321, %v2774
    %v2791 = vadd.f32 %v322, %v2775
    %v2792 = vadd.f32 %v323, %v2776
    %v2794 = vrot.slane %v2792, 7
    %v2811 = vrot.slane %v2777, 7
    %v2812 = vrot.slane %v2778, 7
    %v2813 = vsel %vm342, %v2811, %v2812
    %v2814 = vrot.slane %v2779, 7
    %v2815 = vsel %vm342, %v2812, %v2814
    %v2816 = vrot.slane %v2780, 7
    %v2817 = vsel %vm342, %v2814, %v2816
    %v2818 = vrot.slane %v2781, 7
    %v2819 = vsel %vm342, %v2816, %v2818
    %v2820 = vrot.slane %v2782, 7
    %v2821 = vsel %vm342, %v2818, %v2820
    %v2822 = vrot.slane %v2783, 7
    %v2823 = vsel %vm342, %v2820, %v2822
    %v2824 = vrot.slane %v2784, 7
    %v2825 = vsel %vm342, %v2822, %v2824
    %v2826 = vrot.slane %v2785, 7
    %v2827 = vsel %vm342, %v2824, %v2826
    %v2828 = vrot.slane %v2786, 7
    %v2829 = vsel %vm342, %v2826, %v2828
    %v2830 = vrot.slane %v2787, 7
    %v2831 = vsel %vm342, %v2828, %v2830
    %v2832 = vrot.slane %v2788, 7
    %v2833 = vsel %vm342, %v2830, %v2832
    %v2834 = vrot.slane %v2789, 7
    %v2835 = vsel %vm342, %v2832, %v2834
    %v2836 = vrot.slane %v2790, 7
    %v2837 = vsel %vm342, %v2834, %v2836
    %v2838 = vrot.slane %v2791, 7
    %v2839 = vsel %vm342, %v2836, %v2838
    %v2840 = vsel %vm342, %v2838, %v2794
    %v2857 = vsel %vm342, %v2794, %v2811
    %v2858 = vmul.f32 %v2857, %v188
    %v2859 = vmul.f32 %v2813, %v189
    %v2860 = vmul.f32 %v2815, %v190
    %v2861 = vmul.f32 %v2817, %v191
    %v2862 = vmul.f32 %v2819, %v192
    %v2863 = vmul.f32 %v2821, %v193
    %v2864 = vmul.f32 %v2823, %v194
    %v2865 = vmul.f32 %v2825, %v195
    %v2866 = vmul.f32 %v2827, %v196
    %v2867 = vmul.f32 %v2829, %v197
    %v2868 = vmul.f32 %v2831, %v198
    %v2869 = vmul.f32 %v2833, %v199
    %v2870 = vmul.f32 %v2835, %v200
    %v2871 = vmul.f32 %v2837, %v201
    %v2872 = vmul.f32 %v2839, %v202
    %v2873 = vmul.f32 %v2840, %v203
    %v2874 = vrot.slane %v2777, 1
    %v2875 = vrot.slane %v2778, 1
    %v2876 = vsel %vm406, %v2874, %v2875
    %v2877 = vrot.slane %v2779, 1
    %v2878 = vsel %vm406, %v2875, %v2877
    %v2879 = vrot.slane %v2780, 1
    %v2880 = vsel %vm406, %v2877, %v2879
    %v2881 = vrot.slane %v2781, 1
    %v2882 = vsel %vm406, %v2879, %v2881
    %v2883 = vrot.slane %v2782, 1
    %v2884 = vsel %vm406, %v2881, %v2883
    %v2885 = vrot.slane %v2783, 1
    %v2886 = vsel %vm406, %v2883, %v2885
    %v2887 = vrot.slane %v2784, 1
    %v2888 = vsel %vm406, %v2885, %v2887
    %v2889 = vrot.slane %v2785, 1
    %v2890 = vsel %vm406, %v2887, %v2889
    %v2891 = vrot.slane %v2786, 1
    %v2892 = vsel %vm406, %v2889, %v2891
    %v2893 = vrot.slane %v2787, 1
    %v2894 = vsel %vm406, %v2891, %v2893
    %v2895 = vrot.slane %v2788, 1
    %v2896 = vsel %vm406, %v2893, %v2895
    %v2897 = vrot.slane %v2789, 1
    %v2898 = vsel %vm406, %v2895, %v2897
    %v2899 = vrot.slane %v2790, 1
    %v2900 = vsel %vm406, %v2897, %v2899
    %v2901 = vrot.slane %v2791, 1
    %v2902 = vsel %vm406, %v2899, %v2901
    %v2903 = vrot.slane %v2792, 1
    %v2904 = vsel %vm406, %v2901, %v2903
    %v2922 = vsel %vm406, %v2903, %v2874
    %v2923 = vmul.f32 %v2876, %v236
    %v2924 = vmul.f32 %v2878, %v237
    %v2925 = vmul.f32 %v2880, %v238
    %v2926 = vmul.f32 %v2882, %v239
    %v2927 = vmul.f32 %v2884, %v240
    %v2928 = vmul.f32 %v2886, %v241
    %v2929 = vmul.f32 %v2888, %v242
    %v2930 = vmul.f32 %v2890, %v243
    %v2931 = vmul.f32 %v2892, %v244
    %v2932 = vmul.f32 %v2894, %v245
    %v2933 = vmul.f32 %v2896, %v246
    %v2934 = vmul.f32 %v2898, %v247
    %v2935 = vmul.f32 %v2900, %v248
    %v2936 = vmul.f32 %v2902, %v249
    %v2937 = vmul.f32 %v2904, %v250
    %v2938 = vmul.f32 %v2922, %v251
    %v2939 = vpack.c.bf16 %v2778, %v2777
    %v2940 = vpack.c.bf16 %v2780, %v2779
    %v2941 = vpack.c.bf16 %v2782, %v2781
    %v2942 = vpack.c.bf16 %v2784, %v2783
    %v2943 = vpack.c.bf16 %v2786, %v2785
    %v2944 = vpack.c.bf16 %v2788, %v2787
    %v2945 = vpack.c.bf16 %v2790, %v2789
    %v2946 = vpack.c.bf16 %v2792, %v2791
    %v2947 = vpack.c.bf16 %v2859, %v2858
    %v2948 = vpack.c.bf16 %v2861, %v2860
    %v2949 = vpack.c.bf16 %v2863, %v2862
    %v2950 = vpack.c.bf16 %v2865, %v2864
    %v2951 = vpack.c.bf16 %v2867, %v2866
    %v2952 = vpack.c.bf16 %v2869, %v2868
    %v2953 = vpack.c.bf16 %v2871, %v2870
    %v2954 = vpack.c.bf16 %v2873, %v2872
    %v2956 = vsel %vm508, %v2947, 0
    %v2959 = vsel %vm508, %v2948, 0
    %v2962 = vsel %vm508, %v2949, 0
    %v2965 = vsel %vm508, %v2950, 0
    %v2968 = vsel %vm508, %v2951, 0
    %v2971 = vsel %vm508, %v2952, 0
    %v2974 = vsel %vm508, %v2953, 0
    %v2977 = vsel %vm508, %v2954, 0
    %2979 = vmatprep.subr.bf16.mxu0 0
    %2980 = vmatpush1.bf16.msra.mxu0 %v504
    %2981 = vmatprep.subr.bf16.mxu0 0
    %2982 = vmatpush1.bf16.msra.mxu0 %v505
    %2983 = vmatprep.subr.bf16.mxu0 0
    %2984 = vmatpush1.bf16.msra.mxu0 0
    %2985 = vmatprep.subr.bf16.mxu0 0
    %2986 = vmatpush1.bf16.msra.mxu0 0
    %2987 = vmatprep.subr.bf16.mxu0 0
    %2988 = vmatpush1.bf16.msra.mxu0 0
    %2989 = vmatprep.subr.bf16.mxu0 0
    %2990 = vmatpush1.bf16.msra.mxu0 0
    %2991 = vmatprep.subr.bf16.mxu0 0
    %2992 = vmatpush1.bf16.msra.mxu0 0
    %2993 = vmatprep.subr.bf16.mxu0 0
    %2994 = vmatpush1.bf16.msra.mxu0 0
    %2995 = vmatprep.subr.bf16.mxu0 0
    %2996 = vmatpush1.bf16.msra.mxu0 0
    %2997 = vmatprep.subr.bf16.mxu0 0
    %2998 = vmatpush1.bf16.msra.mxu0 0
    %2999 = vmatprep.subr.bf16.mxu0 0
    %3000 = vmatpush1.bf16.msra.mxu0 0
    %3001 = vmatprep.subr.bf16.mxu0 0
    %3002 = vmatpush1.bf16.msra.mxu0 0
    %3003 = vmatprep.subr.bf16.mxu0 0
    %3004 = vmatpush1.bf16.msra.mxu0 0
    %3005 = vmatprep.subr.bf16.mxu0 0
    %3006 = vmatpush1.bf16.msra.mxu0 0
    %3007 = vmatprep.subr.bf16.mxu0 0
    %3008 = vmatpush1.bf16.msra.mxu0 0
    %3009 = vmatprep.subr.bf16.mxu0 0
    %3010 = vmatpush1.bf16.msra.mxu0 0
    %3011 = vmatprep.mubr.bf16.mxu0 0
    %3012 = vmatmul.mubr.bf16.gmra.mrb[0].mxu0 %v2956
    %v3013 = vpop.f32.mrb[0].mxu0
    %v3014 = vadd.f32 0.0, %v3013
    %v3015 = vpop.f32.mrb[0].mxu0
    %v3016 = vpop.f32.mrb[0].mxu0
    %v3017 = vadd.f32 0.0, %v3016
    %v3018 = vpop.f32.mrb[0].mxu0
    %3019 = vmatprep.mubr.bf16.mxu0 0
    %3020 = vmatmul.mubr.bf16.gmra.mrb[0].mxu0 %v2959
    %v3021 = vpop.f32.mrb[0].mxu0
    %v3022 = vadd.f32 0.0, %v3021
    %v3023 = vpop.f32.mrb[0].mxu0
    %v3024 = vpop.f32.mrb[0].mxu0
    %v3025 = vadd.f32 0.0, %v3024
    %v3026 = vpop.f32.mrb[0].mxu0
    %3027 = vmatprep.mubr.bf16.mxu0 0
    %3028 = vmatmul.mubr.bf16.gmra.mrb[0].mxu0 %v2962
    %v3029 = vpop.f32.mrb[0].mxu0
    %v3030 = vadd.f32 0.0, %v3029
    %v3031 = vpop.f32.mrb[0].mxu0
    %v3032 = vpop.f32.mrb[0].mxu0
    %v3033 = vadd.f32 0.0, %v3032
    %v3034 = vpop.f32.mrb[0].mxu0
    %3035 = vmatprep.mubr.bf16.mxu0 0
    %3036 = vmatmul.mubr.bf16.gmra.mrb[0].mxu0 %v2965
    %v3037 = vpop.f32.mrb[0].mxu0
    %v3038 = vadd.f32 0.0, %v3037
    %v3039 = vpop.f32.mrb[0].mxu0
    %v3040 = vpop.f32.mrb[0].mxu0
    %v3041 = vadd.f32 0.0, %v3040
    %v3042 = vpop.f32.mrb[0].mxu0
    %3043 = vmatprep.mubr.bf16.mxu0 0
    %3044 = vmatmul.mubr.bf16.gmra.mrb[0].mxu0 %v2968
    %v3045 = vpop.f32.mrb[0].mxu0
    %v3046 = vadd.f32 0.0, %v3045
    %v3047 = vpop.f32.mrb[0].mxu0
    %v3048 = vpop.f32.mrb[0].mxu0
    %v3049 = vadd.f32 0.0, %v3048
    %v3050 = vpop.f32.mrb[0].mxu0
    %3051 = vmatprep.mubr.bf16.mxu0 0
    %3052 = vmatmul.mubr.bf16.gmra.mrb[0].mxu0 %v2971
    %v3053 = vpop.f32.mrb[0].mxu0
    %v3054 = vadd.f32 0.0, %v3053
    %v3055 = vpop.f32.mrb[0].mxu0
    %v3056 = vpop.f32.mrb[0].mxu0
    %v3057 = vadd.f32 0.0, %v3056
    %v3058 = vpop.f32.mrb[0].mxu0
    %3059 = vmatprep.mubr.bf16.mxu0 0
    %3060 = vmatmul.mubr.bf16.gmra.mrb[0].mxu0 %v2974
    %v3061 = vpop.f32.mrb[0].mxu0
    %v3062 = vadd.f32 0.0, %v3061
    %v3063 = vpop.f32.mrb[0].mxu0
    %v3064 = vpop.f32.mrb[0].mxu0
    %v3065 = vadd.f32 0.0, %v3064
    %v3066 = vpop.f32.mrb[0].mxu0
    %3067 = vmatprep.mubr.bf16.mxu0 0
    %3068 = vmatmul.mubr.bf16.gmra.mrb[0].mxu0 %v2977
    %v3069 = vpop.f32.mrb[0].mxu0
    %v3070 = vadd.f32 0.0, %v3069
    %v3071 = vpop.f32.mrb[0].mxu0
    %v3072 = vpop.f32.mrb[0].mxu0
    %v3073 = vadd.f32 0.0, %v3072
    %v3074 = vpop.f32.mrb[0].mxu0
    %3075 = vdwg.mxu0
    %v3077 = vsel %vm508, %v2939, 0
    %v3080 = vsel %vm508, %v2940, 0
    %v3083 = vsel %vm508, %v2941, 0
    %v3086 = vsel %vm508, %v2942, 0
    %v3089 = vsel %vm508, %v2943, 0
    %v3092 = vsel %vm508, %v2944, 0
    %v3095 = vsel %vm508, %v2945, 0
    %v3098 = vsel %vm508, %v2946, 0
    %3100 = vmatprep.subr.bf16.mxu0 0
    %3101 = vmatpush1.bf16.msra.mxu0 %v638
    %3102 = vmatprep.subr.bf16.mxu0 0
    %3103 = vmatpush1.bf16.msra.mxu0 %v639
    %3104 = vmatprep.subr.bf16.mxu0 0
    %3105 = vmatpush1.bf16.msra.mxu0 0
    %3106 = vmatprep.subr.bf16.mxu0 0
    %3107 = vmatpush1.bf16.msra.mxu0 0
    %3108 = vmatprep.subr.bf16.mxu0 0
    %3109 = vmatpush1.bf16.msra.mxu0 0
    %3110 = vmatprep.subr.bf16.mxu0 0
    %3111 = vmatpush1.bf16.msra.mxu0 0
    %3112 = vmatprep.subr.bf16.mxu0 0
    %3113 = vmatpush1.bf16.msra.mxu0 0
    %3114 = vmatprep.subr.bf16.mxu0 0
    %3115 = vmatpush1.bf16.msra.mxu0 0
    %3116 = vmatprep.subr.bf16.mxu0 0
    %3117 = vmatpush1.bf16.msra.mxu0 0
    %3118 = vmatprep.subr.bf16.mxu0 0
    %3119 = vmatpush1.bf16.msra.mxu0 0
    %3120 = vmatprep.subr.bf16.mxu0 0
    %3121 = vmatpush1.bf16.msra.mxu0 0
    %3122 = vmatprep.subr.bf16.mxu0 0
    %3123 = vmatpush1.bf16.msra.mxu0 0
    %3124 = vmatprep.subr.bf16.mxu0 0
    %3125 = vmatpush1.bf16.msra.mxu0 0
    %3126 = vmatprep.subr.bf16.mxu0 0
    %3127 = vmatpush1.bf16.msra.mxu0 0
    %3128 = vmatprep.subr.bf16.mxu0 0
    %3129 = vmatpush1.bf16.msra.mxu0 0
    %3130 = vmatprep.subr.bf16.mxu0 0
    %3131 = vmatpush1.bf16.msra.mxu0 0
    %3132 = vmatprep.mubr.bf16.mxu0 0
    %3133 = vmatmul.mubr.bf16.gmra.mrb[0].mxu0 %v3077
    %v3134 = vpop.f32.mrb[0].mxu0
    %v3135 = vadd.f32 %v3014, %v3134
    %v3136 = vpop.f32.mrb[0].mxu0
    %v3137 = vpop.f32.mrb[0].mxu0
    %v3138 = vadd.f32 %v3017, %v3137
    %v3139 = vpop.f32.mrb[0].mxu0
    %3140 = vmatprep.mubr.bf16.mxu0 0
    %3141 = vmatmul.mubr.bf16.gmra.mrb[0].mxu0 %v3080
    %v3142 = vpop.f32.mrb[0].mxu0
    %v3143 = vadd.f32 %v3022, %v3142
    %v3144 = vpop.f32.mrb[0].mxu0
    %v3145 = vpop.f32.mrb[0].mxu0
    %v3146 = vadd.f32 %v3025, %v3145
    %v3147 = vpop.f32.mrb[0].mxu0
    %3148 = vmatprep.mubr.bf16.mxu0 0
    %3149 = vmatmul.mubr.bf16.gmra.mrb[0].mxu0 %v3083
    %v3150 = vpop.f32.mrb[0].mxu0
    %v3151 = vadd.f32 %v3030, %v3150
    %v3152 = vpop.f32.mrb[0].mxu0
    %v3153 = vpop.f32.mrb[0].mxu0
    %v3154 = vadd.f32 %v3033, %v3153
    %v3155 = vpop.f32.mrb[0].mxu0
    %3156 = vmatprep.mubr.bf16.mxu0 0
    %3157 = vmatmul.mubr.bf16.gmra.mrb[0].mxu0 %v3086
    %v3158 = vpop.f32.mrb[0].mxu0
    %v3159 = vadd.f32 %v3038, %v3158
    %v3160 = vpop.f32.mrb[0].mxu0
    %v3161 = vpop.f32.mrb[0].mxu0
    %v3162 = vadd.f32 %v3041, %v3161
    %v3163 = vpop.f32.mrb[0].mxu0
    %3164 = vmatprep.mubr.bf16.mxu0 0
    %3165 = vmatmul.mubr.bf16.gmra.mrb[0].mxu0 %v3089
    %v3166 = vpop.f32.mrb[0].mxu0
    %v3167 = vadd.f32 %v3046, %v3166
    %v3168 = vpop.f32.mrb[0].mxu0
    %v3169 = vpop.f32.mrb[0].mxu0
    %v3170 = vadd.f32 %v3049, %v3169
    %v3171 = vpop.f32.mrb[0].mxu0
    %3172 = vmatprep.mubr.bf16.mxu0 0
    %3173 = vmatmul.mubr.bf16.gmra.mrb[0].mxu0 %v3092
    %v3174 = vpop.f32.mrb[0].mxu0
    %v3175 = vadd.f32 %v3054, %v3174
    %v3176 = vpop.f32.mrb[0].mxu0
    %v3177 = vpop.f32.mrb[0].mxu0
    %v3178 = vadd.f32 %v3057, %v3177
    %v3179 = vpop.f32.mrb[0].mxu0
    %3180 = vmatprep.mubr.bf16.mxu0 0
    %3181 = vmatmul.mubr.bf16.gmra.mrb[0].mxu0 %v3095
    %v3182 = vpop.f32.mrb[0].mxu0
    %v3183 = vadd.f32 %v3062, %v3182
    %v3184 = vpop.f32.mrb[0].mxu0
    %v3185 = vpop.f32.mrb[0].mxu0
    %v3186 = vadd.f32 %v3065, %v3185
    %v3187 = vpop.f32.mrb[0].mxu0
    %3188 = vmatprep.mubr.bf16.mxu0 0
    %3189 = vmatmul.mubr.bf16.gmra.mrb[0].mxu0 %v3098
    %v3190 = vpop.f32.mrb[0].mxu0
    %v3191 = vadd.f32 %v3070, %v3190
    %v3192 = vpop.f32.mrb[0].mxu0
    %v3193 = vpop.f32.mrb[0].mxu0
    %v3194 = vadd.f32 %v3073, %v3193
    %v3195 = vpop.f32.mrb[0].mxu0
    %3196 = vdwg.mxu0
    %v3197 = vpack.c.bf16 %v2924, %v2923
    %v3198 = vpack.c.bf16 %v2926, %v2925
    %v3199 = vpack.c.bf16 %v2928, %v2927
    %v3200 = vpack.c.bf16 %v2930, %v2929
    %v3201 = vpack.c.bf16 %v2932, %v2931
    %v3202 = vpack.c.bf16 %v2934, %v2933
    %v3203 = vpack.c.bf16 %v2936, %v2935
    %v3204 = vpack.c.bf16 %v2938, %v2937
    %v3206 = vsel %vm508, %v3197, 0
    %v3209 = vsel %vm508, %v3198, 0
    %v3212 = vsel %vm508, %v3199, 0
    %v3215 = vsel %vm508, %v3200, 0
    %v3218 = vsel %vm508, %v3201, 0
    %v3221 = vsel %vm508, %v3202, 0
    %v3224 = vsel %vm508, %v3203, 0
    %v3227 = vsel %vm508, %v3204, 0
    %3229 = vmatprep.subr.bf16.mxu0 0
    %3230 = vmatpush1.bf16.msra.mxu0 %v783
    %3231 = vmatprep.subr.bf16.mxu0 0
    %3232 = vmatpush1.bf16.msra.mxu0 %v784
    %3233 = vmatprep.subr.bf16.mxu0 0
    %3234 = vmatpush1.bf16.msra.mxu0 0
    %3235 = vmatprep.subr.bf16.mxu0 0
    %3236 = vmatpush1.bf16.msra.mxu0 0
    %3237 = vmatprep.subr.bf16.mxu0 0
    %3238 = vmatpush1.bf16.msra.mxu0 0
    %3239 = vmatprep.subr.bf16.mxu0 0
    %3240 = vmatpush1.bf16.msra.mxu0 0
    %3241 = vmatprep.subr.bf16.mxu0 0
    %3242 = vmatpush1.bf16.msra.mxu0 0
    %3243 = vmatprep.subr.bf16.mxu0 0
    %3244 = vmatpush1.bf16.msra.mxu0 0
    %3245 = vmatprep.subr.bf16.mxu0 0
    %3246 = vmatpush1.bf16.msra.mxu0 0
    %3247 = vmatprep.subr.bf16.mxu0 0
    %3248 = vmatpush1.bf16.msra.mxu0 0
    %3249 = vmatprep.subr.bf16.mxu0 0
    %3250 = vmatpush1.bf16.msra.mxu0 0
    %3251 = vmatprep.subr.bf16.mxu0 0
    %3252 = vmatpush1.bf16.msra.mxu0 0
    %3253 = vmatprep.subr.bf16.mxu0 0
    %3254 = vmatpush1.bf16.msra.mxu0 0
    %3255 = vmatprep.subr.bf16.mxu0 0
    %3256 = vmatpush1.bf16.msra.mxu0 0
    %3257 = vmatprep.subr.bf16.mxu0 0
    %3258 = vmatpush1.bf16.msra.mxu0 0
    %3259 = vmatprep.subr.bf16.mxu0 0
    %3260 = vmatpush1.bf16.msra.mxu0 0
    %3261 = vmatprep.mubr.bf16.mxu0 0
    %3262 = vmatmul.mubr.bf16.gmra.mrb[0].mxu0 %v3206
    %v3263 = vpop.f32.mrb[0].mxu0
    %v3264 = vadd.f32 0.0, %v3263
    %v3265 = vpop.f32.mrb[0].mxu0
    %v3266 = vpop.f32.mrb[0].mxu0
    %v3267 = vadd.f32 0.0, %v3266
    %v3268 = vpop.f32.mrb[0].mxu0
    %3269 = vmatprep.mubr.bf16.mxu0 0
    %3270 = vmatmul.mubr.bf16.gmra.mrb[0].mxu0 %v3209
    %v3271 = vpop.f32.mrb[0].mxu0
    %v3272 = vadd.f32 0.0, %v3271
    %v3273 = vpop.f32.mrb[0].mxu0
    %v3274 = vpop.f32.mrb[0].mxu0
    %v3275 = vadd.f32 0.0, %v3274
    %v3276 = vpop.f32.mrb[0].mxu0
    %3277 = vmatprep.mubr.bf16.mxu0 0
    %3278 = vmatmul.mubr.bf16.gmra.mrb[0].mxu0 %v3212
    %v3279 = vpop.f32.mrb[0].mxu0
    %v3280 = vadd.f32 0.0, %v3279
    %v3281 = vpop.f32.mrb[0].mxu0
    %v3282 = vpop.f32.mrb[0].mxu0
    %v3283 = vadd.f32 0.0, %v3282
    %v3284 = vpop.f32.mrb[0].mxu0
    %3285 = vmatprep.mubr.bf16.mxu0 0
    %3286 = vmatmul.mubr.bf16.gmra.mrb[0].mxu0 %v3215
    %v3287 = vpop.f32.mrb[0].mxu0
    %v3288 = vadd.f32 0.0, %v3287
    %v3289 = vpop.f32.mrb[0].mxu0
    %v3290 = vpop.f32.mrb[0].mxu0
    %v3291 = vadd.f32 0.0, %v3290
    %v3292 = vpop.f32.mrb[0].mxu0
    %3293 = vmatprep.mubr.bf16.mxu0 0
    %3294 = vmatmul.mubr.bf16.gmra.mrb[0].mxu0 %v3218
    %v3295 = vpop.f32.mrb[0].mxu0
    %v3296 = vadd.f32 0.0, %v3295
    %v3297 = vpop.f32.mrb[0].mxu0
    %v3298 = vpop.f32.mrb[0].mxu0
    %v3299 = vadd.f32 0.0, %v3298
    %v3300 = vpop.f32.mrb[0].mxu0
    %3301 = vmatprep.mubr.bf16.mxu0 0
    %3302 = vmatmul.mubr.bf16.gmra.mrb[0].mxu0 %v3221
    %v3303 = vpop.f32.mrb[0].mxu0
    %v3304 = vadd.f32 0.0, %v3303
    %v3305 = vpop.f32.mrb[0].mxu0
    %v3306 = vpop.f32.mrb[0].mxu0
    %v3307 = vadd.f32 0.0, %v3306
    %v3308 = vpop.f32.mrb[0].mxu0
    %3309 = vmatprep.mubr.bf16.mxu0 0
    %3310 = vmatmul.mubr.bf16.gmra.mrb[0].mxu0 %v3224
    %v3311 = vpop.f32.mrb[0].mxu0
    %v3312 = vadd.f32 0.0, %v3311
    %v3313 = vpop.f32.mrb[0].mxu0
    %v3314 = vpop.f32.mrb[0].mxu0
    %v3315 = vadd.f32 0.0, %v3314
    %v3316 = vpop.f32.mrb[0].mxu0
    %3317 = vmatprep.mubr.bf16.mxu0 0
    %3318 = vmatmul.mubr.bf16.gmra.mrb[0].mxu0 %v3227
    %v3319 = vpop.f32.mrb[0].mxu0
    %v3320 = vadd.f32 0.0, %v3319
    %v3321 = vpop.f32.mrb[0].mxu0
    %v3322 = vpop.f32.mrb[0].mxu0
    %v3323 = vadd.f32 0.0, %v3322
    %v3324 = vpop.f32.mrb[0].mxu0
    %3325 = vdwg.mxu0
    %v3326 = vadd.f32 %v3135, %v3264
    %v3327 = vadd.f32 %v3138, %v3267
    %v3328 = vadd.f32 %v3143, %v3272
    %v3329 = vadd.f32 %v3146, %v3275
    %v3330 = vadd.f32 %v3151, %v3280
    %v3331 = vadd.f32 %v3154, %v3283
    %v3332 = vadd.f32 %v3159, %v3288
    %v3333 = vadd.f32 %v3162, %v3291
    %v3334 = vadd.f32 %v3167, %v3296
    %v3335 = vadd.f32 %v3170, %v3299
    %v3336 = vadd.f32 %v3175, %v3304
    %v3337 = vadd.f32 %v3178, %v3307
    %v3338 = vadd.f32 %v3183, %v3312
    %v3339 = vadd.f32 %v3186, %v3315
    %v3340 = vadd.f32 %v3191, %v3320
    %v3341 = vadd.f32 %v3194, %v3323
    %v3342 = vadd.f32 %v3326, %v929
    %v3343 = vadd.f32 %v3327, %v929
    %v3344 = vadd.f32 %v3328, %v929
    %v3345 = vadd.f32 %v3329, %v929
    %v3346 = vadd.f32 %v3330, %v929
    %v3347 = vadd.f32 %v3331, %v929
    %v3348 = vadd.f32 %v3332, %v929
    %v3349 = vadd.f32 %v3333, %v929
    %v3350 = vadd.f32 %v3334, %v929
    %v3351 = vadd.f32 %v3335, %v929
    %v3352 = vadd.f32 %v3336, %v929
    %v3353 = vadd.f32 %v3337, %v929
    %v3354 = vadd.f32 %v3338, %v929
    %v3355 = vadd.f32 %v3339, %v929
    %v3356 = vadd.f32 %v3340, %v929
    %v3357 = vadd.f32 %v3341, %v929
    %v3358 = vmax.f32 %v3342, 0.0
    %v3359 = vmax.f32 %v3343, 0.0
    %v3360 = vmax.f32 %v3344, 0.0
    %v3361 = vmax.f32 %v3345, 0.0
    %v3362 = vmax.f32 %v3346, 0.0
    %v3363 = vmax.f32 %v3347, 0.0
    %v3364 = vmax.f32 %v3348, 0.0
    %v3365 = vmax.f32 %v3349, 0.0
    %v3366 = vmax.f32 %v3350, 0.0
    %v3367 = vmax.f32 %v3351, 0.0
    %v3368 = vmax.f32 %v3352, 0.0
    %v3369 = vmax.f32 %v3353, 0.0
    %v3370 = vmax.f32 %v3354, 0.0
    %v3371 = vmax.f32 %v3355, 0.0
    %v3372 = vmax.f32 %v3356, 0.0
    %v3373 = vmax.f32 %v3357, 0.0
    %v3375 = vrot.slane %v3373, 7
    %v3392 = vrot.slane %v3358, 7
    %v3393 = vrot.slane %v3359, 7
    %v3394 = vsel %vm342, %v3392, %v3393
    %v3395 = vrot.slane %v3360, 7
    %v3396 = vsel %vm342, %v3393, %v3395
    %v3397 = vrot.slane %v3361, 7
    %v3398 = vsel %vm342, %v3395, %v3397
    %v3399 = vrot.slane %v3362, 7
    %v3400 = vsel %vm342, %v3397, %v3399
    %v3401 = vrot.slane %v3363, 7
    %v3402 = vsel %vm342, %v3399, %v3401
    %v3403 = vrot.slane %v3364, 7
    %v3404 = vsel %vm342, %v3401, %v3403
    %v3405 = vrot.slane %v3365, 7
    %v3406 = vsel %vm342, %v3403, %v3405
    %v3407 = vrot.slane %v3366, 7
    %v3408 = vsel %vm342, %v3405, %v3407
    %v3409 = vrot.slane %v3367, 7
    %v3410 = vsel %vm342, %v3407, %v3409
    %v3411 = vrot.slane %v3368, 7
    %v3412 = vsel %vm342, %v3409, %v3411
    %v3413 = vrot.slane %v3369, 7
    %v3414 = vsel %vm342, %v3411, %v3413
    %v3415 = vrot.slane %v3370, 7
    %v3416 = vsel %vm342, %v3413, %v3415
    %v3417 = vrot.slane %v3371, 7
    %v3418 = vsel %vm342, %v3415, %v3417
    %v3419 = vrot.slane %v3372, 7
    %v3420 = vsel %vm342, %v3417, %v3419
    %v3421 = vsel %vm342, %v3419, %v3375
    %v3438 = vsel %vm342, %v3375, %v3392
    %v3439 = vmul.f32 %v3438, %v188
    %v3440 = vmul.f32 %v3394, %v189
    %v3441 = vmul.f32 %v3396, %v190
    %v3442 = vmul.f32 %v3398, %v191
    %v3443 = vmul.f32 %v3400, %v192
    %v3444 = vmul.f32 %v3402, %v193
    %v3445 = vmul.f32 %v3404, %v194
    %v3446 = vmul.f32 %v3406, %v195
    %v3447 = vmul.f32 %v3408, %v196
    %v3448 = vmul.f32 %v3410, %v197
    %v3449 = vmul.f32 %v3412, %v198
    %v3450 = vmul.f32 %v3414, %v199
    %v3451 = vmul.f32 %v3416, %v200
    %v3452 = vmul.f32 %v3418, %v201
    %v3453 = vmul.f32 %v3420, %v202
    %v3454 = vmul.f32 %v3421, %v203
    %v3455 = vrot.slane %v3358, 1
    %v3456 = vrot.slane %v3359, 1
    %v3457 = vsel %vm406, %v3455, %v3456
    %v3458 = vrot.slane %v3360, 1
    %v3459 = vsel %vm406, %v3456, %v3458
    %v3460 = vrot.slane %v3361, 1
    %v3461 = vsel %vm406, %v3458, %v3460
    %v3462 = vrot.slane %v3362, 1
    %v3463 = vsel %vm406, %v3460, %v3462
    %v3464 = vrot.slane %v3363, 1
    %v3465 = vsel %vm406, %v3462, %v3464
    %v3466 = vrot.slane %v3364, 1
    %v3467 = vsel %vm406, %v3464, %v3466
    %v3468 = vrot.slane %v3365, 1
    %v3469 = vsel %vm406, %v3466, %v3468
    %v3470 = vrot.slane %v3366, 1
    %v3471 = vsel %vm406, %v3468, %v3470
    %v3472 = vrot.slane %v3367, 1
    %v3473 = vsel %vm406, %v3470, %v3472
    %v3474 = vrot.slane %v3368, 1
    %v3475 = vsel %vm406, %v3472, %v3474
    %v3476 = vrot.slane %v3369, 1
    %v3477 = vsel %vm406, %v3474, %v3476
    %v3478 = vrot.slane %v3370, 1
    %v3479 = vsel %vm406, %v3476, %v3478
    %v3480 = vrot.slane %v3371, 1
    %v3481 = vsel %vm406, %v3478, %v3480
    %v3482 = vrot.slane %v3372, 1
    %v3483 = vsel %vm406, %v3480, %v3482
    %v3484 = vrot.slane %v3373, 1
    %v3485 = vsel %vm406, %v3482, %v3484
    %v3503 = vsel %vm406, %v3484, %v3455
    %v3504 = vmul.f32 %v3457, %v236
    %v3505 = vmul.f32 %v3459, %v237
    %v3506 = vmul.f32 %v3461, %v238
    %v3507 = vmul.f32 %v3463, %v239
    %v3508 = vmul.f32 %v3465, %v240
    %v3509 = vmul.f32 %v3467, %v241
    %v3510 = vmul.f32 %v3469, %v242
    %v3511 = vmul.f32 %v3471, %v243
    %v3512 = vmul.f32 %v3473, %v244
    %v3513 = vmul.f32 %v3475, %v245
    %v3514 = vmul.f32 %v3477, %v246
    %v3515 = vmul.f32 %v3479, %v247
    %v3516 = vmul.f32 %v3481, %v248
    %v3517 = vmul.f32 %v3483, %v249
    %v3518 = vmul.f32 %v3485, %v250
    %v3519 = vmul.f32 %v3503, %v251
    %v3520 = vpack.c.bf16 %v3359, %v3358
    %v3521 = vpack.c.bf16 %v3361, %v3360
    %v3522 = vpack.c.bf16 %v3363, %v3362
    %v3523 = vpack.c.bf16 %v3365, %v3364
    %v3524 = vpack.c.bf16 %v3367, %v3366
    %v3525 = vpack.c.bf16 %v3369, %v3368
    %v3526 = vpack.c.bf16 %v3371, %v3370
    %v3527 = vpack.c.bf16 %v3373, %v3372
    %v3528 = vpack.c.bf16 %v3440, %v3439
    %v3529 = vpack.c.bf16 %v3442, %v3441
    %v3530 = vpack.c.bf16 %v3444, %v3443
    %v3531 = vpack.c.bf16 %v3446, %v3445
    %v3532 = vpack.c.bf16 %v3448, %v3447
    %v3533 = vpack.c.bf16 %v3450, %v3449
    %v3534 = vpack.c.bf16 %v3452, %v3451
    %v3535 = vpack.c.bf16 %v3454, %v3453
    %v3537 = vsel %vm508, %v3528, 0
    %v3540 = vsel %vm508, %v3529, 0
    %v3543 = vsel %vm508, %v3530, 0
    %v3546 = vsel %vm508, %v3531, 0
    %v3549 = vsel %vm508, %v3532, 0
    %v3552 = vsel %vm508, %v3533, 0
    %v3555 = vsel %vm508, %v3534, 0
    %v3558 = vsel %vm508, %v3535, 0
    %3560 = vmatprep.subr.bf16.mxu0 0
    %3561 = vmatpush1.bf16.msra.mxu0 %v1141
    %3562 = vmatprep.subr.bf16.mxu0 0
    %3563 = vmatpush1.bf16.msra.mxu0 %v1142
    %3564 = vmatprep.subr.bf16.mxu0 0
    %3565 = vmatpush1.bf16.msra.mxu0 0
    %3566 = vmatprep.subr.bf16.mxu0 0
    %3567 = vmatpush1.bf16.msra.mxu0 0
    %3568 = vmatprep.subr.bf16.mxu0 0
    %3569 = vmatpush1.bf16.msra.mxu0 0
    %3570 = vmatprep.subr.bf16.mxu0 0
    %3571 = vmatpush1.bf16.msra.mxu0 0
    %3572 = vmatprep.subr.bf16.mxu0 0
    %3573 = vmatpush1.bf16.msra.mxu0 0
    %3574 = vmatprep.subr.bf16.mxu0 0
    %3575 = vmatpush1.bf16.msra.mxu0 0
    %3576 = vmatprep.subr.bf16.mxu0 0
    %3577 = vmatpush1.bf16.msra.mxu0 0
    %3578 = vmatprep.subr.bf16.mxu0 0
    %3579 = vmatpush1.bf16.msra.mxu0 0
    %3580 = vmatprep.subr.bf16.mxu0 0
    %3581 = vmatpush1.bf16.msra.mxu0 0
    %3582 = vmatprep.subr.bf16.mxu0 0
    %3583 = vmatpush1.bf16.msra.mxu0 0
    %3584 = vmatprep.subr.bf16.mxu0 0
    %3585 = vmatpush1.bf16.msra.mxu0 0
    %3586 = vmatprep.subr.bf16.mxu0 0
    %3587 = vmatpush1.bf16.msra.mxu0 0
    %3588 = vmatprep.subr.bf16.mxu0 0
    %3589 = vmatpush1.bf16.msra.mxu0 0
    %3590 = vmatprep.subr.bf16.mxu0 0
    %3591 = vmatpush1.bf16.msra.mxu0 0
    %3592 = vmatprep.mubr.bf16.mxu0 0
    %3593 = vmatmul.mubr.bf16.gmra.mrb[0].mxu0 %v3537
    %v3594 = vpop.f32.mrb[0].mxu0
    %v3595 = vadd.f32 0.0, %v3594
    %v3596 = vpop.f32.mrb[0].mxu0
    %v3597 = vpop.f32.mrb[0].mxu0
    %v3598 = vadd.f32 0.0, %v3597
    %v3599 = vpop.f32.mrb[0].mxu0
    %3600 = vmatprep.mubr.bf16.mxu0 0
    %3601 = vmatmul.mubr.bf16.gmra.mrb[0].mxu0 %v3540
    %v3602 = vpop.f32.mrb[0].mxu0
    %v3603 = vadd.f32 0.0, %v3602
    %v3604 = vpop.f32.mrb[0].mxu0
    %v3605 = vpop.f32.mrb[0].mxu0
    %v3606 = vadd.f32 0.0, %v3605
    %v3607 = vpop.f32.mrb[0].mxu0
    %3608 = vmatprep.mubr.bf16.mxu0 0
    %3609 = vmatmul.mubr.bf16.gmra.mrb[0].mxu0 %v3543
    %v3610 = vpop.f32.mrb[0].mxu0
    %v3611 = vadd.f32 0.0, %v3610
    %v3612 = vpop.f32.mrb[0].mxu0
    %v3613 = vpop.f32.mrb[0].mxu0
    %v3614 = vadd.f32 0.0, %v3613
    %v3615 = vpop.f32.mrb[0].mxu0
    %3616 = vmatprep.mubr.bf16.mxu0 0
    %3617 = vmatmul.mubr.bf16.gmra.mrb[0].mxu0 %v3546
    %v3618 = vpop.f32.mrb[0].mxu0
    %v3619 = vadd.f32 0.0, %v3618
    %v3620 = vpop.f32.mrb[0].mxu0
    %v3621 = vpop.f32.mrb[0].mxu0
    %v3622 = vadd.f32 0.0, %v3621
    %v3623 = vpop.f32.mrb[0].mxu0
    %3624 = vmatprep.mubr.bf16.mxu0 0
    %3625 = vmatmul.mubr.bf16.gmra.mrb[0].mxu0 %v3549
    %v3626 = vpop.f32.mrb[0].mxu0
    %v3627 = vadd.f32 0.0, %v3626
    %v3628 = vpop.f32.mrb[0].mxu0
    %v3629 = vpop.f32.mrb[0].mxu0
    %v3630 = vadd.f32 0.0, %v3629
    %v3631 = vpop.f32.mrb[0].mxu0
    %3632 = vmatprep.mubr.bf16.mxu0 0
    %3633 = vmatmul.mubr.bf16.gmra.mrb[0].mxu0 %v3552
    %v3634 = vpop.f32.mrb[0].mxu0
    %v3635 = vadd.f32 0.0, %v3634
    %v3636 = vpop.f32.mrb[0].mxu0
    %v3637 = vpop.f32.mrb[0].mxu0
    %v3638 = vadd.f32 0.0, %v3637
    %v3639 = vpop.f32.mrb[0].mxu0
    %3640 = vmatprep.mubr.bf16.mxu0 0
    %3641 = vmatmul.mubr.bf16.gmra.mrb[0].mxu0 %v3555
    %v3642 = vpop.f32.mrb[0].mxu0
    %v3643 = vadd.f32 0.0, %v3642
    %v3644 = vpop.f32.mrb[0].mxu0
    %v3645 = vpop.f32.mrb[0].mxu0
    %v3646 = vadd.f32 0.0, %v3645
    %v3647 = vpop.f32.mrb[0].mxu0
    %3648 = vmatprep.mubr.bf16.mxu0 0
    %3649 = vmatmul.mubr.bf16.gmra.mrb[0].mxu0 %v3558
    %v3650 = vpop.f32.mrb[0].mxu0
    %v3651 = vadd.f32 0.0, %v3650
    %v3652 = vpop.f32.mrb[0].mxu0
    %v3653 = vpop.f32.mrb[0].mxu0
    %v3654 = vadd.f32 0.0, %v3653
    %v3655 = vpop.f32.mrb[0].mxu0
    %3656 = vdwg.mxu0
    %v3658 = vsel %vm508, %v3520, 0
    %v3661 = vsel %vm508, %v3521, 0
    %v3664 = vsel %vm508, %v3522, 0
    %v3667 = vsel %vm508, %v3523, 0
    %v3670 = vsel %vm508, %v3524, 0
    %v3673 = vsel %vm508, %v3525, 0
    %v3676 = vsel %vm508, %v3526, 0
    %v3679 = vsel %vm508, %v3527, 0
    %3681 = vmatprep.subr.bf16.mxu0 0
    %3682 = vmatpush1.bf16.msra.mxu0 %v1274
    %3683 = vmatprep.subr.bf16.mxu0 0
    %3684 = vmatpush1.bf16.msra.mxu0 %v1275
    %3685 = vmatprep.subr.bf16.mxu0 0
    %3686 = vmatpush1.bf16.msra.mxu0 0
    %3687 = vmatprep.subr.bf16.mxu0 0
    %3688 = vmatpush1.bf16.msra.mxu0 0
    %3689 = vmatprep.subr.bf16.mxu0 0
    %3690 = vmatpush1.bf16.msra.mxu0 0
    %3691 = vmatprep.subr.bf16.mxu0 0
    %3692 = vmatpush1.bf16.msra.mxu0 0
    %3693 = vmatprep.subr.bf16.mxu0 0
    %3694 = vmatpush1.bf16.msra.mxu0 0
    %3695 = vmatprep.subr.bf16.mxu0 0
    %3696 = vmatpush1.bf16.msra.mxu0 0
    %3697 = vmatprep.subr.bf16.mxu0 0
    %3698 = vmatpush1.bf16.msra.mxu0 0
    %3699 = vmatprep.subr.bf16.mxu0 0
    %3700 = vmatpush1.bf16.msra.mxu0 0
    %3701 = vmatprep.subr.bf16.mxu0 0
    %3702 = vmatpush1.bf16.msra.mxu0 0
    %3703 = vmatprep.subr.bf16.mxu0 0
    %3704 = vmatpush1.bf16.msra.mxu0 0
    %3705 = vmatprep.subr.bf16.mxu0 0
    %3706 = vmatpush1.bf16.msra.mxu0 0
    %3707 = vmatprep.subr.bf16.mxu0 0
    %3708 = vmatpush1.bf16.msra.mxu0 0
    %3709 = vmatprep.subr.bf16.mxu0 0
    %3710 = vmatpush1.bf16.msra.mxu0 0
    %3711 = vmatprep.subr.bf16.mxu0 0
    %3712 = vmatpush1.bf16.msra.mxu0 0
    %3713 = vmatprep.mubr.bf16.mxu0 0
    %3714 = vmatmul.mubr.bf16.gmra.mrb[0].mxu0 %v3658
    %v3715 = vpop.f32.mrb[0].mxu0
    %v3716 = vadd.f32 %v3595, %v3715
    %v3717 = vpop.f32.mrb[0].mxu0
    %v3718 = vpop.f32.mrb[0].mxu0
    %v3719 = vadd.f32 %v3598, %v3718
    %v3720 = vpop.f32.mrb[0].mxu0
    %3721 = vmatprep.mubr.bf16.mxu0 0
    %3722 = vmatmul.mubr.bf16.gmra.mrb[0].mxu0 %v3661
    %v3723 = vpop.f32.mrb[0].mxu0
    %v3724 = vadd.f32 %v3603, %v3723
    %v3725 = vpop.f32.mrb[0].mxu0
    %v3726 = vpop.f32.mrb[0].mxu0
    %v3727 = vadd.f32 %v3606, %v3726
    %v3728 = vpop.f32.mrb[0].mxu0
    %3729 = vmatprep.mubr.bf16.mxu0 0
    %3730 = vmatmul.mubr.bf16.gmra.mrb[0].mxu0 %v3664
    %v3731 = vpop.f32.mrb[0].mxu0
    %v3732 = vadd.f32 %v3611, %v3731
    %v3733 = vpop.f32.mrb[0].mxu0
    %v3734 = vpop.f32.mrb[0].mxu0
    %v3735 = vadd.f32 %v3614, %v3734
    %v3736 = vpop.f32.mrb[0].mxu0
    %3737 = vmatprep.mubr.bf16.mxu0 0
    %3738 = vmatmul.mubr.bf16.gmra.mrb[0].mxu0 %v3667
    %v3739 = vpop.f32.mrb[0].mxu0
    %v3740 = vadd.f32 %v3619, %v3739
    %v3741 = vpop.f32.mrb[0].mxu0
    %v3742 = vpop.f32.mrb[0].mxu0
    %v3743 = vadd.f32 %v3622, %v3742
    %v3744 = vpop.f32.mrb[0].mxu0
    %3745 = vmatprep.mubr.bf16.mxu0 0
    %3746 = vmatmul.mubr.bf16.gmra.mrb[0].mxu0 %v3670
    %v3747 = vpop.f32.mrb[0].mxu0
    %v3748 = vadd.f32 %v3627, %v3747
    %v3749 = vpop.f32.mrb[0].mxu0
    %v3750 = vpop.f32.mrb[0].mxu0
    %v3751 = vadd.f32 %v3630, %v3750
    %v3752 = vpop.f32.mrb[0].mxu0
    %3753 = vmatprep.mubr.bf16.mxu0 0
    %3754 = vmatmul.mubr.bf16.gmra.mrb[0].mxu0 %v3673
    %v3755 = vpop.f32.mrb[0].mxu0
    %v3756 = vadd.f32 %v3635, %v3755
    %v3757 = vpop.f32.mrb[0].mxu0
    %v3758 = vpop.f32.mrb[0].mxu0
    %v3759 = vadd.f32 %v3638, %v3758
    %v3760 = vpop.f32.mrb[0].mxu0
    %3761 = vmatprep.mubr.bf16.mxu0 0
    %3762 = vmatmul.mubr.bf16.gmra.mrb[0].mxu0 %v3676
    %v3763 = vpop.f32.mrb[0].mxu0
    %v3764 = vadd.f32 %v3643, %v3763
    %v3765 = vpop.f32.mrb[0].mxu0
    %v3766 = vpop.f32.mrb[0].mxu0
    %v3767 = vadd.f32 %v3646, %v3766
    %v3768 = vpop.f32.mrb[0].mxu0
    %3769 = vmatprep.mubr.bf16.mxu0 0
    %3770 = vmatmul.mubr.bf16.gmra.mrb[0].mxu0 %v3679
    %v3771 = vpop.f32.mrb[0].mxu0
    %v3772 = vadd.f32 %v3651, %v3771
    %v3773 = vpop.f32.mrb[0].mxu0
    %v3774 = vpop.f32.mrb[0].mxu0
    %v3775 = vadd.f32 %v3654, %v3774
    %v3776 = vpop.f32.mrb[0].mxu0
    %3777 = vdwg.mxu0
    %v3778 = vpack.c.bf16 %v3505, %v3504
    %v3779 = vpack.c.bf16 %v3507, %v3506
    %v3780 = vpack.c.bf16 %v3509, %v3508
    %v3781 = vpack.c.bf16 %v3511, %v3510
    %v3782 = vpack.c.bf16 %v3513, %v3512
    %v3783 = vpack.c.bf16 %v3515, %v3514
    %v3784 = vpack.c.bf16 %v3517, %v3516
    %v3785 = vpack.c.bf16 %v3519, %v3518
    %v3787 = vsel %vm508, %v3778, 0
    %v3790 = vsel %vm508, %v3779, 0
    %v3793 = vsel %vm508, %v3780, 0
    %v3796 = vsel %vm508, %v3781, 0
    %v3799 = vsel %vm508, %v3782, 0
    %v3802 = vsel %vm508, %v3783, 0
    %v3805 = vsel %vm508, %v3784, 0
    %v3808 = vsel %vm508, %v3785, 0
    %3810 = vmatprep.subr.bf16.mxu0 0
    %3811 = vmatpush1.bf16.msra.mxu0 %v1419
    %3812 = vmatprep.subr.bf16.mxu0 0
    %3813 = vmatpush1.bf16.msra.mxu0 %v1420
    %3814 = vmatprep.subr.bf16.mxu0 0
    %3815 = vmatpush1.bf16.msra.mxu0 0
    %3816 = vmatprep.subr.bf16.mxu0 0
    %3817 = vmatpush1.bf16.msra.mxu0 0
    %3818 = vmatprep.subr.bf16.mxu0 0
    %3819 = vmatpush1.bf16.msra.mxu0 0
    %3820 = vmatprep.subr.bf16.mxu0 0
    %3821 = vmatpush1.bf16.msra.mxu0 0
    %3822 = vmatprep.subr.bf16.mxu0 0
    %3823 = vmatpush1.bf16.msra.mxu0 0
    %3824 = vmatprep.subr.bf16.mxu0 0
    %3825 = vmatpush1.bf16.msra.mxu0 0
    %3826 = vmatprep.subr.bf16.mxu0 0
    %3827 = vmatpush1.bf16.msra.mxu0 0
    %3828 = vmatprep.subr.bf16.mxu0 0
    %3829 = vmatpush1.bf16.msra.mxu0 0
    %3830 = vmatprep.subr.bf16.mxu0 0
    %3831 = vmatpush1.bf16.msra.mxu0 0
    %3832 = vmatprep.subr.bf16.mxu0 0
    %3833 = vmatpush1.bf16.msra.mxu0 0
    %3834 = vmatprep.subr.bf16.mxu0 0
    %3835 = vmatpush1.bf16.msra.mxu0 0
    %3836 = vmatprep.subr.bf16.mxu0 0
    %3837 = vmatpush1.bf16.msra.mxu0 0
    %3838 = vmatprep.subr.bf16.mxu0 0
    %3839 = vmatpush1.bf16.msra.mxu0 0
    %3840 = vmatprep.subr.bf16.mxu0 0
    %3841 = vmatpush1.bf16.msra.mxu0 0
    %3842 = vmatprep.mubr.bf16.mxu0 0
    %3843 = vmatmul.mubr.bf16.gmra.mrb[0].mxu0 %v3787
    %v3844 = vpop.f32.mrb[0].mxu0
    %v3845 = vadd.f32 0.0, %v3844
    %v3846 = vpop.f32.mrb[0].mxu0
    %v3847 = vpop.f32.mrb[0].mxu0
    %v3848 = vadd.f32 0.0, %v3847
    %v3849 = vpop.f32.mrb[0].mxu0
    %3850 = vmatprep.mubr.bf16.mxu0 0
    %3851 = vmatmul.mubr.bf16.gmra.mrb[0].mxu0 %v3790
    %v3852 = vpop.f32.mrb[0].mxu0
    %v3853 = vadd.f32 0.0, %v3852
    %v3854 = vpop.f32.mrb[0].mxu0
    %v3855 = vpop.f32.mrb[0].mxu0
    %v3856 = vadd.f32 0.0, %v3855
    %v3857 = vpop.f32.mrb[0].mxu0
    %3858 = vmatprep.mubr.bf16.mxu0 0
    %3859 = vmatmul.mubr.bf16.gmra.mrb[0].mxu0 %v3793
    %v3860 = vpop.f32.mrb[0].mxu0
    %v3861 = vadd.f32 0.0, %v3860
    %v3862 = vpop.f32.mrb[0].mxu0
    %v3863 = vpop.f32.mrb[0].mxu0
    %v3864 = vadd.f32 0.0, %v3863
    %v3865 = vpop.f32.mrb[0].mxu0
    %3866 = vmatprep.mubr.bf16.mxu0 0
    %3867 = vmatmul.mubr.bf16.gmra.mrb[0].mxu0 %v3796
    %v3868 = vpop.f32.mrb[0].mxu0
    %v3869 = vadd.f32 0.0, %v3868
    %v3870 = vpop.f32.mrb[0].mxu0
    %v3871 = vpop.f32.mrb[0].mxu0
    %v3872 = vadd.f32 0.0, %v3871
    %v3873 = vpop.f32.mrb[0].mxu0
    %3874 = vmatprep.mubr.bf16.mxu0 0
    %3875 = vmatmul.mubr.bf16.gmra.mrb[0].mxu0 %v3799
    %v3876 = vpop.f32.mrb[0].mxu0
    %v3877 = vadd.f32 0.0, %v3876
    %v3878 = vpop.f32.mrb[0].mxu0
    %v3879 = vpop.f32.mrb[0].mxu0
    %v3880 = vadd.f32 0.0, %v3879
    %v3881 = vpop.f32.mrb[0].mxu0
    %3882 = vmatprep.mubr.bf16.mxu0 0
    %3883 = vmatmul.mubr.bf16.gmra.mrb[0].mxu0 %v3802
    %v3884 = vpop.f32.mrb[0].mxu0
    %v3885 = vadd.f32 0.0, %v3884
    %v3886 = vpop.f32.mrb[0].mxu0
    %v3887 = vpop.f32.mrb[0].mxu0
    %v3888 = vadd.f32 0.0, %v3887
    %v3889 = vpop.f32.mrb[0].mxu0
    %3890 = vmatprep.mubr.bf16.mxu0 0
    %3891 = vmatmul.mubr.bf16.gmra.mrb[0].mxu0 %v3805
    %v3892 = vpop.f32.mrb[0].mxu0
    %v3893 = vadd.f32 0.0, %v3892
    %v3894 = vpop.f32.mrb[0].mxu0
    %v3895 = vpop.f32.mrb[0].mxu0
    %v3896 = vadd.f32 0.0, %v3895
    %v3897 = vpop.f32.mrb[0].mxu0
    %3898 = vmatprep.mubr.bf16.mxu0 0
    %3899 = vmatmul.mubr.bf16.gmra.mrb[0].mxu0 %v3808
    %v3900 = vpop.f32.mrb[0].mxu0
    %v3901 = vadd.f32 0.0, %v3900
    %v3902 = vpop.f32.mrb[0].mxu0
    %v3903 = vpop.f32.mrb[0].mxu0
    %v3904 = vadd.f32 0.0, %v3903
    %v3905 = vpop.f32.mrb[0].mxu0
    %3906 = vdwg.mxu0
    %v3907 = vadd.f32 %v3716, %v3845
    %v3908 = vadd.f32 %v3719, %v3848
    %v3909 = vadd.f32 %v3724, %v3853
    %v3910 = vadd.f32 %v3727, %v3856
    %v3911 = vadd.f32 %v3732, %v3861
    %v3912 = vadd.f32 %v3735, %v3864
    %v3913 = vadd.f32 %v3740, %v3869
    %v3914 = vadd.f32 %v3743, %v3872
    %v3915 = vadd.f32 %v3748, %v3877
    %v3916 = vadd.f32 %v3751, %v3880
    %v3917 = vadd.f32 %v3756, %v3885
    %v3918 = vadd.f32 %v3759, %v3888
    %v3919 = vadd.f32 %v3764, %v3893
    %v3920 = vadd.f32 %v3767, %v3896
    %v3921 = vadd.f32 %v3772, %v3901
    %v3922 = vadd.f32 %v3775, %v3904
    %v3923 = vadd.f32 %v3907, %v1565
    %v3924 = vadd.f32 %v3908, %v1565
    %v3925 = vadd.f32 %v3909, %v1565
    %v3926 = vadd.f32 %v3910, %v1565
    %v3927 = vadd.f32 %v3911, %v1565
    %v3928 = vadd.f32 %v3912, %v1565
    %v3929 = vadd.f32 %v3913, %v1565
    %v3930 = vadd.f32 %v3914, %v1565
    %v3931 = vadd.f32 %v3915, %v1565
    %v3932 = vadd.f32 %v3916, %v1565
    %v3933 = vadd.f32 %v3917, %v1565
    %v3934 = vadd.f32 %v3918, %v1565
    %v3935 = vadd.f32 %v3919, %v1565
    %v3936 = vadd.f32 %v3920, %v1565
    %v3937 = vadd.f32 %v3921, %v1565
    %v3938 = vadd.f32 %v3922, %v1565
    %v3939 = vsub.f32 %v1567, %v2745
    %v3940 = vsub.f32 %v1568, %v2746
    %v3941 = vsub.f32 %v1569, %v2747
    %v3942 = vsub.f32 %v1570, %v2748
    %v3943 = vsub.f32 %v1571, %v2749
    %v3944 = vsub.f32 %v1572, %v2750
    %v3945 = vsub.f32 %v1573, %v2751
    %v3946 = vsub.f32 %v1574, %v2752
    %v3947 = vsub.f32 %v1575, %v2753
    %v3948 = vsub.f32 %v1576, %v2754
    %v3949 = vsub.f32 %v1577, %v2755
    %v3950 = vsub.f32 %v1578, %v2756
    %v3951 = vsub.f32 %v1579, %v2757
    %v3952 = vsub.f32 %v1580, %v2758
    %v3953 = vsub.f32 %v1581, %v2759
    %v3954 = vsub.f32 %v1582, %v2760
    %v3955 = vadd.f32 %v3939, %v3923
    %v3956 = vadd.f32 %v3940, %v3924
    %v3957 = vadd.f32 %v3941, %v3925
    %v3958 = vadd.f32 %v3942, %v3926
    %v3959 = vadd.f32 %v3943, %v3927
    %v3960 = vadd.f32 %v3944, %v3928
    %v3961 = vadd.f32 %v3945, %v3929
    %v3962 = vadd.f32 %v3946, %v3930
    %v3963 = vadd.f32 %v3947, %v3931
    %v3964 = vadd.f32 %v3948, %v3932
    %v3965 = vadd.f32 %v3949, %v3933
    %v3966 = vadd.f32 %v3950, %v3934
    %v3967 = vadd.f32 %v3951, %v3935
    %v3968 = vadd.f32 %v3952, %v3936
    %v3969 = vadd.f32 %v3953, %v3937
    %v3970 = vadd.f32 %v3954, %v3938
    %v3971 = vadd.f32 %v308, %v3955
    %v3972 = vadd.f32 %v309, %v3956
    %v3973 = vadd.f32 %v310, %v3957
    %v3974 = vadd.f32 %v311, %v3958
    %v3975 = vadd.f32 %v312, %v3959
    %v3976 = vadd.f32 %v313, %v3960
    %v3977 = vadd.f32 %v314, %v3961
    %v3978 = vadd.f32 %v315, %v3962
    %v3979 = vadd.f32 %v316, %v3963
    %v3980 = vadd.f32 %v317, %v3964
    %v3981 = vadd.f32 %v318, %v3965
    %v3982 = vadd.f32 %v319, %v3966
    %v3983 = vadd.f32 %v320, %v3967
    %v3984 = vadd.f32 %v321, %v3968
    %v3985 = vadd.f32 %v322, %v3969
    %v3986 = vadd.f32 %v323, %v3970
    %v3988 = vrot.slane %v3986, 7
    %v4005 = vrot.slane %v3971, 7
    %v4006 = vrot.slane %v3972, 7
    %v4007 = vsel %vm342, %v4005, %v4006
    %v4008 = vrot.slane %v3973, 7
    %v4009 = vsel %vm342, %v4006, %v4008
    %v4010 = vrot.slane %v3974, 7
    %v4011 = vsel %vm342, %v4008, %v4010
    %v4012 = vrot.slane %v3975, 7
    %v4013 = vsel %vm342, %v4010, %v4012
    %v4014 = vrot.slane %v3976, 7
    %v4015 = vsel %vm342, %v4012, %v4014
    %v4016 = vrot.slane %v3977, 7
    %v4017 = vsel %vm342, %v4014, %v4016
    %v4018 = vrot.slane %v3978, 7
    %v4019 = vsel %vm342, %v4016, %v4018
    %v4020 = vrot.slane %v3979, 7
    %v4021 = vsel %vm342, %v4018, %v4020
    %v4022 = vrot.slane %v3980, 7
    %v4023 = vsel %vm342, %v4020, %v4022
    %v4024 = vrot.slane %v3981, 7
    %v4025 = vsel %vm342, %v4022, %v4024
    %v4026 = vrot.slane %v3982, 7
    %v4027 = vsel %vm342, %v4024, %v4026
    %v4028 = vrot.slane %v3983, 7
    %v4029 = vsel %vm342, %v4026, %v4028
    %v4030 = vrot.slane %v3984, 7
    %v4031 = vsel %vm342, %v4028, %v4030
    %v4032 = vrot.slane %v3985, 7
    %v4033 = vsel %vm342, %v4030, %v4032
    %v4034 = vsel %vm342, %v4032, %v3988
    %v4051 = vsel %vm342, %v3988, %v4005
    %v4052 = vmul.f32 %v4051, %v188
    %v4053 = vmul.f32 %v4007, %v189
    %v4054 = vmul.f32 %v4009, %v190
    %v4055 = vmul.f32 %v4011, %v191
    %v4056 = vmul.f32 %v4013, %v192
    %v4057 = vmul.f32 %v4015, %v193
    %v4058 = vmul.f32 %v4017, %v194
    %v4059 = vmul.f32 %v4019, %v195
    %v4060 = vmul.f32 %v4021, %v196
    %v4061 = vmul.f32 %v4023, %v197
    %v4062 = vmul.f32 %v4025, %v198
    %v4063 = vmul.f32 %v4027, %v199
    %v4064 = vmul.f32 %v4029, %v200
    %v4065 = vmul.f32 %v4031, %v201
    %v4066 = vmul.f32 %v4033, %v202
    %v4067 = vmul.f32 %v4034, %v203
    %v4068 = vrot.slane %v3971, 1
    %v4069 = vrot.slane %v3972, 1
    %v4070 = vsel %vm406, %v4068, %v4069
    %v4071 = vrot.slane %v3973, 1
    %v4072 = vsel %vm406, %v4069, %v4071
    %v4073 = vrot.slane %v3974, 1
    %v4074 = vsel %vm406, %v4071, %v4073
    %v4075 = vrot.slane %v3975, 1
    %v4076 = vsel %vm406, %v4073, %v4075
    %v4077 = vrot.slane %v3976, 1
    %v4078 = vsel %vm406, %v4075, %v4077
    %v4079 = vrot.slane %v3977, 1
    %v4080 = vsel %vm406, %v4077, %v4079
    %v4081 = vrot.slane %v3978, 1
    %v4082 = vsel %vm406, %v4079, %v4081
    %v4083 = vrot.slane %v3979, 1
    %v4084 = vsel %vm406, %v4081, %v4083
    %v4085 = vrot.slane %v3980, 1
    %v4086 = vsel %vm406, %v4083, %v4085
    %v4087 = vrot.slane %v3981, 1
    %v4088 = vsel %vm406, %v4085, %v4087
    %v4089 = vrot.slane %v3982, 1
    %v4090 = vsel %vm406, %v4087, %v4089
    %v4091 = vrot.slane %v3983, 1
    %v4092 = vsel %vm406, %v4089, %v4091
    %v4093 = vrot.slane %v3984, 1
    %v4094 = vsel %vm406, %v4091, %v4093
    %v4095 = vrot.slane %v3985, 1
    %v4096 = vsel %vm406, %v4093, %v4095
    %v4097 = vrot.slane %v3986, 1
    %v4098 = vsel %vm406, %v4095, %v4097
    %v4116 = vsel %vm406, %v4097, %v4068
    %v4117 = vmul.f32 %v4070, %v236
    %v4118 = vmul.f32 %v4072, %v237
    %v4119 = vmul.f32 %v4074, %v238
    %v4120 = vmul.f32 %v4076, %v239
    %v4121 = vmul.f32 %v4078, %v240
    %v4122 = vmul.f32 %v4080, %v241
    %v4123 = vmul.f32 %v4082, %v242
    %v4124 = vmul.f32 %v4084, %v243
    %v4125 = vmul.f32 %v4086, %v244
    %v4126 = vmul.f32 %v4088, %v245
    %v4127 = vmul.f32 %v4090, %v246
    %v4128 = vmul.f32 %v4092, %v247
    %v4129 = vmul.f32 %v4094, %v248
    %v4130 = vmul.f32 %v4096, %v249
    %v4131 = vmul.f32 %v4098, %v250
    %v4132 = vmul.f32 %v4116, %v251
    %v4133 = vpack.c.bf16 %v3972, %v3971
    %v4134 = vpack.c.bf16 %v3974, %v3973
    %v4135 = vpack.c.bf16 %v3976, %v3975
    %v4136 = vpack.c.bf16 %v3978, %v3977
    %v4137 = vpack.c.bf16 %v3980, %v3979
    %v4138 = vpack.c.bf16 %v3982, %v3981
    %v4139 = vpack.c.bf16 %v3984, %v3983
    %v4140 = vpack.c.bf16 %v3986, %v3985
    %v4141 = vpack.c.bf16 %v4053, %v4052
    %v4142 = vpack.c.bf16 %v4055, %v4054
    %v4143 = vpack.c.bf16 %v4057, %v4056
    %v4144 = vpack.c.bf16 %v4059, %v4058
    %v4145 = vpack.c.bf16 %v4061, %v4060
    %v4146 = vpack.c.bf16 %v4063, %v4062
    %v4147 = vpack.c.bf16 %v4065, %v4064
    %v4148 = vpack.c.bf16 %v4067, %v4066
    %v4150 = vsel %vm508, %v4141, 0
    %v4153 = vsel %vm508, %v4142, 0
    %v4156 = vsel %vm508, %v4143, 0
    %v4159 = vsel %vm508, %v4144, 0
    %v4162 = vsel %vm508, %v4145, 0
    %v4165 = vsel %vm508, %v4146, 0
    %v4168 = vsel %vm508, %v4147, 0
    %v4171 = vsel %vm508, %v4148, 0
    %4173 = vmatprep.subr.bf16.mxu0 0
    %4174 = vmatpush1.bf16.msra.mxu0 %v504
    %4175 = vmatprep.subr.bf16.mxu0 0
    %4176 = vmatpush1.bf16.msra.mxu0 %v505
    %4177 = vmatprep.subr.bf16.mxu0 0
    %4178 = vmatpush1.bf16.msra.mxu0 0
    %4179 = vmatprep.subr.bf16.mxu0 0
    %4180 = vmatpush1.bf16.msra.mxu0 0
    %4181 = vmatprep.subr.bf16.mxu0 0
    %4182 = vmatpush1.bf16.msra.mxu0 0
    %4183 = vmatprep.subr.bf16.mxu0 0
    %4184 = vmatpush1.bf16.msra.mxu0 0
    %4185 = vmatprep.subr.bf16.mxu0 0
    %4186 = vmatpush1.bf16.msra.mxu0 0
    %4187 = vmatprep.subr.bf16.mxu0 0
    %4188 = vmatpush1.bf16.msra.mxu0 0
    %4189 = vmatprep.subr.bf16.mxu0 0
    %4190 = vmatpush1.bf16.msra.mxu0 0
    %4191 = vmatprep.subr.bf16.mxu0 0
    %4192 = vmatpush1.bf16.msra.mxu0 0
    %4193 = vmatprep.subr.bf16.mxu0 0
    %4194 = vmatpush1.bf16.msra.mxu0 0
    %4195 = vmatprep.subr.bf16.mxu0 0
    %4196 = vmatpush1.bf16.msra.mxu0 0
    %4197 = vmatprep.subr.bf16.mxu0 0
    %4198 = vmatpush1.bf16.msra.mxu0 0
    %4199 = vmatprep.subr.bf16.mxu0 0
    %4200 = vmatpush1.bf16.msra.mxu0 0
    %4201 = vmatprep.subr.bf16.mxu0 0
    %4202 = vmatpush1.bf16.msra.mxu0 0
    %4203 = vmatprep.subr.bf16.mxu0 0
    %4204 = vmatpush1.bf16.msra.mxu0 0
    %4205 = vmatprep.mubr.bf16.mxu0 0
    %4206 = vmatmul.mubr.bf16.gmra.mrb[0].mxu0 %v4150
    %v4207 = vpop.f32.mrb[0].mxu0
    %v4208 = vadd.f32 0.0, %v4207
    %v4209 = vpop.f32.mrb[0].mxu0
    %v4210 = vpop.f32.mrb[0].mxu0
    %v4211 = vadd.f32 0.0, %v4210
    %v4212 = vpop.f32.mrb[0].mxu0
    %4213 = vmatprep.mubr.bf16.mxu0 0
    %4214 = vmatmul.mubr.bf16.gmra.mrb[0].mxu0 %v4153
    %v4215 = vpop.f32.mrb[0].mxu0
    %v4216 = vadd.f32 0.0, %v4215
    %v4217 = vpop.f32.mrb[0].mxu0
    %v4218 = vpop.f32.mrb[0].mxu0
    %v4219 = vadd.f32 0.0, %v4218
    %v4220 = vpop.f32.mrb[0].mxu0
    %4221 = vmatprep.mubr.bf16.mxu0 0
    %4222 = vmatmul.mubr.bf16.gmra.mrb[0].mxu0 %v4156
    %v4223 = vpop.f32.mrb[0].mxu0
    %v4224 = vadd.f32 0.0, %v4223
    %v4225 = vpop.f32.mrb[0].mxu0
    %v4226 = vpop.f32.mrb[0].mxu0
    %v4227 = vadd.f32 0.0, %v4226
    %v4228 = vpop.f32.mrb[0].mxu0
    %4229 = vmatprep.mubr.bf16.mxu0 0
    %4230 = vmatmul.mubr.bf16.gmra.mrb[0].mxu0 %v4159
    %v4231 = vpop.f32.mrb[0].mxu0
    %v4232 = vadd.f32 0.0, %v4231
    %v4233 = vpop.f32.mrb[0].mxu0
    %v4234 = vpop.f32.mrb[0].mxu0
    %v4235 = vadd.f32 0.0, %v4234
    %v4236 = vpop.f32.mrb[0].mxu0
    %4237 = vmatprep.mubr.bf16.mxu0 0
    %4238 = vmatmul.mubr.bf16.gmra.mrb[0].mxu0 %v4162
    %v4239 = vpop.f32.mrb[0].mxu0
    %v4240 = vadd.f32 0.0, %v4239
    %v4241 = vpop.f32.mrb[0].mxu0
    %v4242 = vpop.f32.mrb[0].mxu0
    %v4243 = vadd.f32 0.0, %v4242
    %v4244 = vpop.f32.mrb[0].mxu0
    %4245 = vmatprep.mubr.bf16.mxu0 0
    %4246 = vmatmul.mubr.bf16.gmra.mrb[0].mxu0 %v4165
    %v4247 = vpop.f32.mrb[0].mxu0
    %v4248 = vadd.f32 0.0, %v4247
    %v4249 = vpop.f32.mrb[0].mxu0
    %v4250 = vpop.f32.mrb[0].mxu0
    %v4251 = vadd.f32 0.0, %v4250
    %v4252 = vpop.f32.mrb[0].mxu0
    %4253 = vmatprep.mubr.bf16.mxu0 0
    %4254 = vmatmul.mubr.bf16.gmra.mrb[0].mxu0 %v4168
    %v4255 = vpop.f32.mrb[0].mxu0
    %v4256 = vadd.f32 0.0, %v4255
    %v4257 = vpop.f32.mrb[0].mxu0
    %v4258 = vpop.f32.mrb[0].mxu0
    %v4259 = vadd.f32 0.0, %v4258
    %v4260 = vpop.f32.mrb[0].mxu0
    %4261 = vmatprep.mubr.bf16.mxu0 0
    %4262 = vmatmul.mubr.bf16.gmra.mrb[0].mxu0 %v4171
    %v4263 = vpop.f32.mrb[0].mxu0
    %v4264 = vadd.f32 0.0, %v4263
    %v4265 = vpop.f32.mrb[0].mxu0
    %v4266 = vpop.f32.mrb[0].mxu0
    %v4267 = vadd.f32 0.0, %v4266
    %v4268 = vpop.f32.mrb[0].mxu0
    %4269 = vdwg.mxu0
    %v4271 = vsel %vm508, %v4133, 0
    %v4274 = vsel %vm508, %v4134, 0
    %v4277 = vsel %vm508, %v4135, 0
    %v4280 = vsel %vm508, %v4136, 0
    %v4283 = vsel %vm508, %v4137, 0
    %v4286 = vsel %vm508, %v4138, 0
    %v4289 = vsel %vm508, %v4139, 0
    %v4292 = vsel %vm508, %v4140, 0
    %4294 = vmatprep.subr.bf16.mxu0 0
    %4295 = vmatpush1.bf16.msra.mxu0 %v638
    %4296 = vmatprep.subr.bf16.mxu0 0
    %4297 = vmatpush1.bf16.msra.mxu0 %v639
    %4298 = vmatprep.subr.bf16.mxu0 0
    %4299 = vmatpush1.bf16.msra.mxu0 0
    %4300 = vmatprep.subr.bf16.mxu0 0
    %4301 = vmatpush1.bf16.msra.mxu0 0
    %4302 = vmatprep.subr.bf16.mxu0 0
    %4303 = vmatpush1.bf16.msra.mxu0 0
    %4304 = vmatprep.subr.bf16.mxu0 0
    %4305 = vmatpush1.bf16.msra.mxu0 0
    %4306 = vmatprep.subr.bf16.mxu0 0
    %4307 = vmatpush1.bf16.msra.mxu0 0
    %4308 = vmatprep.subr.bf16.mxu0 0
    %4309 = vmatpush1.bf16.msra.mxu0 0
    %4310 = vmatprep.subr.bf16.mxu0 0
    %4311 = vmatpush1.bf16.msra.mxu0 0
    %4312 = vmatprep.subr.bf16.mxu0 0
    %4313 = vmatpush1.bf16.msra.mxu0 0
    %4314 = vmatprep.subr.bf16.mxu0 0
    %4315 = vmatpush1.bf16.msra.mxu0 0
    %4316 = vmatprep.subr.bf16.mxu0 0
    %4317 = vmatpush1.bf16.msra.mxu0 0
    %4318 = vmatprep.subr.bf16.mxu0 0
    %4319 = vmatpush1.bf16.msra.mxu0 0
    %4320 = vmatprep.subr.bf16.mxu0 0
    %4321 = vmatpush1.bf16.msra.mxu0 0
    %4322 = vmatprep.subr.bf16.mxu0 0
    %4323 = vmatpush1.bf16.msra.mxu0 0
    %4324 = vmatprep.subr.bf16.mxu0 0
    %4325 = vmatpush1.bf16.msra.mxu0 0
    %4326 = vmatprep.mubr.bf16.mxu0 0
    %4327 = vmatmul.mubr.bf16.gmra.mrb[0].mxu0 %v4271
    %v4328 = vpop.f32.mrb[0].mxu0
    %v4329 = vadd.f32 %v4208, %v4328
    %v4330 = vpop.f32.mrb[0].mxu0
    %v4331 = vpop.f32.mrb[0].mxu0
    %v4332 = vadd.f32 %v4211, %v4331
    %v4333 = vpop.f32.mrb[0].mxu0
    %4334 = vmatprep.mubr.bf16.mxu0 0
    %4335 = vmatmul.mubr.bf16.gmra.mrb[0].mxu0 %v4274
    %v4336 = vpop.f32.mrb[0].mxu0
    %v4337 = vadd.f32 %v4216, %v4336
    %v4338 = vpop.f32.mrb[0].mxu0
    %v4339 = vpop.f32.mrb[0].mxu0
    %v4340 = vadd.f32 %v4219, %v4339
    %v4341 = vpop.f32.mrb[0].mxu0
    %4342 = vmatprep.mubr.bf16.mxu0 0
    %4343 = vmatmul.mubr.bf16.gmra.mrb[0].mxu0 %v4277
    %v4344 = vpop.f32.mrb[0].mxu0
    %v4345 = vadd.f32 %v4224, %v4344
    %v4346 = vpop.f32.mrb[0].mxu0
    %v4347 = vpop.f32.mrb[0].mxu0
    %v4348 = vadd.f32 %v4227, %v4347
    %v4349 = vpop.f32.mrb[0].mxu0
    %4350 = vmatprep.mubr.bf16.mxu0 0
    %4351 = vmatmul.mubr.bf16.gmra.mrb[0].mxu0 %v4280
    %v4352 = vpop.f32.mrb[0].mxu0
    %v4353 = vadd.f32 %v4232, %v4352
    %v4354 = vpop.f32.mrb[0].mxu0
    %v4355 = vpop.f32.mrb[0].mxu0
    %v4356 = vadd.f32 %v4235, %v4355
    %v4357 = vpop.f32.mrb[0].mxu0
    %4358 = vmatprep.mubr.bf16.mxu0 0
    %4359 = vmatmul.mubr.bf16.gmra.mrb[0].mxu0 %v4283
    %v4360 = vpop.f32.mrb[0].mxu0
    %v4361 = vadd.f32 %v4240, %v4360
    %v4362 = vpop.f32.mrb[0].mxu0
    %v4363 = vpop.f32.mrb[0].mxu0
    %v4364 = vadd.f32 %v4243, %v4363
    %v4365 = vpop.f32.mrb[0].mxu0
    %4366 = vmatprep.mubr.bf16.mxu0 0
    %4367 = vmatmul.mubr.bf16.gmra.mrb[0].mxu0 %v4286
    %v4368 = vpop.f32.mrb[0].mxu0
    %v4369 = vadd.f32 %v4248, %v4368
    %v4370 = vpop.f32.mrb[0].mxu0
    %v4371 = vpop.f32.mrb[0].mxu0
    %v4372 = vadd.f32 %v4251, %v4371
    %v4373 = vpop.f32.mrb[0].mxu0
    %4374 = vmatprep.mubr.bf16.mxu0 0
    %4375 = vmatmul.mubr.bf16.gmra.mrb[0].mxu0 %v4289
    %v4376 = vpop.f32.mrb[0].mxu0
    %v4377 = vadd.f32 %v4256, %v4376
    %v4378 = vpop.f32.mrb[0].mxu0
    %v4379 = vpop.f32.mrb[0].mxu0
    %v4380 = vadd.f32 %v4259, %v4379
    %v4381 = vpop.f32.mrb[0].mxu0
    %4382 = vmatprep.mubr.bf16.mxu0 0
    %4383 = vmatmul.mubr.bf16.gmra.mrb[0].mxu0 %v4292
    %v4384 = vpop.f32.mrb[0].mxu0
    %v4385 = vadd.f32 %v4264, %v4384
    %v4386 = vpop.f32.mrb[0].mxu0
    %v4387 = vpop.f32.mrb[0].mxu0
    %v4388 = vadd.f32 %v4267, %v4387
    %v4389 = vpop.f32.mrb[0].mxu0
    %4390 = vdwg.mxu0
    %v4391 = vpack.c.bf16 %v4118, %v4117
    %v4392 = vpack.c.bf16 %v4120, %v4119
    %v4393 = vpack.c.bf16 %v4122, %v4121
    %v4394 = vpack.c.bf16 %v4124, %v4123
    %v4395 = vpack.c.bf16 %v4126, %v4125
    %v4396 = vpack.c.bf16 %v4128, %v4127
    %v4397 = vpack.c.bf16 %v4130, %v4129
    %v4398 = vpack.c.bf16 %v4132, %v4131
    %v4400 = vsel %vm508, %v4391, 0
    %v4403 = vsel %vm508, %v4392, 0
    %v4406 = vsel %vm508, %v4393, 0
    %v4409 = vsel %vm508, %v4394, 0
    %v4412 = vsel %vm508, %v4395, 0
    %v4415 = vsel %vm508, %v4396, 0
    %v4418 = vsel %vm508, %v4397, 0
    %v4421 = vsel %vm508, %v4398, 0
    %4423 = vmatprep.subr.bf16.mxu0 0
    %4424 = vmatpush1.bf16.msra.mxu0 %v783
    %4425 = vmatprep.subr.bf16.mxu0 0
    %4426 = vmatpush1.bf16.msra.mxu0 %v784
    %4427 = vmatprep.subr.bf16.mxu0 0
    %4428 = vmatpush1.bf16.msra.mxu0 0
    %4429 = vmatprep.subr.bf16.mxu0 0
    %4430 = vmatpush1.bf16.msra.mxu0 0
    %4431 = vmatprep.subr.bf16.mxu0 0
    %4432 = vmatpush1.bf16.msra.mxu0 0
    %4433 = vmatprep.subr.bf16.mxu0 0
    %4434 = vmatpush1.bf16.msra.mxu0 0
    %4435 = vmatprep.subr.bf16.mxu0 0
    %4436 = vmatpush1.bf16.msra.mxu0 0
    %4437 = vmatprep.subr.bf16.mxu0 0
    %4438 = vmatpush1.bf16.msra.mxu0 0
    %4439 = vmatprep.subr.bf16.mxu0 0
    %4440 = vmatpush1.bf16.msra.mxu0 0
    %4441 = vmatprep.subr.bf16.mxu0 0
    %4442 = vmatpush1.bf16.msra.mxu0 0
    %4443 = vmatprep.subr.bf16.mxu0 0
    %4444 = vmatpush1.bf16.msra.mxu0 0
    %4445 = vmatprep.subr.bf16.mxu0 0
    %4446 = vmatpush1.bf16.msra.mxu0 0
    %4447 = vmatprep.subr.bf16.mxu0 0
    %4448 = vmatpush1.bf16.msra.mxu0 0
    %4449 = vmatprep.subr.bf16.mxu0 0
    %4450 = vmatpush1.bf16.msra.mxu0 0
    %4451 = vmatprep.subr.bf16.mxu0 0
    %4452 = vmatpush1.bf16.msra.mxu0 0
    %4453 = vmatprep.subr.bf16.mxu0 0
    %4454 = vmatpush1.bf16.msra.mxu0 0
    %4455 = vmatprep.mubr.bf16.mxu0 0
    %4456 = vmatmul.mubr.bf16.gmra.mrb[0].mxu0 %v4400
    %v4457 = vpop.f32.mrb[0].mxu0
    %v4458 = vadd.f32 0.0, %v4457
    %v4459 = vpop.f32.mrb[0].mxu0
    %v4460 = vpop.f32.mrb[0].mxu0
    %v4461 = vadd.f32 0.0, %v4460
    %v4462 = vpop.f32.mrb[0].mxu0
    %4463 = vmatprep.mubr.bf16.mxu0 0
    %4464 = vmatmul.mubr.bf16.gmra.mrb[0].mxu0 %v4403
    %v4465 = vpop.f32.mrb[0].mxu0
    %v4466 = vadd.f32 0.0, %v4465
    %v4467 = vpop.f32.mrb[0].mxu0
    %v4468 = vpop.f32.mrb[0].mxu0
    %v4469 = vadd.f32 0.0, %v4468
    %v4470 = vpop.f32.mrb[0].mxu0
    %4471 = vmatprep.mubr.bf16.mxu0 0
    %4472 = vmatmul.mubr.bf16.gmra.mrb[0].mxu0 %v4406
    %v4473 = vpop.f32.mrb[0].mxu0
    %v4474 = vadd.f32 0.0, %v4473
    %v4475 = vpop.f32.mrb[0].mxu0
    %v4476 = vpop.f32.mrb[0].mxu0
    %v4477 = vadd.f32 0.0, %v4476
    %v4478 = vpop.f32.mrb[0].mxu0
    %4479 = vmatprep.mubr.bf16.mxu0 0
    %4480 = vmatmul.mubr.bf16.gmra.mrb[0].mxu0 %v4409
    %v4481 = vpop.f32.mrb[0].mxu0
    %v4482 = vadd.f32 0.0, %v4481
    %v4483 = vpop.f32.mrb[0].mxu0
    %v4484 = vpop.f32.mrb[0].mxu0
    %v4485 = vadd.f32 0.0, %v4484
    %v4486 = vpop.f32.mrb[0].mxu0
    %4487 = vmatprep.mubr.bf16.mxu0 0
    %4488 = vmatmul.mubr.bf16.gmra.mrb[0].mxu0 %v4412
    %v4489 = vpop.f32.mrb[0].mxu0
    %v4490 = vadd.f32 0.0, %v4489
    %v4491 = vpop.f32.mrb[0].mxu0
    %v4492 = vpop.f32.mrb[0].mxu0
    %v4493 = vadd.f32 0.0, %v4492
    %v4494 = vpop.f32.mrb[0].mxu0
    %4495 = vmatprep.mubr.bf16.mxu0 0
    %4496 = vmatmul.mubr.bf16.gmra.mrb[0].mxu0 %v4415
    %v4497 = vpop.f32.mrb[0].mxu0
    %v4498 = vadd.f32 0.0, %v4497
    %v4499 = vpop.f32.mrb[0].mxu0
    %v4500 = vpop.f32.mrb[0].mxu0
    %v4501 = vadd.f32 0.0, %v4500
    %v4502 = vpop.f32.mrb[0].mxu0
    %4503 = vmatprep.mubr.bf16.mxu0 0
    %4504 = vmatmul.mubr.bf16.gmra.mrb[0].mxu0 %v4418
    %v4505 = vpop.f32.mrb[0].mxu0
    %v4506 = vadd.f32 0.0, %v4505
    %v4507 = vpop.f32.mrb[0].mxu0
    %v4508 = vpop.f32.mrb[0].mxu0
    %v4509 = vadd.f32 0.0, %v4508
    %v4510 = vpop.f32.mrb[0].mxu0
    %4511 = vmatprep.mubr.bf16.mxu0 0
    %4512 = vmatmul.mubr.bf16.gmra.mrb[0].mxu0 %v4421
    %v4513 = vpop.f32.mrb[0].mxu0
    %v4514 = vadd.f32 0.0, %v4513
    %v4515 = vpop.f32.mrb[0].mxu0
    %v4516 = vpop.f32.mrb[0].mxu0
    %v4517 = vadd.f32 0.0, %v4516
    %v4518 = vpop.f32.mrb[0].mxu0
    %4519 = vdwg.mxu0
    %v4520 = vadd.f32 %v4329, %v4458
    %v4521 = vadd.f32 %v4332, %v4461
    %v4522 = vadd.f32 %v4337, %v4466
    %v4523 = vadd.f32 %v4340, %v4469
    %v4524 = vadd.f32 %v4345, %v4474
    %v4525 = vadd.f32 %v4348, %v4477
    %v4526 = vadd.f32 %v4353, %v4482
    %v4527 = vadd.f32 %v4356, %v4485
    %v4528 = vadd.f32 %v4361, %v4490
    %v4529 = vadd.f32 %v4364, %v4493
    %v4530 = vadd.f32 %v4369, %v4498
    %v4531 = vadd.f32 %v4372, %v4501
    %v4532 = vadd.f32 %v4377, %v4506
    %v4533 = vadd.f32 %v4380, %v4509
    %v4534 = vadd.f32 %v4385, %v4514
    %v4535 = vadd.f32 %v4388, %v4517
    %v4536 = vadd.f32 %v4520, %v929
    %v4537 = vadd.f32 %v4521, %v929
    %v4538 = vadd.f32 %v4522, %v929
    %v4539 = vadd.f32 %v4523, %v929
    %v4540 = vadd.f32 %v4524, %v929
    %v4541 = vadd.f32 %v4525, %v929
    %v4542 = vadd.f32 %v4526, %v929
    %v4543 = vadd.f32 %v4527, %v929
    %v4544 = vadd.f32 %v4528, %v929
    %v4545 = vadd.f32 %v4529, %v929
    %v4546 = vadd.f32 %v4530, %v929
    %v4547 = vadd.f32 %v4531, %v929
    %v4548 = vadd.f32 %v4532, %v929
    %v4549 = vadd.f32 %v4533, %v929
    %v4550 = vadd.f32 %v4534, %v929
    %v4551 = vadd.f32 %v4535, %v929
    %v4552 = vmax.f32 %v4536, 0.0
    %v4553 = vmax.f32 %v4537, 0.0
    %v4554 = vmax.f32 %v4538, 0.0
    %v4555 = vmax.f32 %v4539, 0.0
    %v4556 = vmax.f32 %v4540, 0.0
    %v4557 = vmax.f32 %v4541, 0.0
    %v4558 = vmax.f32 %v4542, 0.0
    %v4559 = vmax.f32 %v4543, 0.0
    %v4560 = vmax.f32 %v4544, 0.0
    %v4561 = vmax.f32 %v4545, 0.0
    %v4562 = vmax.f32 %v4546, 0.0
    %v4563 = vmax.f32 %v4547, 0.0
    %v4564 = vmax.f32 %v4548, 0.0
    %v4565 = vmax.f32 %v4549, 0.0
    %v4566 = vmax.f32 %v4550, 0.0
    %v4567 = vmax.f32 %v4551, 0.0
    %v4569 = vrot.slane %v4567, 7
    %v4586 = vrot.slane %v4552, 7
    %v4587 = vrot.slane %v4553, 7
    %v4588 = vsel %vm342, %v4586, %v4587
    %v4589 = vrot.slane %v4554, 7
    %v4590 = vsel %vm342, %v4587, %v4589
    %v4591 = vrot.slane %v4555, 7
    %v4592 = vsel %vm342, %v4589, %v4591
    %v4593 = vrot.slane %v4556, 7
    %v4594 = vsel %vm342, %v4591, %v4593
    %v4595 = vrot.slane %v4557, 7
    %v4596 = vsel %vm342, %v4593, %v4595
    %v4597 = vrot.slane %v4558, 7
    %v4598 = vsel %vm342, %v4595, %v4597
    %v4599 = vrot.slane %v4559, 7
    %v4600 = vsel %vm342, %v4597, %v4599
    %v4601 = vrot.slane %v4560, 7
    %v4602 = vsel %vm342, %v4599, %v4601
    %v4603 = vrot.slane %v4561, 7
    %v4604 = vsel %vm342, %v4601, %v4603
    %v4605 = vrot.slane %v4562, 7
    %v4606 = vsel %vm342, %v4603, %v4605
    %v4607 = vrot.slane %v4563, 7
    %v4608 = vsel %vm342, %v4605, %v4607
    %v4609 = vrot.slane %v4564, 7
    %v4610 = vsel %vm342, %v4607, %v4609
    %v4611 = vrot.slane %v4565, 7
    %v4612 = vsel %vm342, %v4609, %v4611
    %v4613 = vrot.slane %v4566, 7
    %v4614 = vsel %vm342, %v4611, %v4613
    %v4615 = vsel %vm342, %v4613, %v4569
    %v4632 = vsel %vm342, %v4569, %v4586
    %v4633 = vmul.f32 %v4632, %v188
    %v4634 = vmul.f32 %v4588, %v189
    %v4635 = vmul.f32 %v4590, %v190
    %v4636 = vmul.f32 %v4592, %v191
    %v4637 = vmul.f32 %v4594, %v192
    %v4638 = vmul.f32 %v4596, %v193
    %v4639 = vmul.f32 %v4598, %v194
    %v4640 = vmul.f32 %v4600, %v195
    %v4641 = vmul.f32 %v4602, %v196
    %v4642 = vmul.f32 %v4604, %v197
    %v4643 = vmul.f32 %v4606, %v198
    %v4644 = vmul.f32 %v4608, %v199
    %v4645 = vmul.f32 %v4610, %v200
    %v4646 = vmul.f32 %v4612, %v201
    %v4647 = vmul.f32 %v4614, %v202
    %v4648 = vmul.f32 %v4615, %v203
    %v4649 = vrot.slane %v4552, 1
    %v4650 = vrot.slane %v4553, 1
    %v4651 = vsel %vm406, %v4649, %v4650
    %v4652 = vrot.slane %v4554, 1
    %v4653 = vsel %vm406, %v4650, %v4652
    %v4654 = vrot.slane %v4555, 1
    %v4655 = vsel %vm406, %v4652, %v4654
    %v4656 = vrot.slane %v4556, 1
    %v4657 = vsel %vm406, %v4654, %v4656
    %v4658 = vrot.slane %v4557, 1
    %v4659 = vsel %vm406, %v4656, %v4658
    %v4660 = vrot.slane %v4558, 1
    %v4661 = vsel %vm406, %v4658, %v4660
    %v4662 = vrot.slane %v4559, 1
    %v4663 = vsel %vm406, %v4660, %v4662
    %v4664 = vrot.slane %v4560, 1
    %v4665 = vsel %vm406, %v4662, %v4664
    %v4666 = vrot.slane %v4561, 1
    %v4667 = vsel %vm406, %v4664, %v4666
    %v4668 = vrot.slane %v4562, 1
    %v4669 = vsel %vm406, %v4666, %v4668
    %v4670 = vrot.slane %v4563, 1
    %v4671 = vsel %vm406, %v4668, %v4670
    %v4672 = vrot.slane %v4564, 1
    %v4673 = vsel %vm406, %v4670, %v4672
    %v4674 = vrot.slane %v4565, 1
    %v4675 = vsel %vm406, %v4672, %v4674
    %v4676 = vrot.slane %v4566, 1
    %v4677 = vsel %vm406, %v4674, %v4676
    %v4678 = vrot.slane %v4567, 1
    %v4679 = vsel %vm406, %v4676, %v4678
    %v4697 = vsel %vm406, %v4678, %v4649
    %v4698 = vmul.f32 %v4651, %v236
    %v4699 = vmul.f32 %v4653, %v237
    %v4700 = vmul.f32 %v4655, %v238
    %v4701 = vmul.f32 %v4657, %v239
    %v4702 = vmul.f32 %v4659, %v240
    %v4703 = vmul.f32 %v4661, %v241
    %v4704 = vmul.f32 %v4663, %v242
    %v4705 = vmul.f32 %v4665, %v243
    %v4706 = vmul.f32 %v4667, %v244
    %v4707 = vmul.f32 %v4669, %v245
    %v4708 = vmul.f32 %v4671, %v246
    %v4709 = vmul.f32 %v4673, %v247
    %v4710 = vmul.f32 %v4675, %v248
    %v4711 = vmul.f32 %v4677, %v249
    %v4712 = vmul.f32 %v4679, %v250
    %v4713 = vmul.f32 %v4697, %v251
    %v4714 = vpack.c.bf16 %v4553, %v4552
    %v4715 = vpack.c.bf16 %v4555, %v4554
    %v4716 = vpack.c.bf16 %v4557, %v4556
    %v4717 = vpack.c.bf16 %v4559, %v4558
    %v4718 = vpack.c.bf16 %v4561, %v4560
    %v4719 = vpack.c.bf16 %v4563, %v4562
    %v4720 = vpack.c.bf16 %v4565, %v4564
    %v4721 = vpack.c.bf16 %v4567, %v4566
    %v4722 = vpack.c.bf16 %v4634, %v4633
    %v4723 = vpack.c.bf16 %v4636, %v4635
    %v4724 = vpack.c.bf16 %v4638, %v4637
    %v4725 = vpack.c.bf16 %v4640, %v4639
    %v4726 = vpack.c.bf16 %v4642, %v4641
    %v4727 = vpack.c.bf16 %v4644, %v4643
    %v4728 = vpack.c.bf16 %v4646, %v4645
    %v4729 = vpack.c.bf16 %v4648, %v4647
    %v4731 = vsel %vm508, %v4722, 0
    %v4734 = vsel %vm508, %v4723, 0
    %v4737 = vsel %vm508, %v4724, 0
    %v4740 = vsel %vm508, %v4725, 0
    %v4743 = vsel %vm508, %v4726, 0
    %v4746 = vsel %vm508, %v4727, 0
    %v4749 = vsel %vm508, %v4728, 0
    %v4752 = vsel %vm508, %v4729, 0
    %4754 = vmatprep.subr.bf16.mxu0 0
    %4755 = vmatpush1.bf16.msra.mxu0 %v1141
    %4756 = vmatprep.subr.bf16.mxu0 0
    %4757 = vmatpush1.bf16.msra.mxu0 %v1142
    %4758 = vmatprep.subr.bf16.mxu0 0
    %4759 = vmatpush1.bf16.msra.mxu0 0
    %4760 = vmatprep.subr.bf16.mxu0 0
    %4761 = vmatpush1.bf16.msra.mxu0 0
    %4762 = vmatprep.subr.bf16.mxu0 0
    %4763 = vmatpush1.bf16.msra.mxu0 0
    %4764 = vmatprep.subr.bf16.mxu0 0
    %4765 = vmatpush1.bf16.msra.mxu0 0
    %4766 = vmatprep.subr.bf16.mxu0 0
    %4767 = vmatpush1.bf16.msra.mxu0 0
    %4768 = vmatprep.subr.bf16.mxu0 0
    %4769 = vmatpush1.bf16.msra.mxu0 0
    %4770 = vmatprep.subr.bf16.mxu0 0
    %4771 = vmatpush1.bf16.msra.mxu0 0
    %4772 = vmatprep.subr.bf16.mxu0 0
    %4773 = vmatpush1.bf16.msra.mxu0 0
    %4774 = vmatprep.subr.bf16.mxu0 0
    %4775 = vmatpush1.bf16.msra.mxu0 0
    %4776 = vmatprep.subr.bf16.mxu0 0
    %4777 = vmatpush1.bf16.msra.mxu0 0
    %4778 = vmatprep.subr.bf16.mxu0 0
    %4779 = vmatpush1.bf16.msra.mxu0 0
    %4780 = vmatprep.subr.bf16.mxu0 0
    %4781 = vmatpush1.bf16.msra.mxu0 0
    %4782 = vmatprep.subr.bf16.mxu0 0
    %4783 = vmatpush1.bf16.msra.mxu0 0
    %4784 = vmatprep.subr.bf16.mxu0 0
    %4785 = vmatpush1.bf16.msra.mxu0 0
    %4786 = vmatprep.mubr.bf16.mxu0 0
    %4787 = vmatmul.mubr.bf16.gmra.mrb[0].mxu0 %v4731
    %v4788 = vpop.f32.mrb[0].mxu0
    %v4789 = vadd.f32 0.0, %v4788
    %v4790 = vpop.f32.mrb[0].mxu0
    %v4791 = vpop.f32.mrb[0].mxu0
    %v4792 = vadd.f32 0.0, %v4791
    %v4793 = vpop.f32.mrb[0].mxu0
    %4794 = vmatprep.mubr.bf16.mxu0 0
    %4795 = vmatmul.mubr.bf16.gmra.mrb[0].mxu0 %v4734
    %v4796 = vpop.f32.mrb[0].mxu0
    %v4797 = vadd.f32 0.0, %v4796
    %v4798 = vpop.f32.mrb[0].mxu0
    %v4799 = vpop.f32.mrb[0].mxu0
    %v4800 = vadd.f32 0.0, %v4799
    %v4801 = vpop.f32.mrb[0].mxu0
    %4802 = vmatprep.mubr.bf16.mxu0 0
    %4803 = vmatmul.mubr.bf16.gmra.mrb[0].mxu0 %v4737
    %v4804 = vpop.f32.mrb[0].mxu0
    %v4805 = vadd.f32 0.0, %v4804
    %v4806 = vpop.f32.mrb[0].mxu0
    %v4807 = vpop.f32.mrb[0].mxu0
    %v4808 = vadd.f32 0.0, %v4807
    %v4809 = vpop.f32.mrb[0].mxu0
    %4810 = vmatprep.mubr.bf16.mxu0 0
    %4811 = vmatmul.mubr.bf16.gmra.mrb[0].mxu0 %v4740
    %v4812 = vpop.f32.mrb[0].mxu0
    %v4813 = vadd.f32 0.0, %v4812
    %v4814 = vpop.f32.mrb[0].mxu0
    %v4815 = vpop.f32.mrb[0].mxu0
    %v4816 = vadd.f32 0.0, %v4815
    %v4817 = vpop.f32.mrb[0].mxu0
    %4818 = vmatprep.mubr.bf16.mxu0 0
    %4819 = vmatmul.mubr.bf16.gmra.mrb[0].mxu0 %v4743
    %v4820 = vpop.f32.mrb[0].mxu0
    %v4821 = vadd.f32 0.0, %v4820
    %v4822 = vpop.f32.mrb[0].mxu0
    %v4823 = vpop.f32.mrb[0].mxu0
    %v4824 = vadd.f32 0.0, %v4823
    %v4825 = vpop.f32.mrb[0].mxu0
    %4826 = vmatprep.mubr.bf16.mxu0 0
    %4827 = vmatmul.mubr.bf16.gmra.mrb[0].mxu0 %v4746
    %v4828 = vpop.f32.mrb[0].mxu0
    %v4829 = vadd.f32 0.0, %v4828
    %v4830 = vpop.f32.mrb[0].mxu0
    %v4831 = vpop.f32.mrb[0].mxu0
    %v4832 = vadd.f32 0.0, %v4831
    %v4833 = vpop.f32.mrb[0].mxu0
    %4834 = vmatprep.mubr.bf16.mxu0 0
    %4835 = vmatmul.mubr.bf16.gmra.mrb[0].mxu0 %v4749
    %v4836 = vpop.f32.mrb[0].mxu0
    %v4837 = vadd.f32 0.0, %v4836
    %v4838 = vpop.f32.mrb[0].mxu0
    %v4839 = vpop.f32.mrb[0].mxu0
    %v4840 = vadd.f32 0.0, %v4839
    %v4841 = vpop.f32.mrb[0].mxu0
    %4842 = vmatprep.mubr.bf16.mxu0 0
    %4843 = vmatmul.mubr.bf16.gmra.mrb[0].mxu0 %v4752
    %v4844 = vpop.f32.mrb[0].mxu0
    %v4845 = vadd.f32 0.0, %v4844
    %v4846 = vpop.f32.mrb[0].mxu0
    %v4847 = vpop.f32.mrb[0].mxu0
    %v4848 = vadd.f32 0.0, %v4847
    %v4849 = vpop.f32.mrb[0].mxu0
    %4850 = vdwg.mxu0
    %v4852 = vsel %vm508, %v4714, 0
    %v4855 = vsel %vm508, %v4715, 0
    %v4858 = vsel %vm508, %v4716, 0
    %v4861 = vsel %vm508, %v4717, 0
    %v4864 = vsel %vm508, %v4718, 0
    %v4867 = vsel %vm508, %v4719, 0
    %v4870 = vsel %vm508, %v4720, 0
    %v4873 = vsel %vm508, %v4721, 0
    %4875 = vmatprep.subr.bf16.mxu0 0
    %4876 = vmatpush1.bf16.msra.mxu0 %v1274
    %4877 = vmatprep.subr.bf16.mxu0 0
    %4878 = vmatpush1.bf16.msra.mxu0 %v1275
    %4879 = vmatprep.subr.bf16.mxu0 0
    %4880 = vmatpush1.bf16.msra.mxu0 0
    %4881 = vmatprep.subr.bf16.mxu0 0
    %4882 = vmatpush1.bf16.msra.mxu0 0
    %4883 = vmatprep.subr.bf16.mxu0 0
    %4884 = vmatpush1.bf16.msra.mxu0 0
    %4885 = vmatprep.subr.bf16.mxu0 0
    %4886 = vmatpush1.bf16.msra.mxu0 0
    %4887 = vmatprep.subr.bf16.mxu0 0
    %4888 = vmatpush1.bf16.msra.mxu0 0
    %4889 = vmatprep.subr.bf16.mxu0 0
    %4890 = vmatpush1.bf16.msra.mxu0 0
    %4891 = vmatprep.subr.bf16.mxu0 0
    %4892 = vmatpush1.bf16.msra.mxu0 0
    %4893 = vmatprep.subr.bf16.mxu0 0
    %4894 = vmatpush1.bf16.msra.mxu0 0
    %4895 = vmatprep.subr.bf16.mxu0 0
    %4896 = vmatpush1.bf16.msra.mxu0 0
    %4897 = vmatprep.subr.bf16.mxu0 0
    %4898 = vmatpush1.bf16.msra.mxu0 0
    %4899 = vmatprep.subr.bf16.mxu0 0
    %4900 = vmatpush1.bf16.msra.mxu0 0
    %4901 = vmatprep.subr.bf16.mxu0 0
    %4902 = vmatpush1.bf16.msra.mxu0 0
    %4903 = vmatprep.subr.bf16.mxu0 0
    %4904 = vmatpush1.bf16.msra.mxu0 0
    %4905 = vmatprep.subr.bf16.mxu0 0
    %4906 = vmatpush1.bf16.msra.mxu0 0
    %4907 = vmatprep.mubr.bf16.mxu0 0
    %4908 = vmatmul.mubr.bf16.gmra.mrb[0].mxu0 %v4852
    %v4909 = vpop.f32.mrb[0].mxu0
    %v4910 = vadd.f32 %v4789, %v4909
    %v4911 = vpop.f32.mrb[0].mxu0
    %v4912 = vpop.f32.mrb[0].mxu0
    %v4913 = vadd.f32 %v4792, %v4912
    %v4914 = vpop.f32.mrb[0].mxu0
    %4915 = vmatprep.mubr.bf16.mxu0 0
    %4916 = vmatmul.mubr.bf16.gmra.mrb[0].mxu0 %v4855
    %v4917 = vpop.f32.mrb[0].mxu0
    %v4918 = vadd.f32 %v4797, %v4917
    %v4919 = vpop.f32.mrb[0].mxu0
    %v4920 = vpop.f32.mrb[0].mxu0
    %v4921 = vadd.f32 %v4800, %v4920
    %v4922 = vpop.f32.mrb[0].mxu0
    %4923 = vmatprep.mubr.bf16.mxu0 0
    %4924 = vmatmul.mubr.bf16.gmra.mrb[0].mxu0 %v4858
    %v4925 = vpop.f32.mrb[0].mxu0
    %v4926 = vadd.f32 %v4805, %v4925
    %v4927 = vpop.f32.mrb[0].mxu0
    %v4928 = vpop.f32.mrb[0].mxu0
    %v4929 = vadd.f32 %v4808, %v4928
    %v4930 = vpop.f32.mrb[0].mxu0
    %4931 = vmatprep.mubr.bf16.mxu0 0
    %4932 = vmatmul.mubr.bf16.gmra.mrb[0].mxu0 %v4861
    %v4933 = vpop.f32.mrb[0].mxu0
    %v4934 = vadd.f32 %v4813, %v4933
    %v4935 = vpop.f32.mrb[0].mxu0
    %v4936 = vpop.f32.mrb[0].mxu0
    %v4937 = vadd.f32 %v4816, %v4936
    %v4938 = vpop.f32.mrb[0].mxu0
    %4939 = vmatprep.mubr.bf16.mxu0 0
    %4940 = vmatmul.mubr.bf16.gmra.mrb[0].mxu0 %v4864
    %v4941 = vpop.f32.mrb[0].mxu0
    %v4942 = vadd.f32 %v4821, %v4941
    %v4943 = vpop.f32.mrb[0].mxu0
    %v4944 = vpop.f32.mrb[0].mxu0
    %v4945 = vadd.f32 %v4824, %v4944
    %v4946 = vpop.f32.mrb[0].mxu0
    %4947 = vmatprep.mubr.bf16.mxu0 0
    %4948 = vmatmul.mubr.bf16.gmra.mrb[0].mxu0 %v4867
    %v4949 = vpop.f32.mrb[0].mxu0
    %v4950 = vadd.f32 %v4829, %v4949
    %v4951 = vpop.f32.mrb[0].mxu0
    %v4952 = vpop.f32.mrb[0].mxu0
    %v4953 = vadd.f32 %v4832, %v4952
    %v4954 = vpop.f32.mrb[0].mxu0
    %4955 = vmatprep.mubr.bf16.mxu0 0
    %4956 = vmatmul.mubr.bf16.gmra.mrb[0].mxu0 %v4870
    %v4957 = vpop.f32.mrb[0].mxu0
    %v4958 = vadd.f32 %v4837, %v4957
    %v4959 = vpop.f32.mrb[0].mxu0
    %v4960 = vpop.f32.mrb[0].mxu0
    %v4961 = vadd.f32 %v4840, %v4960
    %v4962 = vpop.f32.mrb[0].mxu0
    %4963 = vmatprep.mubr.bf16.mxu0 0
    %4964 = vmatmul.mubr.bf16.gmra.mrb[0].mxu0 %v4873
    %v4965 = vpop.f32.mrb[0].mxu0
    %v4966 = vadd.f32 %v4845, %v4965
    %v4967 = vpop.f32.mrb[0].mxu0
    %v4968 = vpop.f32.mrb[0].mxu0
    %v4969 = vadd.f32 %v4848, %v4968
    %v4970 = vpop.f32.mrb[0].mxu0
    %4971 = vdwg.mxu0
    %v4972 = vpack.c.bf16 %v4699, %v4698
    %v4973 = vpack.c.bf16 %v4701, %v4700
    %v4974 = vpack.c.bf16 %v4703, %v4702
    %v4975 = vpack.c.bf16 %v4705, %v4704
    %v4976 = vpack.c.bf16 %v4707, %v4706
    %v4977 = vpack.c.bf16 %v4709, %v4708
    %v4978 = vpack.c.bf16 %v4711, %v4710
    %v4979 = vpack.c.bf16 %v4713, %v4712
    %v4981 = vsel %vm508, %v4972, 0
    %v4984 = vsel %vm508, %v4973, 0
    %v4987 = vsel %vm508, %v4974, 0
    %v4990 = vsel %vm508, %v4975, 0
    %v4993 = vsel %vm508, %v4976, 0
    %v4996 = vsel %vm508, %v4977, 0
    %v4999 = vsel %vm508, %v4978, 0
    %v5002 = vsel %vm508, %v4979, 0
    %5004 = vmatprep.subr.bf16.mxu0 0
    %5005 = vmatpush1.bf16.msra.mxu0 %v1419
    %5006 = vmatprep.subr.bf16.mxu0 0
    %5007 = vmatpush1.bf16.msra.mxu0 %v1420
    %5008 = vmatprep.subr.bf16.mxu0 0
    %5009 = vmatpush1.bf16.msra.mxu0 0
    %5010 = vmatprep.subr.bf16.mxu0 0
    %5011 = vmatpush1.bf16.msra.mxu0 0
    %5012 = vmatprep.subr.bf16.mxu0 0
    %5013 = vmatpush1.bf16.msra.mxu0 0
    %5014 = vmatprep.subr.bf16.mxu0 0
    %5015 = vmatpush1.bf16.msra.mxu0 0
    %5016 = vmatprep.subr.bf16.mxu0 0
    %5017 = vmatpush1.bf16.msra.mxu0 0
    %5018 = vmatprep.subr.bf16.mxu0 0
    %5019 = vmatpush1.bf16.msra.mxu0 0
    %5020 = vmatprep.subr.bf16.mxu0 0
    %5021 = vmatpush1.bf16.msra.mxu0 0
    %5022 = vmatprep.subr.bf16.mxu0 0
    %5023 = vmatpush1.bf16.msra.mxu0 0
    %5024 = vmatprep.subr.bf16.mxu0 0
    %5025 = vmatpush1.bf16.msra.mxu0 0
    %5026 = vmatprep.subr.bf16.mxu0 0
    %5027 = vmatpush1.bf16.msra.mxu0 0
    %5028 = vmatprep.subr.bf16.mxu0 0
    %5029 = vmatpush1.bf16.msra.mxu0 0
    %5030 = vmatprep.subr.bf16.mxu0 0
    %5031 = vmatpush1.bf16.msra.mxu0 0
    %5032 = vmatprep.subr.bf16.mxu0 0
    %5033 = vmatpush1.bf16.msra.mxu0 0
    %5034 = vmatprep.subr.bf16.mxu0 0
    %5035 = vmatpush1.bf16.msra.mxu0 0
    %5036 = vmatprep.mubr.bf16.mxu0 0
    %5037 = vmatmul.mubr.bf16.gmra.mrb[0].mxu0 %v4981
    %v5038 = vpop.f32.mrb[0].mxu0
    %v5039 = vadd.f32 0.0, %v5038
    %v5040 = vpop.f32.mrb[0].mxu0
    %v5041 = vpop.f32.mrb[0].mxu0
    %v5042 = vadd.f32 0.0, %v5041
    %v5043 = vpop.f32.mrb[0].mxu0
    %5044 = vmatprep.mubr.bf16.mxu0 0
    %5045 = vmatmul.mubr.bf16.gmra.mrb[0].mxu0 %v4984
    %v5046 = vpop.f32.mrb[0].mxu0
    %v5047 = vadd.f32 0.0, %v5046
    %v5048 = vpop.f32.mrb[0].mxu0
    %v5049 = vpop.f32.mrb[0].mxu0
    %v5050 = vadd.f32 0.0, %v5049
    %v5051 = vpop.f32.mrb[0].mxu0
    %5052 = vmatprep.mubr.bf16.mxu0 0
    %5053 = vmatmul.mubr.bf16.gmra.mrb[0].mxu0 %v4987
    %v5054 = vpop.f32.mrb[0].mxu0
    %v5055 = vadd.f32 0.0, %v5054
    %v5056 = vpop.f32.mrb[0].mxu0
    %v5057 = vpop.f32.mrb[0].mxu0
    %v5058 = vadd.f32 0.0, %v5057
    %v5059 = vpop.f32.mrb[0].mxu0
    %5060 = vmatprep.mubr.bf16.mxu0 0
    %5061 = vmatmul.mubr.bf16.gmra.mrb[0].mxu0 %v4990
    %v5062 = vpop.f32.mrb[0].mxu0
    %v5063 = vadd.f32 0.0, %v5062
    %v5064 = vpop.f32.mrb[0].mxu0
    %v5065 = vpop.f32.mrb[0].mxu0
    %v5066 = vadd.f32 0.0, %v5065
    %v5067 = vpop.f32.mrb[0].mxu0
    %5068 = vmatprep.mubr.bf16.mxu0 0
    %5069 = vmatmul.mubr.bf16.gmra.mrb[0].mxu0 %v4993
    %v5070 = vpop.f32.mrb[0].mxu0
    %v5071 = vadd.f32 0.0, %v5070
    %v5072 = vpop.f32.mrb[0].mxu0
    %v5073 = vpop.f32.mrb[0].mxu0
    %v5074 = vadd.f32 0.0, %v5073
    %v5075 = vpop.f32.mrb[0].mxu0
    %5076 = vmatprep.mubr.bf16.mxu0 0
    %5077 = vmatmul.mubr.bf16.gmra.mrb[0].mxu0 %v4996
    %v5078 = vpop.f32.mrb[0].mxu0
    %v5079 = vadd.f32 0.0, %v5078
    %v5080 = vpop.f32.mrb[0].mxu0
    %v5081 = vpop.f32.mrb[0].mxu0
    %v5082 = vadd.f32 0.0, %v5081
    %v5083 = vpop.f32.mrb[0].mxu0
    %5084 = vmatprep.mubr.bf16.mxu0 0
    %5085 = vmatmul.mubr.bf16.gmra.mrb[0].mxu0 %v4999
    %v5086 = vpop.f32.mrb[0].mxu0
    %v5087 = vadd.f32 0.0, %v5086
    %v5088 = vpop.f32.mrb[0].mxu0
    %v5089 = vpop.f32.mrb[0].mxu0
    %v5090 = vadd.f32 0.0, %v5089
    %v5091 = vpop.f32.mrb[0].mxu0
    %5092 = vmatprep.mubr.bf16.mxu0 0
    %5093 = vmatmul.mubr.bf16.gmra.mrb[0].mxu0 %v5002
    %v5094 = vpop.f32.mrb[0].mxu0
    %v5095 = vadd.f32 0.0, %v5094
    %v5096 = vpop.f32.mrb[0].mxu0
    %v5097 = vpop.f32.mrb[0].mxu0
    %v5098 = vadd.f32 0.0, %v5097
    %v5099 = vpop.f32.mrb[0].mxu0
    %5100 = vdwg.mxu0
    %v5101 = vadd.f32 %v4910, %v5039
    %v5102 = vadd.f32 %v4913, %v5042
    %v5103 = vadd.f32 %v4918, %v5047
    %v5104 = vadd.f32 %v4921, %v5050
    %v5105 = vadd.f32 %v4926, %v5055
    %v5106 = vadd.f32 %v4929, %v5058
    %v5107 = vadd.f32 %v4934, %v5063
    %v5108 = vadd.f32 %v4937, %v5066
    %v5109 = vadd.f32 %v4942, %v5071
    %v5110 = vadd.f32 %v4945, %v5074
    %v5111 = vadd.f32 %v4950, %v5079
    %v5112 = vadd.f32 %v4953, %v5082
    %v5113 = vadd.f32 %v4958, %v5087
    %v5114 = vadd.f32 %v4961, %v5090
    %v5115 = vadd.f32 %v4966, %v5095
    %v5116 = vadd.f32 %v4969, %v5098
    %v5117 = vadd.f32 %v5101, %v1565
    %v5118 = vadd.f32 %v5102, %v1565
    %v5119 = vadd.f32 %v5103, %v1565
    %v5120 = vadd.f32 %v5104, %v1565
    %v5121 = vadd.f32 %v5105, %v1565
    %v5122 = vadd.f32 %v5106, %v1565
    %v5123 = vadd.f32 %v5107, %v1565
    %v5124 = vadd.f32 %v5108, %v1565
    %v5125 = vadd.f32 %v5109, %v1565
    %v5126 = vadd.f32 %v5110, %v1565
    %v5127 = vadd.f32 %v5111, %v1565
    %v5128 = vadd.f32 %v5112, %v1565
    %v5129 = vadd.f32 %v5113, %v1565
    %v5130 = vadd.f32 %v5114, %v1565
    %v5131 = vadd.f32 %v5115, %v1565
    %v5132 = vadd.f32 %v5116, %v1565
    %v5133 = vadd.f32 %v2745, %v3923
    %v5134 = vadd.f32 %v2746, %v3924
    %v5135 = vadd.f32 %v2747, %v3925
    %v5136 = vadd.f32 %v2748, %v3926
    %v5137 = vadd.f32 %v2749, %v3927
    %v5138 = vadd.f32 %v2750, %v3928
    %v5139 = vadd.f32 %v2751, %v3929
    %v5140 = vadd.f32 %v2752, %v3930
    %v5141 = vadd.f32 %v2753, %v3931
    %v5142 = vadd.f32 %v2754, %v3932
    %v5143 = vadd.f32 %v2755, %v3933
    %v5144 = vadd.f32 %v2756, %v3934
    %v5145 = vadd.f32 %v2757, %v3935
    %v5146 = vadd.f32 %v2758, %v3936
    %v5147 = vadd.f32 %v2759, %v3937
    %v5148 = vadd.f32 %v2760, %v3938
    %v5149 = vmul.f32 %v5133, 3.0
    %v5150 = vmul.f32 %v5134, 3.0
    %v5151 = vmul.f32 %v5135, 3.0
    %v5152 = vmul.f32 %v5136, 3.0
    %v5153 = vmul.f32 %v5137, 3.0
    %v5154 = vmul.f32 %v5138, 3.0
    %v5155 = vmul.f32 %v5139, 3.0
    %v5156 = vmul.f32 %v5140, 3.0
    %v5157 = vmul.f32 %v5141, 3.0
    %v5158 = vmul.f32 %v5142, 3.0
    %v5159 = vmul.f32 %v5143, 3.0
    %v5160 = vmul.f32 %v5144, 3.0
    %v5161 = vmul.f32 %v5145, 3.0
    %v5162 = vmul.f32 %v5146, 3.0
    %v5163 = vmul.f32 %v5147, 3.0
    %v5164 = vmul.f32 %v5148, 3.0
    %v5165 = vadd.f32 %v1567, %v5149
    %v5166 = vadd.f32 %v1568, %v5150
    %v5167 = vadd.f32 %v1569, %v5151
    %v5168 = vadd.f32 %v1570, %v5152
    %v5169 = vadd.f32 %v1571, %v5153
    %v5170 = vadd.f32 %v1572, %v5154
    %v5171 = vadd.f32 %v1573, %v5155
    %v5172 = vadd.f32 %v1574, %v5156
    %v5173 = vadd.f32 %v1575, %v5157
    %v5174 = vadd.f32 %v1576, %v5158
    %v5175 = vadd.f32 %v1577, %v5159
    %v5176 = vadd.f32 %v1578, %v5160
    %v5177 = vadd.f32 %v1579, %v5161
    %v5178 = vadd.f32 %v1580, %v5162
    %v5179 = vadd.f32 %v1581, %v5163
    %v5180 = vadd.f32 %v1582, %v5164
    %v5181 = vadd.f32 %v5165, %v5117
    %v5182 = vadd.f32 %v5166, %v5118
    %v5183 = vadd.f32 %v5167, %v5119
    %v5184 = vadd.f32 %v5168, %v5120
    %v5185 = vadd.f32 %v5169, %v5121
    %v5186 = vadd.f32 %v5170, %v5122
    %v5187 = vadd.f32 %v5171, %v5123
    %v5188 = vadd.f32 %v5172, %v5124
    %v5189 = vadd.f32 %v5173, %v5125
    %v5190 = vadd.f32 %v5174, %v5126
    %v5191 = vadd.f32 %v5175, %v5127
    %v5192 = vadd.f32 %v5176, %v5128
    %v5193 = vadd.f32 %v5177, %v5129
    %v5194 = vadd.f32 %v5178, %v5130
    %v5195 = vadd.f32 %v5179, %v5131
    %v5196 = vadd.f32 %v5180, %v5132
    %v5197 = vmul.f32 %v5181, 0.125
    %v5198 = vmul.f32 %v5182, 0.125
    %v5199 = vmul.f32 %v5183, 0.125
    %v5200 = vmul.f32 %v5184, 0.125
    %v5201 = vmul.f32 %v5185, 0.125
    %v5202 = vmul.f32 %v5186, 0.125
    %v5203 = vmul.f32 %v5187, 0.125
    %v5204 = vmul.f32 %v5188, 0.125
    %v5205 = vmul.f32 %v5189, 0.125
    %v5206 = vmul.f32 %v5190, 0.125
    %v5207 = vmul.f32 %v5191, 0.125
    %v5208 = vmul.f32 %v5192, 0.125
    %v5209 = vmul.f32 %v5193, 0.125
    %v5210 = vmul.f32 %v5194, 0.125
    %v5211 = vmul.f32 %v5195, 0.125
    %v5212 = vmul.f32 %v5196, 0.125
    %v5213 = vadd.f32 %v308, %v5197
    %v5214 = vadd.f32 %v309, %v5198
    %v5215 = vadd.f32 %v310, %v5199
    %v5216 = vadd.f32 %v311, %v5200
    %v5217 = vadd.f32 %v312, %v5201
    %v5218 = vadd.f32 %v313, %v5202
    %v5219 = vadd.f32 %v314, %v5203
    %v5220 = vadd.f32 %v315, %v5204
    %v5221 = vadd.f32 %v316, %v5205
    %v5222 = vadd.f32 %v317, %v5206
    %v5223 = vadd.f32 %v318, %v5207
    %v5224 = vadd.f32 %v319, %v5208
    %v5225 = vadd.f32 %v320, %v5209
    %v5226 = vadd.f32 %v321, %v5210
    %v5227 = vadd.f32 %v322, %v5211
    %v5228 = vadd.f32 %v323, %v5212
    %5229 = vst.msk [vmem:[#allocation2] sm:$0xff] %vm508, %v5213
    %5230 = vst.msk [vmem:[#allocation2 + $0x8] sm:$0xff] %vm508, %v5214
    %5231 = vst.msk [vmem:[#allocation2 + $0x10] sm:$0xff] %vm508, %v5215
    %5232 = vst.msk [vmem:[#allocation2 + $0x18] sm:$0xff] %vm508, %v5216
    %5233 = vst.msk [vmem:[#allocation2 + $0x20] sm:$0xff] %vm508, %v5217
    %5234 = vst.msk [vmem:[#allocation2 + $0x28] sm:$0xff] %vm508, %v5218
    %5235 = vst.msk [vmem:[#allocation2 + $0x30] sm:$0xff] %vm508, %v5219
    %5236 = vst.msk [vmem:[#allocation2 + $0x38] sm:$0xff] %vm508, %v5220
    %5237 = vst.msk [vmem:[#allocation2 + $0x40] sm:$0xff] %vm508, %v5221
    %5238 = vst.msk [vmem:[#allocation2 + $0x48] sm:$0xff] %vm508, %v5222
    %5239 = vst.msk [vmem:[#allocation2 + $0x50] sm:$0xff] %vm508, %v5223
    %5240 = vst.msk [vmem:[#allocation2 + $0x58] sm:$0xff] %vm508, %v5224
    %5241 = vst.msk [vmem:[#allocation2 + $0x60] sm:$0xff] %vm508, %v5225
    %5242 = vst.msk [vmem:[#allocation2 + $0x68] sm:$0xff] %vm508, %v5226
    %5243 = vst.msk [vmem:[#allocation2 + $0x70] sm:$0xff] %vm508, %v5227
    %5244 = vst.msk [vmem:[#allocation2 + $0x78] sm:$0xff] %vm508, %v5228
    %v5245 = vld [vmem:[#allocation2] ss:$2 sm:$0xff]
    %s5246 = scalar_lea.vmem [#allocation2], 16
    %v5247 = vld [vmem:[%s5246] ss:$2 sm:$0xff]
    %s5248 = scalar_lea.vmem [#allocation2], 32
    %v5249 = vld [vmem:[%s5248] ss:$2 sm:$0xff]
    %s5250 = scalar_lea.vmem [#allocation2], 48
    %v5251 = vld [vmem:[%s5250] ss:$2 sm:$0xff]
    %s5252 = scalar_lea.vmem [#allocation2], 64
    %v5253 = vld [vmem:[%s5252] ss:$2 sm:$0xff]
    %s5254 = scalar_lea.vmem [#allocation2], 80
    %v5255 = vld [vmem:[%s5254] ss:$2 sm:$0xff]
    %s5256 = scalar_lea.vmem [#allocation2], 96
    %v5257 = vld [vmem:[%s5256] ss:$2 sm:$0xff]
    %s5258 = scalar_lea.vmem [#allocation2], 112
    %v5259 = vld [vmem:[%s5258] ss:$2 sm:$0xff]
    %s5260 = scalar_lea.vmem [#allocation2], 1
    %v5261 = vld [vmem:[%s5260] ss:$2 sm:$0xff]
    %s5262 = scalar_lea.vmem [#allocation2], 17
    %v5263 = vld [vmem:[%s5262] ss:$2 sm:$0xff]
    %s5264 = scalar_lea.vmem [#allocation2], 33
    %v5265 = vld [vmem:[%s5264] ss:$2 sm:$0xff]
    %s5266 = scalar_lea.vmem [#allocation2], 49
    %v5267 = vld [vmem:[%s5266] ss:$2 sm:$0xff]
    %s5268 = scalar_lea.vmem [#allocation2], 65
    %v5269 = vld [vmem:[%s5268] ss:$2 sm:$0xff]
    %s5270 = scalar_lea.vmem [#allocation2], 81
    %v5271 = vld [vmem:[%s5270] ss:$2 sm:$0xff]
    %s5272 = scalar_lea.vmem [#allocation2], 97
    %v5273 = vld [vmem:[%s5272] ss:$2 sm:$0xff]
    %s5274 = scalar_lea.vmem [#allocation2], 113
    %v5275 = vld [vmem:[%s5274] ss:$2 sm:$0xff]
    %v5277 = vrot.slane %v5275, 7
    %v5286 = vrot.slane %v5261, 7
    %v5287 = vrot.slane %v5263, 7
    %v5288 = vsel %vm342, %v5286, %v5287
    %v5289 = vrot.slane %v5265, 7
    %v5290 = vsel %vm342, %v5287, %v5289
    %v5291 = vrot.slane %v5267, 7
    %v5292 = vsel %vm342, %v5289, %v5291
    %v5293 = vrot.slane %v5269, 7
    %v5294 = vsel %vm342, %v5291, %v5293
    %v5295 = vrot.slane %v5271, 7
    %v5296 = vsel %vm342, %v5293, %v5295
    %v5297 = vrot.slane %v5273, 7
    %v5298 = vsel %vm342, %v5295, %v5297
    %v5299 = vsel %vm342, %v5297, %v5277
    %v5308 = vsel %vm342, %v5277, %v5286
    %v5309 = vmul.f32 %v5308, %v276
    %v5310 = vmul.f32 %v5288, %v277
    %v5311 = vmul.f32 %v5290, %v278
    %v5312 = vmul.f32 %v5292, %v279
    %v5313 = vmul.f32 %v5294, %v280
    %v5314 = vmul.f32 %v5296, %v281
    %v5315 = vmul.f32 %v5298, %v282
    %v5316 = vmul.f32 %v5299, %v283
    %v5317 = vpack.c.bf16 %v5247, %v5245
    %v5318 = vpack.c.bf16 %v5251, %v5249
    %v5319 = vpack.c.bf16 %v5255, %v5253
    %v5320 = vpack.c.bf16 %v5259, %v5257
    %v5321 = vld [vmem:[%s10] sm:$0xf]
    %v5322 = vld [vmem:[%s10 + $0x4] sm:$0xf]
    %v5323 = vld [vmem:[%s10 + $0x8] sm:$0xf]
    %v5324 = vld [vmem:[%s10 + $0xc] sm:$0xf]
    %v5325 = vpack.c.bf16 %v5310, %v5309
    %v5326 = vpack.c.bf16 %v5312, %v5311
    %v5327 = vpack.c.bf16 %v5314, %v5313
    %v5328 = vpack.c.bf16 %v5316, %v5315
    %v5329 = vld [vmem:[#allocation7] sm:$0xf]
    %v5330 = vld [vmem:[#allocation7 + $0x4] sm:$0xf]
    %v5331 = vld [vmem:[#allocation7 + $0x8] sm:$0xf]
    %v5332 = vld [vmem:[#allocation7 + $0xc] sm:$0xf]
    %v5337 = vunpack.c.l.b16 %v5329
    %v5338 = vunpack.c.l.b16 %v5330
    %v5339 = vunpack.c.l.b16 %v5331
    %v5340 = vunpack.c.l.b16 %v5332
    %v5341 = vpack.c.b16 %v5338, %v5337
    %v5342 = vpack.c.b16 %v5340, %v5339
    %v5346 = vsel %vm508, %v5325, 0
    %v5349 = vsel %vm508, %v5326, 0
    %v5352 = vsel %vm508, %v5327, 0
    %v5355 = vsel %vm508, %v5328, 0
    %5357 = vmatprep.subr.bf16.mxu0 0
    %5358 = vmatpush1.bf16.msra.mxu0 %v5341
    %5359 = vmatprep.subr.bf16.mxu0 0
    %5360 = vmatpush1.bf16.msra.mxu0 %v5342
    %5361 = vmatprep.subr.bf16.mxu0 0
    %5362 = vmatpush1.bf16.msra.mxu0 0
    %5363 = vmatprep.subr.bf16.mxu0 0
    %5364 = vmatpush1.bf16.msra.mxu0 0
    %5365 = vmatprep.subr.bf16.mxu0 0
    %5366 = vmatpush1.bf16.msra.mxu0 0
    %5367 = vmatprep.subr.bf16.mxu0 0
    %5368 = vmatpush1.bf16.msra.mxu0 0
    %5369 = vmatprep.subr.bf16.mxu0 0
    %5370 = vmatpush1.bf16.msra.mxu0 0
    %5371 = vmatprep.subr.bf16.mxu0 0
    %5372 = vmatpush1.bf16.msra.mxu0 0
    %5373 = vmatprep.subr.bf16.mxu0 0
    %5374 = vmatpush1.bf16.msra.mxu0 0
    %5375 = vmatprep.subr.bf16.mxu0 0
    %5376 = vmatpush1.bf16.msra.mxu0 0
    %5377 = vmatprep.subr.bf16.mxu0 0
    %5378 = vmatpush1.bf16.msra.mxu0 0
    %5379 = vmatprep.subr.bf16.mxu0 0
    %5380 = vmatpush1.bf16.msra.mxu0 0
    %5381 = vmatprep.subr.bf16.mxu0 0
    %5382 = vmatpush1.bf16.msra.mxu0 0
    %5383 = vmatprep.subr.bf16.mxu0 0
    %5384 = vmatpush1.bf16.msra.mxu0 0
    %5385 = vmatprep.subr.bf16.mxu0 0
    %5386 = vmatpush1.bf16.msra.mxu0 0
    %5387 = vmatprep.subr.bf16.mxu0 0
    %5388 = vmatpush1.bf16.msra.mxu0 0
    %5389 = vmatprep.mubr.bf16.mxu0 0
    %5390 = vmatmul.mubr.bf16.gmra.mrb[0].mxu0 %v5346
    %v5391 = vpop.f32.mrb[0].mxu0
    %v5392 = vadd.f32 0.0, %v5391
    %v5393 = vpop.f32.mrb[0].mxu0
    %v5394 = vpop.f32.mrb[0].mxu0
    %v5395 = vadd.f32 0.0, %v5394
    %v5396 = vpop.f32.mrb[0].mxu0
    %5397 = vmatprep.mubr.bf16.mxu0 0
    %5398 = vmatmul.mubr.bf16.gmra.mrb[0].mxu0 %v5349
    %v5399 = vpop.f32.mrb[0].mxu0
    %v5400 = vadd.f32 0.0, %v5399
    %v5401 = vpop.f32.mrb[0].mxu0
    %v5402 = vpop.f32.mrb[0].mxu0
    %v5403 = vadd.f32 0.0, %v5402
    %v5404 = vpop.f32.mrb[0].mxu0
    %5405 = vmatprep.mubr.bf16.mxu0 0
    %5406 = vmatmul.mubr.bf16.gmra.mrb[0].mxu0 %v5352
    %v5407 = vpop.f32.mrb[0].mxu0
    %v5408 = vadd.f32 0.0, %v5407
    %v5409 = vpop.f32.mrb[0].mxu0
    %v5410 = vpop.f32.mrb[0].mxu0
    %v5411 = vadd.f32 0.0, %v5410
    %v5412 = vpop.f32.mrb[0].mxu0
    %5413 = vmatprep.mubr.bf16.mxu0 0
    %5414 = vmatmul.mubr.bf16.gmra.mrb[0].mxu0 %v5355
    %v5415 = vpop.f32.mrb[0].mxu0
    %v5416 = vadd.f32 0.0, %v5415
    %v5417 = vpop.f32.mrb[0].mxu0
    %v5418 = vpop.f32.mrb[0].mxu0
    %v5419 = vadd.f32 0.0, %v5418
    %v5420 = vpop.f32.mrb[0].mxu0
    %5421 = vdwg.mxu0
    %v5426 = vunpack.c.l.b16 %v5321
    %v5427 = vunpack.c.l.b16 %v5322
    %v5428 = vunpack.c.l.b16 %v5323
    %v5429 = vunpack.c.l.b16 %v5324
    %v5430 = vpack.c.b16 %v5427, %v5426
    %v5431 = vpack.c.b16 %v5429, %v5428
    %v5435 = vsel %vm508, %v5317, 0
    %v5438 = vsel %vm508, %v5318, 0
    %v5441 = vsel %vm508, %v5319, 0
    %v5444 = vsel %vm508, %v5320, 0
    %5446 = vmatprep.subr.bf16.mxu0 0
    %5447 = vmatpush1.bf16.msra.mxu0 %v5430
    %5448 = vmatprep.subr.bf16.mxu0 0
    %5449 = vmatpush1.bf16.msra.mxu0 %v5431
    %5450 = vmatprep.subr.bf16.mxu0 0
    %5451 = vmatpush1.bf16.msra.mxu0 0
    %5452 = vmatprep.subr.bf16.mxu0 0
    %5453 = vmatpush1.bf16.msra.mxu0 0
    %5454 = vmatprep.subr.bf16.mxu0 0
    %5455 = vmatpush1.bf16.msra.mxu0 0
    %5456 = vmatprep.subr.bf16.mxu0 0
    %5457 = vmatpush1.bf16.msra.mxu0 0
    %5458 = vmatprep.subr.bf16.mxu0 0
    %5459 = vmatpush1.bf16.msra.mxu0 0
    %5460 = vmatprep.subr.bf16.mxu0 0
    %5461 = vmatpush1.bf16.msra.mxu0 0
    %5462 = vmatprep.subr.bf16.mxu0 0
    %5463 = vmatpush1.bf16.msra.mxu0 0
    %5464 = vmatprep.subr.bf16.mxu0 0
    %5465 = vmatpush1.bf16.msra.mxu0 0
    %5466 = vmatprep.subr.bf16.mxu0 0
    %5467 = vmatpush1.bf16.msra.mxu0 0
    %5468 = vmatprep.subr.bf16.mxu0 0
    %5469 = vmatpush1.bf16.msra.mxu0 0
    %5470 = vmatprep.subr.bf16.mxu0 0
    %5471 = vmatpush1.bf16.msra.mxu0 0
    %5472 = vmatprep.subr.bf16.mxu0 0
    %5473 = vmatpush1.bf16.msra.mxu0 0
    %5474 = vmatprep.subr.bf16.mxu0 0
    %5475 = vmatpush1.bf16.msra.mxu0 0
    %5476 = vmatprep.subr.bf16.mxu0 0
    %5477 = vmatpush1.bf16.msra.mxu0 0
    %5478 = vmatprep.mubr.bf16.mxu0 0
    %5479 = vmatmul.mubr.bf16.gmra.mrb[0].mxu0 %v5435
    %v5480 = vpop.f32.mrb[0].mxu0
    %v5481 = vadd.f32 %v5392, %v5480
    %v5482 = vpop.f32.mrb[0].mxu0
    %v5483 = vpop.f32.mrb[0].mxu0
    %v5484 = vadd.f32 %v5395, %v5483
    %v5485 = vpop.f32.mrb[0].mxu0
    %5486 = vmatprep.mubr.bf16.mxu0 0
    %5487 = vmatmul.mubr.bf16.gmra.mrb[0].mxu0 %v5438
    %v5488 = vpop.f32.mrb[0].mxu0
    %v5489 = vadd.f32 %v5400, %v5488
    %v5490 = vpop.f32.mrb[0].mxu0
    %v5491 = vpop.f32.mrb[0].mxu0
    %v5492 = vadd.f32 %v5403, %v5491
    %v5493 = vpop.f32.mrb[0].mxu0
    %5494 = vmatprep.mubr.bf16.mxu0 0
    %5495 = vmatmul.mubr.bf16.gmra.mrb[0].mxu0 %v5441
    %v5496 = vpop.f32.mrb[0].mxu0
    %v5497 = vadd.f32 %v5408, %v5496
    %v5498 = vpop.f32.mrb[0].mxu0
    %v5499 = vpop.f32.mrb[0].mxu0
    %v5500 = vadd.f32 %v5411, %v5499
    %v5501 = vpop.f32.mrb[0].mxu0
    %5502 = vmatprep.mubr.bf16.mxu0 0
    %5503 = vmatmul.mubr.bf16.gmra.mrb[0].mxu0 %v5444
    %v5504 = vpop.f32.mrb[0].mxu0
    %v5505 = vadd.f32 %v5416, %v5504
    %v5506 = vpop.f32.mrb[0].mxu0
    %v5507 = vpop.f32.mrb[0].mxu0
    %v5508 = vadd.f32 %v5419, %v5507
    %v5509 = vpop.f32.mrb[0].mxu0
    %5510 = vdwg.mxu0
    %v5511 = vpack.c.bf16 %v5263, %v5261
    %v5512 = vpack.c.bf16 %v5267, %v5265
    %v5513 = vpack.c.bf16 %v5271, %v5269
    %v5514 = vpack.c.bf16 %v5275, %v5273
    %v5515 = vld [vmem:[#allocation9] sm:$0xf]
    %v5516 = vld [vmem:[#allocation9 + $0x4] sm:$0xf]
    %v5517 = vld [vmem:[#allocation9 + $0x8] sm:$0xf]
    %v5518 = vld [vmem:[#allocation9 + $0xc] sm:$0xf]
    %v5523 = vunpack.c.l.b16 %v5515
    %v5524 = vunpack.c.l.b16 %v5516
    %v5525 = vunpack.c.l.b16 %v5517
    %v5526 = vunpack.c.l.b16 %v5518
    %v5527 = vpack.c.b16 %v5524, %v5523
    %v5528 = vpack.c.b16 %v5526, %v5525
    %v5532 = vsel %vm508, %v5511, 0
    %v5535 = vsel %vm508, %v5512, 0
    %v5538 = vsel %vm508, %v5513, 0
    %v5541 = vsel %vm508, %v5514, 0
    %5543 = vmatprep.subr.bf16.mxu0 0
    %5544 = vmatpush1.bf16.msra.mxu0 %v5527
    %5545 = vmatprep.subr.bf16.mxu0 0
    %5546 = vmatpush1.bf16.msra.mxu0 %v5528
    %5547 = vmatprep.subr.bf16.mxu0 0
    %5548 = vmatpush1.bf16.msra.mxu0 0
    %5549 = vmatprep.subr.bf16.mxu0 0
    %5550 = vmatpush1.bf16.msra.mxu0 0
    %5551 = vmatprep.subr.bf16.mxu0 0
    %5552 = vmatpush1.bf16.msra.mxu0 0
    %5553 = vmatprep.subr.bf16.mxu0 0
    %5554 = vmatpush1.bf16.msra.mxu0 0
    %5555 = vmatprep.subr.bf16.mxu0 0
    %5556 = vmatpush1.bf16.msra.mxu0 0
    %5557 = vmatprep.subr.bf16.mxu0 0
    %5558 = vmatpush1.bf16.msra.mxu0 0
    %5559 = vmatprep.subr.bf16.mxu0 0
    %5560 = vmatpush1.bf16.msra.mxu0 0
    %5561 = vmatprep.subr.bf16.mxu0 0
    %5562 = vmatpush1.bf16.msra.mxu0 0
    %5563 = vmatprep.subr.bf16.mxu0 0
    %5564 = vmatpush1.bf16.msra.mxu0 0
    %5565 = vmatprep.subr.bf16.mxu0 0
    %5566 = vmatpush1.bf16.msra.mxu0 0
    %5567 = vmatprep.subr.bf16.mxu0 0
    %5568 = vmatpush1.bf16.msra.mxu0 0
    %5569 = vmatprep.subr.bf16.mxu0 0
    %5570 = vmatpush1.bf16.msra.mxu0 0
    %5571 = vmatprep.subr.bf16.mxu0 0
    %5572 = vmatpush1.bf16.msra.mxu0 0
    %5573 = vmatprep.subr.bf16.mxu0 0
    %5574 = vmatpush1.bf16.msra.mxu0 0
    %5575 = vmatprep.mubr.bf16.mxu0 0
    %5576 = vmatmul.mubr.bf16.gmra.mrb[0].mxu0 %v5532
    %v5577 = vpop.f32.mrb[0].mxu0
    %v5578 = vadd.f32 0.0, %v5577
    %v5579 = vpop.f32.mrb[0].mxu0
    %v5580 = vpop.f32.mrb[0].mxu0
    %v5581 = vadd.f32 0.0, %v5580
    %v5582 = vpop.f32.mrb[0].mxu0
    %5583 = vmatprep.mubr.bf16.mxu0 0
    %5584 = vmatmul.mubr.bf16.gmra.mrb[0].mxu0 %v5535
    %v5585 = vpop.f32.mrb[0].mxu0
    %v5586 = vadd.f32 0.0, %v5585
    %v5587 = vpop.f32.mrb[0].mxu0
    %v5588 = vpop.f32.mrb[0].mxu0
    %v5589 = vadd.f32 0.0, %v5588
    %v5590 = vpop.f32.mrb[0].mxu0
    %5591 = vmatprep.mubr.bf16.mxu0 0
    %5592 = vmatmul.mubr.bf16.gmra.mrb[0].mxu0 %v5538
    %v5593 = vpop.f32.mrb[0].mxu0
    %v5594 = vadd.f32 0.0, %v5593
    %v5595 = vpop.f32.mrb[0].mxu0
    %v5596 = vpop.f32.mrb[0].mxu0
    %v5597 = vadd.f32 0.0, %v5596
    %v5598 = vpop.f32.mrb[0].mxu0
    %5599 = vmatprep.mubr.bf16.mxu0 0
    %5600 = vmatmul.mubr.bf16.gmra.mrb[0].mxu0 %v5541
    %v5601 = vpop.f32.mrb[0].mxu0
    %v5602 = vadd.f32 0.0, %v5601
    %v5603 = vpop.f32.mrb[0].mxu0
    %v5604 = vpop.f32.mrb[0].mxu0
    %v5605 = vadd.f32 0.0, %v5604
    %v5606 = vpop.f32.mrb[0].mxu0
    %5607 = vdwg.mxu0
    %v5608 = vadd.f32 %v5481, %v5578
    %v5609 = vadd.f32 %v5484, %v5581
    %v5610 = vadd.f32 %v5489, %v5586
    %v5611 = vadd.f32 %v5492, %v5589
    %v5612 = vadd.f32 %v5497, %v5594
    %v5613 = vadd.f32 %v5500, %v5597
    %v5614 = vadd.f32 %v5505, %v5602
    %v5615 = vadd.f32 %v5508, %v5605
    %v5616 = vld [vmem:[%s12] sm:$0x1]
    %v5618 = vlaneseq
    %v5619 = vshrl.u32 %v5618, 7
    %v5620 = vsub.s32 0, %v5619
    %v5621 = vrot.slane %v5616, %v5620
    %v5623 = vadd.f32 %v5608, %v5621
    %v5624 = vadd.f32 %v5609, %v5621
    %v5625 = vadd.f32 %v5610, %v5621
    %v5626 = vadd.f32 %v5611, %v5621
    %v5627 = vadd.f32 %v5612, %v5621
    %v5628 = vadd.f32 %v5613, %v5621
    %v5629 = vadd.f32 %v5614, %v5621
    %v5630 = vadd.f32 %v5615, %v5621
    %v5631 = vmax.f32 %v5623, 0.0
    %v5632 = vmax.f32 %v5624, 0.0
    %v5633 = vmax.f32 %v5625, 0.0
    %v5634 = vmax.f32 %v5626, 0.0
    %v5635 = vmax.f32 %v5627, 0.0
    %v5636 = vmax.f32 %v5628, 0.0
    %v5637 = vmax.f32 %v5629, 0.0
    %v5638 = vmax.f32 %v5630, 0.0
    %v5640 = vrot.slane %v5638, 7
    %v5649 = vrot.slane %v5631, 7
    %v5650 = vrot.slane %v5632, 7
    %v5651 = vsel %vm342, %v5649, %v5650
    %v5652 = vrot.slane %v5633, 7
    %v5653 = vsel %vm342, %v5650, %v5652
    %v5654 = vrot.slane %v5634, 7
    %v5655 = vsel %vm342, %v5652, %v5654
    %v5656 = vrot.slane %v5635, 7
    %v5657 = vsel %vm342, %v5654, %v5656
    %v5658 = vrot.slane %v5636, 7
    %v5659 = vsel %vm342, %v5656, %v5658
    %v5660 = vrot.slane %v5637, 7
    %v5661 = vsel %vm342, %v5658, %v5660
    %v5662 = vsel %vm342, %v5660, %v5640
    %v5671 = vsel %vm342, %v5640, %v5649
    %v5672 = vmul.f32 %v5671, %v276
    %v5673 = vmul.f32 %v5651, %v277
    %v5674 = vmul.f32 %v5653, %v278
    %v5675 = vmul.f32 %v5655, %v279
    %v5676 = vmul.f32 %v5657, %v280
    %v5677 = vmul.f32 %v5659, %v281
    %v5678 = vmul.f32 %v5661, %v282
    %v5679 = vmul.f32 %v5662, %v283
    %v5680 = vrot.slane %v5631, 1
    %v5681 = vrot.slane %v5632, 1
    %v5682 = vsel %vm406, %v5680, %v5681
    %v5683 = vrot.slane %v5633, 1
    %v5684 = vsel %vm406, %v5681, %v5683
    %v5685 = vrot.slane %v5634, 1
    %v5686 = vsel %vm406, %v5683, %v5685
    %v5687 = vrot.slane %v5635, 1
    %v5688 = vsel %vm406, %v5685, %v5687
    %v5689 = vrot.slane %v5636, 1
    %v5690 = vsel %vm406, %v5687, %v5689
    %v5691 = vrot.slane %v5637, 1
    %v5692 = vsel %vm406, %v5689, %v5691
    %v5693 = vrot.slane %v5638, 1
    %v5694 = vsel %vm406, %v5691, %v5693
    %v5704 = vsel %vm406, %v5693, %v5680
    %v5705 = vmul.f32 %v5682, %v300
    %v5706 = vmul.f32 %v5684, %v301
    %v5707 = vmul.f32 %v5686, %v302
    %v5708 = vmul.f32 %v5688, %v303
    %v5709 = vmul.f32 %v5690, %v304
    %v5710 = vmul.f32 %v5692, %v305
    %v5711 = vmul.f32 %v5694, %v306
    %v5712 = vmul.f32 %v5704, %v307
    %v5713 = vpack.c.bf16 %v5632, %v5631
    %v5714 = vpack.c.bf16 %v5634, %v5633
    %v5715 = vpack.c.bf16 %v5636, %v5635
    %v5716 = vpack.c.bf16 %v5638, %v5637
    %v5717 = vld [vmem:[%s14] sm:$0xf]
    %v5718 = vld [vmem:[%s14 + $0x4] sm:$0xf]
    %v5719 = vld [vmem:[%s14 + $0x8] sm:$0xf]
    %v5720 = vld [vmem:[%s14 + $0xc] sm:$0xf]
    %v5721 = vld [vmem:[%s14 + $0x10] sm:$0xf]
    %v5722 = vld [vmem:[%s14 + $0x14] sm:$0xf]
    %v5723 = vld [vmem:[%s14 + $0x18] sm:$0xf]
    %v5724 = vld [vmem:[%s14 + $0x1c] sm:$0xf]
    %v5725 = vpack.c.bf16 %v5673, %v5672
    %v5726 = vpack.c.bf16 %v5675, %v5674
    %v5727 = vpack.c.bf16 %v5677, %v5676
    %v5728 = vpack.c.bf16 %v5679, %v5678
    %v5729 = vld [vmem:[%s13] sm:$0xf]
    %v5730 = vld [vmem:[%s13 + $0x4] sm:$0xf]
    %v5731 = vld [vmem:[%s13 + $0x8] sm:$0xf]
    %v5732 = vld [vmem:[%s13 + $0xc] sm:$0xf]
    %v5733 = vld [vmem:[%s13 + $0x10] sm:$0xf]
    %v5734 = vld [vmem:[%s13 + $0x14] sm:$0xf]
    %v5735 = vld [vmem:[%s13 + $0x18] sm:$0xf]
    %v5736 = vld [vmem:[%s13 + $0x1c] sm:$0xf]
    %v5745 = vunpack.c.l.b16 %v5729
    %v5746 = vunpack.c.l.b16 %v5730
    %v5747 = vunpack.c.l.b16 %v5731
    %v5748 = vunpack.c.l.b16 %v5732
    %v5749 = vunpack.c.l.b16 %v5733
    %v5750 = vunpack.c.l.b16 %v5734
    %v5751 = vunpack.c.l.b16 %v5735
    %v5752 = vunpack.c.l.b16 %v5736
    %v5753 = vpack.c.b16 %v5746, %v5745
    %v5754 = vpack.c.b16 %v5748, %v5747
    %v5755 = vpack.c.b16 %v5750, %v5749
    %v5756 = vpack.c.b16 %v5752, %v5751
    %vm5761 = vcmask 523264
    %v5763 = vsel %vm5761, %v5725, 0
    %v5766 = vsel %vm5761, %v5726, 0
    %v5769 = vsel %vm5761, %v5727, 0
    %v5772 = vsel %vm5761, %v5728, 0
    %5774 = vmatprep.subr.bf16.mxu0 0
    %5775 = vmatpush1.bf16.msra.mxu0 %v5753
    %5776 = vmatprep.subr.bf16.mxu0 0
    %5777 = vmatpush1.bf16.msra.mxu0 %v5754
    %5778 = vmatprep.subr.bf16.mxu0 0
    %5779 = vmatpush1.bf16.msra.mxu0 %v5755
    %5780 = vmatprep.subr.bf16.mxu0 0
    %5781 = vmatpush1.bf16.msra.mxu0 %v5756
    %5782 = vmatprep.subr.bf16.mxu0 0
    %5783 = vmatpush1.bf16.msra.mxu0 0
    %5784 = vmatprep.subr.bf16.mxu0 0
    %5785 = vmatpush1.bf16.msra.mxu0 0
    %5786 = vmatprep.subr.bf16.mxu0 0
    %5787 = vmatpush1.bf16.msra.mxu0 0
    %5788 = vmatprep.subr.bf16.mxu0 0
    %5789 = vmatpush1.bf16.msra.mxu0 0
    %5790 = vmatprep.subr.bf16.mxu0 0
    %5791 = vmatpush1.bf16.msra.mxu0 0
    %5792 = vmatprep.subr.bf16.mxu0 0
    %5793 = vmatpush1.bf16.msra.mxu0 0
    %5794 = vmatprep.subr.bf16.mxu0 0
    %5795 = vmatpush1.bf16.msra.mxu0 0
    %5796 = vmatprep.subr.bf16.mxu0 0
    %5797 = vmatpush1.bf16.msra.mxu0 0
    %5798 = vmatprep.subr.bf16.mxu0 0
    %5799 = vmatpush1.bf16.msra.mxu0 0
    %5800 = vmatprep.subr.bf16.mxu0 0
    %5801 = vmatpush1.bf16.msra.mxu0 0
    %5802 = vmatprep.subr.bf16.mxu0 0
    %5803 = vmatpush1.bf16.msra.mxu0 0
    %5804 = vmatprep.subr.bf16.mxu0 0
    %5805 = vmatpush1.bf16.msra.mxu0 0
    %5806 = vmatprep.mubr.bf16.mxu0 0
    %5807 = vmatmul.mubr.bf16.gmra.mrb[0].mxu0 %v5763
    %v5808 = vpop.f32.mrb[0].mxu0
    %v5809 = vadd.f32 0.0, %v5808
    %v5810 = vpop.f32.mrb[0].mxu0
    %v5811 = vpop.f32.mrb[0].mxu0
    %v5812 = vadd.f32 0.0, %v5811
    %v5813 = vpop.f32.mrb[0].mxu0
    %5814 = vmatprep.mubr.bf16.mxu0 0
    %5815 = vmatmul.mubr.bf16.gmra.mrb[0].mxu0 %v5766
    %v5816 = vpop.f32.mrb[0].mxu0
    %v5817 = vadd.f32 0.0, %v5816
    %v5818 = vpop.f32.mrb[0].mxu0
    %v5819 = vpop.f32.mrb[0].mxu0
    %v5820 = vadd.f32 0.0, %v5819
    %v5821 = vpop.f32.mrb[0].mxu0
    %5822 = vmatprep.mubr.bf16.mxu0 0
    %5823 = vmatmul.mubr.bf16.gmra.mrb[0].mxu0 %v5769
    %v5824 = vpop.f32.mrb[0].mxu0
    %v5825 = vadd.f32 0.0, %v5824
    %v5826 = vpop.f32.mrb[0].mxu0
    %v5827 = vpop.f32.mrb[0].mxu0
    %v5828 = vadd.f32 0.0, %v5827
    %v5829 = vpop.f32.mrb[0].mxu0
    %5830 = vmatprep.mubr.bf16.mxu0 0
    %5831 = vmatmul.mubr.bf16.gmra.mrb[0].mxu0 %v5772
    %v5832 = vpop.f32.mrb[0].mxu0
    %v5833 = vadd.f32 0.0, %v5832
    %v5834 = vpop.f32.mrb[0].mxu0
    %v5835 = vpop.f32.mrb[0].mxu0
    %v5836 = vadd.f32 0.0, %v5835
    %v5837 = vpop.f32.mrb[0].mxu0
    %5838 = vdwg.mxu0
    %v5847 = vunpack.c.l.b16 %v5717
    %v5848 = vunpack.c.l.b16 %v5718
    %v5849 = vunpack.c.l.b16 %v5719
    %v5850 = vunpack.c.l.b16 %v5720
    %v5851 = vunpack.c.l.b16 %v5721
    %v5852 = vunpack.c.l.b16 %v5722
    %v5853 = vunpack.c.l.b16 %v5723
    %v5854 = vunpack.c.l.b16 %v5724
    %v5855 = vpack.c.b16 %v5848, %v5847
    %v5856 = vpack.c.b16 %v5850, %v5849
    %v5857 = vpack.c.b16 %v5852, %v5851
    %v5858 = vpack.c.b16 %v5854, %v5853
    %v5864 = vsel %vm5761, %v5713, 0
    %v5867 = vsel %vm5761, %v5714, 0
    %v5870 = vsel %vm5761, %v5715, 0
    %v5873 = vsel %vm5761, %v5716, 0
    %5875 = vmatprep.subr.bf16.mxu0 0
    %5876 = vmatpush1.bf16.msra.mxu0 %v5855
    %5877 = vmatprep.subr.bf16.mxu0 0
    %5878 = vmatpush1.bf16.msra.mxu0 %v5856
    %5879 = vmatprep.subr.bf16.mxu0 0
    %5880 = vmatpush1.bf16.msra.mxu0 %v5857
    %5881 = vmatprep.subr.bf16.mxu0 0
    %5882 = vmatpush1.bf16.msra.mxu0 %v5858
    %5883 = vmatprep.subr.bf16.mxu0 0
    %5884 = vmatpush1.bf16.msra.mxu0 0
    %5885 = vmatprep.subr.bf16.mxu0 0
    %5886 = vmatpush1.bf16.msra.mxu0 0
    %5887 = vmatprep.subr.bf16.mxu0 0
    %5888 = vmatpush1.bf16.msra.mxu0 0
    %5889 = vmatprep.subr.bf16.mxu0 0
    %5890 = vmatpush1.bf16.msra.mxu0 0
    %5891 = vmatprep.subr.bf16.mxu0 0
    %5892 = vmatpush1.bf16.msra.mxu0 0
    %5893 = vmatprep.subr.bf16.mxu0 0
    %5894 = vmatpush1.bf16.msra.mxu0 0
    %5895 = vmatprep.subr.bf16.mxu0 0
    %5896 = vmatpush1.bf16.msra.mxu0 0
    %5897 = vmatprep.subr.bf16.mxu0 0
    %5898 = vmatpush1.bf16.msra.mxu0 0
    %5899 = vmatprep.subr.bf16.mxu0 0
    %5900 = vmatpush1.bf16.msra.mxu0 0
    %5901 = vmatprep.subr.bf16.mxu0 0
    %5902 = vmatpush1.bf16.msra.mxu0 0
    %5903 = vmatprep.subr.bf16.mxu0 0
    %5904 = vmatpush1.bf16.msra.mxu0 0
    %5905 = vmatprep.subr.bf16.mxu0 0
    %5906 = vmatpush1.bf16.msra.mxu0 0
    %5907 = vmatprep.mubr.bf16.mxu0 0
    %5908 = vmatmul.mubr.bf16.gmra.mrb[0].mxu0 %v5864
    %v5909 = vpop.f32.mrb[0].mxu0
    %v5910 = vadd.f32 %v5809, %v5909
    %v5911 = vpop.f32.mrb[0].mxu0
    %v5912 = vpop.f32.mrb[0].mxu0
    %v5913 = vadd.f32 %v5812, %v5912
    %v5914 = vpop.f32.mrb[0].mxu0
    %5915 = vmatprep.mubr.bf16.mxu0 0
    %5916 = vmatmul.mubr.bf16.gmra.mrb[0].mxu0 %v5867
    %v5917 = vpop.f32.mrb[0].mxu0
    %v5918 = vadd.f32 %v5817, %v5917
    %v5919 = vpop.f32.mrb[0].mxu0
    %v5920 = vpop.f32.mrb[0].mxu0
    %v5921 = vadd.f32 %v5820, %v5920
    %v5922 = vpop.f32.mrb[0].mxu0
    %5923 = vmatprep.mubr.bf16.mxu0 0
    %5924 = vmatmul.mubr.bf16.gmra.mrb[0].mxu0 %v5870
    %v5925 = vpop.f32.mrb[0].mxu0
    %v5926 = vadd.f32 %v5825, %v5925
    %v5927 = vpop.f32.mrb[0].mxu0
    %v5928 = vpop.f32.mrb[0].mxu0
    %v5929 = vadd.f32 %v5828, %v5928
    %v5930 = vpop.f32.mrb[0].mxu0
    %5931 = vmatprep.mubr.bf16.mxu0 0
    %5932 = vmatmul.mubr.bf16.gmra.mrb[0].mxu0 %v5873
    %v5933 = vpop.f32.mrb[0].mxu0
    %v5934 = vadd.f32 %v5833, %v5933
    %v5935 = vpop.f32.mrb[0].mxu0
    %v5936 = vpop.f32.mrb[0].mxu0
    %v5937 = vadd.f32 %v5836, %v5936
    %v5938 = vpop.f32.mrb[0].mxu0
    %5939 = vdwg.mxu0
    %v5940 = vpack.c.bf16 %v5706, %v5705
    %v5941 = vpack.c.bf16 %v5708, %v5707
    %v5942 = vpack.c.bf16 %v5710, %v5709
    %v5943 = vpack.c.bf16 %v5712, %v5711
    %v5944 = vld [vmem:[%s15] sm:$0xf]
    %v5945 = vld [vmem:[%s15 + $0x4] sm:$0xf]
    %v5946 = vld [vmem:[%s15 + $0x8] sm:$0xf]
    %v5947 = vld [vmem:[%s15 + $0xc] sm:$0xf]
    %v5948 = vld [vmem:[%s15 + $0x10] sm:$0xf]
    %v5949 = vld [vmem:[%s15 + $0x14] sm:$0xf]
    %v5950 = vld [vmem:[%s15 + $0x18] sm:$0xf]
    %v5951 = vld [vmem:[%s15 + $0x1c] sm:$0xf]
    %v5960 = vunpack.c.l.b16 %v5944
    %v5961 = vunpack.c.l.b16 %v5945
    %v5962 = vunpack.c.l.b16 %v5946
    %v5963 = vunpack.c.l.b16 %v5947
    %v5964 = vunpack.c.l.b16 %v5948
    %v5965 = vunpack.c.l.b16 %v5949
    %v5966 = vunpack.c.l.b16 %v5950
    %v5967 = vunpack.c.l.b16 %v5951
    %v5968 = vpack.c.b16 %v5961, %v5960
    %v5969 = vpack.c.b16 %v5963, %v5962
    %v5970 = vpack.c.b16 %v5965, %v5964
    %v5971 = vpack.c.b16 %v5967, %v5966
    %v5977 = vsel %vm5761, %v5940, 0
    %v5980 = vsel %vm5761, %v5941, 0
    %v5983 = vsel %vm5761, %v5942, 0
    %v5986 = vsel %vm5761, %v5943, 0
    %5988 = vmatprep.subr.bf16.mxu0 0
    %5989 = vmatpush1.bf16.msra.mxu0 %v5968
    %5990 = vmatprep.subr.bf16.mxu0 0
    %5991 = vmatpush1.bf16.msra.mxu0 %v5969
    %5992 = vmatprep.subr.bf16.mxu0 0
    %5993 = vmatpush1.bf16.msra.mxu0 %v5970
    %5994 = vmatprep.subr.bf16.mxu0 0
    %5995 = vmatpush1.bf16.msra.mxu0 %v5971
    %5996 = vmatprep.subr.bf16.mxu0 0
    %5997 = vmatpush1.bf16.msra.mxu0 0
    %5998 = vmatprep.subr.bf16.mxu0 0
    %5999 = vmatpush1.bf16.msra.mxu0 0
    %6000 = vmatprep.subr.bf16.mxu0 0
    %6001 = vmatpush1.bf16.msra.mxu0 0
    %6002 = vmatprep.subr.bf16.mxu0 0
    %6003 = vmatpush1.bf16.msra.mxu0 0
    %6004 = vmatprep.subr.bf16.mxu0 0
    %6005 = vmatpush1.bf16.msra.mxu0 0
    %6006 = vmatprep.subr.bf16.mxu0 0
    %6007 = vmatpush1.bf16.msra.mxu0 0
    %6008 = vmatprep.subr.bf16.mxu0 0
    %6009 = vmatpush1.bf16.msra.mxu0 0
    %6010 = vmatprep.subr.bf16.mxu0 0
    %6011 = vmatpush1.bf16.msra.mxu0 0
    %6012 = vmatprep.subr.bf16.mxu0 0
    %6013 = vmatpush1.bf16.msra.mxu0 0
    %6014 = vmatprep.subr.bf16.mxu0 0
    %6015 = vmatpush1.bf16.msra.mxu0 0
    %6016 = vmatprep.subr.bf16.mxu0 0
    %6017 = vmatpush1.bf16.msra.mxu0 0
    %6018 = vmatprep.subr.bf16.mxu0 0
    %6019 = vmatpush1.bf16.msra.mxu0 0
    %6020 = vmatprep.mubr.bf16.mxu0 0
    %6021 = vmatmul.mubr.bf16.gmra.mrb[0].mxu0 %v5977
    %v6022 = vpop.f32.mrb[0].mxu0
    %v6023 = vadd.f32 0.0, %v6022
    %v6024 = vpop.f32.mrb[0].mxu0
    %v6025 = vpop.f32.mrb[0].mxu0
    %v6026 = vadd.f32 0.0, %v6025
    %v6027 = vpop.f32.mrb[0].mxu0
    %6028 = vmatprep.mubr.bf16.mxu0 0
    %6029 = vmatmul.mubr.bf16.gmra.mrb[0].mxu0 %v5980
    %v6030 = vpop.f32.mrb[0].mxu0
    %v6031 = vadd.f32 0.0, %v6030
    %v6032 = vpop.f32.mrb[0].mxu0
    %v6033 = vpop.f32.mrb[0].mxu0
    %v6034 = vadd.f32 0.0, %v6033
    %v6035 = vpop.f32.mrb[0].mxu0
    %6036 = vmatprep.mubr.bf16.mxu0 0
    %6037 = vmatmul.mubr.bf16.gmra.mrb[0].mxu0 %v5983
    %v6038 = vpop.f32.mrb[0].mxu0
    %v6039 = vadd.f32 0.0, %v6038
    %v6040 = vpop.f32.mrb[0].mxu0
    %v6041 = vpop.f32.mrb[0].mxu0
    %v6042 = vadd.f32 0.0, %v6041
    %v6043 = vpop.f32.mrb[0].mxu0
    %6044 = vmatprep.mubr.bf16.mxu0 0
    %6045 = vmatmul.mubr.bf16.gmra.mrb[0].mxu0 %v5986
    %v6046 = vpop.f32.mrb[0].mxu0
    %v6047 = vadd.f32 0.0, %v6046
    %v6048 = vpop.f32.mrb[0].mxu0
    %v6049 = vpop.f32.mrb[0].mxu0
    %v6050 = vadd.f32 0.0, %v6049
    %v6051 = vpop.f32.mrb[0].mxu0
    %6052 = vdwg.mxu0
    %v6053 = vadd.f32 %v5910, %v6023
    %v6054 = vadd.f32 %v5913, %v6026
    %v6055 = vadd.f32 %v5918, %v6031
    %v6056 = vadd.f32 %v5921, %v6034
    %v6057 = vadd.f32 %v5926, %v6039
    %v6058 = vadd.f32 %v5929, %v6042
    %v6059 = vadd.f32 %v5934, %v6047
    %v6060 = vadd.f32 %v5937, %v6050
    %v6061 = vld [vmem:[%s16] sm:$0x1]
    %v6063 = vlaneseq
    %v6064 = vshrl.u32 %v6063, 7
    %v6065 = vsub.s32 0, %v6064
    %v6066 = vrot.slane %v6061, %v6065
    %v6068 = vadd.f32 %v6053, %v6066
    %v6069 = vadd.f32 %v6054, %v6066
    %v6070 = vadd.f32 %v6055, %v6066
    %v6071 = vadd.f32 %v6056, %v6066
    %v6072 = vadd.f32 %v6057, %v6066
    %v6073 = vadd.f32 %v6058, %v6066
    %v6074 = vadd.f32 %v6059, %v6066
    %v6075 = vadd.f32 %v6060, %v6066
    %v6076 = vmax.f32 %v6068, 0.0
    %v6077 = vmax.f32 %v6069, 0.0
    %v6078 = vmax.f32 %v6070, 0.0
    %v6079 = vmax.f32 %v6071, 0.0
    %v6080 = vmax.f32 %v6072, 0.0
    %v6081 = vmax.f32 %v6073, 0.0
    %v6082 = vmax.f32 %v6074, 0.0
    %v6083 = vmax.f32 %v6075, 0.0
    %v6085 = vrot.slane %v6083, 7
    %v6094 = vrot.slane %v6076, 7
    %v6095 = vrot.slane %v6077, 7
    %v6096 = vsel %vm342, %v6094, %v6095
    %v6097 = vrot.slane %v6078, 7
    %v6098 = vsel %vm342, %v6095, %v6097
    %v6099 = vrot.slane %v6079, 7
    %v6100 = vsel %vm342, %v6097, %v6099
    %v6101 = vrot.slane %v6080, 7
    %v6102 = vsel %vm342, %v6099, %v6101
    %v6103 = vrot.slane %v6081, 7
    %v6104 = vsel %vm342, %v6101, %v6103
    %v6105 = vrot.slane %v6082, 7
    %v6106 = vsel %vm342, %v6103, %v6105
    %v6107 = vsel %vm342, %v6105, %v6085
    %v6116 = vsel %vm342, %v6085, %v6094
    %v6117 = vmul.f32 %v6116, %v276
    %v6118 = vmul.f32 %v6096, %v277
    %v6119 = vmul.f32 %v6098, %v278
    %v6120 = vmul.f32 %v6100, %v279
    %v6121 = vmul.f32 %v6102, %v280
    %v6122 = vmul.f32 %v6104, %v281
    %v6123 = vmul.f32 %v6106, %v282
    %v6124 = vmul.f32 %v6107, %v283
    %v6125 = vrot.slane %v6076, 1
    %v6126 = vrot.slane %v6077, 1
    %v6127 = vsel %vm406, %v6125, %v6126
    %v6128 = vrot.slane %v6078, 1
    %v6129 = vsel %vm406, %v6126, %v6128
    %v6130 = vrot.slane %v6079, 1
    %v6131 = vsel %vm406, %v6128, %v6130
    %v6132 = vrot.slane %v6080, 1
    %v6133 = vsel %vm406, %v6130, %v6132
    %v6134 = vrot.slane %v6081, 1
    %v6135 = vsel %vm406, %v6132, %v6134
    %v6136 = vrot.slane %v6082, 1
    %v6137 = vsel %vm406, %v6134, %v6136
    %v6138 = vrot.slane %v6083, 1
    %v6139 = vsel %vm406, %v6136, %v6138
    %v6149 = vsel %vm406, %v6138, %v6125
    %v6150 = vmul.f32 %v6127, %v300
    %v6151 = vmul.f32 %v6129, %v301
    %v6152 = vmul.f32 %v6131, %v302
    %v6153 = vmul.f32 %v6133, %v303
    %v6154 = vmul.f32 %v6135, %v304
    %v6155 = vmul.f32 %v6137, %v305
    %v6156 = vmul.f32 %v6139, %v306
    %v6157 = vmul.f32 %v6149, %v307
    %v6158 = vpack.c.bf16 %v6077, %v6076
    %v6159 = vpack.c.bf16 %v6079, %v6078
    %v6160 = vpack.c.bf16 %v6081, %v6080
    %v6161 = vpack.c.bf16 %v6083, %v6082
    %v6162 = vld [vmem:[%s18] sm:$0xf]
    %v6163 = vld [vmem:[%s18 + $0x4] sm:$0xf]
    %v6164 = vld [vmem:[%s18 + $0x8] sm:$0xf]
    %v6165 = vld [vmem:[%s18 + $0xc] sm:$0xf]
    %v6166 = vld [vmem:[%s18 + $0x10] sm:$0xf]
    %v6167 = vld [vmem:[%s18 + $0x14] sm:$0xf]
    %v6168 = vld [vmem:[%s18 + $0x18] sm:$0xf]
    %v6169 = vld [vmem:[%s18 + $0x1c] sm:$0xf]
    %v6170 = vpack.c.bf16 %v6118, %v6117
    %v6171 = vpack.c.bf16 %v6120, %v6119
    %v6172 = vpack.c.bf16 %v6122, %v6121
    %v6173 = vpack.c.bf16 %v6124, %v6123
    %v6174 = vld [vmem:[%s17] sm:$0xf]
    %v6175 = vld [vmem:[%s17 + $0x4] sm:$0xf]
    %v6176 = vld [vmem:[%s17 + $0x8] sm:$0xf]
    %v6177 = vld [vmem:[%s17 + $0xc] sm:$0xf]
    %v6178 = vld [vmem:[%s17 + $0x10] sm:$0xf]
    %v6179 = vld [vmem:[%s17 + $0x14] sm:$0xf]
    %v6180 = vld [vmem:[%s17 + $0x18] sm:$0xf]
    %v6181 = vld [vmem:[%s17 + $0x1c] sm:$0xf]
    %v6190 = vunpack.c.l.b16 %v6174
    %v6191 = vunpack.c.l.b16 %v6175
    %v6192 = vunpack.c.l.b16 %v6176
    %v6193 = vunpack.c.l.b16 %v6177
    %v6194 = vunpack.c.l.b16 %v6178
    %v6195 = vunpack.c.l.b16 %v6179
    %v6196 = vunpack.c.l.b16 %v6180
    %v6197 = vunpack.c.l.b16 %v6181
    %v6198 = vpack.c.b16 %v6191, %v6190
    %v6199 = vpack.c.b16 %v6193, %v6192
    %v6200 = vpack.c.b16 %v6195, %v6194
    %v6201 = vpack.c.b16 %v6197, %v6196
    %v6207 = vsel %vm5761, %v6170, 0
    %v6210 = vsel %vm5761, %v6171, 0
    %v6213 = vsel %vm5761, %v6172, 0
    %v6216 = vsel %vm5761, %v6173, 0
    %6218 = vmatprep.subr.bf16.mxu0 0
    %6219 = vmatpush1.bf16.msra.mxu0 %v6198
    %6220 = vmatprep.subr.bf16.mxu0 0
    %6221 = vmatpush1.bf16.msra.mxu0 %v6199
    %6222 = vmatprep.subr.bf16.mxu0 0
    %6223 = vmatpush1.bf16.msra.mxu0 %v6200
    %6224 = vmatprep.subr.bf16.mxu0 0
    %6225 = vmatpush1.bf16.msra.mxu0 %v6201
    %6226 = vmatprep.subr.bf16.mxu0 0
    %6227 = vmatpush1.bf16.msra.mxu0 0
    %6228 = vmatprep.subr.bf16.mxu0 0
    %6229 = vmatpush1.bf16.msra.mxu0 0
    %6230 = vmatprep.subr.bf16.mxu0 0
    %6231 = vmatpush1.bf16.msra.mxu0 0
    %6232 = vmatprep.subr.bf16.mxu0 0
    %6233 = vmatpush1.bf16.msra.mxu0 0
    %6234 = vmatprep.subr.bf16.mxu0 0
    %6235 = vmatpush1.bf16.msra.mxu0 0
    %6236 = vmatprep.subr.bf16.mxu0 0
    %6237 = vmatpush1.bf16.msra.mxu0 0
    %6238 = vmatprep.subr.bf16.mxu0 0
    %6239 = vmatpush1.bf16.msra.mxu0 0
    %6240 = vmatprep.subr.bf16.mxu0 0
    %6241 = vmatpush1.bf16.msra.mxu0 0
    %6242 = vmatprep.subr.bf16.mxu0 0
    %6243 = vmatpush1.bf16.msra.mxu0 0
    %6244 = vmatprep.subr.bf16.mxu0 0
    %6245 = vmatpush1.bf16.msra.mxu0 0
    %6246 = vmatprep.subr.bf16.mxu0 0
    %6247 = vmatpush1.bf16.msra.mxu0 0
    %6248 = vmatprep.subr.bf16.mxu0 0
    %6249 = vmatpush1.bf16.msra.mxu0 0
    %6250 = vmatprep.mubr.bf16.mxu0 0
    %6251 = vmatmul.mubr.bf16.gmra.mrb[0].mxu0 %v6207
    %v6252 = vpop.f32.mrb[0].mxu0
    %v6253 = vadd.f32 0.0, %v6252
    %v6254 = vpop.f32.mrb[0].mxu0
    %v6255 = vpop.f32.mrb[0].mxu0
    %v6256 = vadd.f32 0.0, %v6255
    %v6257 = vpop.f32.mrb[0].mxu0
    %6258 = vmatprep.mubr.bf16.mxu0 0
    %6259 = vmatmul.mubr.bf16.gmra.mrb[0].mxu0 %v6210
    %v6260 = vpop.f32.mrb[0].mxu0
    %v6261 = vadd.f32 0.0, %v6260
    %v6262 = vpop.f32.mrb[0].mxu0
    %v6263 = vpop.f32.mrb[0].mxu0
    %v6264 = vadd.f32 0.0, %v6263
    %v6265 = vpop.f32.mrb[0].mxu0
    %6266 = vmatprep.mubr.bf16.mxu0 0
    %6267 = vmatmul.mubr.bf16.gmra.mrb[0].mxu0 %v6213
    %v6268 = vpop.f32.mrb[0].mxu0
    %v6269 = vadd.f32 0.0, %v6268
    %v6270 = vpop.f32.mrb[0].mxu0
    %v6271 = vpop.f32.mrb[0].mxu0
    %v6272 = vadd.f32 0.0, %v6271
    %v6273 = vpop.f32.mrb[0].mxu0
    %6274 = vmatprep.mubr.bf16.mxu0 0
    %6275 = vmatmul.mubr.bf16.gmra.mrb[0].mxu0 %v6216
    %v6276 = vpop.f32.mrb[0].mxu0
    %v6277 = vadd.f32 0.0, %v6276
    %v6278 = vpop.f32.mrb[0].mxu0
    %v6279 = vpop.f32.mrb[0].mxu0
    %v6280 = vadd.f32 0.0, %v6279
    %v6281 = vpop.f32.mrb[0].mxu0
    %6282 = vdwg.mxu0
    %v6291 = vunpack.c.l.b16 %v6162
    %v6292 = vunpack.c.l.b16 %v6163
    %v6293 = vunpack.c.l.b16 %v6164
    %v6294 = vunpack.c.l.b16 %v6165
    %v6295 = vunpack.c.l.b16 %v6166
    %v6296 = vunpack.c.l.b16 %v6167
    %v6297 = vunpack.c.l.b16 %v6168
    %v6298 = vunpack.c.l.b16 %v6169
    %v6299 = vpack.c.b16 %v6292, %v6291
    %v6300 = vpack.c.b16 %v6294, %v6293
    %v6301 = vpack.c.b16 %v6296, %v6295
    %v6302 = vpack.c.b16 %v6298, %v6297
    %v6308 = vsel %vm5761, %v6158, 0
    %v6311 = vsel %vm5761, %v6159, 0
    %v6314 = vsel %vm5761, %v6160, 0
    %v6317 = vsel %vm5761, %v6161, 0
    %6319 = vmatprep.subr.bf16.mxu0 0
    %6320 = vmatpush1.bf16.msra.mxu0 %v6299
    %6321 = vmatprep.subr.bf16.mxu0 0
    %6322 = vmatpush1.bf16.msra.mxu0 %v6300
    %6323 = vmatprep.subr.bf16.mxu0 0
    %6324 = vmatpush1.bf16.msra.mxu0 %v6301
    %6325 = vmatprep.subr.bf16.mxu0 0
    %6326 = vmatpush1.bf16.msra.mxu0 %v6302
    %6327 = vmatprep.subr.bf16.mxu0 0
    %6328 = vmatpush1.bf16.msra.mxu0 0
    %6329 = vmatprep.subr.bf16.mxu0 0
    %6330 = vmatpush1.bf16.msra.mxu0 0
    %6331 = vmatprep.subr.bf16.mxu0 0
    %6332 = vmatpush1.bf16.msra.mxu0 0
    %6333 = vmatprep.subr.bf16.mxu0 0
    %6334 = vmatpush1.bf16.msra.mxu0 0
    %6335 = vmatprep.subr.bf16.mxu0 0
    %6336 = vmatpush1.bf16.msra.mxu0 0
    %6337 = vmatprep.subr.bf16.mxu0 0
    %6338 = vmatpush1.bf16.msra.mxu0 0
    %6339 = vmatprep.subr.bf16.mxu0 0
    %6340 = vmatpush1.bf16.msra.mxu0 0
    %6341 = vmatprep.subr.bf16.mxu0 0
    %6342 = vmatpush1.bf16.msra.mxu0 0
    %6343 = vmatprep.subr.bf16.mxu0 0
    %6344 = vmatpush1.bf16.msra.mxu0 0
    %6345 = vmatprep.subr.bf16.mxu0 0
    %6346 = vmatpush1.bf16.msra.mxu0 0
    %6347 = vmatprep.subr.bf16.mxu0 0
    %6348 = vmatpush1.bf16.msra.mxu0 0
    %6349 = vmatprep.subr.bf16.mxu0 0
    %6350 = vmatpush1.bf16.msra.mxu0 0
    %6351 = vmatprep.mubr.bf16.mxu0 0
    %6352 = vmatmul.mubr.bf16.gmra.mrb[0].mxu0 %v6308
    %v6353 = vpop.f32.mrb[0].mxu0
    %v6354 = vadd.f32 %v6253, %v6353
    %v6355 = vpop.f32.mrb[0].mxu0
    %v6356 = vpop.f32.mrb[0].mxu0
    %v6357 = vadd.f32 %v6256, %v6356
    %v6358 = vpop.f32.mrb[0].mxu0
    %6359 = vmatprep.mubr.bf16.mxu0 0
    %6360 = vmatmul.mubr.bf16.gmra.mrb[0].mxu0 %v6311
    %v6361 = vpop.f32.mrb[0].mxu0
    %v6362 = vadd.f32 %v6261, %v6361
    %v6363 = vpop.f32.mrb[0].mxu0
    %v6364 = vpop.f32.mrb[0].mxu0
    %v6365 = vadd.f32 %v6264, %v6364
    %v6366 = vpop.f32.mrb[0].mxu0
    %6367 = vmatprep.mubr.bf16.mxu0 0
    %6368 = vmatmul.mubr.bf16.gmra.mrb[0].mxu0 %v6314
    %v6369 = vpop.f32.mrb[0].mxu0
    %v6370 = vadd.f32 %v6269, %v6369
    %v6371 = vpop.f32.mrb[0].mxu0
    %v6372 = vpop.f32.mrb[0].mxu0
    %v6373 = vadd.f32 %v6272, %v6372
    %v6374 = vpop.f32.mrb[0].mxu0
    %6375 = vmatprep.mubr.bf16.mxu0 0
    %6376 = vmatmul.mubr.bf16.gmra.mrb[0].mxu0 %v6317
    %v6377 = vpop.f32.mrb[0].mxu0
    %v6378 = vadd.f32 %v6277, %v6377
    %v6379 = vpop.f32.mrb[0].mxu0
    %v6380 = vpop.f32.mrb[0].mxu0
    %v6381 = vadd.f32 %v6280, %v6380
    %v6382 = vpop.f32.mrb[0].mxu0
    %6383 = vdwg.mxu0
    %v6384 = vpack.c.bf16 %v6151, %v6150
    %v6385 = vpack.c.bf16 %v6153, %v6152
    %v6386 = vpack.c.bf16 %v6155, %v6154
    %v6387 = vpack.c.bf16 %v6157, %v6156
    %v6388 = vld [vmem:[%s19] sm:$0xf]
    %v6389 = vld [vmem:[%s19 + $0x4] sm:$0xf]
    %v6390 = vld [vmem:[%s19 + $0x8] sm:$0xf]
    %v6391 = vld [vmem:[%s19 + $0xc] sm:$0xf]
    %v6392 = vld [vmem:[%s19 + $0x10] sm:$0xf]
    %v6393 = vld [vmem:[%s19 + $0x14] sm:$0xf]
    %v6394 = vld [vmem:[%s19 + $0x18] sm:$0xf]
    %v6395 = vld [vmem:[%s19 + $0x1c] sm:$0xf]
    %v6404 = vunpack.c.l.b16 %v6388
    %v6405 = vunpack.c.l.b16 %v6389
    %v6406 = vunpack.c.l.b16 %v6390
    %v6407 = vunpack.c.l.b16 %v6391
    %v6408 = vunpack.c.l.b16 %v6392
    %v6409 = vunpack.c.l.b16 %v6393
    %v6410 = vunpack.c.l.b16 %v6394
    %v6411 = vunpack.c.l.b16 %v6395
    %v6412 = vpack.c.b16 %v6405, %v6404
    %v6413 = vpack.c.b16 %v6407, %v6406
    %v6414 = vpack.c.b16 %v6409, %v6408
    %v6415 = vpack.c.b16 %v6411, %v6410
    %v6421 = vsel %vm5761, %v6384, 0
    %v6424 = vsel %vm5761, %v6385, 0
    %v6427 = vsel %vm5761, %v6386, 0
    %v6430 = vsel %vm5761, %v6387, 0
    %6432 = vmatprep.subr.bf16.mxu0 0
    %6433 = vmatpush1.bf16.msra.mxu0 %v6412
    %6434 = vmatprep.subr.bf16.mxu0 0
    %6435 = vmatpush1.bf16.msra.mxu0 %v6413
    %6436 = vmatprep.subr.bf16.mxu0 0
    %6437 = vmatpush1.bf16.msra.mxu0 %v6414
    %6438 = vmatprep.subr.bf16.mxu0 0
    %6439 = vmatpush1.bf16.msra.mxu0 %v6415
    %6440 = vmatprep.subr.bf16.mxu0 0
    %6441 = vmatpush1.bf16.msra.mxu0 0
    %6442 = vmatprep.subr.bf16.mxu0 0
    %6443 = vmatpush1.bf16.msra.mxu0 0
    %6444 = vmatprep.subr.bf16.mxu0 0
    %6445 = vmatpush1.bf16.msra.mxu0 0
    %6446 = vmatprep.subr.bf16.mxu0 0
    %6447 = vmatpush1.bf16.msra.mxu0 0
    %6448 = vmatprep.subr.bf16.mxu0 0
    %6449 = vmatpush1.bf16.msra.mxu0 0
    %6450 = vmatprep.subr.bf16.mxu0 0
    %6451 = vmatpush1.bf16.msra.mxu0 0
    %6452 = vmatprep.subr.bf16.mxu0 0
    %6453 = vmatpush1.bf16.msra.mxu0 0
    %6454 = vmatprep.subr.bf16.mxu0 0
    %6455 = vmatpush1.bf16.msra.mxu0 0
    %6456 = vmatprep.subr.bf16.mxu0 0
    %6457 = vmatpush1.bf16.msra.mxu0 0
    %6458 = vmatprep.subr.bf16.mxu0 0
    %6459 = vmatpush1.bf16.msra.mxu0 0
    %6460 = vmatprep.subr.bf16.mxu0 0
    %6461 = vmatpush1.bf16.msra.mxu0 0
    %6462 = vmatprep.subr.bf16.mxu0 0
    %6463 = vmatpush1.bf16.msra.mxu0 0
    %6464 = vmatprep.mubr.bf16.mxu0 0
    %6465 = vmatmul.mubr.bf16.gmra.mrb[0].mxu0 %v6421
    %v6466 = vpop.f32.mrb[0].mxu0
    %v6467 = vadd.f32 0.0, %v6466
    %v6468 = vpop.f32.mrb[0].mxu0
    %v6469 = vpop.f32.mrb[0].mxu0
    %v6470 = vadd.f32 0.0, %v6469
    %v6471 = vpop.f32.mrb[0].mxu0
    %6472 = vmatprep.mubr.bf16.mxu0 0
    %6473 = vmatmul.mubr.bf16.gmra.mrb[0].mxu0 %v6424
    %v6474 = vpop.f32.mrb[0].mxu0
    %v6475 = vadd.f32 0.0, %v6474
    %v6476 = vpop.f32.mrb[0].mxu0
    %v6477 = vpop.f32.mrb[0].mxu0
    %v6478 = vadd.f32 0.0, %v6477
    %v6479 = vpop.f32.mrb[0].mxu0
    %6480 = vmatprep.mubr.bf16.mxu0 0
    %6481 = vmatmul.mubr.bf16.gmra.mrb[0].mxu0 %v6427
    %v6482 = vpop.f32.mrb[0].mxu0
    %v6483 = vadd.f32 0.0, %v6482
    %v6484 = vpop.f32.mrb[0].mxu0
    %v6485 = vpop.f32.mrb[0].mxu0
    %v6486 = vadd.f32 0.0, %v6485
    %v6487 = vpop.f32.mrb[0].mxu0
    %6488 = vmatprep.mubr.bf16.mxu0 0
    %6489 = vmatmul.mubr.bf16.gmra.mrb[0].mxu0 %v6430
    %v6490 = vpop.f32.mrb[0].mxu0
    %v6491 = vadd.f32 0.0, %v6490
    %v6492 = vpop.f32.mrb[0].mxu0
    %v6493 = vpop.f32.mrb[0].mxu0
    %v6494 = vadd.f32 0.0, %v6493
    %v6495 = vpop.f32.mrb[0].mxu0
    %6496 = vdwg.mxu0
    %v6497 = vadd.f32 %v6354, %v6467
    %v6498 = vadd.f32 %v6357, %v6470
    %v6499 = vadd.f32 %v6362, %v6475
    %v6500 = vadd.f32 %v6365, %v6478
    %v6501 = vadd.f32 %v6370, %v6483
    %v6502 = vadd.f32 %v6373, %v6486
    %v6503 = vadd.f32 %v6378, %v6491
    %v6504 = vadd.f32 %v6381, %v6494
    %v6505 = vld [vmem:[%s20] sm:$0x1]
    %v6507 = vlaneseq
    %v6508 = vshrl.u32 %v6507, 7
    %v6509 = vsub.s32 0, %v6508
    %v6510 = vrot.slane %v6505, %v6509
    %v6512 = vadd.f32 %v6497, %v6510
    %v6513 = vadd.f32 %v6498, %v6510
    %v6514 = vadd.f32 %v6499, %v6510
    %v6515 = vadd.f32 %v6500, %v6510
    %v6516 = vadd.f32 %v6501, %v6510
    %v6517 = vadd.f32 %v6502, %v6510
    %v6518 = vadd.f32 %v6503, %v6510
    %v6519 = vadd.f32 %v6504, %v6510
    %v6520 = vmul.f32 %v6512, 0.33333334
    %v6521 = vmul.f32 %v6513, 0.33333334
    %v6522 = vmul.f32 %v6514, 0.33333334
    %v6523 = vmul.f32 %v6515, 0.33333334
    %v6524 = vmul.f32 %v6516, 0.33333334
    %v6525 = vmul.f32 %v6517, 0.33333334
    %v6526 = vmul.f32 %v6518, 0.33333334
    %v6527 = vmul.f32 %v6519, 0.33333334
    %v6528 = vadd.f32 %v5631, %v6520
    %v6529 = vadd.f32 %v5632, %v6521
    %v6530 = vadd.f32 %v5633, %v6522
    %v6531 = vadd.f32 %v5634, %v6523
    %v6532 = vadd.f32 %v5635, %v6524
    %v6533 = vadd.f32 %v5636, %v6525
    %v6534 = vadd.f32 %v5637, %v6526
    %v6535 = vadd.f32 %v5638, %v6527
    %v6537 = vrot.slane %v6535, 7
    %v6546 = vrot.slane %v6528, 7
    %v6547 = vrot.slane %v6529, 7
    %v6548 = vsel %vm342, %v6546, %v6547
    %v6549 = vrot.slane %v6530, 7
    %v6550 = vsel %vm342, %v6547, %v6549
    %v6551 = vrot.slane %v6531, 7
    %v6552 = vsel %vm342, %v6549, %v6551
    %v6553 = vrot.slane %v6532, 7
    %v6554 = vsel %vm342, %v6551, %v6553
    %v6555 = vrot.slane %v6533, 7
    %v6556 = vsel %vm342, %v6553, %v6555
    %v6557 = vrot.slane %v6534, 7
    %v6558 = vsel %vm342, %v6555, %v6557
    %v6559 = vsel %vm342, %v6557, %v6537
    %v6568 = vsel %vm342, %v6537, %v6546
    %v6569 = vmul.f32 %v6568, %v276
    %v6570 = vmul.f32 %v6548, %v277
    %v6571 = vmul.f32 %v6550, %v278
    %v6572 = vmul.f32 %v6552, %v279
    %v6573 = vmul.f32 %v6554, %v280
    %v6574 = vmul.f32 %v6556, %v281
    %v6575 = vmul.f32 %v6558, %v282
    %v6576 = vmul.f32 %v6559, %v283
    %v6577 = vrot.slane %v6528, 1
    %v6578 = vrot.slane %v6529, 1
    %v6579 = vsel %vm406, %v6577, %v6578
    %v6580 = vrot.slane %v6530, 1
    %v6581 = vsel %vm406, %v6578, %v6580
    %v6582 = vrot.slane %v6531, 1
    %v6583 = vsel %vm406, %v6580, %v6582
    %v6584 = vrot.slane %v6532, 1
    %v6585 = vsel %vm406, %v6582, %v6584
    %v6586 = vrot.slane %v6533, 1
    %v6587 = vsel %vm406, %v6584, %v6586
    %v6588 = vrot.slane %v6534, 1
    %v6589 = vsel %vm406, %v6586, %v6588
    %v6590 = vrot.slane %v6535, 1
    %v6591 = vsel %vm406, %v6588, %v6590
    %v6601 = vsel %vm406, %v6590, %v6577
    %v6602 = vmul.f32 %v6579, %v300
    %v6603 = vmul.f32 %v6581, %v301
    %v6604 = vmul.f32 %v6583, %v302
    %v6605 = vmul.f32 %v6585, %v303
    %v6606 = vmul.f32 %v6587, %v304
    %v6607 = vmul.f32 %v6589, %v305
    %v6608 = vmul.f32 %v6591, %v306
    %v6609 = vmul.f32 %v6601, %v307
    %v6610 = vpack.c.bf16 %v6529, %v6528
    %v6611 = vpack.c.bf16 %v6531, %v6530
    %v6612 = vpack.c.bf16 %v6533, %v6532
    %v6613 = vpack.c.bf16 %v6535, %v6534
    %v6614 = vpack.c.bf16 %v6570, %v6569
    %v6615 = vpack.c.bf16 %v6572, %v6571
    %v6616 = vpack.c.bf16 %v6574, %v6573
    %v6617 = vpack.c.bf16 %v6576, %v6575
    %v6619 = vsel %vm5761, %v6614, 0
    %v6622 = vsel %vm5761, %v6615, 0
    %v6625 = vsel %vm5761, %v6616, 0
    %v6628 = vsel %vm5761, %v6617, 0
    %6630 = vmatprep.subr.bf16.mxu0 0
    %6631 = vmatpush1.bf16.msra.mxu0 %v5753
    %6632 = vmatprep.subr.bf16.mxu0 0
    %6633 = vmatpush1.bf16.msra.mxu0 %v5754
    %6634 = vmatprep.subr.bf16.mxu0 0
    %6635 = vmatpush1.bf16.msra.mxu0 %v5755
    %6636 = vmatprep.subr.bf16.mxu0 0
    %6637 = vmatpush1.bf16.msra.mxu0 %v5756
    %6638 = vmatprep.subr.bf16.mxu0 0
    %6639 = vmatpush1.bf16.msra.mxu0 0
    %6640 = vmatprep.subr.bf16.mxu0 0
    %6641 = vmatpush1.bf16.msra.mxu0 0
    %6642 = vmatprep.subr.bf16.mxu0 0
    %6643 = vmatpush1.bf16.msra.mxu0 0
    %6644 = vmatprep.subr.bf16.mxu0 0
    %6645 = vmatpush1.bf16.msra.mxu0 0
    %6646 = vmatprep.subr.bf16.mxu0 0
    %6647 = vmatpush1.bf16.msra.mxu0 0
    %6648 = vmatprep.subr.bf16.mxu0 0
    %6649 = vmatpush1.bf16.msra.mxu0 0
    %6650 = vmatprep.subr.bf16.mxu0 0
    %6651 = vmatpush1.bf16.msra.mxu0 0
    %6652 = vmatprep.subr.bf16.mxu0 0
    %6653 = vmatpush1.bf16.msra.mxu0 0
    %6654 = vmatprep.subr.bf16.mxu0 0
    %6655 = vmatpush1.bf16.msra.mxu0 0
    %6656 = vmatprep.subr.bf16.mxu0 0
    %6657 = vmatpush1.bf16.msra.mxu0 0
    %6658 = vmatprep.subr.bf16.mxu0 0
    %6659 = vmatpush1.bf16.msra.mxu0 0
    %6660 = vmatprep.subr.bf16.mxu0 0
    %6661 = vmatpush1.bf16.msra.mxu0 0
    %6662 = vmatprep.mubr.bf16.mxu0 0
    %6663 = vmatmul.mubr.bf16.gmra.mrb[0].mxu0 %v6619
    %v6664 = vpop.f32.mrb[0].mxu0
    %v6665 = vadd.f32 0.0, %v6664
    %v6666 = vpop.f32.mrb[0].mxu0
    %v6667 = vpop.f32.mrb[0].mxu0
    %v6668 = vadd.f32 0.0, %v6667
    %v6669 = vpop.f32.mrb[0].mxu0
    %6670 = vmatprep.mubr.bf16.mxu0 0
    %6671 = vmatmul.mubr.bf16.gmra.mrb[0].mxu0 %v6622
    %v6672 = vpop.f32.mrb[0].mxu0
    %v6673 = vadd.f32 0.0, %v6672
    %v6674 = vpop.f32.mrb[0].mxu0
    %v6675 = vpop.f32.mrb[0].mxu0
    %v6676 = vadd.f32 0.0, %v6675
    %v6677 = vpop.f32.mrb[0].mxu0
    %6678 = vmatprep.mubr.bf16.mxu0 0
    %6679 = vmatmul.mubr.bf16.gmra.mrb[0].mxu0 %v6625
    %v6680 = vpop.f32.mrb[0].mxu0
    %v6681 = vadd.f32 0.0, %v6680
    %v6682 = vpop.f32.mrb[0].mxu0
    %v6683 = vpop.f32.mrb[0].mxu0
    %v6684 = vadd.f32 0.0, %v6683
    %v6685 = vpop.f32.mrb[0].mxu0
    %6686 = vmatprep.mubr.bf16.mxu0 0
    %6687 = vmatmul.mubr.bf16.gmra.mrb[0].mxu0 %v6628
    %v6688 = vpop.f32.mrb[0].mxu0
    %v6689 = vadd.f32 0.0, %v6688
    %v6690 = vpop.f32.mrb[0].mxu0
    %v6691 = vpop.f32.mrb[0].mxu0
    %v6692 = vadd.f32 0.0, %v6691
    %v6693 = vpop.f32.mrb[0].mxu0
    %6694 = vdwg.mxu0
    %v6696 = vsel %vm5761, %v6610, 0
    %v6699 = vsel %vm5761, %v6611, 0
    %v6702 = vsel %vm5761, %v6612, 0
    %v6705 = vsel %vm5761, %v6613, 0
    %6707 = vmatprep.subr.bf16.mxu0 0
    %6708 = vmatpush1.bf16.msra.mxu0 %v5855
    %6709 = vmatprep.subr.bf16.mxu0 0
    %6710 = vmatpush1.bf16.msra.mxu0 %v5856
    %6711 = vmatprep.subr.bf16.mxu0 0
    %6712 = vmatpush1.bf16.msra.mxu0 %v5857
    %6713 = vmatprep.subr.bf16.mxu0 0
    %6714 = vmatpush1.bf16.msra.mxu0 %v5858
    %6715 = vmatprep.subr.bf16.mxu0 0
    %6716 = vmatpush1.bf16.msra.mxu0 0
    %6717 = vmatprep.subr.bf16.mxu0 0
    %6718 = vmatpush1.bf16.msra.mxu0 0
    %6719 = vmatprep.subr.bf16.mxu0 0
    %6720 = vmatpush1.bf16.msra.mxu0 0
    %6721 = vmatprep.subr.bf16.mxu0 0
    %6722 = vmatpush1.bf16.msra.mxu0 0
    %6723 = vmatprep.subr.bf16.mxu0 0
    %6724 = vmatpush1.bf16.msra.mxu0 0
    %6725 = vmatprep.subr.bf16.mxu0 0
    %6726 = vmatpush1.bf16.msra.mxu0 0
    %6727 = vmatprep.subr.bf16.mxu0 0
    %6728 = vmatpush1.bf16.msra.mxu0 0
    %6729 = vmatprep.subr.bf16.mxu0 0
    %6730 = vmatpush1.bf16.msra.mxu0 0
    %6731 = vmatprep.subr.bf16.mxu0 0
    %6732 = vmatpush1.bf16.msra.mxu0 0
    %6733 = vmatprep.subr.bf16.mxu0 0
    %6734 = vmatpush1.bf16.msra.mxu0 0
    %6735 = vmatprep.subr.bf16.mxu0 0
    %6736 = vmatpush1.bf16.msra.mxu0 0
    %6737 = vmatprep.subr.bf16.mxu0 0
    %6738 = vmatpush1.bf16.msra.mxu0 0
    %6739 = vmatprep.mubr.bf16.mxu0 0
    %6740 = vmatmul.mubr.bf16.gmra.mrb[0].mxu0 %v6696
    %v6741 = vpop.f32.mrb[0].mxu0
    %v6742 = vadd.f32 %v6665, %v6741
    %v6743 = vpop.f32.mrb[0].mxu0
    %v6744 = vpop.f32.mrb[0].mxu0
    %v6745 = vadd.f32 %v6668, %v6744
    %v6746 = vpop.f32.mrb[0].mxu0
    %6747 = vmatprep.mubr.bf16.mxu0 0
    %6748 = vmatmul.mubr.bf16.gmra.mrb[0].mxu0 %v6699
    %v6749 = vpop.f32.mrb[0].mxu0
    %v6750 = vadd.f32 %v6673, %v6749
    %v6751 = vpop.f32.mrb[0].mxu0
    %v6752 = vpop.f32.mrb[0].mxu0
    %v6753 = vadd.f32 %v6676, %v6752
    %v6754 = vpop.f32.mrb[0].mxu0
    %6755 = vmatprep.mubr.bf16.mxu0 0
    %6756 = vmatmul.mubr.bf16.gmra.mrb[0].mxu0 %v6702
    %v6757 = vpop.f32.mrb[0].mxu0
    %v6758 = vadd.f32 %v6681, %v6757
    %v6759 = vpop.f32.mrb[0].mxu0
    %v6760 = vpop.f32.mrb[0].mxu0
    %v6761 = vadd.f32 %v6684, %v6760
    %v6762 = vpop.f32.mrb[0].mxu0
    %6763 = vmatprep.mubr.bf16.mxu0 0
    %6764 = vmatmul.mubr.bf16.gmra.mrb[0].mxu0 %v6705
    %v6765 = vpop.f32.mrb[0].mxu0
    %v6766 = vadd.f32 %v6689, %v6765
    %v6767 = vpop.f32.mrb[0].mxu0
    %v6768 = vpop.f32.mrb[0].mxu0
    %v6769 = vadd.f32 %v6692, %v6768
    %v6770 = vpop.f32.mrb[0].mxu0
    %6771 = vdwg.mxu0
    %v6772 = vpack.c.bf16 %v6603, %v6602
    %v6773 = vpack.c.bf16 %v6605, %v6604
    %v6774 = vpack.c.bf16 %v6607, %v6606
    %v6775 = vpack.c.bf16 %v6609, %v6608
    %v6777 = vsel %vm5761, %v6772, 0
    %v6780 = vsel %vm5761, %v6773, 0
    %v6783 = vsel %vm5761, %v6774, 0
    %v6786 = vsel %vm5761, %v6775, 0
    %6788 = vmatprep.subr.bf16.mxu0 0
    %6789 = vmatpush1.bf16.msra.mxu0 %v5968
    %6790 = vmatprep.subr.bf16.mxu0 0
    %6791 = vmatpush1.bf16.msra.mxu0 %v5969
    %6792 = vmatprep.subr.bf16.mxu0 0
    %6793 = vmatpush1.bf16.msra.mxu0 %v5970
    %6794 = vmatprep.subr.bf16.mxu0 0
    %6795 = vmatpush1.bf16.msra.mxu0 %v5971
    %6796 = vmatprep.subr.bf16.mxu0 0
    %6797 = vmatpush1.bf16.msra.mxu0 0
    %6798 = vmatprep.subr.bf16.mxu0 0
    %6799 = vmatpush1.bf16.msra.mxu0 0
    %6800 = vmatprep.subr.bf16.mxu0 0
    %6801 = vmatpush1.bf16.msra.mxu0 0
    %6802 = vmatprep.subr.bf16.mxu0 0
    %6803 = vmatpush1.bf16.msra.mxu0 0
    %6804 = vmatprep.subr.bf16.mxu0 0
    %6805 = vmatpush1.bf16.msra.mxu0 0
    %6806 = vmatprep.subr.bf16.mxu0 0
    %6807 = vmatpush1.bf16.msra.mxu0 0
    %6808 = vmatprep.subr.bf16.mxu0 0
    %6809 = vmatpush1.bf16.msra.mxu0 0
    %6810 = vmatprep.subr.bf16.mxu0 0
    %6811 = vmatpush1.bf16.msra.mxu0 0
    %6812 = vmatprep.subr.bf16.mxu0 0
    %6813 = vmatpush1.bf16.msra.mxu0 0
    %6814 = vmatprep.subr.bf16.mxu0 0
    %6815 = vmatpush1.bf16.msra.mxu0 0
    %6816 = vmatprep.subr.bf16.mxu0 0
    %6817 = vmatpush1.bf16.msra.mxu0 0
    %6818 = vmatprep.subr.bf16.mxu0 0
    %6819 = vmatpush1.bf16.msra.mxu0 0
    %6820 = vmatprep.mubr.bf16.mxu0 0
    %6821 = vmatmul.mubr.bf16.gmra.mrb[0].mxu0 %v6777
    %v6822 = vpop.f32.mrb[0].mxu0
    %v6823 = vadd.f32 0.0, %v6822
    %v6824 = vpop.f32.mrb[0].mxu0
    %v6825 = vpop.f32.mrb[0].mxu0
    %v6826 = vadd.f32 0.0, %v6825
    %v6827 = vpop.f32.mrb[0].mxu0
    %6828 = vmatprep.mubr.bf16.mxu0 0
    %6829 = vmatmul.mubr.bf16.gmra.mrb[0].mxu0 %v6780
    %v6830 = vpop.f32.mrb[0].mxu0
    %v6831 = vadd.f32 0.0, %v6830
    %v6832 = vpop.f32.mrb[0].mxu0
    %v6833 = vpop.f32.mrb[0].mxu0
    %v6834 = vadd.f32 0.0, %v6833
    %v6835 = vpop.f32.mrb[0].mxu0
    %6836 = vmatprep.mubr.bf16.mxu0 0
    %6837 = vmatmul.mubr.bf16.gmra.mrb[0].mxu0 %v6783
    %v6838 = vpop.f32.mrb[0].mxu0
    %v6839 = vadd.f32 0.0, %v6838
    %v6840 = vpop.f32.mrb[0].mxu0
    %v6841 = vpop.f32.mrb[0].mxu0
    %v6842 = vadd.f32 0.0, %v6841
    %v6843 = vpop.f32.mrb[0].mxu0
    %6844 = vmatprep.mubr.bf16.mxu0 0
    %6845 = vmatmul.mubr.bf16.gmra.mrb[0].mxu0 %v6786
    %v6846 = vpop.f32.mrb[0].mxu0
    %v6847 = vadd.f32 0.0, %v6846
    %v6848 = vpop.f32.mrb[0].mxu0
    %v6849 = vpop.f32.mrb[0].mxu0
    %v6850 = vadd.f32 0.0, %v6849
    %v6851 = vpop.f32.mrb[0].mxu0
    %6852 = vdwg.mxu0
    %v6853 = vadd.f32 %v6742, %v6823
    %v6854 = vadd.f32 %v6745, %v6826
    %v6855 = vadd.f32 %v6750, %v6831
    %v6856 = vadd.f32 %v6753, %v6834
    %v6857 = vadd.f32 %v6758, %v6839
    %v6858 = vadd.f32 %v6761, %v6842
    %v6859 = vadd.f32 %v6766, %v6847
    %v6860 = vadd.f32 %v6769, %v6850
    %v6861 = vadd.f32 %v6853, %v6066
    %v6862 = vadd.f32 %v6854, %v6066
    %v6863 = vadd.f32 %v6855, %v6066
    %v6864 = vadd.f32 %v6856, %v6066
    %v6865 = vadd.f32 %v6857, %v6066
    %v6866 = vadd.f32 %v6858, %v6066
    %v6867 = vadd.f32 %v6859, %v6066
    %v6868 = vadd.f32 %v6860, %v6066
    %v6869 = vmax.f32 %v6861, 0.0
    %v6870 = vmax.f32 %v6862, 0.0
    %v6871 = vmax.f32 %v6863, 0.0
    %v6872 = vmax.f32 %v6864, 0.0
    %v6873 = vmax.f32 %v6865, 0.0
    %v6874 = vmax.f32 %v6866, 0.0
    %v6875 = vmax.f32 %v6867, 0.0
    %v6876 = vmax.f32 %v6868, 0.0
    %v6878 = vrot.slane %v6876, 7
    %v6887 = vrot.slane %v6869, 7
    %v6888 = vrot.slane %v6870, 7
    %v6889 = vsel %vm342, %v6887, %v6888
    %v6890 = vrot.slane %v6871, 7
    %v6891 = vsel %vm342, %v6888, %v6890
    %v6892 = vrot.slane %v6872, 7
    %v6893 = vsel %vm342, %v6890, %v6892
    %v6894 = vrot.slane %v6873, 7
    %v6895 = vsel %vm342, %v6892, %v6894
    %v6896 = vrot.slane %v6874, 7
    %v6897 = vsel %vm342, %v6894, %v6896
    %v6898 = vrot.slane %v6875, 7
    %v6899 = vsel %vm342, %v6896, %v6898
    %v6900 = vsel %vm342, %v6898, %v6878
    %v6909 = vsel %vm342, %v6878, %v6887
    %v6910 = vmul.f32 %v6909, %v276
    %v6911 = vmul.f32 %v6889, %v277
    %v6912 = vmul.f32 %v6891, %v278
    %v6913 = vmul.f32 %v6893, %v279
    %v6914 = vmul.f32 %v6895, %v280
    %v6915 = vmul.f32 %v6897, %v281
    %v6916 = vmul.f32 %v6899, %v282
    %v6917 = vmul.f32 %v6900, %v283
    %v6918 = vrot.slane %v6869, 1
    %v6919 = vrot.slane %v6870, 1
    %v6920 = vsel %vm406, %v6918, %v6919
    %v6921 = vrot.slane %v6871, 1
    %v6922 = vsel %vm406, %v6919, %v6921
    %v6923 = vrot.slane %v6872, 1
    %v6924 = vsel %vm406, %v6921, %v6923
    %v6925 = vrot.slane %v6873, 1
    %v6926 = vsel %vm406, %v6923, %v6925
    %v6927 = vrot.slane %v6874, 1
    %v6928 = vsel %vm406, %v6925, %v6927
    %v6929 = vrot.slane %v6875, 1
    %v6930 = vsel %vm406, %v6927, %v6929
    %v6931 = vrot.slane %v6876, 1
    %v6932 = vsel %vm406, %v6929, %v6931
    %v6942 = vsel %vm406, %v6931, %v6918
    %v6943 = vmul.f32 %v6920, %v300
    %v6944 = vmul.f32 %v6922, %v301
    %v6945 = vmul.f32 %v6924, %v302
    %v6946 = vmul.f32 %v6926, %v303
    %v6947 = vmul.f32 %v6928, %v304
    %v6948 = vmul.f32 %v6930, %v305
    %v6949 = vmul.f32 %v6932, %v306
    %v6950 = vmul.f32 %v6942, %v307
    %v6951 = vpack.c.bf16 %v6870, %v6869
    %v6952 = vpack.c.bf16 %v6872, %v6871
    %v6953 = vpack.c.bf16 %v6874, %v6873
    %v6954 = vpack.c.bf16 %v6876, %v6875
    %v6955 = vpack.c.bf16 %v6911, %v6910
    %v6956 = vpack.c.bf16 %v6913, %v6912
    %v6957 = vpack.c.bf16 %v6915, %v6914
    %v6958 = vpack.c.bf16 %v6917, %v6916
    %v6960 = vsel %vm5761, %v6955, 0
    %v6963 = vsel %vm5761, %v6956, 0
    %v6966 = vsel %vm5761, %v6957, 0
    %v6969 = vsel %vm5761, %v6958, 0
    %6971 = vmatprep.subr.bf16.mxu0 0
    %6972 = vmatpush1.bf16.msra.mxu0 %v6198
    %6973 = vmatprep.subr.bf16.mxu0 0
    %6974 = vmatpush1.bf16.msra.mxu0 %v6199
    %6975 = vmatprep.subr.bf16.mxu0 0
    %6976 = vmatpush1.bf16.msra.mxu0 %v6200
    %6977 = vmatprep.subr.bf16.mxu0 0
    %6978 = vmatpush1.bf16.msra.mxu0 %v6201
    %6979 = vmatprep.subr.bf16.mxu0 0
    %6980 = vmatpush1.bf16.msra.mxu0 0
    %6981 = vmatprep.subr.bf16.mxu0 0
    %6982 = vmatpush1.bf16.msra.mxu0 0
    %6983 = vmatprep.subr.bf16.mxu0 0
    %6984 = vmatpush1.bf16.msra.mxu0 0
    %6985 = vmatprep.subr.bf16.mxu0 0
    %6986 = vmatpush1.bf16.msra.mxu0 0
    %6987 = vmatprep.subr.bf16.mxu0 0
    %6988 = vmatpush1.bf16.msra.mxu0 0
    %6989 = vmatprep.subr.bf16.mxu0 0
    %6990 = vmatpush1.bf16.msra.mxu0 0
    %6991 = vmatprep.subr.bf16.mxu0 0
    %6992 = vmatpush1.bf16.msra.mxu0 0
    %6993 = vmatprep.subr.bf16.mxu0 0
    %6994 = vmatpush1.bf16.msra.mxu0 0
    %6995 = vmatprep.subr.bf16.mxu0 0
    %6996 = vmatpush1.bf16.msra.mxu0 0
    %6997 = vmatprep.subr.bf16.mxu0 0
    %6998 = vmatpush1.bf16.msra.mxu0 0
    %6999 = vmatprep.subr.bf16.mxu0 0
    %7000 = vmatpush1.bf16.msra.mxu0 0
    %7001 = vmatprep.subr.bf16.mxu0 0
    %7002 = vmatpush1.bf16.msra.mxu0 0
    %7003 = vmatprep.mubr.bf16.mxu0 0
    %7004 = vmatmul.mubr.bf16.gmra.mrb[0].mxu0 %v6960
    %v7005 = vpop.f32.mrb[0].mxu0
    %v7006 = vadd.f32 0.0, %v7005
    %v7007 = vpop.f32.mrb[0].mxu0
    %v7008 = vpop.f32.mrb[0].mxu0
    %v7009 = vadd.f32 0.0, %v7008
    %v7010 = vpop.f32.mrb[0].mxu0
    %7011 = vmatprep.mubr.bf16.mxu0 0
    %7012 = vmatmul.mubr.bf16.gmra.mrb[0].mxu0 %v6963
    %v7013 = vpop.f32.mrb[0].mxu0
    %v7014 = vadd.f32 0.0, %v7013
    %v7015 = vpop.f32.mrb[0].mxu0
    %v7016 = vpop.f32.mrb[0].mxu0
    %v7017 = vadd.f32 0.0, %v7016
    %v7018 = vpop.f32.mrb[0].mxu0
    %7019 = vmatprep.mubr.bf16.mxu0 0
    %7020 = vmatmul.mubr.bf16.gmra.mrb[0].mxu0 %v6966
    %v7021 = vpop.f32.mrb[0].mxu0
    %v7022 = vadd.f32 0.0, %v7021
    %v7023 = vpop.f32.mrb[0].mxu0
    %v7024 = vpop.f32.mrb[0].mxu0
    %v7025 = vadd.f32 0.0, %v7024
    %v7026 = vpop.f32.mrb[0].mxu0
    %7027 = vmatprep.mubr.bf16.mxu0 0
    %7028 = vmatmul.mubr.bf16.gmra.mrb[0].mxu0 %v6969
    %v7029 = vpop.f32.mrb[0].mxu0
    %v7030 = vadd.f32 0.0, %v7029
    %v7031 = vpop.f32.mrb[0].mxu0
    %v7032 = vpop.f32.mrb[0].mxu0
    %v7033 = vadd.f32 0.0, %v7032
    %v7034 = vpop.f32.mrb[0].mxu0
    %7035 = vdwg.mxu0
    %v7037 = vsel %vm5761, %v6951, 0
    %v7040 = vsel %vm5761, %v6952, 0
    %v7043 = vsel %vm5761, %v6953, 0
    %v7046 = vsel %vm5761, %v6954, 0
    %7048 = vmatprep.subr.bf16.mxu0 0
    %7049 = vmatpush1.bf16.msra.mxu0 %v6299
    %7050 = vmatprep.subr.bf16.mxu0 0
    %7051 = vmatpush1.bf16.msra.mxu0 %v6300
    %7052 = vmatprep.subr.bf16.mxu0 0
    %7053 = vmatpush1.bf16.msra.mxu0 %v6301
    %7054 = vmatprep.subr.bf16.mxu0 0
    %7055 = vmatpush1.bf16.msra.mxu0 %v6302
    %7056 = vmatprep.subr.bf16.mxu0 0
    %7057 = vmatpush1.bf16.msra.mxu0 0
    %7058 = vmatprep.subr.bf16.mxu0 0
    %7059 = vmatpush1.bf16.msra.mxu0 0
    %7060 = vmatprep.subr.bf16.mxu0 0
    %7061 = vmatpush1.bf16.msra.mxu0 0
    %7062 = vmatprep.subr.bf16.mxu0 0
    %7063 = vmatpush1.bf16.msra.mxu0 0
    %7064 = vmatprep.subr.bf16.mxu0 0
    %7065 = vmatpush1.bf16.msra.mxu0 0
    %7066 = vmatprep.subr.bf16.mxu0 0
    %7067 = vmatpush1.bf16.msra.mxu0 0
    %7068 = vmatprep.subr.bf16.mxu0 0
    %7069 = vmatpush1.bf16.msra.mxu0 0
    %7070 = vmatprep.subr.bf16.mxu0 0
    %7071 = vmatpush1.bf16.msra.mxu0 0
    %7072 = vmatprep.subr.bf16.mxu0 0
    %7073 = vmatpush1.bf16.msra.mxu0 0
    %7074 = vmatprep.subr.bf16.mxu0 0
    %7075 = vmatpush1.bf16.msra.mxu0 0
    %7076 = vmatprep.subr.bf16.mxu0 0
    %7077 = vmatpush1.bf16.msra.mxu0 0
    %7078 = vmatprep.subr.bf16.mxu0 0
    %7079 = vmatpush1.bf16.msra.mxu0 0
    %7080 = vmatprep.mubr.bf16.mxu0 0
    %7081 = vmatmul.mubr.bf16.gmra.mrb[0].mxu0 %v7037
    %v7082 = vpop.f32.mrb[0].mxu0
    %v7083 = vadd.f32 %v7006, %v7082
    %v7084 = vpop.f32.mrb[0].mxu0
    %v7085 = vpop.f32.mrb[0].mxu0
    %v7086 = vadd.f32 %v7009, %v7085
    %v7087 = vpop.f32.mrb[0].mxu0
    %7088 = vmatprep.mubr.bf16.mxu0 0
    %7089 = vmatmul.mubr.bf16.gmra.mrb[0].mxu0 %v7040
    %v7090 = vpop.f32.mrb[0].mxu0
    %v7091 = vadd.f32 %v7014, %v7090
    %v7092 = vpop.f32.mrb[0].mxu0
    %v7093 = vpop.f32.mrb[0].mxu0
    %v7094 = vadd.f32 %v7017, %v7093
    %v7095 = vpop.f32.mrb[0].mxu0
    %7096 = vmatprep.mubr.bf16.mxu0 0
    %7097 = vmatmul.mubr.bf16.gmra.mrb[0].mxu0 %v7043
    %v7098 = vpop.f32.mrb[0].mxu0
    %v7099 = vadd.f32 %v7022, %v7098
    %v7100 = vpop.f32.mrb[0].mxu0
    %v7101 = vpop.f32.mrb[0].mxu0
    %v7102 = vadd.f32 %v7025, %v7101
    %v7103 = vpop.f32.mrb[0].mxu0
    %7104 = vmatprep.mubr.bf16.mxu0 0
    %7105 = vmatmul.mubr.bf16.gmra.mrb[0].mxu0 %v7046
    %v7106 = vpop.f32.mrb[0].mxu0
    %v7107 = vadd.f32 %v7030, %v7106
    %v7108 = vpop.f32.mrb[0].mxu0
    %v7109 = vpop.f32.mrb[0].mxu0
    %v7110 = vadd.f32 %v7033, %v7109
    %v7111 = vpop.f32.mrb[0].mxu0
    %7112 = vdwg.mxu0
    %v7113 = vpack.c.bf16 %v6944, %v6943
    %v7114 = vpack.c.bf16 %v6946, %v6945
    %v7115 = vpack.c.bf16 %v6948, %v6947
    %v7116 = vpack.c.bf16 %v6950, %v6949
    %v7118 = vsel %vm5761, %v7113, 0
    %v7121 = vsel %vm5761, %v7114, 0
    %v7124 = vsel %vm5761, %v7115, 0
    %v7127 = vsel %vm5761, %v7116, 0
    %7129 = vmatprep.subr.bf16.mxu0 0
    %7130 = vmatpush1.bf16.msra.mxu0 %v6412
    %7131 = vmatprep.subr.bf16.mxu0 0
    %7132 = vmatpush1.bf16.msra.mxu0 %v6413
    %7133 = vmatprep.subr.bf16.mxu0 0
    %7134 = vmatpush1.bf16.msra.mxu0 %v6414
    %7135 = vmatprep.subr.bf16.mxu0 0
    %7136 = vmatpush1.bf16.msra.mxu0 %v6415
    %7137 = vmatprep.subr.bf16.mxu0 0
    %7138 = vmatpush1.bf16.msra.mxu0 0
    %7139 = vmatprep.subr.bf16.mxu0 0
    %7140 = vmatpush1.bf16.msra.mxu0 0
    %7141 = vmatprep.subr.bf16.mxu0 0
    %7142 = vmatpush1.bf16.msra.mxu0 0
    %7143 = vmatprep.subr.bf16.mxu0 0
    %7144 = vmatpush1.bf16.msra.mxu0 0
    %7145 = vmatprep.subr.bf16.mxu0 0
    %7146 = vmatpush1.bf16.msra.mxu0 0
    %7147 = vmatprep.subr.bf16.mxu0 0
    %7148 = vmatpush1.bf16.msra.mxu0 0
    %7149 = vmatprep.subr.bf16.mxu0 0
    %7150 = vmatpush1.bf16.msra.mxu0 0
    %7151 = vmatprep.subr.bf16.mxu0 0
    %7152 = vmatpush1.bf16.msra.mxu0 0
    %7153 = vmatprep.subr.bf16.mxu0 0
    %7154 = vmatpush1.bf16.msra.mxu0 0
    %7155 = vmatprep.subr.bf16.mxu0 0
    %7156 = vmatpush1.bf16.msra.mxu0 0
    %7157 = vmatprep.subr.bf16.mxu0 0
    %7158 = vmatpush1.bf16.msra.mxu0 0
    %7159 = vmatprep.subr.bf16.mxu0 0
    %7160 = vmatpush1.bf16.msra.mxu0 0
    %7161 = vmatprep.mubr.bf16.mxu0 0
    %7162 = vmatmul.mubr.bf16.gmra.mrb[0].mxu0 %v7118
    %v7163 = vpop.f32.mrb[0].mxu0
    %v7164 = vadd.f32 0.0, %v7163
    %v7165 = vpop.f32.mrb[0].mxu0
    %v7166 = vpop.f32.mrb[0].mxu0
    %v7167 = vadd.f32 0.0, %v7166
    %v7168 = vpop.f32.mrb[0].mxu0
    %7169 = vmatprep.mubr.bf16.mxu0 0
    %7170 = vmatmul.mubr.bf16.gmra.mrb[0].mxu0 %v7121
    %v7171 = vpop.f32.mrb[0].mxu0
    %v7172 = vadd.f32 0.0, %v7171
    %v7173 = vpop.f32.mrb[0].mxu0
    %v7174 = vpop.f32.mrb[0].mxu0
    %v7175 = vadd.f32 0.0, %v7174
    %v7176 = vpop.f32.mrb[0].mxu0
    %7177 = vmatprep.mubr.bf16.mxu0 0
    %7178 = vmatmul.mubr.bf16.gmra.mrb[0].mxu0 %v7124
    %v7179 = vpop.f32.mrb[0].mxu0
    %v7180 = vadd.f32 0.0, %v7179
    %v7181 = vpop.f32.mrb[0].mxu0
    %v7182 = vpop.f32.mrb[0].mxu0
    %v7183 = vadd.f32 0.0, %v7182
    %v7184 = vpop.f32.mrb[0].mxu0
    %7185 = vmatprep.mubr.bf16.mxu0 0
    %7186 = vmatmul.mubr.bf16.gmra.mrb[0].mxu0 %v7127
    %v7187 = vpop.f32.mrb[0].mxu0
    %v7188 = vadd.f32 0.0, %v7187
    %v7189 = vpop.f32.mrb[0].mxu0
    %v7190 = vpop.f32.mrb[0].mxu0
    %v7191 = vadd.f32 0.0, %v7190
    %v7192 = vpop.f32.mrb[0].mxu0
    %7193 = vdwg.mxu0
    %v7194 = vadd.f32 %v7083, %v7164
    %v7195 = vadd.f32 %v7086, %v7167
    %v7196 = vadd.f32 %v7091, %v7172
    %v7197 = vadd.f32 %v7094, %v7175
    %v7198 = vadd.f32 %v7099, %v7180
    %v7199 = vadd.f32 %v7102, %v7183
    %v7200 = vadd.f32 %v7107, %v7188
    %v7201 = vadd.f32 %v7110, %v7191
    %v7202 = vadd.f32 %v7194, %v6510
    %v7203 = vadd.f32 %v7195, %v6510
    %v7204 = vadd.f32 %v7196, %v6510
    %v7205 = vadd.f32 %v7197, %v6510
    %v7206 = vadd.f32 %v7198, %v6510
    %v7207 = vadd.f32 %v7199, %v6510
    %v7208 = vadd.f32 %v7200, %v6510
    %v7209 = vadd.f32 %v7201, %v6510
    %v7210 = vsub.f32 %v7202, %v6520
    %v7211 = vsub.f32 %v7203, %v6521
    %v7212 = vsub.f32 %v7204, %v6522
    %v7213 = vsub.f32 %v7205, %v6523
    %v7214 = vsub.f32 %v7206, %v6524
    %v7215 = vsub.f32 %v7207, %v6525
    %v7216 = vsub.f32 %v7208, %v6526
    %v7217 = vsub.f32 %v7209, %v6527
    %v7218 = vadd.f32 %v5631, %v7210
    %v7219 = vadd.f32 %v5632, %v7211
    %v7220 = vadd.f32 %v5633, %v7212
    %v7221 = vadd.f32 %v5634, %v7213
    %v7222 = vadd.f32 %v5635, %v7214
    %v7223 = vadd.f32 %v5636, %v7215
    %v7224 = vadd.f32 %v5637, %v7216
    %v7225 = vadd.f32 %v5638, %v7217
    %v7227 = vrot.slane %v7225, 7
    %v7236 = vrot.slane %v7218, 7
    %v7237 = vrot.slane %v7219, 7
    %v7238 = vsel %vm342, %v7236, %v7237
    %v7239 = vrot.slane %v7220, 7
    %v7240 = vsel %vm342, %v7237, %v7239
    %v7241 = vrot.slane %v7221, 7
    %v7242 = vsel %vm342, %v7239, %v7241
    %v7243 = vrot.slane %v7222, 7
    %v7244 = vsel %vm342, %v7241, %v7243
    %v7245 = vrot.slane %v7223, 7
    %v7246 = vsel %vm342, %v7243, %v7245
    %v7247 = vrot.slane %v7224, 7
    %v7248 = vsel %vm342, %v7245, %v7247
    %v7249 = vsel %vm342, %v7247, %v7227
    %v7258 = vsel %vm342, %v7227, %v7236
    %v7259 = vmul.f32 %v7258, %v276
    %v7260 = vmul.f32 %v7238, %v277
    %v7261 = vmul.f32 %v7240, %v278
    %v7262 = vmul.f32 %v7242, %v279
    %v7263 = vmul.f32 %v7244, %v280
    %v7264 = vmul.f32 %v7246, %v281
    %v7265 = vmul.f32 %v7248, %v282
    %v7266 = vmul.f32 %v7249, %v283
    %v7267 = vrot.slane %v7218, 1
    %v7268 = vrot.slane %v7219, 1
    %v7269 = vsel %vm406, %v7267, %v7268
    %v7270 = vrot.slane %v7220, 1
    %v7271 = vsel %vm406, %v7268, %v7270
    %v7272 = vrot.slane %v7221, 1
    %v7273 = vsel %vm406, %v7270, %v7272
    %v7274 = vrot.slane %v7222, 1
    %v7275 = vsel %vm406, %v7272, %v7274
    %v7276 = vrot.slane %v7223, 1
    %v7277 = vsel %vm406, %v7274, %v7276
    %v7278 = vrot.slane %v7224, 1
    %v7279 = vsel %vm406, %v7276, %v7278
    %v7280 = vrot.slane %v7225, 1
    %v7281 = vsel %vm406, %v7278, %v7280
    %v7291 = vsel %vm406, %v7280, %v7267
    %v7292 = vmul.f32 %v7269, %v300
    %v7293 = vmul.f32 %v7271, %v301
    %v7294 = vmul.f32 %v7273, %v302
    %v7295 = vmul.f32 %v7275, %v303
    %v7296 = vmul.f32 %v7277, %v304
    %v7297 = vmul.f32 %v7279, %v305
    %v7298 = vmul.f32 %v7281, %v306
    %v7299 = vmul.f32 %v7291, %v307
    %v7300 = vpack.c.bf16 %v7219, %v7218
    %v7301 = vpack.c.bf16 %v7221, %v7220
    %v7302 = vpack.c.bf16 %v7223, %v7222
    %v7303 = vpack.c.bf16 %v7225, %v7224
    %v7304 = vpack.c.bf16 %v7260, %v7259
    %v7305 = vpack.c.bf16 %v7262, %v7261
    %v7306 = vpack.c.bf16 %v7264, %v7263
    %v7307 = vpack.c.bf16 %v7266, %v7265
    %v7309 = vsel %vm5761, %v7304, 0
    %v7312 = vsel %vm5761, %v7305, 0
    %v7315 = vsel %vm5761, %v7306, 0
    %v7318 = vsel %vm5761, %v7307, 0
    %7320 = vmatprep.subr.bf16.mxu0 0
    %7321 = vmatpush1.bf16.msra.mxu0 %v5753
    %7322 = vmatprep.subr.bf16.mxu0 0
    %7323 = vmatpush1.bf16.msra.mxu0 %v5754
    %7324 = vmatprep.subr.bf16.mxu0 0
    %7325 = vmatpush1.bf16.msra.mxu0 %v5755
    %7326 = vmatprep.subr.bf16.mxu0 0
    %7327 = vmatpush1.bf16.msra.mxu0 %v5756
    %7328 = vmatprep.subr.bf16.mxu0 0
    %7329 = vmatpush1.bf16.msra.mxu0 0
    %7330 = vmatprep.subr.bf16.mxu0 0
    %7331 = vmatpush1.bf16.msra.mxu0 0
    %7332 = vmatprep.subr.bf16.mxu0 0
    %7333 = vmatpush1.bf16.msra.mxu0 0
    %7334 = vmatprep.subr.bf16.mxu0 0
    %7335 = vmatpush1.bf16.msra.mxu0 0
    %7336 = vmatprep.subr.bf16.mxu0 0
    %7337 = vmatpush1.bf16.msra.mxu0 0
    %7338 = vmatprep.subr.bf16.mxu0 0
    %7339 = vmatpush1.bf16.msra.mxu0 0
    %7340 = vmatprep.subr.bf16.mxu0 0
    %7341 = vmatpush1.bf16.msra.mxu0 0
    %7342 = vmatprep.subr.bf16.mxu0 0
    %7343 = vmatpush1.bf16.msra.mxu0 0
    %7344 = vmatprep.subr.bf16.mxu0 0
    %7345 = vmatpush1.bf16.msra.mxu0 0
    %7346 = vmatprep.subr.bf16.mxu0 0
    %7347 = vmatpush1.bf16.msra.mxu0 0
    %7348 = vmatprep.subr.bf16.mxu0 0
    %7349 = vmatpush1.bf16.msra.mxu0 0
    %7350 = vmatprep.subr.bf16.mxu0 0
    %7351 = vmatpush1.bf16.msra.mxu0 0
    %7352 = vmatprep.mubr.bf16.mxu0 0
    %7353 = vmatmul.mubr.bf16.gmra.mrb[0].mxu0 %v7309
    %v7354 = vpop.f32.mrb[0].mxu0
    %v7355 = vadd.f32 0.0, %v7354
    %v7356 = vpop.f32.mrb[0].mxu0
    %v7357 = vpop.f32.mrb[0].mxu0
    %v7358 = vadd.f32 0.0, %v7357
    %v7359 = vpop.f32.mrb[0].mxu0
    %7360 = vmatprep.mubr.bf16.mxu0 0
    %7361 = vmatmul.mubr.bf16.gmra.mrb[0].mxu0 %v7312
    %v7362 = vpop.f32.mrb[0].mxu0
    %v7363 = vadd.f32 0.0, %v7362
    %v7364 = vpop.f32.mrb[0].mxu0
    %v7365 = vpop.f32.mrb[0].mxu0
    %v7366 = vadd.f32 0.0, %v7365
    %v7367 = vpop.f32.mrb[0].mxu0
    %7368 = vmatprep.mubr.bf16.mxu0 0
    %7369 = vmatmul.mubr.bf16.gmra.mrb[0].mxu0 %v7315
    %v7370 = vpop.f32.mrb[0].mxu0
    %v7371 = vadd.f32 0.0, %v7370
    %v7372 = vpop.f32.mrb[0].mxu0
    %v7373 = vpop.f32.mrb[0].mxu0
    %v7374 = vadd.f32 0.0, %v7373
    %v7375 = vpop.f32.mrb[0].mxu0
    %7376 = vmatprep.mubr.bf16.mxu0 0
    %7377 = vmatmul.mubr.bf16.gmra.mrb[0].mxu0 %v7318
    %v7378 = vpop.f32.mrb[0].mxu0
    %v7379 = vadd.f32 0.0, %v7378
    %v7380 = vpop.f32.mrb[0].mxu0
    %v7381 = vpop.f32.mrb[0].mxu0
    %v7382 = vadd.f32 0.0, %v7381
    %v7383 = vpop.f32.mrb[0].mxu0
    %7384 = vdwg.mxu0
    %v7386 = vsel %vm5761, %v7300, 0
    %v7389 = vsel %vm5761, %v7301, 0
    %v7392 = vsel %vm5761, %v7302, 0
    %v7395 = vsel %vm5761, %v7303, 0
    %7397 = vmatprep.subr.bf16.mxu0 0
    %7398 = vmatpush1.bf16.msra.mxu0 %v5855
    %7399 = vmatprep.subr.bf16.mxu0 0
    %7400 = vmatpush1.bf16.msra.mxu0 %v5856
    %7401 = vmatprep.subr.bf16.mxu0 0
    %7402 = vmatpush1.bf16.msra.mxu0 %v5857
    %7403 = vmatprep.subr.bf16.mxu0 0
    %7404 = vmatpush1.bf16.msra.mxu0 %v5858
    %7405 = vmatprep.subr.bf16.mxu0 0
    %7406 = vmatpush1.bf16.msra.mxu0 0
    %7407 = vmatprep.subr.bf16.mxu0 0
    %7408 = vmatpush1.bf16.msra.mxu0 0
    %7409 = vmatprep.subr.bf16.mxu0 0
    %7410 = vmatpush1.bf16.msra.mxu0 0
    %7411 = vmatprep.subr.bf16.mxu0 0
    %7412 = vmatpush1.bf16.msra.mxu0 0
    %7413 = vmatprep.subr.bf16.mxu0 0
    %7414 = vmatpush1.bf16.msra.mxu0 0
    %7415 = vmatprep.subr.bf16.mxu0 0
    %7416 = vmatpush1.bf16.msra.mxu0 0
    %7417 = vmatprep.subr.bf16.mxu0 0
    %7418 = vmatpush1.bf16.msra.mxu0 0
    %7419 = vmatprep.subr.bf16.mxu0 0
    %7420 = vmatpush1.bf16.msra.mxu0 0
    %7421 = vmatprep.subr.bf16.mxu0 0
    %7422 = vmatpush1.bf16.msra.mxu0 0
    %7423 = vmatprep.subr.bf16.mxu0 0
    %7424 = vmatpush1.bf16.msra.mxu0 0
    %7425 = vmatprep.subr.bf16.mxu0 0
    %7426 = vmatpush1.bf16.msra.mxu0 0
    %7427 = vmatprep.subr.bf16.mxu0 0
    %7428 = vmatpush1.bf16.msra.mxu0 0
    %7429 = vmatprep.mubr.bf16.mxu0 0
    %7430 = vmatmul.mubr.bf16.gmra.mrb[0].mxu0 %v7386
    %v7431 = vpop.f32.mrb[0].mxu0
    %v7432 = vadd.f32 %v7355, %v7431
    %v7433 = vpop.f32.mrb[0].mxu0
    %v7434 = vpop.f32.mrb[0].mxu0
    %v7435 = vadd.f32 %v7358, %v7434
    %v7436 = vpop.f32.mrb[0].mxu0
    %7437 = vmatprep.mubr.bf16.mxu0 0
    %7438 = vmatmul.mubr.bf16.gmra.mrb[0].mxu0 %v7389
    %v7439 = vpop.f32.mrb[0].mxu0
    %v7440 = vadd.f32 %v7363, %v7439
    %v7441 = vpop.f32.mrb[0].mxu0
    %v7442 = vpop.f32.mrb[0].mxu0
    %v7443 = vadd.f32 %v7366, %v7442
    %v7444 = vpop.f32.mrb[0].mxu0
    %7445 = vmatprep.mubr.bf16.mxu0 0
    %7446 = vmatmul.mubr.bf16.gmra.mrb[0].mxu0 %v7392
    %v7447 = vpop.f32.mrb[0].mxu0
    %v7448 = vadd.f32 %v7371, %v7447
    %v7449 = vpop.f32.mrb[0].mxu0
    %v7450 = vpop.f32.mrb[0].mxu0
    %v7451 = vadd.f32 %v7374, %v7450
    %v7452 = vpop.f32.mrb[0].mxu0
    %7453 = vmatprep.mubr.bf16.mxu0 0
    %7454 = vmatmul.mubr.bf16.gmra.mrb[0].mxu0 %v7395
    %v7455 = vpop.f32.mrb[0].mxu0
    %v7456 = vadd.f32 %v7379, %v7455
    %v7457 = vpop.f32.mrb[0].mxu0
    %v7458 = vpop.f32.mrb[0].mxu0
    %v7459 = vadd.f32 %v7382, %v7458
    %v7460 = vpop.f32.mrb[0].mxu0
    %7461 = vdwg.mxu0
    %v7462 = vpack.c.bf16 %v7293, %v7292
    %v7463 = vpack.c.bf16 %v7295, %v7294
    %v7464 = vpack.c.bf16 %v7297, %v7296
    %v7465 = vpack.c.bf16 %v7299, %v7298
    %v7467 = vsel %vm5761, %v7462, 0
    %v7470 = vsel %vm5761, %v7463, 0
    %v7473 = vsel %vm5761, %v7464, 0
    %v7476 = vsel %vm5761, %v7465, 0
    %7478 = vmatprep.subr.bf16.mxu0 0
    %7479 = vmatpush1.bf16.msra.mxu0 %v5968
    %7480 = vmatprep.subr.bf16.mxu0 0
    %7481 = vmatpush1.bf16.msra.mxu0 %v5969
    %7482 = vmatprep.subr.bf16.mxu0 0
    %7483 = vmatpush1.bf16.msra.mxu0 %v5970
    %7484 = vmatprep.subr.bf16.mxu0 0
    %7485 = vmatpush1.bf16.msra.mxu0 %v5971
    %7486 = vmatprep.subr.bf16.mxu0 0
    %7487 = vmatpush1.bf16.msra.mxu0 0
    %7488 = vmatprep.subr.bf16.mxu0 0
    %7489 = vmatpush1.bf16.msra.mxu0 0
    %7490 = vmatprep.subr.bf16.mxu0 0
    %7491 = vmatpush1.bf16.msra.mxu0 0
    %7492 = vmatprep.subr.bf16.mxu0 0
    %7493 = vmatpush1.bf16.msra.mxu0 0
    %7494 = vmatprep.subr.bf16.mxu0 0
    %7495 = vmatpush1.bf16.msra.mxu0 0
    %7496 = vmatprep.subr.bf16.mxu0 0
    %7497 = vmatpush1.bf16.msra.mxu0 0
    %7498 = vmatprep.subr.bf16.mxu0 0
    %7499 = vmatpush1.bf16.msra.mxu0 0
    %7500 = vmatprep.subr.bf16.mxu0 0
    %7501 = vmatpush1.bf16.msra.mxu0 0
    %7502 = vmatprep.subr.bf16.mxu0 0
    %7503 = vmatpush1.bf16.msra.mxu0 0
    %7504 = vmatprep.subr.bf16.mxu0 0
    %7505 = vmatpush1.bf16.msra.mxu0 0
    %7506 = vmatprep.subr.bf16.mxu0 0
    %7507 = vmatpush1.bf16.msra.mxu0 0
    %7508 = vmatprep.subr.bf16.mxu0 0
    %7509 = vmatpush1.bf16.msra.mxu0 0
    %7510 = vmatprep.mubr.bf16.mxu0 0
    %7511 = vmatmul.mubr.bf16.gmra.mrb[0].mxu0 %v7467
    %v7512 = vpop.f32.mrb[0].mxu0
    %v7513 = vadd.f32 0.0, %v7512
    %v7514 = vpop.f32.mrb[0].mxu0
    %v7515 = vpop.f32.mrb[0].mxu0
    %v7516 = vadd.f32 0.0, %v7515
    %v7517 = vpop.f32.mrb[0].mxu0
    %7518 = vmatprep.mubr.bf16.mxu0 0
    %7519 = vmatmul.mubr.bf16.gmra.mrb[0].mxu0 %v7470
    %v7520 = vpop.f32.mrb[0].mxu0
    %v7521 = vadd.f32 0.0, %v7520
    %v7522 = vpop.f32.mrb[0].mxu0
    %v7523 = vpop.f32.mrb[0].mxu0
    %v7524 = vadd.f32 0.0, %v7523
    %v7525 = vpop.f32.mrb[0].mxu0
    %7526 = vmatprep.mubr.bf16.mxu0 0
    %7527 = vmatmul.mubr.bf16.gmra.mrb[0].mxu0 %v7473
    %v7528 = vpop.f32.mrb[0].mxu0
    %v7529 = vadd.f32 0.0, %v7528
    %v7530 = vpop.f32.mrb[0].mxu0
    %v7531 = vpop.f32.mrb[0].mxu0
    %v7532 = vadd.f32 0.0, %v7531
    %v7533 = vpop.f32.mrb[0].mxu0
    %7534 = vmatprep.mubr.bf16.mxu0 0
    %7535 = vmatmul.mubr.bf16.gmra.mrb[0].mxu0 %v7476
    %v7536 = vpop.f32.mrb[0].mxu0
    %v7537 = vadd.f32 0.0, %v7536
    %v7538 = vpop.f32.mrb[0].mxu0
    %v7539 = vpop.f32.mrb[0].mxu0
    %v7540 = vadd.f32 0.0, %v7539
    %v7541 = vpop.f32.mrb[0].mxu0
    %7542 = vdwg.mxu0
    %v7543 = vadd.f32 %v7432, %v7513
    %v7544 = vadd.f32 %v7435, %v7516
    %v7545 = vadd.f32 %v7440, %v7521
    %v7546 = vadd.f32 %v7443, %v7524
    %v7547 = vadd.f32 %v7448, %v7529
    %v7548 = vadd.f32 %v7451, %v7532
    %v7549 = vadd.f32 %v7456, %v7537
    %v7550 = vadd.f32 %v7459, %v7540
    %v7551 = vadd.f32 %v7543, %v6066
    %v7552 = vadd.f32 %v7544, %v6066
    %v7553 = vadd.f32 %v7545, %v6066
    %v7554 = vadd.f32 %v7546, %v6066
    %v7555 = vadd.f32 %v7547, %v6066
    %v7556 = vadd.f32 %v7548, %v6066
    %v7557 = vadd.f32 %v7549, %v6066
    %v7558 = vadd.f32 %v7550, %v6066
    %v7559 = vmax.f32 %v7551, 0.0
    %v7560 = vmax.f32 %v7552, 0.0
    %v7561 = vmax.f32 %v7553, 0.0
    %v7562 = vmax.f32 %v7554, 0.0
    %v7563 = vmax.f32 %v7555, 0.0
    %v7564 = vmax.f32 %v7556, 0.0
    %v7565 = vmax.f32 %v7557, 0.0
    %v7566 = vmax.f32 %v7558, 0.0
    %v7568 = vrot.slane %v7566, 7
    %v7577 = vrot.slane %v7559, 7
    %v7578 = vrot.slane %v7560, 7
    %v7579 = vsel %vm342, %v7577, %v7578
    %v7580 = vrot.slane %v7561, 7
    %v7581 = vsel %vm342, %v7578, %v7580
    %v7582 = vrot.slane %v7562, 7
    %v7583 = vsel %vm342, %v7580, %v7582
    %v7584 = vrot.slane %v7563, 7
    %v7585 = vsel %vm342, %v7582, %v7584
    %v7586 = vrot.slane %v7564, 7
    %v7587 = vsel %vm342, %v7584, %v7586
    %v7588 = vrot.slane %v7565, 7
    %v7589 = vsel %vm342, %v7586, %v7588
    %v7590 = vsel %vm342, %v7588, %v7568
    %v7599 = vsel %vm342, %v7568, %v7577
    %v7600 = vmul.f32 %v7599, %v276
    %v7601 = vmul.f32 %v7579, %v277
    %v7602 = vmul.f32 %v7581, %v278
    %v7603 = vmul.f32 %v7583, %v279
    %v7604 = vmul.f32 %v7585, %v280
    %v7605 = vmul.f32 %v7587, %v281
    %v7606 = vmul.f32 %v7589, %v282
    %v7607 = vmul.f32 %v7590, %v283
    %v7608 = vrot.slane %v7559, 1
    %v7609 = vrot.slane %v7560, 1
    %v7610 = vsel %vm406, %v7608, %v7609
    %v7611 = vrot.slane %v7561, 1
    %v7612 = vsel %vm406, %v7609, %v7611
    %v7613 = vrot.slane %v7562, 1
    %v7614 = vsel %vm406, %v7611, %v7613
    %v7615 = vrot.slane %v7563, 1
    %v7616 = vsel %vm406, %v7613, %v7615
    %v7617 = vrot.slane %v7564, 1
    %v7618 = vsel %vm406, %v7615, %v7617
    %v7619 = vrot.slane %v7565, 1
    %v7620 = vsel %vm406, %v7617, %v7619
    %v7621 = vrot.slane %v7566, 1
    %v7622 = vsel %vm406, %v7619, %v7621
    %v7632 = vsel %vm406, %v7621, %v7608
    %v7633 = vmul.f32 %v7610, %v300
    %v7634 = vmul.f32 %v7612, %v301
    %v7635 = vmul.f32 %v7614, %v302
    %v7636 = vmul.f32 %v7616, %v303
    %v7637 = vmul.f32 %v7618, %v304
    %v7638 = vmul.f32 %v7620, %v305
    %v7639 = vmul.f32 %v7622, %v306
    %v7640 = vmul.f32 %v7632, %v307
    %v7641 = vpack.c.bf16 %v7560, %v7559
    %v7642 = vpack.c.bf16 %v7562, %v7561
    %v7643 = vpack.c.bf16 %v7564, %v7563
    %v7644 = vpack.c.bf16 %v7566, %v7565
    %v7645 = vpack.c.bf16 %v7601, %v7600
    %v7646 = vpack.c.bf16 %v7603, %v7602
    %v7647 = vpack.c.bf16 %v7605, %v7604
    %v7648 = vpack.c.bf16 %v7607, %v7606
    %v7650 = vsel %vm5761, %v7645, 0
    %v7653 = vsel %vm5761, %v7646, 0
    %v7656 = vsel %vm5761, %v7647, 0
    %v7659 = vsel %vm5761, %v7648, 0
    %7661 = vmatprep.subr.bf16.mxu0 0
    %7662 = vmatpush1.bf16.msra.mxu0 %v6198
    %7663 = vmatprep.subr.bf16.mxu0 0
    %7664 = vmatpush1.bf16.msra.mxu0 %v6199
    %7665 = vmatprep.subr.bf16.mxu0 0
    %7666 = vmatpush1.bf16.msra.mxu0 %v6200
    %7667 = vmatprep.subr.bf16.mxu0 0
    %7668 = vmatpush1.bf16.msra.mxu0 %v6201
    %7669 = vmatprep.subr.bf16.mxu0 0
    %7670 = vmatpush1.bf16.msra.mxu0 0
    %7671 = vmatprep.subr.bf16.mxu0 0
    %7672 = vmatpush1.bf16.msra.mxu0 0
    %7673 = vmatprep.subr.bf16.mxu0 0
    %7674 = vmatpush1.bf16.msra.mxu0 0
    %7675 = vmatprep.subr.bf16.mxu0 0
    %7676 = vmatpush1.bf16.msra.mxu0 0
    %7677 = vmatprep.subr.bf16.mxu0 0
    %7678 = vmatpush1.bf16.msra.mxu0 0
    %7679 = vmatprep.subr.bf16.mxu0 0
    %7680 = vmatpush1.bf16.msra.mxu0 0
    %7681 = vmatprep.subr.bf16.mxu0 0
    %7682 = vmatpush1.bf16.msra.mxu0 0
    %7683 = vmatprep.subr.bf16.mxu0 0
    %7684 = vmatpush1.bf16.msra.mxu0 0
    %7685 = vmatprep.subr.bf16.mxu0 0
    %7686 = vmatpush1.bf16.msra.mxu0 0
    %7687 = vmatprep.subr.bf16.mxu0 0
    %7688 = vmatpush1.bf16.msra.mxu0 0
    %7689 = vmatprep.subr.bf16.mxu0 0
    %7690 = vmatpush1.bf16.msra.mxu0 0
    %7691 = vmatprep.subr.bf16.mxu0 0
    %7692 = vmatpush1.bf16.msra.mxu0 0
    %7693 = vmatprep.mubr.bf16.mxu0 0
    %7694 = vmatmul.mubr.bf16.gmra.mrb[0].mxu0 %v7650
    %v7695 = vpop.f32.mrb[0].mxu0
    %v7696 = vadd.f32 0.0, %v7695
    %v7697 = vpop.f32.mrb[0].mxu0
    %v7698 = vpop.f32.mrb[0].mxu0
    %v7699 = vadd.f32 0.0, %v7698
    %v7700 = vpop.f32.mrb[0].mxu0
    %7701 = vmatprep.mubr.bf16.mxu0 0
    %7702 = vmatmul.mubr.bf16.gmra.mrb[0].mxu0 %v7653
    %v7703 = vpop.f32.mrb[0].mxu0
    %v7704 = vadd.f32 0.0, %v7703
    %v7705 = vpop.f32.mrb[0].mxu0
    %v7706 = vpop.f32.mrb[0].mxu0
    %v7707 = vadd.f32 0.0, %v7706
    %v7708 = vpop.f32.mrb[0].mxu0
    %7709 = vmatprep.mubr.bf16.mxu0 0
    %7710 = vmatmul.mubr.bf16.gmra.mrb[0].mxu0 %v7656
    %v7711 = vpop.f32.mrb[0].mxu0
    %v7712 = vadd.f32 0.0, %v7711
    %v7713 = vpop.f32.mrb[0].mxu0
    %v7714 = vpop.f32.mrb[0].mxu0
    %v7715 = vadd.f32 0.0, %v7714
    %v7716 = vpop.f32.mrb[0].mxu0
    %7717 = vmatprep.mubr.bf16.mxu0 0
    %7718 = vmatmul.mubr.bf16.gmra.mrb[0].mxu0 %v7659
    %v7719 = vpop.f32.mrb[0].mxu0
    %v7720 = vadd.f32 0.0, %v7719
    %v7721 = vpop.f32.mrb[0].mxu0
    %v7722 = vpop.f32.mrb[0].mxu0
    %v7723 = vadd.f32 0.0, %v7722
    %v7724 = vpop.f32.mrb[0].mxu0
    %7725 = vdwg.mxu0
    %v7727 = vsel %vm5761, %v7641, 0
    %v7730 = vsel %vm5761, %v7642, 0
    %v7733 = vsel %vm5761, %v7643, 0
    %v7736 = vsel %vm5761, %v7644, 0
    %7738 = vmatprep.subr.bf16.mxu0 0
    %7739 = vmatpush1.bf16.msra.mxu0 %v6299
    %7740 = vmatprep.subr.bf16.mxu0 0
    %7741 = vmatpush1.bf16.msra.mxu0 %v6300
    %7742 = vmatprep.subr.bf16.mxu0 0
    %7743 = vmatpush1.bf16.msra.mxu0 %v6301
    %7744 = vmatprep.subr.bf16.mxu0 0
    %7745 = vmatpush1.bf16.msra.mxu0 %v6302
    %7746 = vmatprep.subr.bf16.mxu0 0
    %7747 = vmatpush1.bf16.msra.mxu0 0
    %7748 = vmatprep.subr.bf16.mxu0 0
    %7749 = vmatpush1.bf16.msra.mxu0 0
    %7750 = vmatprep.subr.bf16.mxu0 0
    %7751 = vmatpush1.bf16.msra.mxu0 0
    %7752 = vmatprep.subr.bf16.mxu0 0
    %7753 = vmatpush1.bf16.msra.mxu0 0
    %7754 = vmatprep.subr.bf16.mxu0 0
    %7755 = vmatpush1.bf16.msra.mxu0 0
    %7756 = vmatprep.subr.bf16.mxu0 0
    %7757 = vmatpush1.bf16.msra.mxu0 0
    %7758 = vmatprep.subr.bf16.mxu0 0
    %7759 = vmatpush1.bf16.msra.mxu0 0
    %7760 = vmatprep.subr.bf16.mxu0 0
    %7761 = vmatpush1.bf16.msra.mxu0 0
    %7762 = vmatprep.subr.bf16.mxu0 0
    %7763 = vmatpush1.bf16.msra.mxu0 0
    %7764 = vmatprep.subr.bf16.mxu0 0
    %7765 = vmatpush1.bf16.msra.mxu0 0
    %7766 = vmatprep.subr.bf16.mxu0 0
    %7767 = vmatpush1.bf16.msra.mxu0 0
    %7768 = vmatprep.subr.bf16.mxu0 0
    %7769 = vmatpush1.bf16.msra.mxu0 0
    %7770 = vmatprep.mubr.bf16.mxu0 0
    %7771 = vmatmul.mubr.bf16.gmra.mrb[0].mxu0 %v7727
    %v7772 = vpop.f32.mrb[0].mxu0
    %v7773 = vadd.f32 %v7696, %v7772
    %v7774 = vpop.f32.mrb[0].mxu0
    %v7775 = vpop.f32.mrb[0].mxu0
    %v7776 = vadd.f32 %v7699, %v7775
    %v7777 = vpop.f32.mrb[0].mxu0
    %7778 = vmatprep.mubr.bf16.mxu0 0
    %7779 = vmatmul.mubr.bf16.gmra.mrb[0].mxu0 %v7730
    %v7780 = vpop.f32.mrb[0].mxu0
    %v7781 = vadd.f32 %v7704, %v7780
    %v7782 = vpop.f32.mrb[0].mxu0
    %v7783 = vpop.f32.mrb[0].mxu0
    %v7784 = vadd.f32 %v7707, %v7783
    %v7785 = vpop.f32.mrb[0].mxu0
    %7786 = vmatprep.mubr.bf16.mxu0 0
    %7787 = vmatmul.mubr.bf16.gmra.mrb[0].mxu0 %v7733
    %v7788 = vpop.f32.mrb[0].mxu0
    %v7789 = vadd.f32 %v7712, %v7788
    %v7790 = vpop.f32.mrb[0].mxu0
    %v7791 = vpop.f32.mrb[0].mxu0
    %v7792 = vadd.f32 %v7715, %v7791
    %v7793 = vpop.f32.mrb[0].mxu0
    %7794 = vmatprep.mubr.bf16.mxu0 0
    %7795 = vmatmul.mubr.bf16.gmra.mrb[0].mxu0 %v7736
    %v7796 = vpop.f32.mrb[0].mxu0
    %v7797 = vadd.f32 %v7720, %v7796
    %v7798 = vpop.f32.mrb[0].mxu0
    %v7799 = vpop.f32.mrb[0].mxu0
    %v7800 = vadd.f32 %v7723, %v7799
    %v7801 = vpop.f32.mrb[0].mxu0
    %7802 = vdwg.mxu0
    %v7803 = vpack.c.bf16 %v7634, %v7633
    %v7804 = vpack.c.bf16 %v7636, %v7635
    %v7805 = vpack.c.bf16 %v7638, %v7637
    %v7806 = vpack.c.bf16 %v7640, %v7639
    %v7808 = vsel %vm5761, %v7803, 0
    %v7811 = vsel %vm5761, %v7804, 0
    %v7814 = vsel %vm5761, %v7805, 0
    %v7817 = vsel %vm5761, %v7806, 0
    %7819 = vmatprep.subr.bf16.mxu0 0
    %7820 = vmatpush1.bf16.msra.mxu0 %v6412
    %7821 = vmatprep.subr.bf16.mxu0 0
    %7822 = vmatpush1.bf16.msra.mxu0 %v6413
    %7823 = vmatprep.subr.bf16.mxu0 0
    %7824 = vmatpush1.bf16.msra.mxu0 %v6414
    %7825 = vmatprep.subr.bf16.mxu0 0
    %7826 = vmatpush1.bf16.msra.mxu0 %v6415
    %7827 = vmatprep.subr.bf16.mxu0 0
    %7828 = vmatpush1.bf16.msra.mxu0 0
    %7829 = vmatprep.subr.bf16.mxu0 0
    %7830 = vmatpush1.bf16.msra.mxu0 0
    %7831 = vmatprep.subr.bf16.mxu0 0
    %7832 = vmatpush1.bf16.msra.mxu0 0
    %7833 = vmatprep.subr.bf16.mxu0 0
    %7834 = vmatpush1.bf16.msra.mxu0 0
    %7835 = vmatprep.subr.bf16.mxu0 0
    %7836 = vmatpush1.bf16.msra.mxu0 0
    %7837 = vmatprep.subr.bf16.mxu0 0
    %7838 = vmatpush1.bf16.msra.mxu0 0
    %7839 = vmatprep.subr.bf16.mxu0 0
    %7840 = vmatpush1.bf16.msra.mxu0 0
    %7841 = vmatprep.subr.bf16.mxu0 0
    %7842 = vmatpush1.bf16.msra.mxu0 0
    %7843 = vmatprep.subr.bf16.mxu0 0
    %7844 = vmatpush1.bf16.msra.mxu0 0
    %7845 = vmatprep.subr.bf16.mxu0 0
    %7846 = vmatpush1.bf16.msra.mxu0 0
    %7847 = vmatprep.subr.bf16.mxu0 0
    %7848 = vmatpush1.bf16.msra.mxu0 0
    %7849 = vmatprep.subr.bf16.mxu0 0
    %7850 = vmatpush1.bf16.msra.mxu0 0
    %7851 = vmatprep.mubr.bf16.mxu0 0
    %7852 = vmatmul.mubr.bf16.gmra.mrb[0].mxu0 %v7808
    %v7853 = vpop.f32.mrb[0].mxu0
    %v7854 = vadd.f32 0.0, %v7853
    %v7855 = vpop.f32.mrb[0].mxu0
    %v7856 = vpop.f32.mrb[0].mxu0
    %v7857 = vadd.f32 0.0, %v7856
    %v7858 = vpop.f32.mrb[0].mxu0
    %7859 = vmatprep.mubr.bf16.mxu0 0
    %7860 = vmatmul.mubr.bf16.gmra.mrb[0].mxu0 %v7811
    %v7861 = vpop.f32.mrb[0].mxu0
    %v7862 = vadd.f32 0.0, %v7861
    %v7863 = vpop.f32.mrb[0].mxu0
    %v7864 = vpop.f32.mrb[0].mxu0
    %v7865 = vadd.f32 0.0, %v7864
    %v7866 = vpop.f32.mrb[0].mxu0
    %7867 = vmatprep.mubr.bf16.mxu0 0
    %7868 = vmatmul.mubr.bf16.gmra.mrb[0].mxu0 %v7814
    %v7869 = vpop.f32.mrb[0].mxu0
    %v7870 = vadd.f32 0.0, %v7869
    %v7871 = vpop.f32.mrb[0].mxu0
    %v7872 = vpop.f32.mrb[0].mxu0
    %v7873 = vadd.f32 0.0, %v7872
    %v7874 = vpop.f32.mrb[0].mxu0
    %7875 = vmatprep.mubr.bf16.mxu0 0
    %7876 = vmatmul.mubr.bf16.gmra.mrb[0].mxu0 %v7817
    %v7877 = vpop.f32.mrb[0].mxu0
    %v7878 = vadd.f32 0.0, %v7877
    %v7879 = vpop.f32.mrb[0].mxu0
    %v7880 = vpop.f32.mrb[0].mxu0
    %v7881 = vadd.f32 0.0, %v7880
    %v7882 = vpop.f32.mrb[0].mxu0
    %7883 = vdwg.mxu0
    %v7884 = vadd.f32 %v7773, %v7854
    %v7885 = vadd.f32 %v7776, %v7857
    %v7886 = vadd.f32 %v7781, %v7862
    %v7887 = vadd.f32 %v7784, %v7865
    %v7888 = vadd.f32 %v7789, %v7870
    %v7889 = vadd.f32 %v7792, %v7873
    %v7890 = vadd.f32 %v7797, %v7878
    %v7891 = vadd.f32 %v7800, %v7881
    %v7892 = vadd.f32 %v7884, %v6510
    %v7893 = vadd.f32 %v7885, %v6510
    %v7894 = vadd.f32 %v7886, %v6510
    %v7895 = vadd.f32 %v7887, %v6510
    %v7896 = vadd.f32 %v7888, %v6510
    %v7897 = vadd.f32 %v7889, %v6510
    %v7898 = vadd.f32 %v7890, %v6510
    %v7899 = vadd.f32 %v7891, %v6510
    %v7900 = vsub.f32 %v6512, %v7202
    %v7901 = vsub.f32 %v6513, %v7203
    %v7902 = vsub.f32 %v6514, %v7204
    %v7903 = vsub.f32 %v6515, %v7205
    %v7904 = vsub.f32 %v6516, %v7206
    %v7905 = vsub.f32 %v6517, %v7207
    %v7906 = vsub.f32 %v6518, %v7208
    %v7907 = vsub.f32 %v6519, %v7209
    %v7908 = vadd.f32 %v7900, %v7892
    %v7909 = vadd.f32 %v7901, %v7893
    %v7910 = vadd.f32 %v7902, %v7894
    %v7911 = vadd.f32 %v7903, %v7895
    %v7912 = vadd.f32 %v7904, %v7896
    %v7913 = vadd.f32 %v7905, %v7897
    %v7914 = vadd.f32 %v7906, %v7898
    %v7915 = vadd.f32 %v7907, %v7899
    %v7916 = vadd.f32 %v5631, %v7908
    %v7917 = vadd.f32 %v5632, %v7909
    %v7918 = vadd.f32 %v5633, %v7910
    %v7919 = vadd.f32 %v5634, %v7911
    %v7920 = vadd.f32 %v5635, %v7912
    %v7921 = vadd.f32 %v5636, %v7913
    %v7922 = vadd.f32 %v5637, %v7914
    %v7923 = vadd.f32 %v5638, %v7915
    %v7925 = vrot.slane %v7923, 7
    %v7934 = vrot.slane %v7916, 7
    %v7935 = vrot.slane %v7917, 7
    %v7936 = vsel %vm342, %v7934, %v7935
    %v7937 = vrot.slane %v7918, 7
    %v7938 = vsel %vm342, %v7935, %v7937
    %v7939 = vrot.slane %v7919, 7
    %v7940 = vsel %vm342, %v7937, %v7939
    %v7941 = vrot.slane %v7920, 7
    %v7942 = vsel %vm342, %v7939, %v7941
    %v7943 = vrot.slane %v7921, 7
    %v7944 = vsel %vm342, %v7941, %v7943
    %v7945 = vrot.slane %v7922, 7
    %v7946 = vsel %vm342, %v7943, %v7945
    %v7947 = vsel %vm342, %v7945, %v7925
    %v7956 = vsel %vm342, %v7925, %v7934
    %v7957 = vmul.f32 %v7956, %v276
    %v7958 = vmul.f32 %v7936, %v277
    %v7959 = vmul.f32 %v7938, %v278
    %v7960 = vmul.f32 %v7940, %v279
    %v7961 = vmul.f32 %v7942, %v280
    %v7962 = vmul.f32 %v7944, %v281
    %v7963 = vmul.f32 %v7946, %v282
    %v7964 = vmul.f32 %v7947, %v283
    %v7965 = vrot.slane %v7916, 1
    %v7966 = vrot.slane %v7917, 1
    %v7967 = vsel %vm406, %v7965, %v7966
    %v7968 = vrot.slane %v7918, 1
    %v7969 = vsel %vm406, %v7966, %v7968
    %v7970 = vrot.slane %v7919, 1
    %v7971 = vsel %vm406, %v7968, %v7970
    %v7972 = vrot.slane %v7920, 1
    %v7973 = vsel %vm406, %v7970, %v7972
    %v7974 = vrot.slane %v7921, 1
    %v7975 = vsel %vm406, %v7972, %v7974
    %v7976 = vrot.slane %v7922, 1
    %v7977 = vsel %vm406, %v7974, %v7976
    %v7978 = vrot.slane %v7923, 1
    %v7979 = vsel %vm406, %v7976, %v7978
    %v7989 = vsel %vm406, %v7978, %v7965
    %v7990 = vmul.f32 %v7967, %v300
    %v7991 = vmul.f32 %v7969, %v301
    %v7992 = vmul.f32 %v7971, %v302
    %v7993 = vmul.f32 %v7973, %v303
    %v7994 = vmul.f32 %v7975, %v304
    %v7995 = vmul.f32 %v7977, %v305
    %v7996 = vmul.f32 %v7979, %v306
    %v7997 = vmul.f32 %v7989, %v307
    %v7998 = vpack.c.bf16 %v7917, %v7916
    %v7999 = vpack.c.bf16 %v7919, %v7918
    %v8000 = vpack.c.bf16 %v7921, %v7920
    %v8001 = vpack.c.bf16 %v7923, %v7922
    %v8002 = vpack.c.bf16 %v7958, %v7957
    %v8003 = vpack.c.bf16 %v7960, %v7959
    %v8004 = vpack.c.bf16 %v7962, %v7961
    %v8005 = vpack.c.bf16 %v7964, %v7963
    %v8007 = vsel %vm5761, %v8002, 0
    %v8010 = vsel %vm5761, %v8003, 0
    %v8013 = vsel %vm5761, %v8004, 0
    %v8016 = vsel %vm5761, %v8005, 0
    %8018 = vmatprep.subr.bf16.mxu0 0
    %8019 = vmatpush1.bf16.msra.mxu0 %v5753
    %8020 = vmatprep.subr.bf16.mxu0 0
    %8021 = vmatpush1.bf16.msra.mxu0 %v5754
    %8022 = vmatprep.subr.bf16.mxu0 0
    %8023 = vmatpush1.bf16.msra.mxu0 %v5755
    %8024 = vmatprep.subr.bf16.mxu0 0
    %8025 = vmatpush1.bf16.msra.mxu0 %v5756
    %8026 = vmatprep.subr.bf16.mxu0 0
    %8027 = vmatpush1.bf16.msra.mxu0 0
    %8028 = vmatprep.subr.bf16.mxu0 0
    %8029 = vmatpush1.bf16.msra.mxu0 0
    %8030 = vmatprep.subr.bf16.mxu0 0
    %8031 = vmatpush1.bf16.msra.mxu0 0
    %8032 = vmatprep.subr.bf16.mxu0 0
    %8033 = vmatpush1.bf16.msra.mxu0 0
    %8034 = vmatprep.subr.bf16.mxu0 0
    %8035 = vmatpush1.bf16.msra.mxu0 0
    %8036 = vmatprep.subr.bf16.mxu0 0
    %8037 = vmatpush1.bf16.msra.mxu0 0
    %8038 = vmatprep.subr.bf16.mxu0 0
    %8039 = vmatpush1.bf16.msra.mxu0 0
    %8040 = vmatprep.subr.bf16.mxu0 0
    %8041 = vmatpush1.bf16.msra.mxu0 0
    %8042 = vmatprep.subr.bf16.mxu0 0
    %8043 = vmatpush1.bf16.msra.mxu0 0
    %8044 = vmatprep.subr.bf16.mxu0 0
    %8045 = vmatpush1.bf16.msra.mxu0 0
    %8046 = vmatprep.subr.bf16.mxu0 0
    %8047 = vmatpush1.bf16.msra.mxu0 0
    %8048 = vmatprep.subr.bf16.mxu0 0
    %8049 = vmatpush1.bf16.msra.mxu0 0
    %8050 = vmatprep.mubr.bf16.mxu0 0
    %8051 = vmatmul.mubr.bf16.gmra.mrb[0].mxu0 %v8007
    %v8052 = vpop.f32.mrb[0].mxu0
    %v8053 = vadd.f32 0.0, %v8052
    %v8054 = vpop.f32.mrb[0].mxu0
    %v8055 = vpop.f32.mrb[0].mxu0
    %v8056 = vadd.f32 0.0, %v8055
    %v8057 = vpop.f32.mrb[0].mxu0
    %8058 = vmatprep.mubr.bf16.mxu0 0
    %8059 = vmatmul.mubr.bf16.gmra.mrb[0].mxu0 %v8010
    %v8060 = vpop.f32.mrb[0].mxu0
    %v8061 = vadd.f32 0.0, %v8060
    %v8062 = vpop.f32.mrb[0].mxu0
    %v8063 = vpop.f32.mrb[0].mxu0
    %v8064 = vadd.f32 0.0, %v8063
    %v8065 = vpop.f32.mrb[0].mxu0
    %8066 = vmatprep.mubr.bf16.mxu0 0
    %8067 = vmatmul.mubr.bf16.gmra.mrb[0].mxu0 %v8013
    %v8068 = vpop.f32.mrb[0].mxu0
    %v8069 = vadd.f32 0.0, %v8068
    %v8070 = vpop.f32.mrb[0].mxu0
    %v8071 = vpop.f32.mrb[0].mxu0
    %v8072 = vadd.f32 0.0, %v8071
    %v8073 = vpop.f32.mrb[0].mxu0
    %8074 = vmatprep.mubr.bf16.mxu0 0
    %8075 = vmatmul.mubr.bf16.gmra.mrb[0].mxu0 %v8016
    %v8076 = vpop.f32.mrb[0].mxu0
    %v8077 = vadd.f32 0.0, %v8076
    %v8078 = vpop.f32.mrb[0].mxu0
    %v8079 = vpop.f32.mrb[0].mxu0
    %v8080 = vadd.f32 0.0, %v8079
    %v8081 = vpop.f32.mrb[0].mxu0
    %8082 = vdwg.mxu0
    %v8084 = vsel %vm5761, %v7998, 0
    %v8087 = vsel %vm5761, %v7999, 0
    %v8090 = vsel %vm5761, %v8000, 0
    %v8093 = vsel %vm5761, %v8001, 0
    %8095 = vmatprep.subr.bf16.mxu0 0
    %8096 = vmatpush1.bf16.msra.mxu0 %v5855
    %8097 = vmatprep.subr.bf16.mxu0 0
    %8098 = vmatpush1.bf16.msra.mxu0 %v5856
    %8099 = vmatprep.subr.bf16.mxu0 0
    %8100 = vmatpush1.bf16.msra.mxu0 %v5857
    %8101 = vmatprep.subr.bf16.mxu0 0
    %8102 = vmatpush1.bf16.msra.mxu0 %v5858
    %8103 = vmatprep.subr.bf16.mxu0 0
    %8104 = vmatpush1.bf16.msra.mxu0 0
    %8105 = vmatprep.subr.bf16.mxu0 0
    %8106 = vmatpush1.bf16.msra.mxu0 0
    %8107 = vmatprep.subr.bf16.mxu0 0
    %8108 = vmatpush1.bf16.msra.mxu0 0
    %8109 = vmatprep.subr.bf16.mxu0 0
    %8110 = vmatpush1.bf16.msra.mxu0 0
    %8111 = vmatprep.subr.bf16.mxu0 0
    %8112 = vmatpush1.bf16.msra.mxu0 0
    %8113 = vmatprep.subr.bf16.mxu0 0
    %8114 = vmatpush1.bf16.msra.mxu0 0
    %8115 = vmatprep.subr.bf16.mxu0 0
    %8116 = vmatpush1.bf16.msra.mxu0 0
    %8117 = vmatprep.subr.bf16.mxu0 0
    %8118 = vmatpush1.bf16.msra.mxu0 0
    %8119 = vmatprep.subr.bf16.mxu0 0
    %8120 = vmatpush1.bf16.msra.mxu0 0
    %8121 = vmatprep.subr.bf16.mxu0 0
    %8122 = vmatpush1.bf16.msra.mxu0 0
    %8123 = vmatprep.subr.bf16.mxu0 0
    %8124 = vmatpush1.bf16.msra.mxu0 0
    %8125 = vmatprep.subr.bf16.mxu0 0
    %8126 = vmatpush1.bf16.msra.mxu0 0
    %8127 = vmatprep.mubr.bf16.mxu0 0
    %8128 = vmatmul.mubr.bf16.gmra.mrb[0].mxu0 %v8084
    %v8129 = vpop.f32.mrb[0].mxu0
    %v8130 = vadd.f32 %v8053, %v8129
    %v8131 = vpop.f32.mrb[0].mxu0
    %v8132 = vpop.f32.mrb[0].mxu0
    %v8133 = vadd.f32 %v8056, %v8132
    %v8134 = vpop.f32.mrb[0].mxu0
    %8135 = vmatprep.mubr.bf16.mxu0 0
    %8136 = vmatmul.mubr.bf16.gmra.mrb[0].mxu0 %v8087
    %v8137 = vpop.f32.mrb[0].mxu0
    %v8138 = vadd.f32 %v8061, %v8137
    %v8139 = vpop.f32.mrb[0].mxu0
    %v8140 = vpop.f32.mrb[0].mxu0
    %v8141 = vadd.f32 %v8064, %v8140
    %v8142 = vpop.f32.mrb[0].mxu0
    %8143 = vmatprep.mubr.bf16.mxu0 0
    %8144 = vmatmul.mubr.bf16.gmra.mrb[0].mxu0 %v8090
    %v8145 = vpop.f32.mrb[0].mxu0
    %v8146 = vadd.f32 %v8069, %v8145
    %v8147 = vpop.f32.mrb[0].mxu0
    %v8148 = vpop.f32.mrb[0].mxu0
    %v8149 = vadd.f32 %v8072, %v8148
    %v8150 = vpop.f32.mrb[0].mxu0
    %8151 = vmatprep.mubr.bf16.mxu0 0
    %8152 = vmatmul.mubr.bf16.gmra.mrb[0].mxu0 %v8093
    %v8153 = vpop.f32.mrb[0].mxu0
    %v8154 = vadd.f32 %v8077, %v8153
    %v8155 = vpop.f32.mrb[0].mxu0
    %v8156 = vpop.f32.mrb[0].mxu0
    %v8157 = vadd.f32 %v8080, %v8156
    %v8158 = vpop.f32.mrb[0].mxu0
    %8159 = vdwg.mxu0
    %v8160 = vpack.c.bf16 %v7991, %v7990
    %v8161 = vpack.c.bf16 %v7993, %v7992
    %v8162 = vpack.c.bf16 %v7995, %v7994
    %v8163 = vpack.c.bf16 %v7997, %v7996
    %v8165 = vsel %vm5761, %v8160, 0
    %v8168 = vsel %vm5761, %v8161, 0
    %v8171 = vsel %vm5761, %v8162, 0
    %v8174 = vsel %vm5761, %v8163, 0
    %8176 = vmatprep.subr.bf16.mxu0 0
    %8177 = vmatpush1.bf16.msra.mxu0 %v5968
    %8178 = vmatprep.subr.bf16.mxu0 0
    %8179 = vmatpush1.bf16.msra.mxu0 %v5969
    %8180 = vmatprep.subr.bf16.mxu0 0
    %8181 = vmatpush1.bf16.msra.mxu0 %v5970
    %8182 = vmatprep.subr.bf16.mxu0 0
    %8183 = vmatpush1.bf16.msra.mxu0 %v5971
    %8184 = vmatprep.subr.bf16.mxu0 0
    %8185 = vmatpush1.bf16.msra.mxu0 0
    %8186 = vmatprep.subr.bf16.mxu0 0
    %8187 = vmatpush1.bf16.msra.mxu0 0
    %8188 = vmatprep.subr.bf16.mxu0 0
    %8189 = vmatpush1.bf16.msra.mxu0 0
    %8190 = vmatprep.subr.bf16.mxu0 0
    %8191 = vmatpush1.bf16.msra.mxu0 0
    %8192 = vmatprep.subr.bf16.mxu0 0
    %8193 = vmatpush1.bf16.msra.mxu0 0
    %8194 = vmatprep.subr.bf16.mxu0 0
    %8195 = vmatpush1.bf16.msra.mxu0 0
    %8196 = vmatprep.subr.bf16.mxu0 0
    %8197 = vmatpush1.bf16.msra.mxu0 0
    %8198 = vmatprep.subr.bf16.mxu0 0
    %8199 = vmatpush1.bf16.msra.mxu0 0
    %8200 = vmatprep.subr.bf16.mxu0 0
    %8201 = vmatpush1.bf16.msra.mxu0 0
    %8202 = vmatprep.subr.bf16.mxu0 0
    %8203 = vmatpush1.bf16.msra.mxu0 0
    %8204 = vmatprep.subr.bf16.mxu0 0
    %8205 = vmatpush1.bf16.msra.mxu0 0
    %8206 = vmatprep.subr.bf16.mxu0 0
    %8207 = vmatpush1.bf16.msra.mxu0 0
    %8208 = vmatprep.mubr.bf16.mxu0 0
    %8209 = vmatmul.mubr.bf16.gmra.mrb[0].mxu0 %v8165
    %v8210 = vpop.f32.mrb[0].mxu0
    %v8211 = vadd.f32 0.0, %v8210
    %v8212 = vpop.f32.mrb[0].mxu0
    %v8213 = vpop.f32.mrb[0].mxu0
    %v8214 = vadd.f32 0.0, %v8213
    %v8215 = vpop.f32.mrb[0].mxu0
    %8216 = vmatprep.mubr.bf16.mxu0 0
    %8217 = vmatmul.mubr.bf16.gmra.mrb[0].mxu0 %v8168
    %v8218 = vpop.f32.mrb[0].mxu0
    %v8219 = vadd.f32 0.0, %v8218
    %v8220 = vpop.f32.mrb[0].mxu0
    %v8221 = vpop.f32.mrb[0].mxu0
    %v8222 = vadd.f32 0.0, %v8221
    %v8223 = vpop.f32.mrb[0].mxu0
    %8224 = vmatprep.mubr.bf16.mxu0 0
    %8225 = vmatmul.mubr.bf16.gmra.mrb[0].mxu0 %v8171
    %v8226 = vpop.f32.mrb[0].mxu0
    %v8227 = vadd.f32 0.0, %v8226
    %v8228 = vpop.f32.mrb[0].mxu0
    %v8229 = vpop.f32.mrb[0].mxu0
    %v8230 = vadd.f32 0.0, %v8229
    %v8231 = vpop.f32.mrb[0].mxu0
    %8232 = vmatprep.mubr.bf16.mxu0 0
    %8233 = vmatmul.mubr.bf16.gmra.mrb[0].mxu0 %v8174
    %v8234 = vpop.f32.mrb[0].mxu0
    %v8235 = vadd.f32 0.0, %v8234
    %v8236 = vpop.f32.mrb[0].mxu0
    %v8237 = vpop.f32.mrb[0].mxu0
    %v8238 = vadd.f32 0.0, %v8237
    %v8239 = vpop.f32.mrb[0].mxu0
    %8240 = vdwg.mxu0
    %v8241 = vadd.f32 %v8130, %v8211
    %v8242 = vadd.f32 %v8133, %v8214
    %v8243 = vadd.f32 %v8138, %v8219
    %v8244 = vadd.f32 %v8141, %v8222
    %v8245 = vadd.f32 %v8146, %v8227
    %v8246 = vadd.f32 %v8149, %v8230
    %v8247 = vadd.f32 %v8154, %v8235
    %v8248 = vadd.f32 %v8157, %v8238
    %v8249 = vadd.f32 %v8241, %v6066
    %v8250 = vadd.f32 %v8242, %v6066
    %v8251 = vadd.f32 %v8243, %v6066
    %v8252 = vadd.f32 %v8244, %v6066
    %v8253 = vadd.f32 %v8245, %v6066
    %v8254 = vadd.f32 %v8246, %v6066
    %v8255 = vadd.f32 %v8247, %v6066
    %v8256 = vadd.f32 %v8248, %v6066
    %v8257 = vmax.f32 %v8249, 0.0
    %v8258 = vmax.f32 %v8250, 0.0
    %v8259 = vmax.f32 %v8251, 0.0
    %v8260 = vmax.f32 %v8252, 0.0
    %v8261 = vmax.f32 %v8253, 0.0
    %v8262 = vmax.f32 %v8254, 0.0
    %v8263 = vmax.f32 %v8255, 0.0
    %v8264 = vmax.f32 %v8256, 0.0
    %v8266 = vrot.slane %v8264, 7
    %v8275 = vrot.slane %v8257, 7
    %v8276 = vrot.slane %v8258, 7
    %v8277 = vsel %vm342, %v8275, %v8276
    %v8278 = vrot.slane %v8259, 7
    %v8279 = vsel %vm342, %v8276, %v8278
    %v8280 = vrot.slane %v8260, 7
    %v8281 = vsel %vm342, %v8278, %v8280
    %v8282 = vrot.slane %v8261, 7
    %v8283 = vsel %vm342, %v8280, %v8282
    %v8284 = vrot.slane %v8262, 7
    %v8285 = vsel %vm342, %v8282, %v8284
    %v8286 = vrot.slane %v8263, 7
    %v8287 = vsel %vm342, %v8284, %v8286
    %v8288 = vsel %vm342, %v8286, %v8266
    %v8297 = vsel %vm342, %v8266, %v8275
    %v8298 = vmul.f32 %v8297, %v276
    %v8299 = vmul.f32 %v8277, %v277
    %v8300 = vmul.f32 %v8279, %v278
    %v8301 = vmul.f32 %v8281, %v279
    %v8302 = vmul.f32 %v8283, %v280
    %v8303 = vmul.f32 %v8285, %v281
    %v8304 = vmul.f32 %v8287, %v282
    %v8305 = vmul.f32 %v8288, %v283
    %v8306 = vrot.slane %v8257, 1
    %v8307 = vrot.slane %v8258, 1
    %v8308 = vsel %vm406, %v8306, %v8307
    %v8309 = vrot.slane %v8259, 1
    %v8310 = vsel %vm406, %v8307, %v8309
    %v8311 = vrot.slane %v8260, 1
    %v8312 = vsel %vm406, %v8309, %v8311
    %v8313 = vrot.slane %v8261, 1
    %v8314 = vsel %vm406, %v8311, %v8313
    %v8315 = vrot.slane %v8262, 1
    %v8316 = vsel %vm406, %v8313, %v8315
    %v8317 = vrot.slane %v8263, 1
    %v8318 = vsel %vm406, %v8315, %v8317
    %v8319 = vrot.slane %v8264, 1
    %v8320 = vsel %vm406, %v8317, %v8319
    %v8330 = vsel %vm406, %v8319, %v8306
    %v8331 = vmul.f32 %v8308, %v300
    %v8332 = vmul.f32 %v8310, %v301
    %v8333 = vmul.f32 %v8312, %v302
    %v8334 = vmul.f32 %v8314, %v303
    %v8335 = vmul.f32 %v8316, %v304
    %v8336 = vmul.f32 %v8318, %v305
    %v8337 = vmul.f32 %v8320, %v306
    %v8338 = vmul.f32 %v8330, %v307
    %v8339 = vpack.c.bf16 %v8258, %v8257
    %v8340 = vpack.c.bf16 %v8260, %v8259
    %v8341 = vpack.c.bf16 %v8262, %v8261
    %v8342 = vpack.c.bf16 %v8264, %v8263
    %v8343 = vpack.c.bf16 %v8299, %v8298
    %v8344 = vpack.c.bf16 %v8301, %v8300
    %v8345 = vpack.c.bf16 %v8303, %v8302
    %v8346 = vpack.c.bf16 %v8305, %v8304
    %v8348 = vsel %vm5761, %v8343, 0
    %v8351 = vsel %vm5761, %v8344, 0
    %v8354 = vsel %vm5761, %v8345, 0
    %v8357 = vsel %vm5761, %v8346, 0
    %8359 = vmatprep.subr.bf16.mxu0 0
    %8360 = vmatpush1.bf16.msra.mxu0 %v6198
    %8361 = vmatprep.subr.bf16.mxu0 0
    %8362 = vmatpush1.bf16.msra.mxu0 %v6199
    %8363 = vmatprep.subr.bf16.mxu0 0
    %8364 = vmatpush1.bf16.msra.mxu0 %v6200
    %8365 = vmatprep.subr.bf16.mxu0 0
    %8366 = vmatpush1.bf16.msra.mxu0 %v6201
    %8367 = vmatprep.subr.bf16.mxu0 0
    %8368 = vmatpush1.bf16.msra.mxu0 0
    %8369 = vmatprep.subr.bf16.mxu0 0
    %8370 = vmatpush1.bf16.msra.mxu0 0
    %8371 = vmatprep.subr.bf16.mxu0 0
    %8372 = vmatpush1.bf16.msra.mxu0 0
    %8373 = vmatprep.subr.bf16.mxu0 0
    %8374 = vmatpush1.bf16.msra.mxu0 0
    %8375 = vmatprep.subr.bf16.mxu0 0
    %8376 = vmatpush1.bf16.msra.mxu0 0
    %8377 = vmatprep.subr.bf16.mxu0 0
    %8378 = vmatpush1.bf16.msra.mxu0 0
    %8379 = vmatprep.subr.bf16.mxu0 0
    %8380 = vmatpush1.bf16.msra.mxu0 0
    %8381 = vmatprep.subr.bf16.mxu0 0
    %8382 = vmatpush1.bf16.msra.mxu0 0
    %8383 = vmatprep.subr.bf16.mxu0 0
    %8384 = vmatpush1.bf16.msra.mxu0 0
    %8385 = vmatprep.subr.bf16.mxu0 0
    %8386 = vmatpush1.bf16.msra.mxu0 0
    %8387 = vmatprep.subr.bf16.mxu0 0
    %8388 = vmatpush1.bf16.msra.mxu0 0
    %8389 = vmatprep.subr.bf16.mxu0 0
    %8390 = vmatpush1.bf16.msra.mxu0 0
    %8391 = vmatprep.mubr.bf16.mxu0 0
    %8392 = vmatmul.mubr.bf16.gmra.mrb[0].mxu0 %v8348
    %v8393 = vpop.f32.mrb[0].mxu0
    %v8394 = vadd.f32 0.0, %v8393
    %v8395 = vpop.f32.mrb[0].mxu0
    %v8396 = vpop.f32.mrb[0].mxu0
    %v8397 = vadd.f32 0.0, %v8396
    %v8398 = vpop.f32.mrb[0].mxu0
    %8399 = vmatprep.mubr.bf16.mxu0 0
    %8400 = vmatmul.mubr.bf16.gmra.mrb[0].mxu0 %v8351
    %v8401 = vpop.f32.mrb[0].mxu0
    %v8402 = vadd.f32 0.0, %v8401
    %v8403 = vpop.f32.mrb[0].mxu0
    %v8404 = vpop.f32.mrb[0].mxu0
    %v8405 = vadd.f32 0.0, %v8404
    %v8406 = vpop.f32.mrb[0].mxu0
    %8407 = vmatprep.mubr.bf16.mxu0 0
    %8408 = vmatmul.mubr.bf16.gmra.mrb[0].mxu0 %v8354
    %v8409 = vpop.f32.mrb[0].mxu0
    %v8410 = vadd.f32 0.0, %v8409
    %v8411 = vpop.f32.mrb[0].mxu0
    %v8412 = vpop.f32.mrb[0].mxu0
    %v8413 = vadd.f32 0.0, %v8412
    %v8414 = vpop.f32.mrb[0].mxu0
    %8415 = vmatprep.mubr.bf16.mxu0 0
    %8416 = vmatmul.mubr.bf16.gmra.mrb[0].mxu0 %v8357
    %v8417 = vpop.f32.mrb[0].mxu0
    %v8418 = vadd.f32 0.0, %v8417
    %v8419 = vpop.f32.mrb[0].mxu0
    %v8420 = vpop.f32.mrb[0].mxu0
    %v8421 = vadd.f32 0.0, %v8420
    %v8422 = vpop.f32.mrb[0].mxu0
    %8423 = vdwg.mxu0
    %v8425 = vsel %vm5761, %v8339, 0
    %v8428 = vsel %vm5761, %v8340, 0
    %v8431 = vsel %vm5761, %v8341, 0
    %v8434 = vsel %vm5761, %v8342, 0
    %8436 = vmatprep.subr.bf16.mxu0 0
    %8437 = vmatpush1.bf16.msra.mxu0 %v6299
    %8438 = vmatprep.subr.bf16.mxu0 0
    %8439 = vmatpush1.bf16.msra.mxu0 %v6300
    %8440 = vmatprep.subr.bf16.mxu0 0
    %8441 = vmatpush1.bf16.msra.mxu0 %v6301
    %8442 = vmatprep.subr.bf16.mxu0 0
    %8443 = vmatpush1.bf16.msra.mxu0 %v6302
    %8444 = vmatprep.subr.bf16.mxu0 0
    %8445 = vmatpush1.bf16.msra.mxu0 0
    %8446 = vmatprep.subr.bf16.mxu0 0
    %8447 = vmatpush1.bf16.msra.mxu0 0
    %8448 = vmatprep.subr.bf16.mxu0 0
    %8449 = vmatpush1.bf16.msra.mxu0 0
    %8450 = vmatprep.subr.bf16.mxu0 0
    %8451 = vmatpush1.bf16.msra.mxu0 0
    %8452 = vmatprep.subr.bf16.mxu0 0
    %8453 = vmatpush1.bf16.msra.mxu0 0
    %8454 = vmatprep.subr.bf16.mxu0 0
    %8455 = vmatpush1.bf16.msra.mxu0 0
    %8456 = vmatprep.subr.bf16.mxu0 0
    %8457 = vmatpush1.bf16.msra.mxu0 0
    %8458 = vmatprep.subr.bf16.mxu0 0
    %8459 = vmatpush1.bf16.msra.mxu0 0
    %8460 = vmatprep.subr.bf16.mxu0 0
    %8461 = vmatpush1.bf16.msra.mxu0 0
    %8462 = vmatprep.subr.bf16.mxu0 0
    %8463 = vmatpush1.bf16.msra.mxu0 0
    %8464 = vmatprep.subr.bf16.mxu0 0
    %8465 = vmatpush1.bf16.msra.mxu0 0
    %8466 = vmatprep.subr.bf16.mxu0 0
    %8467 = vmatpush1.bf16.msra.mxu0 0
    %8468 = vmatprep.mubr.bf16.mxu0 0
    %8469 = vmatmul.mubr.bf16.gmra.mrb[0].mxu0 %v8425
    %v8470 = vpop.f32.mrb[0].mxu0
    %v8471 = vadd.f32 %v8394, %v8470
    %v8472 = vpop.f32.mrb[0].mxu0
    %v8473 = vpop.f32.mrb[0].mxu0
    %v8474 = vadd.f32 %v8397, %v8473
    %v8475 = vpop.f32.mrb[0].mxu0
    %8476 = vmatprep.mubr.bf16.mxu0 0
    %8477 = vmatmul.mubr.bf16.gmra.mrb[0].mxu0 %v8428
    %v8478 = vpop.f32.mrb[0].mxu0
    %v8479 = vadd.f32 %v8402, %v8478
    %v8480 = vpop.f32.mrb[0].mxu0
    %v8481 = vpop.f32.mrb[0].mxu0
    %v8482 = vadd.f32 %v8405, %v8481
    %v8483 = vpop.f32.mrb[0].mxu0
    %8484 = vmatprep.mubr.bf16.mxu0 0
    %8485 = vmatmul.mubr.bf16.gmra.mrb[0].mxu0 %v8431
    %v8486 = vpop.f32.mrb[0].mxu0
    %v8487 = vadd.f32 %v8410, %v8486
    %v8488 = vpop.f32.mrb[0].mxu0
    %v8489 = vpop.f32.mrb[0].mxu0
    %v8490 = vadd.f32 %v8413, %v8489
    %v8491 = vpop.f32.mrb[0].mxu0
    %8492 = vmatprep.mubr.bf16.mxu0 0
    %8493 = vmatmul.mubr.bf16.gmra.mrb[0].mxu0 %v8434
    %v8494 = vpop.f32.mrb[0].mxu0
    %v8495 = vadd.f32 %v8418, %v8494
    %v8496 = vpop.f32.mrb[0].mxu0
    %v8497 = vpop.f32.mrb[0].mxu0
    %v8498 = vadd.f32 %v8421, %v8497
    %v8499 = vpop.f32.mrb[0].mxu0
    %8500 = vdwg.mxu0
    %v8501 = vpack.c.bf16 %v8332, %v8331
    %v8502 = vpack.c.bf16 %v8334, %v8333
    %v8503 = vpack.c.bf16 %v8336, %v8335
    %v8504 = vpack.c.bf16 %v8338, %v8337
    %v8506 = vsel %vm5761, %v8501, 0
    %v8509 = vsel %vm5761, %v8502, 0
    %v8512 = vsel %vm5761, %v8503, 0
    %v8515 = vsel %vm5761, %v8504, 0
    %8517 = vmatprep.subr.bf16.mxu0 0
    %8518 = vmatpush1.bf16.msra.mxu0 %v6412
    %8519 = vmatprep.subr.bf16.mxu0 0
    %8520 = vmatpush1.bf16.msra.mxu0 %v6413
    %8521 = vmatprep.subr.bf16.mxu0 0
    %8522 = vmatpush1.bf16.msra.mxu0 %v6414
    %8523 = vmatprep.subr.bf16.mxu0 0
    %8524 = vmatpush1.bf16.msra.mxu0 %v6415
    %8525 = vmatprep.subr.bf16.mxu0 0
    %8526 = vmatpush1.bf16.msra.mxu0 0
    %8527 = vmatprep.subr.bf16.mxu0 0
    %8528 = vmatpush1.bf16.msra.mxu0 0
    %8529 = vmatprep.subr.bf16.mxu0 0
    %8530 = vmatpush1.bf16.msra.mxu0 0
    %8531 = vmatprep.subr.bf16.mxu0 0
    %8532 = vmatpush1.bf16.msra.mxu0 0
    %8533 = vmatprep.subr.bf16.mxu0 0
    %8534 = vmatpush1.bf16.msra.mxu0 0
    %8535 = vmatprep.subr.bf16.mxu0 0
    %8536 = vmatpush1.bf16.msra.mxu0 0
    %8537 = vmatprep.subr.bf16.mxu0 0
    %8538 = vmatpush1.bf16.msra.mxu0 0
    %8539 = vmatprep.subr.bf16.mxu0 0
    %8540 = vmatpush1.bf16.msra.mxu0 0
    %8541 = vmatprep.subr.bf16.mxu0 0
    %8542 = vmatpush1.bf16.msra.mxu0 0
    %8543 = vmatprep.subr.bf16.mxu0 0
    %8544 = vmatpush1.bf16.msra.mxu0 0
    %8545 = vmatprep.subr.bf16.mxu0 0
    %8546 = vmatpush1.bf16.msra.mxu0 0
    %8547 = vmatprep.subr.bf16.mxu0 0
    %8548 = vmatpush1.bf16.msra.mxu0 0
    %8549 = vmatprep.mubr.bf16.mxu0 0
    %8550 = vmatmul.mubr.bf16.gmra.mrb[0].mxu0 %v8506
    %v8551 = vpop.f32.mrb[0].mxu0
    %v8552 = vadd.f32 0.0, %v8551
    %v8553 = vpop.f32.mrb[0].mxu0
    %v8554 = vpop.f32.mrb[0].mxu0
    %v8555 = vadd.f32 0.0, %v8554
    %v8556 = vpop.f32.mrb[0].mxu0
    %8557 = vmatprep.mubr.bf16.mxu0 0
    %8558 = vmatmul.mubr.bf16.gmra.mrb[0].mxu0 %v8509
    %v8559 = vpop.f32.mrb[0].mxu0
    %v8560 = vadd.f32 0.0, %v8559
    %v8561 = vpop.f32.mrb[0].mxu0
    %v8562 = vpop.f32.mrb[0].mxu0
    %v8563 = vadd.f32 0.0, %v8562
    %v8564 = vpop.f32.mrb[0].mxu0
    %8565 = vmatprep.mubr.bf16.mxu0 0
    %8566 = vmatmul.mubr.bf16.gmra.mrb[0].mxu0 %v8512
    %v8567 = vpop.f32.mrb[0].mxu0
    %v8568 = vadd.f32 0.0, %v8567
    %v8569 = vpop.f32.mrb[0].mxu0
    %v8570 = vpop.f32.mrb[0].mxu0
    %v8571 = vadd.f32 0.0, %v8570
    %v8572 = vpop.f32.mrb[0].mxu0
    %8573 = vmatprep.mubr.bf16.mxu0 0
    %8574 = vmatmul.mubr.bf16.gmra.mrb[0].mxu0 %v8515
    %v8575 = vpop.f32.mrb[0].mxu0
    %v8576 = vadd.f32 0.0, %v8575
    %v8577 = vpop.f32.mrb[0].mxu0
    %v8578 = vpop.f32.mrb[0].mxu0
    %v8579 = vadd.f32 0.0, %v8578
    %v8580 = vpop.f32.mrb[0].mxu0
    %8581 = vdwg.mxu0
    %v8582 = vadd.f32 %v8471, %v8552
    %v8583 = vadd.f32 %v8474, %v8555
    %v8584 = vadd.f32 %v8479, %v8560
    %v8585 = vadd.f32 %v8482, %v8563
    %v8586 = vadd.f32 %v8487, %v8568
    %v8587 = vadd.f32 %v8490, %v8571
    %v8588 = vadd.f32 %v8495, %v8576
    %v8589 = vadd.f32 %v8498, %v8579
    %v8590 = vadd.f32 %v8582, %v6510
    %v8591 = vadd.f32 %v8583, %v6510
    %v8592 = vadd.f32 %v8584, %v6510
    %v8593 = vadd.f32 %v8585, %v6510
    %v8594 = vadd.f32 %v8586, %v6510
    %v8595 = vadd.f32 %v8587, %v6510
    %v8596 = vadd.f32 %v8588, %v6510
    %v8597 = vadd.f32 %v8589, %v6510
    %v8598 = vadd.f32 %v7202, %v7892
    %v8599 = vadd.f32 %v7203, %v7893
    %v8600 = vadd.f32 %v7204, %v7894
    %v8601 = vadd.f32 %v7205, %v7895
    %v8602 = vadd.f32 %v7206, %v7896
    %v8603 = vadd.f32 %v7207, %v7897
    %v8604 = vadd.f32 %v7208, %v7898
    %v8605 = vadd.f32 %v7209, %v7899
    %v8606 = vmul.f32 %v8598, 3.0
    %v8607 = vmul.f32 %v8599, 3.0
    %v8608 = vmul.f32 %v8600, 3.0
    %v8609 = vmul.f32 %v8601, 3.0
    %v8610 = vmul.f32 %v8602, 3.0
    %v8611 = vmul.f32 %v8603, 3.0
    %v8612 = vmul.f32 %v8604, 3.0
    %v8613 = vmul.f32 %v8605, 3.0
    %v8614 = vadd.f32 %v6512, %v8606
    %v8615 = vadd.f32 %v6513, %v8607
    %v8616 = vadd.f32 %v6514, %v8608
    %v8617 = vadd.f32 %v6515, %v8609
    %v8618 = vadd.f32 %v6516, %v8610
    %v8619 = vadd.f32 %v6517, %v8611
    %v8620 = vadd.f32 %v6518, %v8612
    %v8621 = vadd.f32 %v6519, %v8613
    %v8622 = vadd.f32 %v8614, %v8590
    %v8623 = vadd.f32 %v8615, %v8591
    %v8624 = vadd.f32 %v8616, %v8592
    %v8625 = vadd.f32 %v8617, %v8593
    %v8626 = vadd.f32 %v8618, %v8594
    %v8627 = vadd.f32 %v8619, %v8595
    %v8628 = vadd.f32 %v8620, %v8596
    %v8629 = vadd.f32 %v8621, %v8597
    %v8630 = vmul.f32 %v8622, 0.125
    %v8631 = vmul.f32 %v8623, 0.125
    %v8632 = vmul.f32 %v8624, 0.125
    %v8633 = vmul.f32 %v8625, 0.125
    %v8634 = vmul.f32 %v8626, 0.125
    %v8635 = vmul.f32 %v8627, 0.125
    %v8636 = vmul.f32 %v8628, 0.125
    %v8637 = vmul.f32 %v8629, 0.125
    %v8638 = vadd.f32 %v5631, %v8630
    %v8639 = vadd.f32 %v5632, %v8631
    %v8640 = vadd.f32 %v5633, %v8632
    %v8641 = vadd.f32 %v5634, %v8633
    %v8642 = vadd.f32 %v5635, %v8634
    %v8643 = vadd.f32 %v5636, %v8635
    %v8644 = vadd.f32 %v5637, %v8636
    %v8645 = vadd.f32 %v5638, %v8637
    %v8654 = vrot.slane %v8638, 1
    %v8655 = vrot.slane %v8639, 1
    %v8656 = vsel %vm406, %v8654, %v8655
    %v8657 = vrot.slane %v8640, 1
    %v8658 = vsel %vm406, %v8655, %v8657
    %v8659 = vrot.slane %v8641, 1
    %v8660 = vsel %vm406, %v8657, %v8659
    %v8661 = vrot.slane %v8642, 1
    %v8662 = vsel %vm406, %v8659, %v8661
    %v8663 = vrot.slane %v8643, 1
    %v8664 = vsel %vm406, %v8661, %v8663
    %v8665 = vrot.slane %v8644, 1
    %v8666 = vsel %vm406, %v8663, %v8665
    %v8667 = vrot.slane %v8645, 1
    %v8668 = vsel %vm406, %v8665, %v8667
    %v8678 = vsel %vm406, %v8667, %v8654
    %v8679 = vmax.f32 %v8638, %v8656
    %v8680 = vmax.f32 %v8639, %v8658
    %v8681 = vmax.f32 %v8640, %v8660
    %v8682 = vmax.f32 %v8641, %v8662
    %v8683 = vmax.f32 %v8642, %v8664
    %v8684 = vmax.f32 %v8643, %v8666
    %v8685 = vmax.f32 %v8644, %v8668
    %v8686 = vmax.f32 %v8645, %v8678
    %8687 = vst.msk [vmem:[#allocation3] sm:$0xff] %vm5761, %v8679
    %8688 = vst.msk [vmem:[#allocation3 + $0x8] sm:$0xff] %vm5761, %v8680
    %8689 = vst.msk [vmem:[#allocation3 + $0x10] sm:$0xff] %vm5761, %v8681
    %8690 = vst.msk [vmem:[#allocation3 + $0x18] sm:$0xff] %vm5761, %v8682
    %8691 = vst.msk [vmem:[#allocation3 + $0x20] sm:$0xff] %vm5761, %v8683
    %8692 = vst.msk [vmem:[#allocation3 + $0x28] sm:$0xff] %vm5761, %v8684
    %8693 = vst.msk [vmem:[#allocation3 + $0x30] sm:$0xff] %vm5761, %v8685
    %8694 = vst.msk [vmem:[#allocation3 + $0x38] sm:$0xff] %vm5761, %v8686
    %v8695 = vld [vmem:[#allocation3] ss:$8 sm:$0xf]
    %v8696 = vld [vmem:[#allocation3] ss:$8 sm:$0xf0]
    %v8697 = vor.u32 %v8695, %v8696
    %s8698 = scalar_lea.vmem [#allocation3], 2
    %v8699 = vld [vmem:[%s8698] ss:$8 sm:$0xf]
    %v8700 = vld [vmem:[%s8698] ss:$8 sm:$0xf0]
    %v8701 = vor.u32 %v8699, %v8700
    %s8702 = scalar_lea.vmem [#allocation3], 4
    %v8703 = vld [vmem:[%s8702] ss:$8 sm:$0xf]
    %v8704 = vld [vmem:[%s8702] ss:$8 sm:$0xf0]
    %v8705 = vor.u32 %v8703, %v8704
    %s8706 = scalar_lea.vmem [#allocation3], 6
    %v8707 = vld [vmem:[%s8706] ss:$8 sm:$0xf]
    %v8708 = vld [vmem:[%s8706] ss:$8 sm:$0xf0]
    %v8709 = vor.u32 %v8707, %v8708
    %8711 = vrot.lane.b32.xlu0 %v8701, 64
    %v8712 = vpop.permute.xlu0 %8711
    %8715 = vrot.lane.b32.xlu0 %v8709, 64
    %v8716 = vpop.permute.xlu0 %8715
    %v8718 = vsel %vm5761, %v8697, %v8712
    %v8719 = vsel %vm5761, %v8705, %v8716
    %v8720 = vpack.c.bf16 %v8718, %v8718
    %v8721 = vpack.c.bf16 %v8719, %v8719
    %v8722 = vld [vmem:[%s21] sm:$0xf]
    %v8723 = vld [vmem:[%s21 + $0x4] sm:$0xf]
    %v8724 = vld [vmem:[%s21 + $0x8] sm:$0xf]
    %v8725 = vld [vmem:[%s21 + $0xc] sm:$0xf]
    %v8726 = vld [vmem:[%s21 + $0x10] sm:$0xf]
    %v8727 = vld [vmem:[%s21 + $0x14] sm:$0xf]
    %v8728 = vld [vmem:[%s21 + $0x18] sm:$0xf]
    %v8729 = vld [vmem:[%s21 + $0x1c] sm:$0xf]
    %v8730 = vld [vmem:[%s21 + $0x20] sm:$0xf]
    %v8731 = vld [vmem:[%s21 + $0x24] sm:$0xf]
    %v8732 = vld [vmem:[%s21 + $0x28] sm:$0xf]
    %v8733 = vld [vmem:[%s21 + $0x2c] sm:$0xf]
    %v8734 = vld [vmem:[%s21 + $0x30] sm:$0xf]
    %v8735 = vld [vmem:[%s21 + $0x34] sm:$0xf]
    %v8736 = vld [vmem:[%s21 + $0x38] sm:$0xf]
    %v8737 = vld [vmem:[%s21 + $0x3c] sm:$0xf]
    %v8738 = vld [vmem:[%s21 + $0x40] sm:$0xf]
    %v8739 = vld [vmem:[%s21 + $0x44] sm:$0xf]
    %v8740 = vld [vmem:[%s21 + $0x48] sm:$0xf]
    %v8741 = vld [vmem:[%s21 + $0x4c] sm:$0xf]
    %v8742 = vld [vmem:[%s21 + $0x50] sm:$0xf]
    %v8743 = vld [vmem:[%s21 + $0x54] sm:$0xf]
    %v8744 = vld [vmem:[%s21 + $0x58] sm:$0xf]
    %v8745 = vld [vmem:[%s21 + $0x5c] sm:$0xf]
    %v8746 = vld [vmem:[%s21 + $0x60] sm:$0xf]
    %v8747 = vld [vmem:[%s21 + $0x64] sm:$0xf]
    %v8748 = vld [vmem:[%s21 + $0x68] sm:$0xf]
    %v8749 = vld [vmem:[%s21 + $0x6c] sm:$0xf]
    %v8750 = vld [vmem:[%s21 + $0x70] sm:$0xf]
    %v8751 = vld [vmem:[%s21 + $0x74] sm:$0xf]
    %v8752 = vld [vmem:[%s21 + $0x78] sm:$0xf]
    %v8753 = vld [vmem:[%s21 + $0x7c] sm:$0xf]
    %v8754 = vld [vmem:[%s22] sm:$0x1]
    %v8756 = vlaneseq
    %v8757 = vshrl.u32 %v8756, 7
    %v8758 = vsub.s32 0, %v8757
    %v8759 = vrot.slane %v8754, %v8758
    %v8793 = vunpack.c.l.b16 %v8722
    %v8794 = vunpack.c.l.b16 %v8723
    %v8795 = vunpack.c.l.b16 %v8724
    %v8796 = vunpack.c.l.b16 %v8725
    %v8797 = vunpack.c.l.b16 %v8726
    %v8798 = vunpack.c.l.b16 %v8727
    %v8799 = vunpack.c.l.b16 %v8728
    %v8800 = vunpack.c.l.b16 %v8729
    %v8801 = vunpack.c.l.b16 %v8730
    %v8802 = vunpack.c.l.b16 %v8731
    %v8803 = vunpack.c.l.b16 %v8732
    %v8804 = vunpack.c.l.b16 %v8733
    %v8805 = vunpack.c.l.b16 %v8734
    %v8806 = vunpack.c.l.b16 %v8735
    %v8807 = vunpack.c.l.b16 %v8736
    %v8808 = vunpack.c.l.b16 %v8737
    %v8809 = vunpack.c.l.b16 %v8738
    %v8810 = vunpack.c.l.b16 %v8739
    %v8811 = vunpack.c.l.b16 %v8740
    %v8812 = vunpack.c.l.b16 %v8741
    %v8813 = vunpack.c.l.b16 %v8742
    %v8814 = vunpack.c.l.b16 %v8743
    %v8815 = vunpack.c.l.b16 %v8744
    %v8816 = vunpack.c.l.b16 %v8745
    %v8817 = vunpack.c.l.b16 %v8746
    %v8818 = vunpack.c.l.b16 %v8747
    %v8819 = vunpack.c.l.b16 %v8748
    %v8820 = vunpack.c.l.b16 %v8749
    %v8821 = vunpack.c.l.b16 %v8750
    %v8822 = vunpack.c.l.b16 %v8751
    %v8823 = vunpack.c.l.b16 %v8752
    %v8824 = vunpack.c.l.b16 %v8753
    %v8825 = vpack.c.b16 %v8794, %v8793
    %v8826 = vpack.c.b16 %v8796, %v8795
    %v8827 = vpack.c.b16 %v8798, %v8797
    %v8828 = vpack.c.b16 %v8800, %v8799
    %v8829 = vpack.c.b16 %v8802, %v8801
    %v8830 = vpack.c.b16 %v8804, %v8803
    %v8831 = vpack.c.b16 %v8806, %v8805
    %v8832 = vpack.c.b16 %v8808, %v8807
    %v8833 = vpack.c.b16 %v8810, %v8809
    %v8834 = vpack.c.b16 %v8812, %v8811
    %v8835 = vpack.c.b16 %v8814, %v8813
    %v8836 = vpack.c.b16 %v8816, %v8815
    %v8837 = vpack.c.b16 %v8818, %v8817
    %v8838 = vpack.c.b16 %v8820, %v8819
    %v8839 = vpack.c.b16 %v8822, %v8821
    %v8840 = vpack.c.b16 %v8824, %v8823
    %8857 = vmatprep.subr.bf16.mxu0 0
    %8858 = vmatpush1.bf16.msra.mxu0 %v8825
    %8859 = vmatprep.subr.bf16.mxu0 0
    %8860 = vmatpush1.bf16.msra.mxu0 %v8826
    %8861 = vmatprep.subr.bf16.mxu0 0
    %8862 = vmatpush1.bf16.msra.mxu0 %v8827
    %8863 = vmatprep.subr.bf16.mxu0 0
    %8864 = vmatpush1.bf16.msra.mxu0 %v8828
    %8865 = vmatprep.subr.bf16.mxu0 0
    %8866 = vmatpush1.bf16.msra.mxu0 %v8829
    %8867 = vmatprep.subr.bf16.mxu0 0
    %8868 = vmatpush1.bf16.msra.mxu0 %v8830
    %8869 = vmatprep.subr.bf16.mxu0 0
    %8870 = vmatpush1.bf16.msra.mxu0 %v8831
    %8871 = vmatprep.subr.bf16.mxu0 0
    %8872 = vmatpush1.bf16.msra.mxu0 %v8832
    %8873 = vmatprep.subr.bf16.mxu0 0
    %8874 = vmatpush1.bf16.msra.mxu0 %v8833
    %8875 = vmatprep.subr.bf16.mxu0 0
    %8876 = vmatpush1.bf16.msra.mxu0 %v8834
    %8877 = vmatprep.subr.bf16.mxu0 0
    %8878 = vmatpush1.bf16.msra.mxu0 %v8835
    %8879 = vmatprep.subr.bf16.mxu0 0
    %8880 = vmatpush1.bf16.msra.mxu0 %v8836
    %8881 = vmatprep.subr.bf16.mxu0 0
    %8882 = vmatpush1.bf16.msra.mxu0 %v8837
    %8883 = vmatprep.subr.bf16.mxu0 0
    %8884 = vmatpush1.bf16.msra.mxu0 %v8838
    %8885 = vmatprep.subr.bf16.mxu0 0
    %8886 = vmatpush1.bf16.msra.mxu0 %v8839
    %8887 = vmatprep.subr.bf16.mxu0 0
    %8888 = vmatpush1.bf16.msra.mxu0 %v8840
    %8889 = vmatprep.mubr.bf16.mxu0 %v8721
    %8890 = vmatmul.mubr.bf16.gmra.mrb[0].mxu0 %v8720
    %v8891 = vpop.f32.mrb[0].mxu0
    %v8892 = vadd.f32 %v8759, %v8891
    %v8893 = vpop.f32.mrb[0].mxu0
    %v8894 = vpop.f32.mrb[0].mxu0
    %v8895 = vpop.f32.mrb[0].mxu0
    %8896 = vdwg.mxu0
    %v8897 = vmax.f32 %v8892, 0.0
    %v8898 = vpack.c.bf16 %v8897, %v8897
    %v8899 = vld [vmem:[%s23] sm:$0xf]
    %v8900 = vld [vmem:[%s23 + $0x4] sm:$0xf]
    %v8901 = vld [vmem:[%s23 + $0x8] sm:$0xf]
    %v8902 = vld [vmem:[%s23 + $0xc] sm:$0xf]
    %v8903 = vld [vmem:[%s23 + $0x10] sm:$0xf]
    %v8904 = vld [vmem:[%s23 + $0x14] sm:$0xf]
    %v8905 = vld [vmem:[%s23 + $0x18] sm:$0xf]
    %v8906 = vld [vmem:[%s23 + $0x1c] sm:$0xf]
    %v8907 = vld [vmem:[%s24] sm:$0x1]
    %v8909 = vlaneseq
    %v8910 = vshrl.u32 %v8909, 7
    %v8911 = vsub.s32 0, %v8910
    %v8912 = vrot.slane %v8907, %v8911
    %v8922 = vunpack.c.l.b16 %v8899
    %v8923 = vunpack.c.l.b16 %v8900
    %v8924 = vunpack.c.l.b16 %v8901
    %v8925 = vunpack.c.l.b16 %v8902
    %v8926 = vunpack.c.l.b16 %v8903
    %v8927 = vunpack.c.l.b16 %v8904
    %v8928 = vunpack.c.l.b16 %v8905
    %v8929 = vunpack.c.l.b16 %v8906
    %v8930 = vpack.c.b16 %v8923, %v8922
    %v8931 = vpack.c.b16 %v8925, %v8924
    %v8932 = vpack.c.b16 %v8927, %v8926
    %v8933 = vpack.c.b16 %v8929, %v8928
    %v8939 = vsel %vm5761, %v8898, 0
    %8941 = vmatprep.subr.bf16.mxu0 0
    %8942 = vmatpush1.bf16.msra.mxu0 %v8930
    %8943 = vmatprep.subr.bf16.mxu0 0
    %8944 = vmatpush1.bf16.msra.mxu0 %v8931
    %8945 = vmatprep.subr.bf16.mxu0 0
    %8946 = vmatpush1.bf16.msra.mxu0 %v8932
    %8947 = vmatprep.subr.bf16.mxu0 0
    %8948 = vmatpush1.bf16.msra.mxu0 %v8933
    %8949 = vmatprep.subr.bf16.mxu0 0
    %8950 = vmatpush1.bf16.msra.mxu0 0
    %8951 = vmatprep.subr.bf16.mxu0 0
    %8952 = vmatpush1.bf16.msra.mxu0 0
    %8953 = vmatprep.subr.bf16.mxu0 0
    %8954 = vmatpush1.bf16.msra.mxu0 0
    %8955 = vmatprep.subr.bf16.mxu0 0
    %8956 = vmatpush1.bf16.msra.mxu0 0
    %8957 = vmatprep.subr.bf16.mxu0 0
    %8958 = vmatpush1.bf16.msra.mxu0 0
    %8959 = vmatprep.subr.bf16.mxu0 0
    %8960 = vmatpush1.bf16.msra.mxu0 0
    %8961 = vmatprep.subr.bf16.mxu0 0
    %8962 = vmatpush1.bf16.msra.mxu0 0
    %8963 = vmatprep.subr.bf16.mxu0 0
    %8964 = vmatpush1.bf16.msra.mxu0 0
    %8965 = vmatprep.subr.bf16.mxu0 0
    %8966 = vmatpush1.bf16.msra.mxu0 0
    %8967 = vmatprep.subr.bf16.mxu0 0
    %8968 = vmatpush1.bf16.msra.mxu0 0
    %8969 = vmatprep.subr.bf16.mxu0 0
    %8970 = vmatpush1.bf16.msra.mxu0 0
    %8971 = vmatprep.subr.bf16.mxu0 0
    %8972 = vmatpush1.bf16.msra.mxu0 0
    %8973 = vmatprep.mubr.bf16.mxu0 0
    %8974 = vmatmul.mubr.bf16.gmra.mrb[0].mxu0 %v8939
    %v8975 = vpop.f32.mrb[0].mxu0
    %v8976 = vadd.f32 %v8912, %v8975
    %v8977 = vpop.f32.mrb[0].mxu0
    %v8978 = vpop.f32.mrb[0].mxu0
    %v8979 = vpop.f32.mrb[0].mxu0
    %8980 = vdwg.mxu0
    %8981 = vst [vmem:[#allocation10] sm:$0xff] %v8976
    // Predicated region
    $region114: #{tpu_custom_call.1} parent=1 // pred_check
      _
    $region115: #{tpu_custom_call.1} parent=1 // pred_check_branch
      %8983 = sbr.rel (0) target = $region117
    $region116: #{tpu_custom_call.1} parent=1 // pred_region
      %s8985 = ssub.s32 128, 128
      %8986 = vsyncadd [#allocation6], %s8985
      %s8988 = sshll.u32 [#allocation10], 4
      %s8989 = int_to_ptr.vmem [resolvable:$true] %s8988
      %8991 = dma.vmem_to_hbm [thread:$0]  %s8989, 128, %s25, [#allocation6]
    $region117: #{tpu_custom_call.1} parent=1 // pred_fallthru
      _
    // Predicated region
    $region118: #{tpu_custom_call.1} parent=1 // pred_check
      _
    $region119: #{tpu_custom_call.1} parent=1 // pred_check_branch
      %8993 = sbr.rel (0) target = $region121
    $region120: #{tpu_custom_call.1} parent=1 // pred_region
      %8994 = dma.done [#allocation6], 128
    $region121: #{tpu_custom_call.1} parent=1 // pred_fallthru
      _
    %8995 = vsyncpa [#allocation5], 1
    %8996 = vsyncpa [#allocation8], 1
    %8997 = vsyncpa [#allocation6], 1

</llo_original>
